<compile_context>
chip_gen: v6e
topology: v6e:2x2x1
jax: 0.10.0
libtpu: 0.0.40
codegen_flags: <defaults>
</compile_context>

<pallas_src>
import jax
import jax.numpy as jnp
from jax.experimental import pallas as pl
from jax.experimental.pallas import tpu as pltpu

HIDDEN_SIZE = 128
INPUT_SIZE = 59
SEQ_ITEMS = 10          # items per trajectory
GEO_DIM = 12            # region(8) + poi(4)
EMB_DIM = 27            # car(16) + week(3) + time(8)
CONV_K = 3
CONV_OUT = 32           # INPUT_SIZE - EMB_DIM
T_LSTM = SEQ_ITEMS - CONV_K + 1   # 8
LABEL_SIZE = 10
OUT_PAD = 128           # lane-padded output width
MAX_B_TILE = 64         # batch tile cap (sweepable; 64 fits v5e's 16 MiB VMEM)
N_CAR, N_REGION, N_POI, N_WEEK, N_TIME = 50, 100, 20, 7, 1440


def _sigm(x):
    # sigmoid(x) = 0.5 * tanh(0.5 x) + 0.5  -> one EUP op, no divide
    return 0.5 * jnp.tanh(0.5 * x) + 0.5


# ---------------------------------------------------------------------------
# Fused forward kernel: GeoConv + emb-tanh + 2-layer bi-LSTM + final Linear
# Packed-weight layout (built in init_params):
#   wih0*: columns = [fwd: i f g o | bwd: i f g o], each gate block H wide
#   whh*f / whh*b: per-direction (H, 4H)
#   scratch gin0 / gin1f / x1 are time-major (T, B, C), bf16
# ---------------------------------------------------------------------------
def _fused_forward_kernel(wins_ref, emb_ref, cw_ref, cb_ref,
                          wih0c_ref, wih0e_ref, b0_ref,
                          whh0f_ref, whh0b_ref,
                          wih1f_ref, b1f_ref, wih1b_ref, b1b_ref,
                          whh1f_ref,
                          woutf_ref, woutb_ref, bout_ref,
                          out_ref,
                          gin0_ref, gin1f_ref, x1_ref):
    T = T_LSTM
    H = HIDDEN_SIZE
    B = emb_ref.shape[0]

    def bdot(a, w):  # bf16 MXU operands, f32 accumulation
        # NOTE: recurrent LHS (h) is rounded to bf16; keep it f32 here if a
        # tighter match to an f32 PyTorch reference is required.
        return jnp.dot(a.astype(jnp.bfloat16), w, preferred_element_type=jnp.float32)

    # ---- GeoConv: matmul + ELU on the pre-unfolded time-major slab ----------
    wins = wins_ref[...].reshape(T * B, CONV_K * GEO_DIM)           # free merge
    y = bdot(wins, cw_ref[...]) + cb_ref[...]                       # (T*B, 32)
    conv = jnp.where(y > 0.0, y, jnp.exp(jnp.minimum(y, 0.0)) - 1.0)  # ELU

    # ---- attribute-embedding branch -----------------------------------------
    emb = jnp.tanh(emb_ref[...])                                    # (B, 27)
    per_traj0 = bdot(emb, wih0e_ref[...]) + b0_ref[...]             # (B, 8H)

    # ---- layer-0 input projection: all timesteps, both directions, one matmul
    gin0 = bdot(conv, wih0c_ref[...]).reshape(T, B, 8 * H) + per_traj0[None]
    gin0_ref[...] = gin0.astype(jnp.bfloat16)                       # time-major

    def gate(g, c):
        # g: (B, 4H) f32 packed [i f g o]; c: (B, H) f32
        i = _sigm(g[:, :H])
        f = _sigm(g[:, H:2 * H])
        gg = jnp.tanh(g[:, 2 * H:3 * H])
        o = _sigm(g[:, 3 * H:])
        c_new = f * c + i * gg
        return o * jnp.tanh(c_new), c_new

    # ---- layer 0: fwd+bwd recurrences, per-direction matmuls, one loop ------
    whh0f = whh0f_ref[...]
    whh0b = whh0b_ref[...]
    z = jnp.zeros((B, H), jnp.float32)
    hf, cf, hb, cb = z, z, z, z
    for s in range(T):
        tf, tb = s, T - 1 - s
        gf = gin0_ref[tf, :, :4 * H].astype(jnp.float32) + bdot(hf, whh0f)
        hf, cf = gate(gf, cf)
        x1_ref[tf, :, :H] = hf.astype(jnp.bfloat16)      # fwd hidden @ time tf
        gb = gin0_ref[tb, :, 4 * H:].astype(jnp.float32) + bdot(hb, whh0b)
        hb, cb = gate(gb, cb)
        x1_ref[tb, :, H:] = hb.astype(jnp.bfloat16)      # bwd hidden @ time tb

    # ---- layer-1 forward input projection (all timesteps at once) -----------
    x1 = x1_ref[...].reshape(T * B, 2 * H)               # free merge (time-major)
    gin1f_ref[...] = (bdot(x1, wih1f_ref[...]) + b1f_ref[...]
                      ).reshape(T, B, 4 * H).astype(jnp.bfloat16)

    # ---- layer-1 forward recurrence ------------------------------------------
    whh1f = whh1f_ref[...]
    hf, cf = z, z
    for s in range(T):
        gf = gin1f_ref[s].astype(jnp.float32) + bdot(hf, whh1f)
        hf, cf = gate(gf, cf)

    # ---- layer-1 backward hidden at output time T-1 --------------------------
    # The backward direction starts from a zero state at t = T-1, so its
    # hidden there is a single gate pass with no recurrent matmul (0 @ Whh).
    gb = bdot(x1_ref[T - 1], wih1b_ref[...]) + b1b_ref[...]
    hb_last, _ = gate(gb, z)

    # ---- final Linear on r_out[:, -1, :] (lane-padded, per-direction W) -----
    out_ref[...] = (bdot(hf, woutf_ref[...]) + bdot(hb_last, woutb_ref[...])
                    + bout_ref[...])


def _const_spec(shape):
    zeros = (0,) * len(shape)
    return pl.BlockSpec(shape, lambda i: zeros)


def fused_forward(wins, emb, p, b_tile):
    """wins: (T, B_pad, 36) f32 time-major unfolded geo; emb: (B_pad, 27) f32."""
    B_pad = emb.shape[0]
    grid = (B_pad // b_tile,)
    weight_args = (p['conv_w'], p['conv_b'],
                   p['wih0c'], p['wih0e'], p['b0'],
                   p['whh0f'], p['whh0b'],
                   p['wih1f'], p['b1f'], p['wih1b'], p['b1b'],
                   p['whh1f'],
                   p['woutf'], p['woutb'], p['bout'])
    in_specs = ([pl.BlockSpec((T_LSTM, b_tile, CONV_K * GEO_DIM),
                              lambda i: (0, i, 0)),
                 pl.BlockSpec((b_tile, EMB_DIM), lambda i: (i, 0))]
                + [_const_spec(w.shape) for w in weight_args])
    out = pl.pallas_call(
        _fused_forward_kernel,
        out_shape=jax.ShapeDtypeStruct((B_pad, OUT_PAD), jnp.float32),
        grid=grid,
        in_specs=in_specs,
        out_specs=pl.BlockSpec((b_tile, OUT_PAD), lambda i: (i, 0)),
        scratch_shapes=[
            pltpu.VMEM((T_LSTM, b_tile, 8 * HIDDEN_SIZE), jnp.bfloat16),  # gin0
            pltpu.VMEM((T_LSTM, b_tile, 4 * HIDDEN_SIZE), jnp.bfloat16),  # gin1f
            pltpu.VMEM((T_LSTM, b_tile, 2 * HIDDEN_SIZE), jnp.bfloat16),  # x1
        ],
        # ~8 MiB peak per grid step at b_tile=64 -> default scoped VMEM is
        # enough on v5e/v6e/v7x; set vmem_limit_bytes if b_tile is raised.
        compiler_params=pltpu.CompilerParams(dimension_semantics=("parallel",)),
    )(wins, emb, *weight_args)
    return out


# ---------------------------------------------------------------------------
# Parameters (deterministic synthetic init, pre-packed for the kernel)
# ---------------------------------------------------------------------------
def init_params(key):
    H = HIDDEN_SIZE
    keys = jax.random.split(key, 32)
    ki = iter(keys)
    u = lambda k, shape, s: jax.random.uniform(k, shape, jnp.float32, -s, s)
    p = {}
    # embeddings (gathered in the JAX wrapper)
    p['car_embeds'] = jax.random.normal(next(ki), (N_CAR, 16), jnp.float32)
    p['region_embeds'] = jax.random.normal(next(ki), (N_REGION, 8), jnp.float32)
    p['poi_embeds'] = jax.random.normal(next(ki), (N_POI, 4), jnp.float32)
    p['week_embeds'] = jax.random.normal(next(ki), (N_WEEK, 3), jnp.float32)
    p['time_embeds'] = jax.random.normal(next(ki), (N_TIME, 8), jnp.float32)
    # GeoConv: torch Conv1d weight (out, in, k) -> packed (k*in, out)
    sc = (GEO_DIM * CONV_K) ** -0.5
    conv_w = u(next(ki), (CONV_OUT, GEO_DIM, CONV_K), sc)
    conv_b = u(next(ki), (CONV_OUT,), sc)
    p['conv_w'] = jnp.transpose(conv_w, (2, 1, 0)).reshape(
        CONV_K * GEO_DIM, CONV_OUT).astype(jnp.bfloat16)
    p['conv_b'] = conv_b.reshape(1, CONV_OUT)
    # LSTM weights (pre-transposed; combined bias b_ih + b_hh modeled as one b)
    s = H ** -0.5

    def lstm_dir(din):
        wih = u(next(ki), (din, 4 * H), s)
        whh = u(next(ki), (H, 4 * H), s)
        b = u(next(ki), (1, 4 * H), s)
        return wih, whh, b

    # layer 0 (input 59 = conv(32) + emb(27) row groups)
    wih0f, whh0f, b0f = lstm_dir(INPUT_SIZE)
    wih0b, whh0b, b0b = lstm_dir(INPUT_SIZE)
    wih0 = jnp.concatenate([wih0f, wih0b], axis=1)                  # (59, 8H)
    p['wih0c'] = wih0[:CONV_OUT].astype(jnp.bfloat16)               # (32, 8H)
    p['wih0e'] = wih0[CONV_OUT:].astype(jnp.bfloat16)               # (27, 8H)
    p['b0'] = jnp.concatenate([b0f, b0b], axis=1)                   # (1, 8H)
    p['whh0f'] = whh0f.astype(jnp.bfloat16)                         # (H, 4H)
    p['whh0b'] = whh0b.astype(jnp.bfloat16)                         # (H, 4H)
    # layer 1 (input 2H).  The reverse-direction recurrent weight (whh1b) is a
    # module parameter but cannot affect out = Linear(r_out[:, -1, :]): the
    # backward hidden at t = T-1 is computed from a zero initial state.
    wih1f, whh1f, b1f = lstm_dir(2 * H)
    wih1b, _whh1b_unused, b1b = lstm_dir(2 * H)
    p['wih1f'] = wih1f.astype(jnp.bfloat16)
    p['b1f'] = b1f
    p['wih1b'] = wih1b.astype(jnp.bfloat16)
    p['b1b'] = b1b
    p['whh1f'] = whh1f.astype(jnp.bfloat16)
    # output Linear(2H -> label_size), lane-padded to 128, split per direction
    so = (2 * H) ** -0.5
    wout = u(next(ki), (2 * H, LABEL_SIZE), so)
    bout = u(next(ki), (1, LABEL_SIZE), so)
    woutp = jnp.zeros((2 * H, OUT_PAD), jnp.float32).at[:, :LABEL_SIZE].set(wout)
    p['woutf'] = woutp[:H].astype(jnp.bfloat16)
    p['woutb'] = woutp[H:].astype(jnp.bfloat16)
    p['bout'] = jnp.zeros((1, OUT_PAD), jnp.float32).at[:, :LABEL_SIZE].set(bout)
    return p


# ---------------------------------------------------------------------------
# Full forward: embedding gathers + GeoConv unfold in JAX, rest in the kernel
# ---------------------------------------------------------------------------
def rnn_forward(x_idx, params):
    """x_idx: (B, 10, 5) int32, fields [car, region, poi, week, time]."""
    B = x_idx.shape[0]
    # per-step region+poi embeddings -> new_vector.view(-1, 10, 12)
    region_e = jnp.take(params['region_embeds'], x_idx[:, :, 1], axis=0)   # (B,10,8)
    poi_e = jnp.take(params['poi_embeds'], x_idx[:, :, 2], axis=0)         # (B,10,4)
    geo = jnp.concatenate([region_e, poi_e], axis=-1).astype(jnp.float32)  # (B,10,12)
    # GeoConv unfold host-side, then time-major for the kernel: (T, B, 36)
    wins = jnp.concatenate([geo[:, k:k + T_LSTM, :] for k in range(CONV_K)],
                           axis=-1)                                        # (B,T,36)
    wins = jnp.transpose(wins, (1, 0, 2))                                  # (T,B,36)
    # per-trajectory car/week/time embeddings (tanh applied inside the kernel)
    car_e = jnp.take(params['car_embeds'], x_idx[:, 0, 0], axis=0)          # (B,16)
    week_e = jnp.take(params['week_embeds'], x_idx[:, 0, 3], axis=0)        # (B,3)
    time_e = jnp.take(params['time_embeds'], x_idx[:, 0, 4], axis=0)        # (B,8)
    emb = jnp.concatenate([car_e, week_e, time_e], axis=-1).astype(jnp.float32)

    # batch tile: big enough to feed the MXU, capped at 64 (v5e VMEM / vregs)
    b_tile = min(MAX_B_TILE, ((B + 7) // 8) * 8)
    B_pad = ((B + b_tile - 1) // b_tile) * b_tile
    if B_pad != B:
        wins = jnp.pad(wins, ((0, 0), (0, B_pad - B), (0, 0)))
        emb = jnp.pad(emb, ((0, B_pad - B), (0, 0)))

    out = fused_forward(wins, emb, params, b_tile)        # (B_pad, 128)
    return out[:B, :LABEL_SIZE]


if __name__ == "__main__":
    key = jax.random.PRNGKey(0)
    pkey, dkey = jax.random.split(key)
    params = init_params(pkey)

    B = 4
    k1, k2, k3, k4, k5 = jax.random.split(dkey, 5)
    car = jax.random.randint(k1, (B, SEQ_ITEMS, 1), 0, N_CAR)
    region = jax.random.randint(k2, (B, SEQ_ITEMS, 1), 0, N_REGION)
    poi = jax.random.randint(k3, (B, SEQ_ITEMS, 1), 0, N_POI)
    week = jax.random.randint(k4, (B, SEQ_ITEMS, 1), 0, N_WEEK)
    time = jax.random.randint(k5, (B, SEQ_ITEMS, 1), 0, N_TIME)
    x_idx = jnp.concatenate([car, region, poi, week, time], axis=-1).astype(jnp.int32)

    out = jax.jit(rnn_forward)(x_idx, params)
    out = jax.block_until_ready(out)
    assert out.shape == (B, LABEL_SIZE) and out.dtype == jnp.float32
    print("KERNEL_OK")
</pallas_src>

<mosaic_0001>
module attributes {stable_mosaic.version = 11 : i64} {
  func.func @_fused_forward_kernel(%arg0: i32, %arg1: memref<8x8x36xf32, #tpu.memory_space<vmem>>, %arg2: memref<8x27xf32, #tpu.memory_space<vmem>>, %arg3: memref<36x32xbf16, #tpu.memory_space<vmem>>, %arg4: memref<1x32xf32, #tpu.memory_space<vmem>>, %arg5: memref<32x1024xbf16, #tpu.memory_space<vmem>>, %arg6: memref<27x1024xbf16, #tpu.memory_space<vmem>>, %arg7: memref<1x1024xf32, #tpu.memory_space<vmem>>, %arg8: memref<128x512xbf16, #tpu.memory_space<vmem>>, %arg9: memref<128x512xbf16, #tpu.memory_space<vmem>>, %arg10: memref<256x512xbf16, #tpu.memory_space<vmem>>, %arg11: memref<1x512xf32, #tpu.memory_space<vmem>>, %arg12: memref<256x512xbf16, #tpu.memory_space<vmem>>, %arg13: memref<1x512xf32, #tpu.memory_space<vmem>>, %arg14: memref<128x512xbf16, #tpu.memory_space<vmem>>, %arg15: memref<128x128xbf16, #tpu.memory_space<vmem>>, %arg16: memref<128x128xbf16, #tpu.memory_space<vmem>>, %arg17: memref<1x128xf32, #tpu.memory_space<vmem>>, %arg18: memref<8x128xf32, #tpu.memory_space<vmem>>, %arg19: memref<8x8x1024xbf16, #tpu.memory_space<vmem>>, %arg20: memref<8x8x512xbf16, #tpu.memory_space<vmem>>, %arg21: memref<8x8x256xbf16, #tpu.memory_space<vmem>>) attributes {dimension_semantics = [#tpu.dimension_semantics<parallel>], iteration_bounds = array<i64: 1>, scalar_prefetch = 0 : i64, scratch_operands = 3 : i64, tpu.core_type = #tpu.core_type<tc>, window_params = [{transform_indices = @transform_0, window_bounds = array<i64: 8, 8, 36>}, {transform_indices = @transform_1, window_bounds = array<i64: 8, 27>}, {pipeline_mode = #tpu.pipeline_mode<synchronous>, transform_indices = @transform_2, window_bounds = array<i64: 36, 32>}, {pipeline_mode = #tpu.pipeline_mode<synchronous>, transform_indices = @transform_3, window_bounds = array<i64: 1, 32>}, {pipeline_mode = #tpu.pipeline_mode<synchronous>, transform_indices = @transform_4, window_bounds = array<i64: 32, 1024>}, {pipeline_mode = #tpu.pipeline_mode<synchronous>, transform_indices = @transform_5, window_bounds = array<i64: 27, 1024>}, {pipeline_mode = #tpu.pipeline_mode<synchronous>, transform_indices = @transform_6, window_bounds = array<i64: 1, 1024>}, {pipeline_mode = #tpu.pipeline_mode<synchronous>, transform_indices = @transform_7, window_bounds = array<i64: 128, 512>}, {pipeline_mode = #tpu.pipeline_mode<synchronous>, transform_indices = @transform_8, window_bounds = array<i64: 128, 512>}, {pipeline_mode = #tpu.pipeline_mode<synchronous>, transform_indices = @transform_9, window_bounds = array<i64: 256, 512>}, {pipeline_mode = #tpu.pipeline_mode<synchronous>, transform_indices = @transform_10, window_bounds = array<i64: 1, 512>}, {pipeline_mode = #tpu.pipeline_mode<synchronous>, transform_indices = @transform_11, window_bounds = array<i64: 256, 512>}, {pipeline_mode = #tpu.pipeline_mode<synchronous>, transform_indices = @transform_12, window_bounds = array<i64: 1, 512>}, {pipeline_mode = #tpu.pipeline_mode<synchronous>, transform_indices = @transform_13, window_bounds = array<i64: 128, 512>}, {pipeline_mode = #tpu.pipeline_mode<synchronous>, transform_indices = @transform_14, window_bounds = array<i64: 128, 128>}, {pipeline_mode = #tpu.pipeline_mode<synchronous>, transform_indices = @transform_15, window_bounds = array<i64: 128, 128>}, {pipeline_mode = #tpu.pipeline_mode<synchronous>, transform_indices = @transform_16, window_bounds = array<i64: 1, 128>}, {transform_indices = @transform_17, window_bounds = array<i64: 8, 128>}]} {
    %c0 = arith.constant 0 : index
    %c0_0 = arith.constant 0 : index
    %c0_1 = arith.constant 0 : index
    %0 = vector.load %arg1[%c0, %c0_0, %c0_1] : memref<8x8x36xf32, #tpu.memory_space<vmem>>, vector<8x8x36xf32>
    %1 = vector.shape_cast %0 : vector<8x8x36xf32> to vector<64x36xf32>
    %c0_2 = arith.constant 0 : index
    %c0_3 = arith.constant 0 : index
    %2 = vector.load %arg3[%c0_2, %c0_3] : memref<36x32xbf16, #tpu.memory_space<vmem>>, vector<36x32xbf16>
    %3 = arith.truncf %1 : vector<64x36xf32> to vector<64x36xbf16>
    %cst = arith.constant dense<0.000000e+00> : vector<64x32xf32>
    %4 = tpu.matmul %3, %2, %cst {dimension_numbers = #tpu.dot_dimension_numbers<[1], [0], [0], [1], [0, 0, 1, 1], [], []>} : vector<64x36xbf16>, vector<36x32xbf16>, vector<64x32xf32> -> vector<64x32xf32>
    %c0_4 = arith.constant 0 : index
    %c0_5 = arith.constant 0 : index
    %5 = vector.load %arg4[%c0_4, %c0_5] : memref<1x32xf32, #tpu.memory_space<vmem>>, vector<1x32xf32>
    %6 = vector.broadcast %5 : vector<1x32xf32> to vector<64x32xf32>
    %7 = arith.addf %4, %6 : vector<64x32xf32>
    %cst_6 = arith.constant 0.000000e+00 : f32
    %8 = vector.broadcast %cst_6 : f32 to vector<64x32xf32>
    %9 = arith.cmpf ogt, %7, %8 : vector<64x32xf32>
    %cst_7 = arith.constant 0.000000e+00 : f32
    %10 = vector.broadcast %cst_7 : f32 to vector<64x32xf32>
    %11 = arith.minimumf %7, %10 : vector<64x32xf32>
    %12 = math.exp %11 : vector<64x32xf32>
    %cst_8 = arith.constant 1.000000e+00 : f32
    %13 = vector.broadcast %cst_8 : f32 to vector<64x32xf32>
    %14 = arith.subf %12, %13 : vector<64x32xf32>
    %15 = arith.select %9, %7, %14 : vector<64x32xi1>, vector<64x32xf32>
    %c0_9 = arith.constant 0 : index
    %c0_10 = arith.constant 0 : index
    %16 = vector.load %arg2[%c0_9, %c0_10] : memref<8x27xf32, #tpu.memory_space<vmem>>, vector<8x27xf32>
    %17 = math.tanh %16 : vector<8x27xf32>
    %c0_11 = arith.constant 0 : index
    %c0_12 = arith.constant 0 : index
    %18 = vector.load %arg6[%c0_11, %c0_12] : memref<27x1024xbf16, #tpu.memory_space<vmem>>, vector<27x1024xbf16>
    %19 = arith.truncf %17 : vector<8x27xf32> to vector<8x27xbf16>
    %cst_13 = arith.constant dense<0.000000e+00> : vector<8x1024xf32>
    %20 = tpu.matmul %19, %18, %cst_13 {dimension_numbers = #tpu.dot_dimension_numbers<[1], [0], [0], [1], [0, 0, 1, 1], [], []>} : vector<8x27xbf16>, vector<27x1024xbf16>, vector<8x1024xf32> -> vector<8x1024xf32>
    %c0_14 = arith.constant 0 : index
    %c0_15 = arith.constant 0 : index
    %21 = vector.load %arg7[%c0_14, %c0_15] : memref<1x1024xf32, #tpu.memory_space<vmem>>, vector<1x1024xf32>
    %22 = vector.broadcast %21 : vector<1x1024xf32> to vector<8x1024xf32>
    %23 = arith.addf %20, %22 : vector<8x1024xf32>
    %c0_16 = arith.constant 0 : index
    %c0_17 = arith.constant 0 : index
    %24 = vector.load %arg5[%c0_16, %c0_17] : memref<32x1024xbf16, #tpu.memory_space<vmem>>, vector<32x1024xbf16>
    %25 = arith.truncf %15 : vector<64x32xf32> to vector<64x32xbf16>
    %cst_18 = arith.constant dense<0.000000e+00> : vector<64x1024xf32>
    %26 = tpu.matmul %25, %24, %cst_18 {dimension_numbers = #tpu.dot_dimension_numbers<[1], [0], [0], [1], [0, 0, 1, 1], [], []>} : vector<64x32xbf16>, vector<32x1024xbf16>, vector<64x1024xf32> -> vector<64x1024xf32>
    %27 = vector.shape_cast %26 : vector<64x1024xf32> to vector<8x8x1024xf32>
    %28 = vector.shape_cast %23 : vector<8x1024xf32> to vector<1x8x1024xf32>
    %29 = vector.broadcast %28 : vector<1x8x1024xf32> to vector<8x8x1024xf32>
    %30 = arith.addf %27, %29 : vector<8x8x1024xf32>
    %31 = arith.truncf %30 : vector<8x8x1024xf32> to vector<8x8x1024xbf16>
    %c0_19 = arith.constant 0 : index
    %c0_20 = arith.constant 0 : index
    %c0_21 = arith.constant 0 : index
    %32 = vector.load %arg19[%c0_19, %c0_20, %c0_21] : memref<8x8x1024xbf16, #tpu.memory_space<vmem>>, vector<8x8x1024xbf16>
    tpu.vector_store %arg19[%c0_19, %c0_20, %c0_21], %31 {strides = array<i32>} : memref<8x8x1024xbf16, #tpu.memory_space<vmem>>, vector<8x8x1024xbf16>,
    %c0_22 = arith.constant 0 : index
    %c0_23 = arith.constant 0 : index
    %33 = vector.load %arg8[%c0_22, %c0_23] : memref<128x512xbf16, #tpu.memory_space<vmem>>, vector<128x512xbf16>
    %c0_24 = arith.constant 0 : index
    %c0_25 = arith.constant 0 : index
    %34 = vector.load %arg9[%c0_24, %c0_25] : memref<128x512xbf16, #tpu.memory_space<vmem>>, vector<128x512xbf16>
    %cst_26 = arith.constant 0.000000e+00 : f32
    %35 = vector.broadcast %cst_26 : f32 to vector<8x128xf32>
    %c0_27 = arith.constant 0 : index
    %c0_28 = arith.constant 0 : index
    %c0_29 = arith.constant 0 : index
    %36 = vector.load %arg19[%c0_27, %c0_28, %c0_29] : memref<8x8x1024xbf16, #tpu.memory_space<vmem>>, vector<1x8x512xbf16>
    %37 = vector.shape_cast %36 : vector<1x8x512xbf16> to vector<8x512xbf16>
    %38 = arith.extf %37 : vector<8x512xbf16> to vector<8x512xf32>
    %39 = arith.truncf %35 : vector<8x128xf32> to vector<8x128xbf16>
    %cst_30 = arith.constant dense<0.000000e+00> : vector<8x512xf32>
    %40 = tpu.matmul %39, %33, %cst_30 {dimension_numbers = #tpu.dot_dimension_numbers<[1], [0], [0], [1], [0, 0, 1, 1], [], []>} : vector<8x128xbf16>, vector<128x512xbf16>, vector<8x512xf32> -> vector<8x512xf32>
    %41 = arith.addf %38, %40 : vector<8x512xf32>
    %42 = vector.extract_strided_slice %41 {offsets = [0, 0], sizes = [8, 128], strides = [1, 1]} : vector<8x512xf32> to vector<8x128xf32>
    %cst_31 = arith.constant 5.000000e-01 : f32
    %43 = vector.broadcast %cst_31 : f32 to vector<8x128xf32>
    %44 = arith.mulf %43, %42 : vector<8x128xf32>
    %45 = math.tanh %44 : vector<8x128xf32>
    %cst_32 = arith.constant 5.000000e-01 : f32
    %46 = vector.broadcast %cst_32 : f32 to vector<8x128xf32>
    %47 = arith.mulf %46, %45 : vector<8x128xf32>
    %cst_33 = arith.constant 5.000000e-01 : f32
    %48 = vector.broadcast %cst_33 : f32 to vector<8x128xf32>
    %49 = arith.addf %47, %48 : vector<8x128xf32>
    %50 = vector.extract_strided_slice %41 {offsets = [0, 128], sizes = [8, 128], strides = [1, 1]} : vector<8x512xf32> to vector<8x128xf32>
    %cst_34 = arith.constant 5.000000e-01 : f32
    %51 = vector.broadcast %cst_34 : f32 to vector<8x128xf32>
    %52 = arith.mulf %51, %50 : vector<8x128xf32>
    %53 = math.tanh %52 : vector<8x128xf32>
    %cst_35 = arith.constant 5.000000e-01 : f32
    %54 = vector.broadcast %cst_35 : f32 to vector<8x128xf32>
    %55 = arith.mulf %54, %53 : vector<8x128xf32>
    %cst_36 = arith.constant 5.000000e-01 : f32
    %56 = vector.broadcast %cst_36 : f32 to vector<8x128xf32>
    %57 = arith.addf %55, %56 : vector<8x128xf32>
    %58 = vector.extract_strided_slice %41 {offsets = [0, 256], sizes = [8, 128], strides = [1, 1]} : vector<8x512xf32> to vector<8x128xf32>
    %59 = math.tanh %58 : vector<8x128xf32>
    %60 = vector.extract_strided_slice %41 {offsets = [0, 384], sizes = [8, 128], strides = [1, 1]} : vector<8x512xf32> to vector<8x128xf32>
    %cst_37 = arith.constant 5.000000e-01 : f32
    %61 = vector.broadcast %cst_37 : f32 to vector<8x128xf32>
    %62 = arith.mulf %61, %60 : vector<8x128xf32>
    %63 = math.tanh %62 : vector<8x128xf32>
    %cst_38 = arith.constant 5.000000e-01 : f32
    %64 = vector.broadcast %cst_38 : f32 to vector<8x128xf32>
    %65 = arith.mulf %64, %63 : vector<8x128xf32>
    %cst_39 = arith.constant 5.000000e-01 : f32
    %66 = vector.broadcast %cst_39 : f32 to vector<8x128xf32>
    %67 = arith.addf %65, %66 : vector<8x128xf32>
    %68 = arith.mulf %57, %35 : vector<8x128xf32>
    %69 = arith.mulf %49, %59 : vector<8x128xf32>
    %70 = arith.addf %68, %69 : vector<8x128xf32>
    %71 = math.tanh %70 : vector<8x128xf32>
    %72 = arith.mulf %67, %71 : vector<8x128xf32>
    %73 = arith.truncf %72 : vector<8x128xf32> to vector<8x128xbf16>
    %c0_40 = arith.constant 0 : index
    %c0_41 = arith.constant 0 : index
    %c0_42 = arith.constant 0 : index
    %74 = vector.load %arg21[%c0_40, %c0_41, %c0_42] : memref<8x8x256xbf16, #tpu.memory_space<vmem>>, vector<1x8x128xbf16>
    %75 = vector.shape_cast %74 : vector<1x8x128xbf16> to vector<8x128xbf16>
    %76 = vector.shape_cast %73 : vector<8x128xbf16> to vector<1x8x128xbf16>
    tpu.vector_store %arg21[%c0_40, %c0_41, %c0_42], %76 {strides = array<i32>} : memref<8x8x256xbf16, #tpu.memory_space<vmem>>, vector<1x8x128xbf16>,
    %c7 = arith.constant 7 : index
    %c0_43 = arith.constant 0 : index
    %c512 = arith.constant 512 : index
    %77 = vector.load %arg19[%c7, %c0_43, %c512] : memref<8x8x1024xbf16, #tpu.memory_space<vmem>>, vector<1x8x512xbf16>
    %78 = vector.shape_cast %77 : vector<1x8x512xbf16> to vector<8x512xbf16>
    %79 = arith.extf %78 : vector<8x512xbf16> to vector<8x512xf32>
    %80 = arith.truncf %35 : vector<8x128xf32> to vector<8x128xbf16>
    %cst_44 = arith.constant dense<0.000000e+00> : vector<8x512xf32>
    %81 = tpu.matmul %80, %34, %cst_44 {dimension_numbers = #tpu.dot_dimension_numbers<[1], [0], [0], [1], [0, 0, 1, 1], [], []>} : vector<8x128xbf16>, vector<128x512xbf16>, vector<8x512xf32> -> vector<8x512xf32>
    %82 = arith.addf %79, %81 : vector<8x512xf32>
    %83 = vector.extract_strided_slice %82 {offsets = [0, 0], sizes = [8, 128], strides = [1, 1]} : vector<8x512xf32> to vector<8x128xf32>
    %cst_45 = arith.constant 5.000000e-01 : f32
    %84 = vector.broadcast %cst_45 : f32 to vector<8x128xf32>
    %85 = arith.mulf %84, %83 : vector<8x128xf32>
    %86 = math.tanh %85 : vector<8x128xf32>
    %cst_46 = arith.constant 5.000000e-01 : f32
    %87 = vector.broadcast %cst_46 : f32 to vector<8x128xf32>
    %88 = arith.mulf %87, %86 : vector<8x128xf32>
    %cst_47 = arith.constant 5.000000e-01 : f32
    %89 = vector.broadcast %cst_47 : f32 to vector<8x128xf32>
    %90 = arith.addf %88, %89 : vector<8x128xf32>
    %91 = vector.extract_strided_slice %82 {offsets = [0, 128], sizes = [8, 128], strides = [1, 1]} : vector<8x512xf32> to vector<8x128xf32>
    %cst_48 = arith.constant 5.000000e-01 : f32
    %92 = vector.broadcast %cst_48 : f32 to vector<8x128xf32>
    %93 = arith.mulf %92, %91 : vector<8x128xf32>
    %94 = math.tanh %93 : vector<8x128xf32>
    %cst_49 = arith.constant 5.000000e-01 : f32
    %95 = vector.broadcast %cst_49 : f32 to vector<8x128xf32>
    %96 = arith.mulf %95, %94 : vector<8x128xf32>
    %cst_50 = arith.constant 5.000000e-01 : f32
    %97 = vector.broadcast %cst_50 : f32 to vector<8x128xf32>
    %98 = arith.addf %96, %97 : vector<8x128xf32>
    %99 = vector.extract_strided_slice %82 {offsets = [0, 256], sizes = [8, 128], strides = [1, 1]} : vector<8x512xf32> to vector<8x128xf32>
    %100 = math.tanh %99 : vector<8x128xf32>
    %101 = vector.extract_strided_slice %82 {offsets = [0, 384], sizes = [8, 128], strides = [1, 1]} : vector<8x512xf32> to vector<8x128xf32>
    %cst_51 = arith.constant 5.000000e-01 : f32
    %102 = vector.broadcast %cst_51 : f32 to vector<8x128xf32>
    %103 = arith.mulf %102, %101 : vector<8x128xf32>
    %104 = math.tanh %103 : vector<8x128xf32>
    %cst_52 = arith.constant 5.000000e-01 : f32
    %105 = vector.broadcast %cst_52 : f32 to vector<8x128xf32>
    %106 = arith.mulf %105, %104 : vector<8x128xf32>
    %cst_53 = arith.constant 5.000000e-01 : f32
    %107 = vector.broadcast %cst_53 : f32 to vector<8x128xf32>
    %108 = arith.addf %106, %107 : vector<8x128xf32>
    %109 = arith.mulf %98, %35 : vector<8x128xf32>
    %110 = arith.mulf %90, %100 : vector<8x128xf32>
    %111 = arith.addf %109, %110 : vector<8x128xf32>
    %112 = math.tanh %111 : vector<8x128xf32>
    %113 = arith.mulf %108, %112 : vector<8x128xf32>
    %114 = arith.truncf %113 : vector<8x128xf32> to vector<8x128xbf16>
    %c7_54 = arith.constant 7 : index
    %c0_55 = arith.constant 0 : index
    %c128 = arith.constant 128 : index
    %115 = vector.load %arg21[%c7_54, %c0_55, %c128] : memref<8x8x256xbf16, #tpu.memory_space<vmem>>, vector<1x8x128xbf16>
    %116 = vector.shape_cast %115 : vector<1x8x128xbf16> to vector<8x128xbf16>
    %117 = vector.shape_cast %114 : vector<8x128xbf16> to vector<1x8x128xbf16>
    tpu.vector_store %arg21[%c7_54, %c0_55, %c128], %117 {strides = array<i32>} : memref<8x8x256xbf16, #tpu.memory_space<vmem>>, vector<1x8x128xbf16>,
    %c1 = arith.constant 1 : index
    %c0_56 = arith.constant 0 : index
    %c0_57 = arith.constant 0 : index
    %118 = vector.load %arg19[%c1, %c0_56, %c0_57] : memref<8x8x1024xbf16, #tpu.memory_space<vmem>>, vector<1x8x512xbf16>
    %119 = vector.shape_cast %118 : vector<1x8x512xbf16> to vector<8x512xbf16>
    %120 = arith.extf %119 : vector<8x512xbf16> to vector<8x512xf32>
    %121 = arith.truncf %72 : vector<8x128xf32> to vector<8x128xbf16>
    %cst_58 = arith.constant dense<0.000000e+00> : vector<8x512xf32>
    %122 = tpu.matmul %121, %33, %cst_58 {dimension_numbers = #tpu.dot_dimension_numbers<[1], [0], [0], [1], [0, 0, 1, 1], [], []>} : vector<8x128xbf16>, vector<128x512xbf16>, vector<8x512xf32> -> vector<8x512xf32>
    %123 = arith.addf %120, %122 : vector<8x512xf32>
    %124 = vector.extract_strided_slice %123 {offsets = [0, 0], sizes = [8, 128], strides = [1, 1]} : vector<8x512xf32> to vector<8x128xf32>
    %cst_59 = arith.constant 5.000000e-01 : f32
    %125 = vector.broadcast %cst_59 : f32 to vector<8x128xf32>
    %126 = arith.mulf %125, %124 : vector<8x128xf32>
    %127 = math.tanh %126 : vector<8x128xf32>
    %cst_60 = arith.constant 5.000000e-01 : f32
    %128 = vector.broadcast %cst_60 : f32 to vector<8x128xf32>
    %129 = arith.mulf %128, %127 : vector<8x128xf32>
    %cst_61 = arith.constant 5.000000e-01 : f32
    %130 = vector.broadcast %cst_61 : f32 to vector<8x128xf32>
    %131 = arith.addf %129, %130 : vector<8x128xf32>
    %132 = vector.extract_strided_slice %123 {offsets = [0, 128], sizes = [8, 128], strides = [1, 1]} : vector<8x512xf32> to vector<8x128xf32>
    %cst_62 = arith.constant 5.000000e-01 : f32
    %133 = vector.broadcast %cst_62 : f32 to vector<8x128xf32>
    %134 = arith.mulf %133, %132 : vector<8x128xf32>
    %135 = math.tanh %134 : vector<8x128xf32>
    %cst_63 = arith.constant 5.000000e-01 : f32
    %136 = vector.broadcast %cst_63 : f32 to vector<8x128xf32>
    %137 = arith.mulf %136, %135 : vector<8x128xf32>
    %cst_64 = arith.constant 5.000000e-01 : f32
    %138 = vector.broadcast %cst_64 : f32 to vector<8x128xf32>
    %139 = arith.addf %137, %138 : vector<8x128xf32>
    %140 = vector.extract_strided_slice %123 {offsets = [0, 256], sizes = [8, 128], strides = [1, 1]} : vector<8x512xf32> to vector<8x128xf32>
    %141 = math.tanh %140 : vector<8x128xf32>
    %142 = vector.extract_strided_slice %123 {offsets = [0, 384], sizes = [8, 128], strides = [1, 1]} : vector<8x512xf32> to vector<8x128xf32>
    %cst_65 = arith.constant 5.000000e-01 : f32
    %143 = vector.broadcast %cst_65 : f32 to vector<8x128xf32>
    %144 = arith.mulf %143, %142 : vector<8x128xf32>
    %145 = math.tanh %144 : vector<8x128xf32>
    %cst_66 = arith.constant 5.000000e-01 : f32
    %146 = vector.broadcast %cst_66 : f32 to vector<8x128xf32>
    %147 = arith.mulf %146, %145 : vector<8x128xf32>
    %cst_67 = arith.constant 5.000000e-01 : f32
    %148 = vector.broadcast %cst_67 : f32 to vector<8x128xf32>
    %149 = arith.addf %147, %148 : vector<8x128xf32>
    %150 = arith.mulf %139, %70 : vector<8x128xf32>
    %151 = arith.mulf %131, %141 : vector<8x128xf32>
    %152 = arith.addf %150, %151 : vector<8x128xf32>
    %153 = math.tanh %152 : vector<8x128xf32>
    %154 = arith.mulf %149, %153 : vector<8x128xf32>
    %155 = arith.truncf %154 : vector<8x128xf32> to vector<8x128xbf16>
    %c1_68 = arith.constant 1 : index
    %c0_69 = arith.constant 0 : index
    %c0_70 = arith.constant 0 : index
    %156 = vector.load %arg21[%c1_68, %c0_69, %c0_70] : memref<8x8x256xbf16, #tpu.memory_space<vmem>>, vector<1x8x128xbf16>
    %157 = vector.shape_cast %156 : vector<1x8x128xbf16> to vector<8x128xbf16>
    %158 = vector.shape_cast %155 : vector<8x128xbf16> to vector<1x8x128xbf16>
    tpu.vector_store %arg21[%c1_68, %c0_69, %c0_70], %158 {strides = array<i32>} : memref<8x8x256xbf16, #tpu.memory_space<vmem>>, vector<1x8x128xbf16>,
    %c6 = arith.constant 6 : index
    %c0_71 = arith.constant 0 : index
    %c512_72 = arith.constant 512 : index
    %159 = vector.load %arg19[%c6, %c0_71, %c512_72] : memref<8x8x1024xbf16, #tpu.memory_space<vmem>>, vector<1x8x512xbf16>
    %160 = vector.shape_cast %159 : vector<1x8x512xbf16> to vector<8x512xbf16>
    %161 = arith.extf %160 : vector<8x512xbf16> to vector<8x512xf32>
    %162 = arith.truncf %113 : vector<8x128xf32> to vector<8x128xbf16>
    %cst_73 = arith.constant dense<0.000000e+00> : vector<8x512xf32>
    %163 = tpu.matmul %162, %34, %cst_73 {dimension_numbers = #tpu.dot_dimension_numbers<[1], [0], [0], [1], [0, 0, 1, 1], [], []>} : vector<8x128xbf16>, vector<128x512xbf16>, vector<8x512xf32> -> vector<8x512xf32>
    %164 = arith.addf %161, %163 : vector<8x512xf32>
    %165 = vector.extract_strided_slice %164 {offsets = [0, 0], sizes = [8, 128], strides = [1, 1]} : vector<8x512xf32> to vector<8x128xf32>
    %cst_74 = arith.constant 5.000000e-01 : f32
    %166 = vector.broadcast %cst_74 : f32 to vector<8x128xf32>
    %167 = arith.mulf %166, %165 : vector<8x128xf32>
    %168 = math.tanh %167 : vector<8x128xf32>
    %cst_75 = arith.constant 5.000000e-01 : f32
    %169 = vector.broadcast %cst_75 : f32 to vector<8x128xf32>
    %170 = arith.mulf %169, %168 : vector<8x128xf32>
    %cst_76 = arith.constant 5.000000e-01 : f32
    %171 = vector.broadcast %cst_76 : f32 to vector<8x128xf32>
    %172 = arith.addf %170, %171 : vector<8x128xf32>
    %173 = vector.extract_strided_slice %164 {offsets = [0, 128], sizes = [8, 128], strides = [1, 1]} : vector<8x512xf32> to vector<8x128xf32>
    %cst_77 = arith.constant 5.000000e-01 : f32
    %174 = vector.broadcast %cst_77 : f32 to vector<8x128xf32>
    %175 = arith.mulf %174, %173 : vector<8x128xf32>
    %176 = math.tanh %175 : vector<8x128xf32>
    %cst_78 = arith.constant 5.000000e-01 : f32
    %177 = vector.broadcast %cst_78 : f32 to vector<8x128xf32>
    %178 = arith.mulf %177, %176 : vector<8x128xf32>
    %cst_79 = arith.constant 5.000000e-01 : f32
    %179 = vector.broadcast %cst_79 : f32 to vector<8x128xf32>
    %180 = arith.addf %178, %179 : vector<8x128xf32>
    %181 = vector.extract_strided_slice %164 {offsets = [0, 256], sizes = [8, 128], strides = [1, 1]} : vector<8x512xf32> to vector<8x128xf32>
    %182 = math.tanh %181 : vector<8x128xf32>
    %183 = vector.extract_strided_slice %164 {offsets = [0, 384], sizes = [8, 128], strides = [1, 1]} : vector<8x512xf32> to vector<8x128xf32>
    %cst_80 = arith.constant 5.000000e-01 : f32
    %184 = vector.broadcast %cst_80 : f32 to vector<8x128xf32>
    %185 = arith.mulf %184, %183 : vector<8x128xf32>
    %186 = math.tanh %185 : vector<8x128xf32>
    %cst_81 = arith.constant 5.000000e-01 : f32
    %187 = vector.broadcast %cst_81 : f32 to vector<8x128xf32>
    %188 = arith.mulf %187, %186 : vector<8x128xf32>
    %cst_82 = arith.constant 5.000000e-01 : f32
    %189 = vector.broadcast %cst_82 : f32 to vector<8x128xf32>
    %190 = arith.addf %188, %189 : vector<8x128xf32>
    %191 = arith.mulf %180, %111 : vector<8x128xf32>
    %192 = arith.mulf %172, %182 : vector<8x128xf32>
    %193 = arith.addf %191, %192 : vector<8x128xf32>
    %194 = math.tanh %193 : vector<8x128xf32>
    %195 = arith.mulf %190, %194 : vector<8x128xf32>
    %196 = arith.truncf %195 : vector<8x128xf32> to vector<8x128xbf16>
    %c6_83 = arith.constant 6 : index
    %c0_84 = arith.constant 0 : index
    %c128_85 = arith.constant 128 : index
    %197 = vector.load %arg21[%c6_83, %c0_84, %c128_85] : memref<8x8x256xbf16, #tpu.memory_space<vmem>>, vector<1x8x128xbf16>
    %198 = vector.shape_cast %197 : vector<1x8x128xbf16> to vector<8x128xbf16>
    %199 = vector.shape_cast %196 : vector<8x128xbf16> to vector<1x8x128xbf16>
    tpu.vector_store %arg21[%c6_83, %c0_84, %c128_85], %199 {strides = array<i32>} : memref<8x8x256xbf16, #tpu.memory_space<vmem>>, vector<1x8x128xbf16>,
    %c2 = arith.constant 2 : index
    %c0_86 = arith.constant 0 : index
    %c0_87 = arith.constant 0 : index
    %200 = vector.load %arg19[%c2, %c0_86, %c0_87] : memref<8x8x1024xbf16, #tpu.memory_space<vmem>>, vector<1x8x512xbf16>
    %201 = vector.shape_cast %200 : vector<1x8x512xbf16> to vector<8x512xbf16>
    %202 = arith.extf %201 : vector<8x512xbf16> to vector<8x512xf32>
    %203 = arith.truncf %154 : vector<8x128xf32> to vector<8x128xbf16>
    %cst_88 = arith.constant dense<0.000000e+00> : vector<8x512xf32>
    %204 = tpu.matmul %203, %33, %cst_88 {dimension_numbers = #tpu.dot_dimension_numbers<[1], [0], [0], [1], [0, 0, 1, 1], [], []>} : vector<8x128xbf16>, vector<128x512xbf16>, vector<8x512xf32> -> vector<8x512xf32>
    %205 = arith.addf %202, %204 : vector<8x512xf32>
    %206 = vector.extract_strided_slice %205 {offsets = [0, 0], sizes = [8, 128], strides = [1, 1]} : vector<8x512xf32> to vector<8x128xf32>
    %cst_89 = arith.constant 5.000000e-01 : f32
    %207 = vector.broadcast %cst_89 : f32 to vector<8x128xf32>
    %208 = arith.mulf %207, %206 : vector<8x128xf32>
    %209 = math.tanh %208 : vector<8x128xf32>
    %cst_90 = arith.constant 5.000000e-01 : f32
    %210 = vector.broadcast %cst_90 : f32 to vector<8x128xf32>
    %211 = arith.mulf %210, %209 : vector<8x128xf32>
    %cst_91 = arith.constant 5.000000e-01 : f32
    %212 = vector.broadcast %cst_91 : f32 to vector<8x128xf32>
    %213 = arith.addf %211, %212 : vector<8x128xf32>
    %214 = vector.extract_strided_slice %205 {offsets = [0, 128], sizes = [8, 128], strides = [1, 1]} : vector<8x512xf32> to vector<8x128xf32>
    %cst_92 = arith.constant 5.000000e-01 : f32
    %215 = vector.broadcast %cst_92 : f32 to vector<8x128xf32>
    %216 = arith.mulf %215, %214 : vector<8x128xf32>
    %217 = math.tanh %216 : vector<8x128xf32>
    %cst_93 = arith.constant 5.000000e-01 : f32
    %218 = vector.broadcast %cst_93 : f32 to vector<8x128xf32>
    %219 = arith.mulf %218, %217 : vector<8x128xf32>
    %cst_94 = arith.constant 5.000000e-01 : f32
    %220 = vector.broadcast %cst_94 : f32 to vector<8x128xf32>
    %221 = arith.addf %219, %220 : vector<8x128xf32>
    %222 = vector.extract_strided_slice %205 {offsets = [0, 256], sizes = [8, 128], strides = [1, 1]} : vector<8x512xf32> to vector<8x128xf32>
    %223 = math.tanh %222 : vector<8x128xf32>
    %224 = vector.extract_strided_slice %205 {offsets = [0, 384], sizes = [8, 128], strides = [1, 1]} : vector<8x512xf32> to vector<8x128xf32>
    %cst_95 = arith.constant 5.000000e-01 : f32
    %225 = vector.broadcast %cst_95 : f32 to vector<8x128xf32>
    %226 = arith.mulf %225, %224 : vector<8x128xf32>
    %227 = math.tanh %226 : vector<8x128xf32>
    %cst_96 = arith.constant 5.000000e-01 : f32
    %228 = vector.broadcast %cst_96 : f32 to vector<8x128xf32>
    %229 = arith.mulf %228, %227 : vector<8x128xf32>
    %cst_97 = arith.constant 5.000000e-01 : f32
    %230 = vector.broadcast %cst_97 : f32 to vector<8x128xf32>
    %231 = arith.addf %229, %230 : vector<8x128xf32>
    %232 = arith.mulf %221, %152 : vector<8x128xf32>
    %233 = arith.mulf %213, %223 : vector<8x128xf32>
    %234 = arith.addf %232, %233 : vector<8x128xf32>
    %235 = math.tanh %234 : vector<8x128xf32>
    %236 = arith.mulf %231, %235 : vector<8x128xf32>
    %237 = arith.truncf %236 : vector<8x128xf32> to vector<8x128xbf16>
    %c2_98 = arith.constant 2 : index
    %c0_99 = arith.constant 0 : index
    %c0_100 = arith.constant 0 : index
    %238 = vector.load %arg21[%c2_98, %c0_99, %c0_100] : memref<8x8x256xbf16, #tpu.memory_space<vmem>>, vector<1x8x128xbf16>
    %239 = vector.shape_cast %238 : vector<1x8x128xbf16> to vector<8x128xbf16>
    %240 = vector.shape_cast %237 : vector<8x128xbf16> to vector<1x8x128xbf16>
    tpu.vector_store %arg21[%c2_98, %c0_99, %c0_100], %240 {strides = array<i32>} : memref<8x8x256xbf16, #tpu.memory_space<vmem>>, vector<1x8x128xbf16>,
    %c5 = arith.constant 5 : index
    %c0_101 = arith.constant 0 : index
    %c512_102 = arith.constant 512 : index
    %241 = vector.load %arg19[%c5, %c0_101, %c512_102] : memref<8x8x1024xbf16, #tpu.memory_space<vmem>>, vector<1x8x512xbf16>
    %242 = vector.shape_cast %241 : vector<1x8x512xbf16> to vector<8x512xbf16>
    %243 = arith.extf %242 : vector<8x512xbf16> to vector<8x512xf32>
    %244 = arith.truncf %195 : vector<8x128xf32> to vector<8x128xbf16>
    %cst_103 = arith.constant dense<0.000000e+00> : vector<8x512xf32>
    %245 = tpu.matmul %244, %34, %cst_103 {dimension_numbers = #tpu.dot_dimension_numbers<[1], [0], [0], [1], [0, 0, 1, 1], [], []>} : vector<8x128xbf16>, vector<128x512xbf16>, vector<8x512xf32> -> vector<8x512xf32>
    %246 = arith.addf %243, %245 : vector<8x512xf32>
    %247 = vector.extract_strided_slice %246 {offsets = [0, 0], sizes = [8, 128], strides = [1, 1]} : vector<8x512xf32> to vector<8x128xf32>
    %cst_104 = arith.constant 5.000000e-01 : f32
    %248 = vector.broadcast %cst_104 : f32 to vector<8x128xf32>
    %249 = arith.mulf %248, %247 : vector<8x128xf32>
    %250 = math.tanh %249 : vector<8x128xf32>
    %cst_105 = arith.constant 5.000000e-01 : f32
    %251 = vector.broadcast %cst_105 : f32 to vector<8x128xf32>
    %252 = arith.mulf %251, %250 : vector<8x128xf32>
    %cst_106 = arith.constant 5.000000e-01 : f32
    %253 = vector.broadcast %cst_106 : f32 to vector<8x128xf32>
    %254 = arith.addf %252, %253 : vector<8x128xf32>
    %255 = vector.extract_strided_slice %246 {offsets = [0, 128], sizes = [8, 128], strides = [1, 1]} : vector<8x512xf32> to vector<8x128xf32>
    %cst_107 = arith.constant 5.000000e-01 : f32
    %256 = vector.broadcast %cst_107 : f32 to vector<8x128xf32>
    %257 = arith.mulf %256, %255 : vector<8x128xf32>
    %258 = math.tanh %257 : vector<8x128xf32>
    %cst_108 = arith.constant 5.000000e-01 : f32
    %259 = vector.broadcast %cst_108 : f32 to vector<8x128xf32>
    %260 = arith.mulf %259, %258 : vector<8x128xf32>
    %cst_109 = arith.constant 5.000000e-01 : f32
    %261 = vector.broadcast %cst_109 : f32 to vector<8x128xf32>
    %262 = arith.addf %260, %261 : vector<8x128xf32>
    %263 = vector.extract_strided_slice %246 {offsets = [0, 256], sizes = [8, 128], strides = [1, 1]} : vector<8x512xf32> to vector<8x128xf32>
    %264 = math.tanh %263 : vector<8x128xf32>
    %265 = vector.extract_strided_slice %246 {offsets = [0, 384], sizes = [8, 128], strides = [1, 1]} : vector<8x512xf32> to vector<8x128xf32>
    %cst_110 = arith.constant 5.000000e-01 : f32
    %266 = vector.broadcast %cst_110 : f32 to vector<8x128xf32>
    %267 = arith.mulf %266, %265 : vector<8x128xf32>
    %268 = math.tanh %267 : vector<8x128xf32>
    %cst_111 = arith.constant 5.000000e-01 : f32
    %269 = vector.broadcast %cst_111 : f32 to vector<8x128xf32>
    %270 = arith.mulf %269, %268 : vector<8x128xf32>
    %cst_112 = arith.constant 5.000000e-01 : f32
    %271 = vector.broadcast %cst_112 : f32 to vector<8x128xf32>
    %272 = arith.addf %270, %271 : vector<8x128xf32>
    %273 = arith.mulf %262, %193 : vector<8x128xf32>
    %274 = arith.mulf %254, %264 : vector<8x128xf32>
    %275 = arith.addf %273, %274 : vector<8x128xf32>
    %276 = math.tanh %275 : vector<8x128xf32>
    %277 = arith.mulf %272, %276 : vector<8x128xf32>
    %278 = arith.truncf %277 : vector<8x128xf32> to vector<8x128xbf16>
    %c5_113 = arith.constant 5 : index
    %c0_114 = arith.constant 0 : index
    %c128_115 = arith.constant 128 : index
    %279 = vector.load %arg21[%c5_113, %c0_114, %c128_115] : memref<8x8x256xbf16, #tpu.memory_space<vmem>>, vector<1x8x128xbf16>
    %280 = vector.shape_cast %279 : vector<1x8x128xbf16> to vector<8x128xbf16>
    %281 = vector.shape_cast %278 : vector<8x128xbf16> to vector<1x8x128xbf16>
    tpu.vector_store %arg21[%c5_113, %c0_114, %c128_115], %281 {strides = array<i32>} : memref<8x8x256xbf16, #tpu.memory_space<vmem>>, vector<1x8x128xbf16>,
    %c3 = arith.constant 3 : index
    %c0_116 = arith.constant 0 : index
    %c0_117 = arith.constant 0 : index
    %282 = vector.load %arg19[%c3, %c0_116, %c0_117] : memref<8x8x1024xbf16, #tpu.memory_space<vmem>>, vector<1x8x512xbf16>
    %283 = vector.shape_cast %282 : vector<1x8x512xbf16> to vector<8x512xbf16>
    %284 = arith.extf %283 : vector<8x512xbf16> to vector<8x512xf32>
    %285 = arith.truncf %236 : vector<8x128xf32> to vector<8x128xbf16>
    %cst_118 = arith.constant dense<0.000000e+00> : vector<8x512xf32>
    %286 = tpu.matmul %285, %33, %cst_118 {dimension_numbers = #tpu.dot_dimension_numbers<[1], [0], [0], [1], [0, 0, 1, 1], [], []>} : vector<8x128xbf16>, vector<128x512xbf16>, vector<8x512xf32> -> vector<8x512xf32>
    %287 = arith.addf %284, %286 : vector<8x512xf32>
    %288 = vector.extract_strided_slice %287 {offsets = [0, 0], sizes = [8, 128], strides = [1, 1]} : vector<8x512xf32> to vector<8x128xf32>
    %cst_119 = arith.constant 5.000000e-01 : f32
    %289 = vector.broadcast %cst_119 : f32 to vector<8x128xf32>
    %290 = arith.mulf %289, %288 : vector<8x128xf32>
    %291 = math.tanh %290 : vector<8x128xf32>
    %cst_120 = arith.constant 5.000000e-01 : f32
    %292 = vector.broadcast %cst_120 : f32 to vector<8x128xf32>
    %293 = arith.mulf %292, %291 : vector<8x128xf32>
    %cst_121 = arith.constant 5.000000e-01 : f32
    %294 = vector.broadcast %cst_121 : f32 to vector<8x128xf32>
    %295 = arith.addf %293, %294 : vector<8x128xf32>
    %296 = vector.extract_strided_slice %287 {offsets = [0, 128], sizes = [8, 128], strides = [1, 1]} : vector<8x512xf32> to vector<8x128xf32>
    %cst_122 = arith.constant 5.000000e-01 : f32
    %297 = vector.broadcast %cst_122 : f32 to vector<8x128xf32>
    %298 = arith.mulf %297, %296 : vector<8x128xf32>
    %299 = math.tanh %298 : vector<8x128xf32>
    %cst_123 = arith.constant 5.000000e-01 : f32
    %300 = vector.broadcast %cst_123 : f32 to vector<8x128xf32>
    %301 = arith.mulf %300, %299 : vector<8x128xf32>
    %cst_124 = arith.constant 5.000000e-01 : f32
    %302 = vector.broadcast %cst_124 : f32 to vector<8x128xf32>
    %303 = arith.addf %301, %302 : vector<8x128xf32>
    %304 = vector.extract_strided_slice %287 {offsets = [0, 256], sizes = [8, 128], strides = [1, 1]} : vector<8x512xf32> to vector<8x128xf32>
    %305 = math.tanh %304 : vector<8x128xf32>
    %306 = vector.extract_strided_slice %287 {offsets = [0, 384], sizes = [8, 128], strides = [1, 1]} : vector<8x512xf32> to vector<8x128xf32>
    %cst_125 = arith.constant 5.000000e-01 : f32
    %307 = vector.broadcast %cst_125 : f32 to vector<8x128xf32>
    %308 = arith.mulf %307, %306 : vector<8x128xf32>
    %309 = math.tanh %308 : vector<8x128xf32>
    %cst_126 = arith.constant 5.000000e-01 : f32
    %310 = vector.broadcast %cst_126 : f32 to vector<8x128xf32>
    %311 = arith.mulf %310, %309 : vector<8x128xf32>
    %cst_127 = arith.constant 5.000000e-01 : f32
    %312 = vector.broadcast %cst_127 : f32 to vector<8x128xf32>
    %313 = arith.addf %311, %312 : vector<8x128xf32>
    %314 = arith.mulf %303, %234 : vector<8x128xf32>
    %315 = arith.mulf %295, %305 : vector<8x128xf32>
    %316 = arith.addf %314, %315 : vector<8x128xf32>
    %317 = math.tanh %316 : vector<8x128xf32>
    %318 = arith.mulf %313, %317 : vector<8x128xf32>
    %319 = arith.truncf %318 : vector<8x128xf32> to vector<8x128xbf16>
    %c3_128 = arith.constant 3 : index
    %c0_129 = arith.constant 0 : index
    %c0_130 = arith.constant 0 : index
    %320 = vector.load %arg21[%c3_128, %c0_129, %c0_130] : memref<8x8x256xbf16, #tpu.memory_space<vmem>>, vector<1x8x128xbf16>
    %321 = vector.shape_cast %320 : vector<1x8x128xbf16> to vector<8x128xbf16>
    %322 = vector.shape_cast %319 : vector<8x128xbf16> to vector<1x8x128xbf16>
    tpu.vector_store %arg21[%c3_128, %c0_129, %c0_130], %322 {strides = array<i32>} : memref<8x8x256xbf16, #tpu.memory_space<vmem>>, vector<1x8x128xbf16>,
    %c4 = arith.constant 4 : index
    %c0_131 = arith.constant 0 : index
    %c512_132 = arith.constant 512 : index
    %323 = vector.load %arg19[%c4, %c0_131, %c512_132] : memref<8x8x1024xbf16, #tpu.memory_space<vmem>>, vector<1x8x512xbf16>
    %324 = vector.shape_cast %323 : vector<1x8x512xbf16> to vector<8x512xbf16>
    %325 = arith.extf %324 : vector<8x512xbf16> to vector<8x512xf32>
    %326 = arith.truncf %277 : vector<8x128xf32> to vector<8x128xbf16>
    %cst_133 = arith.constant dense<0.000000e+00> : vector<8x512xf32>
    %327 = tpu.matmul %326, %34, %cst_133 {dimension_numbers = #tpu.dot_dimension_numbers<[1], [0], [0], [1], [0, 0, 1, 1], [], []>} : vector<8x128xbf16>, vector<128x512xbf16>, vector<8x512xf32> -> vector<8x512xf32>
    %328 = arith.addf %325, %327 : vector<8x512xf32>
    %329 = vector.extract_strided_slice %328 {offsets = [0, 0], sizes = [8, 128], strides = [1, 1]} : vector<8x512xf32> to vector<8x128xf32>
    %cst_134 = arith.constant 5.000000e-01 : f32
    %330 = vector.broadcast %cst_134 : f32 to vector<8x128xf32>
    %331 = arith.mulf %330, %329 : vector<8x128xf32>
    %332 = math.tanh %331 : vector<8x128xf32>
    %cst_135 = arith.constant 5.000000e-01 : f32
    %333 = vector.broadcast %cst_135 : f32 to vector<8x128xf32>
    %334 = arith.mulf %333, %332 : vector<8x128xf32>
    %cst_136 = arith.constant 5.000000e-01 : f32
    %335 = vector.broadcast %cst_136 : f32 to vector<8x128xf32>
    %336 = arith.addf %334, %335 : vector<8x128xf32>
    %337 = vector.extract_strided_slice %328 {offsets = [0, 128], sizes = [8, 128], strides = [1, 1]} : vector<8x512xf32> to vector<8x128xf32>
    %cst_137 = arith.constant 5.000000e-01 : f32
    %338 = vector.broadcast %cst_137 : f32 to vector<8x128xf32>
    %339 = arith.mulf %338, %337 : vector<8x128xf32>
    %340 = math.tanh %339 : vector<8x128xf32>
    %cst_138 = arith.constant 5.000000e-01 : f32
    %341 = vector.broadcast %cst_138 : f32 to vector<8x128xf32>
    %342 = arith.mulf %341, %340 : vector<8x128xf32>
    %cst_139 = arith.constant 5.000000e-01 : f32
    %343 = vector.broadcast %cst_139 : f32 to vector<8x128xf32>
    %344 = arith.addf %342, %343 : vector<8x128xf32>
    %345 = vector.extract_strided_slice %328 {offsets = [0, 256], sizes = [8, 128], strides = [1, 1]} : vector<8x512xf32> to vector<8x128xf32>
    %346 = math.tanh %345 : vector<8x128xf32>
    %347 = vector.extract_strided_slice %328 {offsets = [0, 384], sizes = [8, 128], strides = [1, 1]} : vector<8x512xf32> to vector<8x128xf32>
    %cst_140 = arith.constant 5.000000e-01 : f32
    %348 = vector.broadcast %cst_140 : f32 to vector<8x128xf32>
    %349 = arith.mulf %348, %347 : vector<8x128xf32>
    %350 = math.tanh %349 : vector<8x128xf32>
    %cst_141 = arith.constant 5.000000e-01 : f32
    %351 = vector.broadcast %cst_141 : f32 to vector<8x128xf32>
    %352 = arith.mulf %351, %350 : vector<8x128xf32>
    %cst_142 = arith.constant 5.000000e-01 : f32
    %353 = vector.broadcast %cst_142 : f32 to vector<8x128xf32>
    %354 = arith.addf %352, %353 : vector<8x128xf32>
    %355 = arith.mulf %344, %275 : vector<8x128xf32>
    %356 = arith.mulf %336, %346 : vector<8x128xf32>
    %357 = arith.addf %355, %356 : vector<8x128xf32>
    %358 = math.tanh %357 : vector<8x128xf32>
    %359 = arith.mulf %354, %358 : vector<8x128xf32>
    %360 = arith.truncf %359 : vector<8x128xf32> to vector<8x128xbf16>
    %c4_143 = arith.constant 4 : index
    %c0_144 = arith.constant 0 : index
    %c128_145 = arith.constant 128 : index
    %361 = vector.load %arg21[%c4_143, %c0_144, %c128_145] : memref<8x8x256xbf16, #tpu.memory_space<vmem>>, vector<1x8x128xbf16>
    %362 = vector.shape_cast %361 : vector<1x8x128xbf16> to vector<8x128xbf16>
    %363 = vector.shape_cast %360 : vector<8x128xbf16> to vector<1x8x128xbf16>
    tpu.vector_store %arg21[%c4_143, %c0_144, %c128_145], %363 {strides = array<i32>} : memref<8x8x256xbf16, #tpu.memory_space<vmem>>, vector<1x8x128xbf16>,
    %c4_146 = arith.constant 4 : index
    %c0_147 = arith.constant 0 : index
    %c0_148 = arith.constant 0 : index
    %364 = vector.load %arg19[%c4_146, %c0_147, %c0_148] : memref<8x8x1024xbf16, #tpu.memory_space<vmem>>, vector<1x8x512xbf16>
    %365 = vector.shape_cast %364 : vector<1x8x512xbf16> to vector<8x512xbf16>
    %366 = arith.extf %365 : vector<8x512xbf16> to vector<8x512xf32>
    %367 = arith.truncf %318 : vector<8x128xf32> to vector<8x128xbf16>
    %cst_149 = arith.constant dense<0.000000e+00> : vector<8x512xf32>
    %368 = tpu.matmul %367, %33, %cst_149 {dimension_numbers = #tpu.dot_dimension_numbers<[1], [0], [0], [1], [0, 0, 1, 1], [], []>} : vector<8x128xbf16>, vector<128x512xbf16>, vector<8x512xf32> -> vector<8x512xf32>
    %369 = arith.addf %366, %368 : vector<8x512xf32>
    %370 = vector.extract_strided_slice %369 {offsets = [0, 0], sizes = [8, 128], strides = [1, 1]} : vector<8x512xf32> to vector<8x128xf32>
    %cst_150 = arith.constant 5.000000e-01 : f32
    %371 = vector.broadcast %cst_150 : f32 to vector<8x128xf32>
    %372 = arith.mulf %371, %370 : vector<8x128xf32>
    %373 = math.tanh %372 : vector<8x128xf32>
    %cst_151 = arith.constant 5.000000e-01 : f32
    %374 = vector.broadcast %cst_151 : f32 to vector<8x128xf32>
    %375 = arith.mulf %374, %373 : vector<8x128xf32>
    %cst_152 = arith.constant 5.000000e-01 : f32
    %376 = vector.broadcast %cst_152 : f32 to vector<8x128xf32>
    %377 = arith.addf %375, %376 : vector<8x128xf32>
    %378 = vector.extract_strided_slice %369 {offsets = [0, 128], sizes = [8, 128], strides = [1, 1]} : vector<8x512xf32> to vector<8x128xf32>
    %cst_153 = arith.constant 5.000000e-01 : f32
    %379 = vector.broadcast %cst_153 : f32 to vector<8x128xf32>
    %380 = arith.mulf %379, %378 : vector<8x128xf32>
    %381 = math.tanh %380 : vector<8x128xf32>
    %cst_154 = arith.constant 5.000000e-01 : f32
    %382 = vector.broadcast %cst_154 : f32 to vector<8x128xf32>
    %383 = arith.mulf %382, %381 : vector<8x128xf32>
    %cst_155 = arith.constant 5.000000e-01 : f32
    %384 = vector.broadcast %cst_155 : f32 to vector<8x128xf32>
    %385 = arith.addf %383, %384 : vector<8x128xf32>
    %386 = vector.extract_strided_slice %369 {offsets = [0, 256], sizes = [8, 128], strides = [1, 1]} : vector<8x512xf32> to vector<8x128xf32>
    %387 = math.tanh %386 : vector<8x128xf32>
    %388 = vector.extract_strided_slice %369 {offsets = [0, 384], sizes = [8, 128], strides = [1, 1]} : vector<8x512xf32> to vector<8x128xf32>
    %cst_156 = arith.constant 5.000000e-01 : f32
    %389 = vector.broadcast %cst_156 : f32 to vector<8x128xf32>
    %390 = arith.mulf %389, %388 : vector<8x128xf32>
    %391 = math.tanh %390 : vector<8x128xf32>
    %cst_157 = arith.constant 5.000000e-01 : f32
    %392 = vector.broadcast %cst_157 : f32 to vector<8x128xf32>
    %393 = arith.mulf %392, %391 : vector<8x128xf32>
    %cst_158 = arith.constant 5.000000e-01 : f32
    %394 = vector.broadcast %cst_158 : f32 to vector<8x128xf32>
    %395 = arith.addf %393, %394 : vector<8x128xf32>
    %396 = arith.mulf %385, %316 : vector<8x128xf32>
    %397 = arith.mulf %377, %387 : vector<8x128xf32>
    %398 = arith.addf %396, %397 : vector<8x128xf32>
    %399 = math.tanh %398 : vector<8x128xf32>
    %400 = arith.mulf %395, %399 : vector<8x128xf32>
    %401 = arith.truncf %400 : vector<8x128xf32> to vector<8x128xbf16>
    %c4_159 = arith.constant 4 : index
    %c0_160 = arith.constant 0 : index
    %c0_161 = arith.constant 0 : index
    %402 = vector.load %arg21[%c4_159, %c0_160, %c0_161] : memref<8x8x256xbf16, #tpu.memory_space<vmem>>, vector<1x8x128xbf16>
    %403 = vector.shape_cast %402 : vector<1x8x128xbf16> to vector<8x128xbf16>
    %404 = vector.shape_cast %401 : vector<8x128xbf16> to vector<1x8x128xbf16>
    tpu.vector_store %arg21[%c4_159, %c0_160, %c0_161], %404 {strides = array<i32>} : memref<8x8x256xbf16, #tpu.memory_space<vmem>>, vector<1x8x128xbf16>,
    %c3_162 = arith.constant 3 : index
    %c0_163 = arith.constant 0 : index
    %c512_164 = arith.constant 512 : index
    %405 = vector.load %arg19[%c3_162, %c0_163, %c512_164] : memref<8x8x1024xbf16, #tpu.memory_space<vmem>>, vector<1x8x512xbf16>
    %406 = vector.shape_cast %405 : vector<1x8x512xbf16> to vector<8x512xbf16>
    %407 = arith.extf %406 : vector<8x512xbf16> to vector<8x512xf32>
    %408 = arith.truncf %359 : vector<8x128xf32> to vector<8x128xbf16>
    %cst_165 = arith.constant dense<0.000000e+00> : vector<8x512xf32>
    %409 = tpu.matmul %408, %34, %cst_165 {dimension_numbers = #tpu.dot_dimension_numbers<[1], [0], [0], [1], [0, 0, 1, 1], [], []>} : vector<8x128xbf16>, vector<128x512xbf16>, vector<8x512xf32> -> vector<8x512xf32>
    %410 = arith.addf %407, %409 : vector<8x512xf32>
    %411 = vector.extract_strided_slice %410 {offsets = [0, 0], sizes = [8, 128], strides = [1, 1]} : vector<8x512xf32> to vector<8x128xf32>
    %cst_166 = arith.constant 5.000000e-01 : f32
    %412 = vector.broadcast %cst_166 : f32 to vector<8x128xf32>
    %413 = arith.mulf %412, %411 : vector<8x128xf32>
    %414 = math.tanh %413 : vector<8x128xf32>
    %cst_167 = arith.constant 5.000000e-01 : f32
    %415 = vector.broadcast %cst_167 : f32 to vector<8x128xf32>
    %416 = arith.mulf %415, %414 : vector<8x128xf32>
    %cst_168 = arith.constant 5.000000e-01 : f32
    %417 = vector.broadcast %cst_168 : f32 to vector<8x128xf32>
    %418 = arith.addf %416, %417 : vector<8x128xf32>
    %419 = vector.extract_strided_slice %410 {offsets = [0, 128], sizes = [8, 128], strides = [1, 1]} : vector<8x512xf32> to vector<8x128xf32>
    %cst_169 = arith.constant 5.000000e-01 : f32
    %420 = vector.broadcast %cst_169 : f32 to vector<8x128xf32>
    %421 = arith.mulf %420, %419 : vector<8x128xf32>
    %422 = math.tanh %421 : vector<8x128xf32>
    %cst_170 = arith.constant 5.000000e-01 : f32
    %423 = vector.broadcast %cst_170 : f32 to vector<8x128xf32>
    %424 = arith.mulf %423, %422 : vector<8x128xf32>
    %cst_171 = arith.constant 5.000000e-01 : f32
    %425 = vector.broadcast %cst_171 : f32 to vector<8x128xf32>
    %426 = arith.addf %424, %425 : vector<8x128xf32>
    %427 = vector.extract_strided_slice %410 {offsets = [0, 256], sizes = [8, 128], strides = [1, 1]} : vector<8x512xf32> to vector<8x128xf32>
    %428 = math.tanh %427 : vector<8x128xf32>
    %429 = vector.extract_strided_slice %410 {offsets = [0, 384], sizes = [8, 128], strides = [1, 1]} : vector<8x512xf32> to vector<8x128xf32>
    %cst_172 = arith.constant 5.000000e-01 : f32
    %430 = vector.broadcast %cst_172 : f32 to vector<8x128xf32>
    %431 = arith.mulf %430, %429 : vector<8x128xf32>
    %432 = math.tanh %431 : vector<8x128xf32>
    %cst_173 = arith.constant 5.000000e-01 : f32
    %433 = vector.broadcast %cst_173 : f32 to vector<8x128xf32>
    %434 = arith.mulf %433, %432 : vector<8x128xf32>
    %cst_174 = arith.constant 5.000000e-01 : f32
    %435 = vector.broadcast %cst_174 : f32 to vector<8x128xf32>
    %436 = arith.addf %434, %435 : vector<8x128xf32>
    %437 = arith.mulf %426, %357 : vector<8x128xf32>
    %438 = arith.mulf %418, %428 : vector<8x128xf32>
    %439 = arith.addf %437, %438 : vector<8x128xf32>
    %440 = math.tanh %439 : vector<8x128xf32>
    %441 = arith.mulf %436, %440 : vector<8x128xf32>
    %442 = arith.truncf %441 : vector<8x128xf32> to vector<8x128xbf16>
    %c3_175 = arith.constant 3 : index
    %c0_176 = arith.constant 0 : index
    %c128_177 = arith.constant 128 : index
    %443 = vector.load %arg21[%c3_175, %c0_176, %c128_177] : memref<8x8x256xbf16, #tpu.memory_space<vmem>>, vector<1x8x128xbf16>
    %444 = vector.shape_cast %443 : vector<1x8x128xbf16> to vector<8x128xbf16>
    %445 = vector.shape_cast %442 : vector<8x128xbf16> to vector<1x8x128xbf16>
    tpu.vector_store %arg21[%c3_175, %c0_176, %c128_177], %445 {strides = array<i32>} : memref<8x8x256xbf16, #tpu.memory_space<vmem>>, vector<1x8x128xbf16>,
    %c5_178 = arith.constant 5 : index
    %c0_179 = arith.constant 0 : index
    %c0_180 = arith.constant 0 : index
    %446 = vector.load %arg19[%c5_178, %c0_179, %c0_180] : memref<8x8x1024xbf16, #tpu.memory_space<vmem>>, vector<1x8x512xbf16>
    %447 = vector.shape_cast %446 : vector<1x8x512xbf16> to vector<8x512xbf16>
    %448 = arith.extf %447 : vector<8x512xbf16> to vector<8x512xf32>
    %449 = arith.truncf %400 : vector<8x128xf32> to vector<8x128xbf16>
    %cst_181 = arith.constant dense<0.000000e+00> : vector<8x512xf32>
    %450 = tpu.matmul %449, %33, %cst_181 {dimension_numbers = #tpu.dot_dimension_numbers<[1], [0], [0], [1], [0, 0, 1, 1], [], []>} : vector<8x128xbf16>, vector<128x512xbf16>, vector<8x512xf32> -> vector<8x512xf32>
    %451 = arith.addf %448, %450 : vector<8x512xf32>
    %452 = vector.extract_strided_slice %451 {offsets = [0, 0], sizes = [8, 128], strides = [1, 1]} : vector<8x512xf32> to vector<8x128xf32>
    %cst_182 = arith.constant 5.000000e-01 : f32
    %453 = vector.broadcast %cst_182 : f32 to vector<8x128xf32>
    %454 = arith.mulf %453, %452 : vector<8x128xf32>
    %455 = math.tanh %454 : vector<8x128xf32>
    %cst_183 = arith.constant 5.000000e-01 : f32
    %456 = vector.broadcast %cst_183 : f32 to vector<8x128xf32>
    %457 = arith.mulf %456, %455 : vector<8x128xf32>
    %cst_184 = arith.constant 5.000000e-01 : f32
    %458 = vector.broadcast %cst_184 : f32 to vector<8x128xf32>
    %459 = arith.addf %457, %458 : vector<8x128xf32>
    %460 = vector.extract_strided_slice %451 {offsets = [0, 128], sizes = [8, 128], strides = [1, 1]} : vector<8x512xf32> to vector<8x128xf32>
    %cst_185 = arith.constant 5.000000e-01 : f32
    %461 = vector.broadcast %cst_185 : f32 to vector<8x128xf32>
    %462 = arith.mulf %461, %460 : vector<8x128xf32>
    %463 = math.tanh %462 : vector<8x128xf32>
    %cst_186 = arith.constant 5.000000e-01 : f32
    %464 = vector.broadcast %cst_186 : f32 to vector<8x128xf32>
    %465 = arith.mulf %464, %463 : vector<8x128xf32>
    %cst_187 = arith.constant 5.000000e-01 : f32
    %466 = vector.broadcast %cst_187 : f32 to vector<8x128xf32>
    %467 = arith.addf %465, %466 : vector<8x128xf32>
    %468 = vector.extract_strided_slice %451 {offsets = [0, 256], sizes = [8, 128], strides = [1, 1]} : vector<8x512xf32> to vector<8x128xf32>
    %469 = math.tanh %468 : vector<8x128xf32>
    %470 = vector.extract_strided_slice %451 {offsets = [0, 384], sizes = [8, 128], strides = [1, 1]} : vector<8x512xf32> to vector<8x128xf32>
    %cst_188 = arith.constant 5.000000e-01 : f32
    %471 = vector.broadcast %cst_188 : f32 to vector<8x128xf32>
    %472 = arith.mulf %471, %470 : vector<8x128xf32>
    %473 = math.tanh %472 : vector<8x128xf32>
    %cst_189 = arith.constant 5.000000e-01 : f32
    %474 = vector.broadcast %cst_189 : f32 to vector<8x128xf32>
    %475 = arith.mulf %474, %473 : vector<8x128xf32>
    %cst_190 = arith.constant 5.000000e-01 : f32
    %476 = vector.broadcast %cst_190 : f32 to vector<8x128xf32>
    %477 = arith.addf %475, %476 : vector<8x128xf32>
    %478 = arith.mulf %467, %398 : vector<8x128xf32>
    %479 = arith.mulf %459, %469 : vector<8x128xf32>
    %480 = arith.addf %478, %479 : vector<8x128xf32>
    %481 = math.tanh %480 : vector<8x128xf32>
    %482 = arith.mulf %477, %481 : vector<8x128xf32>
    %483 = arith.truncf %482 : vector<8x128xf32> to vector<8x128xbf16>
    %c5_191 = arith.constant 5 : index
    %c0_192 = arith.constant 0 : index
    %c0_193 = arith.constant 0 : index
    %484 = vector.load %arg21[%c5_191, %c0_192, %c0_193] : memref<8x8x256xbf16, #tpu.memory_space<vmem>>, vector<1x8x128xbf16>
    %485 = vector.shape_cast %484 : vector<1x8x128xbf16> to vector<8x128xbf16>
    %486 = vector.shape_cast %483 : vector<8x128xbf16> to vector<1x8x128xbf16>
    tpu.vector_store %arg21[%c5_191, %c0_192, %c0_193], %486 {strides = array<i32>} : memref<8x8x256xbf16, #tpu.memory_space<vmem>>, vector<1x8x128xbf16>,
    %c2_194 = arith.constant 2 : index
    %c0_195 = arith.constant 0 : index
    %c512_196 = arith.constant 512 : index
    %487 = vector.load %arg19[%c2_194, %c0_195, %c512_196] : memref<8x8x1024xbf16, #tpu.memory_space<vmem>>, vector<1x8x512xbf16>
    %488 = vector.shape_cast %487 : vector<1x8x512xbf16> to vector<8x512xbf16>
    %489 = arith.extf %488 : vector<8x512xbf16> to vector<8x512xf32>
    %490 = arith.truncf %441 : vector<8x128xf32> to vector<8x128xbf16>
    %cst_197 = arith.constant dense<0.000000e+00> : vector<8x512xf32>
    %491 = tpu.matmul %490, %34, %cst_197 {dimension_numbers = #tpu.dot_dimension_numbers<[1], [0], [0], [1], [0, 0, 1, 1], [], []>} : vector<8x128xbf16>, vector<128x512xbf16>, vector<8x512xf32> -> vector<8x512xf32>
    %492 = arith.addf %489, %491 : vector<8x512xf32>
    %493 = vector.extract_strided_slice %492 {offsets = [0, 0], sizes = [8, 128], strides = [1, 1]} : vector<8x512xf32> to vector<8x128xf32>
    %cst_198 = arith.constant 5.000000e-01 : f32
    %494 = vector.broadcast %cst_198 : f32 to vector<8x128xf32>
    %495 = arith.mulf %494, %493 : vector<8x128xf32>
    %496 = math.tanh %495 : vector<8x128xf32>
    %cst_199 = arith.constant 5.000000e-01 : f32
    %497 = vector.broadcast %cst_199 : f32 to vector<8x128xf32>
    %498 = arith.mulf %497, %496 : vector<8x128xf32>
    %cst_200 = arith.constant 5.000000e-01 : f32
    %499 = vector.broadcast %cst_200 : f32 to vector<8x128xf32>
    %500 = arith.addf %498, %499 : vector<8x128xf32>
    %501 = vector.extract_strided_slice %492 {offsets = [0, 128], sizes = [8, 128], strides = [1, 1]} : vector<8x512xf32> to vector<8x128xf32>
    %cst_201 = arith.constant 5.000000e-01 : f32
    %502 = vector.broadcast %cst_201 : f32 to vector<8x128xf32>
    %503 = arith.mulf %502, %501 : vector<8x128xf32>
    %504 = math.tanh %503 : vector<8x128xf32>
    %cst_202 = arith.constant 5.000000e-01 : f32
    %505 = vector.broadcast %cst_202 : f32 to vector<8x128xf32>
    %506 = arith.mulf %505, %504 : vector<8x128xf32>
    %cst_203 = arith.constant 5.000000e-01 : f32
    %507 = vector.broadcast %cst_203 : f32 to vector<8x128xf32>
    %508 = arith.addf %506, %507 : vector<8x128xf32>
    %509 = vector.extract_strided_slice %492 {offsets = [0, 256], sizes = [8, 128], strides = [1, 1]} : vector<8x512xf32> to vector<8x128xf32>
    %510 = math.tanh %509 : vector<8x128xf32>
    %511 = vector.extract_strided_slice %492 {offsets = [0, 384], sizes = [8, 128], strides = [1, 1]} : vector<8x512xf32> to vector<8x128xf32>
    %cst_204 = arith.constant 5.000000e-01 : f32
    %512 = vector.broadcast %cst_204 : f32 to vector<8x128xf32>
    %513 = arith.mulf %512, %511 : vector<8x128xf32>
    %514 = math.tanh %513 : vector<8x128xf32>
    %cst_205 = arith.constant 5.000000e-01 : f32
    %515 = vector.broadcast %cst_205 : f32 to vector<8x128xf32>
    %516 = arith.mulf %515, %514 : vector<8x128xf32>
    %cst_206 = arith.constant 5.000000e-01 : f32
    %517 = vector.broadcast %cst_206 : f32 to vector<8x128xf32>
    %518 = arith.addf %516, %517 : vector<8x128xf32>
    %519 = arith.mulf %508, %439 : vector<8x128xf32>
    %520 = arith.mulf %500, %510 : vector<8x128xf32>
    %521 = arith.addf %519, %520 : vector<8x128xf32>
    %522 = math.tanh %521 : vector<8x128xf32>
    %523 = arith.mulf %518, %522 : vector<8x128xf32>
    %524 = arith.truncf %523 : vector<8x128xf32> to vector<8x128xbf16>
    %c2_207 = arith.constant 2 : index
    %c0_208 = arith.constant 0 : index
    %c128_209 = arith.constant 128 : index
    %525 = vector.load %arg21[%c2_207, %c0_208, %c128_209] : memref<8x8x256xbf16, #tpu.memory_space<vmem>>, vector<1x8x128xbf16>
    %526 = vector.shape_cast %525 : vector<1x8x128xbf16> to vector<8x128xbf16>
    %527 = vector.shape_cast %524 : vector<8x128xbf16> to vector<1x8x128xbf16>
    tpu.vector_store %arg21[%c2_207, %c0_208, %c128_209], %527 {strides = array<i32>} : memref<8x8x256xbf16, #tpu.memory_space<vmem>>, vector<1x8x128xbf16>,
    %c6_210 = arith.constant 6 : index
    %c0_211 = arith.constant 0 : index
    %c0_212 = arith.constant 0 : index
    %528 = vector.load %arg19[%c6_210, %c0_211, %c0_212] : memref<8x8x1024xbf16, #tpu.memory_space<vmem>>, vector<1x8x512xbf16>
    %529 = vector.shape_cast %528 : vector<1x8x512xbf16> to vector<8x512xbf16>
    %530 = arith.extf %529 : vector<8x512xbf16> to vector<8x512xf32>
    %531 = arith.truncf %482 : vector<8x128xf32> to vector<8x128xbf16>
    %cst_213 = arith.constant dense<0.000000e+00> : vector<8x512xf32>
    %532 = tpu.matmul %531, %33, %cst_213 {dimension_numbers = #tpu.dot_dimension_numbers<[1], [0], [0], [1], [0, 0, 1, 1], [], []>} : vector<8x128xbf16>, vector<128x512xbf16>, vector<8x512xf32> -> vector<8x512xf32>
    %533 = arith.addf %530, %532 : vector<8x512xf32>
    %534 = vector.extract_strided_slice %533 {offsets = [0, 0], sizes = [8, 128], strides = [1, 1]} : vector<8x512xf32> to vector<8x128xf32>
    %cst_214 = arith.constant 5.000000e-01 : f32
    %535 = vector.broadcast %cst_214 : f32 to vector<8x128xf32>
    %536 = arith.mulf %535, %534 : vector<8x128xf32>
    %537 = math.tanh %536 : vector<8x128xf32>
    %cst_215 = arith.constant 5.000000e-01 : f32
    %538 = vector.broadcast %cst_215 : f32 to vector<8x128xf32>
    %539 = arith.mulf %538, %537 : vector<8x128xf32>
    %cst_216 = arith.constant 5.000000e-01 : f32
    %540 = vector.broadcast %cst_216 : f32 to vector<8x128xf32>
    %541 = arith.addf %539, %540 : vector<8x128xf32>
    %542 = vector.extract_strided_slice %533 {offsets = [0, 128], sizes = [8, 128], strides = [1, 1]} : vector<8x512xf32> to vector<8x128xf32>
    %cst_217 = arith.constant 5.000000e-01 : f32
    %543 = vector.broadcast %cst_217 : f32 to vector<8x128xf32>
    %544 = arith.mulf %543, %542 : vector<8x128xf32>
    %545 = math.tanh %544 : vector<8x128xf32>
    %cst_218 = arith.constant 5.000000e-01 : f32
    %546 = vector.broadcast %cst_218 : f32 to vector<8x128xf32>
    %547 = arith.mulf %546, %545 : vector<8x128xf32>
    %cst_219 = arith.constant 5.000000e-01 : f32
    %548 = vector.broadcast %cst_219 : f32 to vector<8x128xf32>
    %549 = arith.addf %547, %548 : vector<8x128xf32>
    %550 = vector.extract_strided_slice %533 {offsets = [0, 256], sizes = [8, 128], strides = [1, 1]} : vector<8x512xf32> to vector<8x128xf32>
    %551 = math.tanh %550 : vector<8x128xf32>
    %552 = vector.extract_strided_slice %533 {offsets = [0, 384], sizes = [8, 128], strides = [1, 1]} : vector<8x512xf32> to vector<8x128xf32>
    %cst_220 = arith.constant 5.000000e-01 : f32
    %553 = vector.broadcast %cst_220 : f32 to vector<8x128xf32>
    %554 = arith.mulf %553, %552 : vector<8x128xf32>
    %555 = math.tanh %554 : vector<8x128xf32>
    %cst_221 = arith.constant 5.000000e-01 : f32
    %556 = vector.broadcast %cst_221 : f32 to vector<8x128xf32>
    %557 = arith.mulf %556, %555 : vector<8x128xf32>
    %cst_222 = arith.constant 5.000000e-01 : f32
    %558 = vector.broadcast %cst_222 : f32 to vector<8x128xf32>
    %559 = arith.addf %557, %558 : vector<8x128xf32>
    %560 = arith.mulf %549, %480 : vector<8x128xf32>
    %561 = arith.mulf %541, %551 : vector<8x128xf32>
    %562 = arith.addf %560, %561 : vector<8x128xf32>
    %563 = math.tanh %562 : vector<8x128xf32>
    %564 = arith.mulf %559, %563 : vector<8x128xf32>
    %565 = arith.truncf %564 : vector<8x128xf32> to vector<8x128xbf16>
    %c6_223 = arith.constant 6 : index
    %c0_224 = arith.constant 0 : index
    %c0_225 = arith.constant 0 : index
    %566 = vector.load %arg21[%c6_223, %c0_224, %c0_225] : memref<8x8x256xbf16, #tpu.memory_space<vmem>>, vector<1x8x128xbf16>
    %567 = vector.shape_cast %566 : vector<1x8x128xbf16> to vector<8x128xbf16>
    %568 = vector.shape_cast %565 : vector<8x128xbf16> to vector<1x8x128xbf16>
    tpu.vector_store %arg21[%c6_223, %c0_224, %c0_225], %568 {strides = array<i32>} : memref<8x8x256xbf16, #tpu.memory_space<vmem>>, vector<1x8x128xbf16>,
    %c1_226 = arith.constant 1 : index
    %c0_227 = arith.constant 0 : index
    %c512_228 = arith.constant 512 : index
    %569 = vector.load %arg19[%c1_226, %c0_227, %c512_228] : memref<8x8x1024xbf16, #tpu.memory_space<vmem>>, vector<1x8x512xbf16>
    %570 = vector.shape_cast %569 : vector<1x8x512xbf16> to vector<8x512xbf16>
    %571 = arith.extf %570 : vector<8x512xbf16> to vector<8x512xf32>
    %572 = arith.truncf %523 : vector<8x128xf32> to vector<8x128xbf16>
    %cst_229 = arith.constant dense<0.000000e+00> : vector<8x512xf32>
    %573 = tpu.matmul %572, %34, %cst_229 {dimension_numbers = #tpu.dot_dimension_numbers<[1], [0], [0], [1], [0, 0, 1, 1], [], []>} : vector<8x128xbf16>, vector<128x512xbf16>, vector<8x512xf32> -> vector<8x512xf32>
    %574 = arith.addf %571, %573 : vector<8x512xf32>
    %575 = vector.extract_strided_slice %574 {offsets = [0, 0], sizes = [8, 128], strides = [1, 1]} : vector<8x512xf32> to vector<8x128xf32>
    %cst_230 = arith.constant 5.000000e-01 : f32
    %576 = vector.broadcast %cst_230 : f32 to vector<8x128xf32>
    %577 = arith.mulf %576, %575 : vector<8x128xf32>
    %578 = math.tanh %577 : vector<8x128xf32>
    %cst_231 = arith.constant 5.000000e-01 : f32
    %579 = vector.broadcast %cst_231 : f32 to vector<8x128xf32>
    %580 = arith.mulf %579, %578 : vector<8x128xf32>
    %cst_232 = arith.constant 5.000000e-01 : f32
    %581 = vector.broadcast %cst_232 : f32 to vector<8x128xf32>
    %582 = arith.addf %580, %581 : vector<8x128xf32>
    %583 = vector.extract_strided_slice %574 {offsets = [0, 128], sizes = [8, 128], strides = [1, 1]} : vector<8x512xf32> to vector<8x128xf32>
    %cst_233 = arith.constant 5.000000e-01 : f32
    %584 = vector.broadcast %cst_233 : f32 to vector<8x128xf32>
    %585 = arith.mulf %584, %583 : vector<8x128xf32>
    %586 = math.tanh %585 : vector<8x128xf32>
    %cst_234 = arith.constant 5.000000e-01 : f32
    %587 = vector.broadcast %cst_234 : f32 to vector<8x128xf32>
    %588 = arith.mulf %587, %586 : vector<8x128xf32>
    %cst_235 = arith.constant 5.000000e-01 : f32
    %589 = vector.broadcast %cst_235 : f32 to vector<8x128xf32>
    %590 = arith.addf %588, %589 : vector<8x128xf32>
    %591 = vector.extract_strided_slice %574 {offsets = [0, 256], sizes = [8, 128], strides = [1, 1]} : vector<8x512xf32> to vector<8x128xf32>
    %592 = math.tanh %591 : vector<8x128xf32>
    %593 = vector.extract_strided_slice %574 {offsets = [0, 384], sizes = [8, 128], strides = [1, 1]} : vector<8x512xf32> to vector<8x128xf32>
    %cst_236 = arith.constant 5.000000e-01 : f32
    %594 = vector.broadcast %cst_236 : f32 to vector<8x128xf32>
    %595 = arith.mulf %594, %593 : vector<8x128xf32>
    %596 = math.tanh %595 : vector<8x128xf32>
    %cst_237 = arith.constant 5.000000e-01 : f32
    %597 = vector.broadcast %cst_237 : f32 to vector<8x128xf32>
    %598 = arith.mulf %597, %596 : vector<8x128xf32>
    %cst_238 = arith.constant 5.000000e-01 : f32
    %599 = vector.broadcast %cst_238 : f32 to vector<8x128xf32>
    %600 = arith.addf %598, %599 : vector<8x128xf32>
    %601 = arith.mulf %590, %521 : vector<8x128xf32>
    %602 = arith.mulf %582, %592 : vector<8x128xf32>
    %603 = arith.addf %601, %602 : vector<8x128xf32>
    %604 = math.tanh %603 : vector<8x128xf32>
    %605 = arith.mulf %600, %604 : vector<8x128xf32>
    %606 = arith.truncf %605 : vector<8x128xf32> to vector<8x128xbf16>
    %c1_239 = arith.constant 1 : index
    %c0_240 = arith.constant 0 : index
    %c128_241 = arith.constant 128 : index
    %607 = vector.load %arg21[%c1_239, %c0_240, %c128_241] : memref<8x8x256xbf16, #tpu.memory_space<vmem>>, vector<1x8x128xbf16>
    %608 = vector.shape_cast %607 : vector<1x8x128xbf16> to vector<8x128xbf16>
    %609 = vector.shape_cast %606 : vector<8x128xbf16> to vector<1x8x128xbf16>
    tpu.vector_store %arg21[%c1_239, %c0_240, %c128_241], %609 {strides = array<i32>} : memref<8x8x256xbf16, #tpu.memory_space<vmem>>, vector<1x8x128xbf16>,
    %c7_242 = arith.constant 7 : index
    %c0_243 = arith.constant 0 : index
    %c0_244 = arith.constant 0 : index
    %610 = vector.load %arg19[%c7_242, %c0_243, %c0_244] : memref<8x8x1024xbf16, #tpu.memory_space<vmem>>, vector<1x8x512xbf16>
    %611 = vector.shape_cast %610 : vector<1x8x512xbf16> to vector<8x512xbf16>
    %612 = arith.extf %611 : vector<8x512xbf16> to vector<8x512xf32>
    %613 = arith.truncf %564 : vector<8x128xf32> to vector<8x128xbf16>
    %cst_245 = arith.constant dense<0.000000e+00> : vector<8x512xf32>
    %614 = tpu.matmul %613, %33, %cst_245 {dimension_numbers = #tpu.dot_dimension_numbers<[1], [0], [0], [1], [0, 0, 1, 1], [], []>} : vector<8x128xbf16>, vector<128x512xbf16>, vector<8x512xf32> -> vector<8x512xf32>
    %615 = arith.addf %612, %614 : vector<8x512xf32>
    %616 = vector.extract_strided_slice %615 {offsets = [0, 0], sizes = [8, 128], strides = [1, 1]} : vector<8x512xf32> to vector<8x128xf32>
    %cst_246 = arith.constant 5.000000e-01 : f32
    %617 = vector.broadcast %cst_246 : f32 to vector<8x128xf32>
    %618 = arith.mulf %617, %616 : vector<8x128xf32>
    %619 = math.tanh %618 : vector<8x128xf32>
    %cst_247 = arith.constant 5.000000e-01 : f32
    %620 = vector.broadcast %cst_247 : f32 to vector<8x128xf32>
    %621 = arith.mulf %620, %619 : vector<8x128xf32>
    %cst_248 = arith.constant 5.000000e-01 : f32
    %622 = vector.broadcast %cst_248 : f32 to vector<8x128xf32>
    %623 = arith.addf %621, %622 : vector<8x128xf32>
    %624 = vector.extract_strided_slice %615 {offsets = [0, 128], sizes = [8, 128], strides = [1, 1]} : vector<8x512xf32> to vector<8x128xf32>
    %cst_249 = arith.constant 5.000000e-01 : f32
    %625 = vector.broadcast %cst_249 : f32 to vector<8x128xf32>
    %626 = arith.mulf %625, %624 : vector<8x128xf32>
    %627 = math.tanh %626 : vector<8x128xf32>
    %cst_250 = arith.constant 5.000000e-01 : f32
    %628 = vector.broadcast %cst_250 : f32 to vector<8x128xf32>
    %629 = arith.mulf %628, %627 : vector<8x128xf32>
    %cst_251 = arith.constant 5.000000e-01 : f32
    %630 = vector.broadcast %cst_251 : f32 to vector<8x128xf32>
    %631 = arith.addf %629, %630 : vector<8x128xf32>
    %632 = vector.extract_strided_slice %615 {offsets = [0, 256], sizes = [8, 128], strides = [1, 1]} : vector<8x512xf32> to vector<8x128xf32>
    %633 = math.tanh %632 : vector<8x128xf32>
    %634 = vector.extract_strided_slice %615 {offsets = [0, 384], sizes = [8, 128], strides = [1, 1]} : vector<8x512xf32> to vector<8x128xf32>
    %cst_252 = arith.constant 5.000000e-01 : f32
    %635 = vector.broadcast %cst_252 : f32 to vector<8x128xf32>
    %636 = arith.mulf %635, %634 : vector<8x128xf32>
    %637 = math.tanh %636 : vector<8x128xf32>
    %cst_253 = arith.constant 5.000000e-01 : f32
    %638 = vector.broadcast %cst_253 : f32 to vector<8x128xf32>
    %639 = arith.mulf %638, %637 : vector<8x128xf32>
    %cst_254 = arith.constant 5.000000e-01 : f32
    %640 = vector.broadcast %cst_254 : f32 to vector<8x128xf32>
    %641 = arith.addf %639, %640 : vector<8x128xf32>
    %642 = arith.mulf %631, %562 : vector<8x128xf32>
    %643 = arith.mulf %623, %633 : vector<8x128xf32>
    %644 = arith.addf %642, %643 : vector<8x128xf32>
    %645 = math.tanh %644 : vector<8x128xf32>
    %646 = arith.mulf %641, %645 : vector<8x128xf32>
    %647 = arith.truncf %646 : vector<8x128xf32> to vector<8x128xbf16>
    %c7_255 = arith.constant 7 : index
    %c0_256 = arith.constant 0 : index
    %c0_257 = arith.constant 0 : index
    %648 = vector.load %arg21[%c7_255, %c0_256, %c0_257] : memref<8x8x256xbf16, #tpu.memory_space<vmem>>, vector<1x8x128xbf16>
    %649 = vector.shape_cast %648 : vector<1x8x128xbf16> to vector<8x128xbf16>
    %650 = vector.shape_cast %647 : vector<8x128xbf16> to vector<1x8x128xbf16>
    tpu.vector_store %arg21[%c7_255, %c0_256, %c0_257], %650 {strides = array<i32>} : memref<8x8x256xbf16, #tpu.memory_space<vmem>>, vector<1x8x128xbf16>,
    %c0_258 = arith.constant 0 : index
    %c0_259 = arith.constant 0 : index
    %c512_260 = arith.constant 512 : index
    %651 = vector.load %arg19[%c0_258, %c0_259, %c512_260] : memref<8x8x1024xbf16, #tpu.memory_space<vmem>>, vector<1x8x512xbf16>
    %652 = vector.shape_cast %651 : vector<1x8x512xbf16> to vector<8x512xbf16>
    %653 = arith.extf %652 : vector<8x512xbf16> to vector<8x512xf32>
    %654 = arith.truncf %605 : vector<8x128xf32> to vector<8x128xbf16>
    %cst_261 = arith.constant dense<0.000000e+00> : vector<8x512xf32>
    %655 = tpu.matmul %654, %34, %cst_261 {dimension_numbers = #tpu.dot_dimension_numbers<[1], [0], [0], [1], [0, 0, 1, 1], [], []>} : vector<8x128xbf16>, vector<128x512xbf16>, vector<8x512xf32> -> vector<8x512xf32>
    %656 = arith.addf %653, %655 : vector<8x512xf32>
    %657 = vector.extract_strided_slice %656 {offsets = [0, 0], sizes = [8, 128], strides = [1, 1]} : vector<8x512xf32> to vector<8x128xf32>
    %cst_262 = arith.constant 5.000000e-01 : f32
    %658 = vector.broadcast %cst_262 : f32 to vector<8x128xf32>
    %659 = arith.mulf %658, %657 : vector<8x128xf32>
    %660 = math.tanh %659 : vector<8x128xf32>
    %cst_263 = arith.constant 5.000000e-01 : f32
    %661 = vector.broadcast %cst_263 : f32 to vector<8x128xf32>
    %662 = arith.mulf %661, %660 : vector<8x128xf32>
    %cst_264 = arith.constant 5.000000e-01 : f32
    %663 = vector.broadcast %cst_264 : f32 to vector<8x128xf32>
    %664 = arith.addf %662, %663 : vector<8x128xf32>
    %665 = vector.extract_strided_slice %656 {offsets = [0, 128], sizes = [8, 128], strides = [1, 1]} : vector<8x512xf32> to vector<8x128xf32>
    %cst_265 = arith.constant 5.000000e-01 : f32
    %666 = vector.broadcast %cst_265 : f32 to vector<8x128xf32>
    %667 = arith.mulf %666, %665 : vector<8x128xf32>
    %668 = math.tanh %667 : vector<8x128xf32>
    %cst_266 = arith.constant 5.000000e-01 : f32
    %669 = vector.broadcast %cst_266 : f32 to vector<8x128xf32>
    %670 = arith.mulf %669, %668 : vector<8x128xf32>
    %cst_267 = arith.constant 5.000000e-01 : f32
    %671 = vector.broadcast %cst_267 : f32 to vector<8x128xf32>
    %672 = arith.addf %670, %671 : vector<8x128xf32>
    %673 = vector.extract_strided_slice %656 {offsets = [0, 256], sizes = [8, 128], strides = [1, 1]} : vector<8x512xf32> to vector<8x128xf32>
    %674 = math.tanh %673 : vector<8x128xf32>
    %675 = vector.extract_strided_slice %656 {offsets = [0, 384], sizes = [8, 128], strides = [1, 1]} : vector<8x512xf32> to vector<8x128xf32>
    %cst_268 = arith.constant 5.000000e-01 : f32
    %676 = vector.broadcast %cst_268 : f32 to vector<8x128xf32>
    %677 = arith.mulf %676, %675 : vector<8x128xf32>
    %678 = math.tanh %677 : vector<8x128xf32>
    %cst_269 = arith.constant 5.000000e-01 : f32
    %679 = vector.broadcast %cst_269 : f32 to vector<8x128xf32>
    %680 = arith.mulf %679, %678 : vector<8x128xf32>
    %cst_270 = arith.constant 5.000000e-01 : f32
    %681 = vector.broadcast %cst_270 : f32 to vector<8x128xf32>
    %682 = arith.addf %680, %681 : vector<8x128xf32>
    %683 = arith.mulf %672, %603 : vector<8x128xf32>
    %684 = arith.mulf %664, %674 : vector<8x128xf32>
    %685 = arith.addf %683, %684 : vector<8x128xf32>
    %686 = math.tanh %685 : vector<8x128xf32>
    %687 = arith.mulf %682, %686 : vector<8x128xf32>
    %688 = arith.truncf %687 : vector<8x128xf32> to vector<8x128xbf16>
    %c0_271 = arith.constant 0 : index
    %c0_272 = arith.constant 0 : index
    %c128_273 = arith.constant 128 : index
    %689 = vector.load %arg21[%c0_271, %c0_272, %c128_273] : memref<8x8x256xbf16, #tpu.memory_space<vmem>>, vector<1x8x128xbf16>
    %690 = vector.shape_cast %689 : vector<1x8x128xbf16> to vector<8x128xbf16>
    %691 = vector.shape_cast %688 : vector<8x128xbf16> to vector<1x8x128xbf16>
    tpu.vector_store %arg21[%c0_271, %c0_272, %c128_273], %691 {strides = array<i32>} : memref<8x8x256xbf16, #tpu.memory_space<vmem>>, vector<1x8x128xbf16>,
    %c0_274 = arith.constant 0 : index
    %c0_275 = arith.constant 0 : index
    %c0_276 = arith.constant 0 : index
    %692 = vector.load %arg21[%c0_274, %c0_275, %c0_276] : memref<8x8x256xbf16, #tpu.memory_space<vmem>>, vector<8x8x256xbf16>
    %693 = vector.shape_cast %692 : vector<8x8x256xbf16> to vector<64x256xbf16>
    %c0_277 = arith.constant 0 : index
    %c0_278 = arith.constant 0 : index
    %694 = vector.load %arg10[%c0_277, %c0_278] : memref<256x512xbf16, #tpu.memory_space<vmem>>, vector<256x512xbf16>
    %cst_279 = arith.constant dense<0.000000e+00> : vector<64x512xf32>
    %695 = tpu.matmul %693, %694, %cst_279 {dimension_numbers = #tpu.dot_dimension_numbers<[1], [0], [0], [1], [0, 0, 1, 1], [], []>} : vector<64x256xbf16>, vector<256x512xbf16>, vector<64x512xf32> -> vector<64x512xf32>
    %c0_280 = arith.constant 0 : index
    %c0_281 = arith.constant 0 : index
    %696 = vector.load %arg11[%c0_280, %c0_281] : memref<1x512xf32, #tpu.memory_space<vmem>>, vector<1x512xf32>
    %697 = vector.broadcast %696 : vector<1x512xf32> to vector<64x512xf32>
    %698 = arith.addf %695, %697 : vector<64x512xf32>
    %699 = vector.shape_cast %698 : vector<64x512xf32> to vector<8x8x512xf32>
    %700 = arith.truncf %699 : vector<8x8x512xf32> to vector<8x8x512xbf16>
    %c0_282 = arith.constant 0 : index
    %c0_283 = arith.constant 0 : index
    %c0_284 = arith.constant 0 : index
    %701 = vector.load %arg20[%c0_282, %c0_283, %c0_284] : memref<8x8x512xbf16, #tpu.memory_space<vmem>>, vector<8x8x512xbf16>
    tpu.vector_store %arg20[%c0_282, %c0_283, %c0_284], %700 {strides = array<i32>} : memref<8x8x512xbf16, #tpu.memory_space<vmem>>, vector<8x8x512xbf16>,
    %c0_285 = arith.constant 0 : index
    %c0_286 = arith.constant 0 : index
    %702 = vector.load %arg14[%c0_285, %c0_286] : memref<128x512xbf16, #tpu.memory_space<vmem>>, vector<128x512xbf16>
    %c0_287 = arith.constant 0 : index
    %c0_288 = arith.constant 0 : index
    %c0_289 = arith.constant 0 : index
    %703 = vector.load %arg20[%c0_287, %c0_288, %c0_289] : memref<8x8x512xbf16, #tpu.memory_space<vmem>>, vector<1x8x512xbf16>
    %704 = vector.shape_cast %703 : vector<1x8x512xbf16> to vector<8x512xbf16>
    %705 = arith.extf %704 : vector<8x512xbf16> to vector<8x512xf32>
    %706 = arith.truncf %35 : vector<8x128xf32> to vector<8x128xbf16>
    %cst_290 = arith.constant dense<0.000000e+00> : vector<8x512xf32>
    %707 = tpu.matmul %706, %702, %cst_290 {dimension_numbers = #tpu.dot_dimension_numbers<[1], [0], [0], [1], [0, 0, 1, 1], [], []>} : vector<8x128xbf16>, vector<128x512xbf16>, vector<8x512xf32> -> vector<8x512xf32>
    %708 = arith.addf %705, %707 : vector<8x512xf32>
    %709 = vector.extract_strided_slice %708 {offsets = [0, 0], sizes = [8, 128], strides = [1, 1]} : vector<8x512xf32> to vector<8x128xf32>
    %cst_291 = arith.constant 5.000000e-01 : f32
    %710 = vector.broadcast %cst_291 : f32 to vector<8x128xf32>
    %711 = arith.mulf %710, %709 : vector<8x128xf32>
    %712 = math.tanh %711 : vector<8x128xf32>
    %cst_292 = arith.constant 5.000000e-01 : f32
    %713 = vector.broadcast %cst_292 : f32 to vector<8x128xf32>
    %714 = arith.mulf %713, %712 : vector<8x128xf32>
    %cst_293 = arith.constant 5.000000e-01 : f32
    %715 = vector.broadcast %cst_293 : f32 to vector<8x128xf32>
    %716 = arith.addf %714, %715 : vector<8x128xf32>
    %717 = vector.extract_strided_slice %708 {offsets = [0, 128], sizes = [8, 128], strides = [1, 1]} : vector<8x512xf32> to vector<8x128xf32>
    %cst_294 = arith.constant 5.000000e-01 : f32
    %718 = vector.broadcast %cst_294 : f32 to vector<8x128xf32>
    %719 = arith.mulf %718, %717 : vector<8x128xf32>
    %720 = math.tanh %719 : vector<8x128xf32>
    %cst_295 = arith.constant 5.000000e-01 : f32
    %721 = vector.broadcast %cst_295 : f32 to vector<8x128xf32>
    %722 = arith.mulf %721, %720 : vector<8x128xf32>
    %cst_296 = arith.constant 5.000000e-01 : f32
    %723 = vector.broadcast %cst_296 : f32 to vector<8x128xf32>
    %724 = arith.addf %722, %723 : vector<8x128xf32>
    %725 = vector.extract_strided_slice %708 {offsets = [0, 256], sizes = [8, 128], strides = [1, 1]} : vector<8x512xf32> to vector<8x128xf32>
    %726 = math.tanh %725 : vector<8x128xf32>
    %727 = vector.extract_strided_slice %708 {offsets = [0, 384], sizes = [8, 128], strides = [1, 1]} : vector<8x512xf32> to vector<8x128xf32>
    %cst_297 = arith.constant 5.000000e-01 : f32
    %728 = vector.broadcast %cst_297 : f32 to vector<8x128xf32>
    %729 = arith.mulf %728, %727 : vector<8x128xf32>
    %730 = math.tanh %729 : vector<8x128xf32>
    %cst_298 = arith.constant 5.000000e-01 : f32
    %731 = vector.broadcast %cst_298 : f32 to vector<8x128xf32>
    %732 = arith.mulf %731, %730 : vector<8x128xf32>
    %cst_299 = arith.constant 5.000000e-01 : f32
    %733 = vector.broadcast %cst_299 : f32 to vector<8x128xf32>
    %734 = arith.addf %732, %733 : vector<8x128xf32>
    %735 = arith.mulf %724, %35 : vector<8x128xf32>
    %736 = arith.mulf %716, %726 : vector<8x128xf32>
    %737 = arith.addf %735, %736 : vector<8x128xf32>
    %738 = math.tanh %737 : vector<8x128xf32>
    %739 = arith.mulf %734, %738 : vector<8x128xf32>
    %c1_300 = arith.constant 1 : index
    %c0_301 = arith.constant 0 : index
    %c0_302 = arith.constant 0 : index
    %740 = vector.load %arg20[%c1_300, %c0_301, %c0_302] : memref<8x8x512xbf16, #tpu.memory_space<vmem>>, vector<1x8x512xbf16>
    %741 = vector.shape_cast %740 : vector<1x8x512xbf16> to vector<8x512xbf16>
    %742 = arith.extf %741 : vector<8x512xbf16> to vector<8x512xf32>
    %743 = arith.truncf %739 : vector<8x128xf32> to vector<8x128xbf16>
    %cst_303 = arith.constant dense<0.000000e+00> : vector<8x512xf32>
    %744 = tpu.matmul %743, %702, %cst_303 {dimension_numbers = #tpu.dot_dimension_numbers<[1], [0], [0], [1], [0, 0, 1, 1], [], []>} : vector<8x128xbf16>, vector<128x512xbf16>, vector<8x512xf32> -> vector<8x512xf32>
    %745 = arith.addf %742, %744 : vector<8x512xf32>
    %746 = vector.extract_strided_slice %745 {offsets = [0, 0], sizes = [8, 128], strides = [1, 1]} : vector<8x512xf32> to vector<8x128xf32>
    %cst_304 = arith.constant 5.000000e-01 : f32
    %747 = vector.broadcast %cst_304 : f32 to vector<8x128xf32>
    %748 = arith.mulf %747, %746 : vector<8x128xf32>
    %749 = math.tanh %748 : vector<8x128xf32>
    %cst_305 = arith.constant 5.000000e-01 : f32
    %750 = vector.broadcast %cst_305 : f32 to vector<8x128xf32>
    %751 = arith.mulf %750, %749 : vector<8x128xf32>
    %cst_306 = arith.constant 5.000000e-01 : f32
    %752 = vector.broadcast %cst_306 : f32 to vector<8x128xf32>
    %753 = arith.addf %751, %752 : vector<8x128xf32>
    %754 = vector.extract_strided_slice %745 {offsets = [0, 128], sizes = [8, 128], strides = [1, 1]} : vector<8x512xf32> to vector<8x128xf32>
    %cst_307 = arith.constant 5.000000e-01 : f32
    %755 = vector.broadcast %cst_307 : f32 to vector<8x128xf32>
    %756 = arith.mulf %755, %754 : vector<8x128xf32>
    %757 = math.tanh %756 : vector<8x128xf32>
    %cst_308 = arith.constant 5.000000e-01 : f32
    %758 = vector.broadcast %cst_308 : f32 to vector<8x128xf32>
    %759 = arith.mulf %758, %757 : vector<8x128xf32>
    %cst_309 = arith.constant 5.000000e-01 : f32
    %760 = vector.broadcast %cst_309 : f32 to vector<8x128xf32>
    %761 = arith.addf %759, %760 : vector<8x128xf32>
    %762 = vector.extract_strided_slice %745 {offsets = [0, 256], sizes = [8, 128], strides = [1, 1]} : vector<8x512xf32> to vector<8x128xf32>
    %763 = math.tanh %762 : vector<8x128xf32>
    %764 = vector.extract_strided_slice %745 {offsets = [0, 384], sizes = [8, 128], strides = [1, 1]} : vector<8x512xf32> to vector<8x128xf32>
    %cst_310 = arith.constant 5.000000e-01 : f32
    %765 = vector.broadcast %cst_310 : f32 to vector<8x128xf32>
    %766 = arith.mulf %765, %764 : vector<8x128xf32>
    %767 = math.tanh %766 : vector<8x128xf32>
    %cst_311 = arith.constant 5.000000e-01 : f32
    %768 = vector.broadcast %cst_311 : f32 to vector<8x128xf32>
    %769 = arith.mulf %768, %767 : vector<8x128xf32>
    %cst_312 = arith.constant 5.000000e-01 : f32
    %770 = vector.broadcast %cst_312 : f32 to vector<8x128xf32>
    %771 = arith.addf %769, %770 : vector<8x128xf32>
    %772 = arith.mulf %761, %737 : vector<8x128xf32>
    %773 = arith.mulf %753, %763 : vector<8x128xf32>
    %774 = arith.addf %772, %773 : vector<8x128xf32>
    %775 = math.tanh %774 : vector<8x128xf32>
    %776 = arith.mulf %771, %775 : vector<8x128xf32>
    %c2_313 = arith.constant 2 : index
    %c0_314 = arith.constant 0 : index
    %c0_315 = arith.constant 0 : index
    %777 = vector.load %arg20[%c2_313, %c0_314, %c0_315] : memref<8x8x512xbf16, #tpu.memory_space<vmem>>, vector<1x8x512xbf16>
    %778 = vector.shape_cast %777 : vector<1x8x512xbf16> to vector<8x512xbf16>
    %779 = arith.extf %778 : vector<8x512xbf16> to vector<8x512xf32>
    %780 = arith.truncf %776 : vector<8x128xf32> to vector<8x128xbf16>
    %cst_316 = arith.constant dense<0.000000e+00> : vector<8x512xf32>
    %781 = tpu.matmul %780, %702, %cst_316 {dimension_numbers = #tpu.dot_dimension_numbers<[1], [0], [0], [1], [0, 0, 1, 1], [], []>} : vector<8x128xbf16>, vector<128x512xbf16>, vector<8x512xf32> -> vector<8x512xf32>
    %782 = arith.addf %779, %781 : vector<8x512xf32>
    %783 = vector.extract_strided_slice %782 {offsets = [0, 0], sizes = [8, 128], strides = [1, 1]} : vector<8x512xf32> to vector<8x128xf32>
    %cst_317 = arith.constant 5.000000e-01 : f32
    %784 = vector.broadcast %cst_317 : f32 to vector<8x128xf32>
    %785 = arith.mulf %784, %783 : vector<8x128xf32>
    %786 = math.tanh %785 : vector<8x128xf32>
    %cst_318 = arith.constant 5.000000e-01 : f32
    %787 = vector.broadcast %cst_318 : f32 to vector<8x128xf32>
    %788 = arith.mulf %787, %786 : vector<8x128xf32>
    %cst_319 = arith.constant 5.000000e-01 : f32
    %789 = vector.broadcast %cst_319 : f32 to vector<8x128xf32>
    %790 = arith.addf %788, %789 : vector<8x128xf32>
    %791 = vector.extract_strided_slice %782 {offsets = [0, 128], sizes = [8, 128], strides = [1, 1]} : vector<8x512xf32> to vector<8x128xf32>
    %cst_320 = arith.constant 5.000000e-01 : f32
    %792 = vector.broadcast %cst_320 : f32 to vector<8x128xf32>
    %793 = arith.mulf %792, %791 : vector<8x128xf32>
    %794 = math.tanh %793 : vector<8x128xf32>
    %cst_321 = arith.constant 5.000000e-01 : f32
    %795 = vector.broadcast %cst_321 : f32 to vector<8x128xf32>
    %796 = arith.mulf %795, %794 : vector<8x128xf32>
    %cst_322 = arith.constant 5.000000e-01 : f32
    %797 = vector.broadcast %cst_322 : f32 to vector<8x128xf32>
    %798 = arith.addf %796, %797 : vector<8x128xf32>
    %799 = vector.extract_strided_slice %782 {offsets = [0, 256], sizes = [8, 128], strides = [1, 1]} : vector<8x512xf32> to vector<8x128xf32>
    %800 = math.tanh %799 : vector<8x128xf32>
    %801 = vector.extract_strided_slice %782 {offsets = [0, 384], sizes = [8, 128], strides = [1, 1]} : vector<8x512xf32> to vector<8x128xf32>
    %cst_323 = arith.constant 5.000000e-01 : f32
    %802 = vector.broadcast %cst_323 : f32 to vector<8x128xf32>
    %803 = arith.mulf %802, %801 : vector<8x128xf32>
    %804 = math.tanh %803 : vector<8x128xf32>
    %cst_324 = arith.constant 5.000000e-01 : f32
    %805 = vector.broadcast %cst_324 : f32 to vector<8x128xf32>
    %806 = arith.mulf %805, %804 : vector<8x128xf32>
    %cst_325 = arith.constant 5.000000e-01 : f32
    %807 = vector.broadcast %cst_325 : f32 to vector<8x128xf32>
    %808 = arith.addf %806, %807 : vector<8x128xf32>
    %809 = arith.mulf %798, %774 : vector<8x128xf32>
    %810 = arith.mulf %790, %800 : vector<8x128xf32>
    %811 = arith.addf %809, %810 : vector<8x128xf32>
    %812 = math.tanh %811 : vector<8x128xf32>
    %813 = arith.mulf %808, %812 : vector<8x128xf32>
    %c3_326 = arith.constant 3 : index
    %c0_327 = arith.constant 0 : index
    %c0_328 = arith.constant 0 : index
    %814 = vector.load %arg20[%c3_326, %c0_327, %c0_328] : memref<8x8x512xbf16, #tpu.memory_space<vmem>>, vector<1x8x512xbf16>
    %815 = vector.shape_cast %814 : vector<1x8x512xbf16> to vector<8x512xbf16>
    %816 = arith.extf %815 : vector<8x512xbf16> to vector<8x512xf32>
    %817 = arith.truncf %813 : vector<8x128xf32> to vector<8x128xbf16>
    %cst_329 = arith.constant dense<0.000000e+00> : vector<8x512xf32>
    %818 = tpu.matmul %817, %702, %cst_329 {dimension_numbers = #tpu.dot_dimension_numbers<[1], [0], [0], [1], [0, 0, 1, 1], [], []>} : vector<8x128xbf16>, vector<128x512xbf16>, vector<8x512xf32> -> vector<8x512xf32>
    %819 = arith.addf %816, %818 : vector<8x512xf32>
    %820 = vector.extract_strided_slice %819 {offsets = [0, 0], sizes = [8, 128], strides = [1, 1]} : vector<8x512xf32> to vector<8x128xf32>
    %cst_330 = arith.constant 5.000000e-01 : f32
    %821 = vector.broadcast %cst_330 : f32 to vector<8x128xf32>
    %822 = arith.mulf %821, %820 : vector<8x128xf32>
    %823 = math.tanh %822 : vector<8x128xf32>
    %cst_331 = arith.constant 5.000000e-01 : f32
    %824 = vector.broadcast %cst_331 : f32 to vector<8x128xf32>
    %825 = arith.mulf %824, %823 : vector<8x128xf32>
    %cst_332 = arith.constant 5.000000e-01 : f32
    %826 = vector.broadcast %cst_332 : f32 to vector<8x128xf32>
    %827 = arith.addf %825, %826 : vector<8x128xf32>
    %828 = vector.extract_strided_slice %819 {offsets = [0, 128], sizes = [8, 128], strides = [1, 1]} : vector<8x512xf32> to vector<8x128xf32>
    %cst_333 = arith.constant 5.000000e-01 : f32
    %829 = vector.broadcast %cst_333 : f32 to vector<8x128xf32>
    %830 = arith.mulf %829, %828 : vector<8x128xf32>
    %831 = math.tanh %830 : vector<8x128xf32>
    %cst_334 = arith.constant 5.000000e-01 : f32
    %832 = vector.broadcast %cst_334 : f32 to vector<8x128xf32>
    %833 = arith.mulf %832, %831 : vector<8x128xf32>
    %cst_335 = arith.constant 5.000000e-01 : f32
    %834 = vector.broadcast %cst_335 : f32 to vector<8x128xf32>
    %835 = arith.addf %833, %834 : vector<8x128xf32>
    %836 = vector.extract_strided_slice %819 {offsets = [0, 256], sizes = [8, 128], strides = [1, 1]} : vector<8x512xf32> to vector<8x128xf32>
    %837 = math.tanh %836 : vector<8x128xf32>
    %838 = vector.extract_strided_slice %819 {offsets = [0, 384], sizes = [8, 128], strides = [1, 1]} : vector<8x512xf32> to vector<8x128xf32>
    %cst_336 = arith.constant 5.000000e-01 : f32
    %839 = vector.broadcast %cst_336 : f32 to vector<8x128xf32>
    %840 = arith.mulf %839, %838 : vector<8x128xf32>
    %841 = math.tanh %840 : vector<8x128xf32>
    %cst_337 = arith.constant 5.000000e-01 : f32
    %842 = vector.broadcast %cst_337 : f32 to vector<8x128xf32>
    %843 = arith.mulf %842, %841 : vector<8x128xf32>
    %cst_338 = arith.constant 5.000000e-01 : f32
    %844 = vector.broadcast %cst_338 : f32 to vector<8x128xf32>
    %845 = arith.addf %843, %844 : vector<8x128xf32>
    %846 = arith.mulf %835, %811 : vector<8x128xf32>
    %847 = arith.mulf %827, %837 : vector<8x128xf32>
    %848 = arith.addf %846, %847 : vector<8x128xf32>
    %849 = math.tanh %848 : vector<8x128xf32>
    %850 = arith.mulf %845, %849 : vector<8x128xf32>
    %c4_339 = arith.constant 4 : index
    %c0_340 = arith.constant 0 : index
    %c0_341 = arith.constant 0 : index
    %851 = vector.load %arg20[%c4_339, %c0_340, %c0_341] : memref<8x8x512xbf16, #tpu.memory_space<vmem>>, vector<1x8x512xbf16>
    %852 = vector.shape_cast %851 : vector<1x8x512xbf16> to vector<8x512xbf16>
    %853 = arith.extf %852 : vector<8x512xbf16> to vector<8x512xf32>
    %854 = arith.truncf %850 : vector<8x128xf32> to vector<8x128xbf16>
    %cst_342 = arith.constant dense<0.000000e+00> : vector<8x512xf32>
    %855 = tpu.matmul %854, %702, %cst_342 {dimension_numbers = #tpu.dot_dimension_numbers<[1], [0], [0], [1], [0, 0, 1, 1], [], []>} : vector<8x128xbf16>, vector<128x512xbf16>, vector<8x512xf32> -> vector<8x512xf32>
    %856 = arith.addf %853, %855 : vector<8x512xf32>
    %857 = vector.extract_strided_slice %856 {offsets = [0, 0], sizes = [8, 128], strides = [1, 1]} : vector<8x512xf32> to vector<8x128xf32>
    %cst_343 = arith.constant 5.000000e-01 : f32
    %858 = vector.broadcast %cst_343 : f32 to vector<8x128xf32>
    %859 = arith.mulf %858, %857 : vector<8x128xf32>
    %860 = math.tanh %859 : vector<8x128xf32>
    %cst_344 = arith.constant 5.000000e-01 : f32
    %861 = vector.broadcast %cst_344 : f32 to vector<8x128xf32>
    %862 = arith.mulf %861, %860 : vector<8x128xf32>
    %cst_345 = arith.constant 5.000000e-01 : f32
    %863 = vector.broadcast %cst_345 : f32 to vector<8x128xf32>
    %864 = arith.addf %862, %863 : vector<8x128xf32>
    %865 = vector.extract_strided_slice %856 {offsets = [0, 128], sizes = [8, 128], strides = [1, 1]} : vector<8x512xf32> to vector<8x128xf32>
    %cst_346 = arith.constant 5.000000e-01 : f32
    %866 = vector.broadcast %cst_346 : f32 to vector<8x128xf32>
    %867 = arith.mulf %866, %865 : vector<8x128xf32>
    %868 = math.tanh %867 : vector<8x128xf32>
    %cst_347 = arith.constant 5.000000e-01 : f32
    %869 = vector.broadcast %cst_347 : f32 to vector<8x128xf32>
    %870 = arith.mulf %869, %868 : vector<8x128xf32>
    %cst_348 = arith.constant 5.000000e-01 : f32
    %871 = vector.broadcast %cst_348 : f32 to vector<8x128xf32>
    %872 = arith.addf %870, %871 : vector<8x128xf32>
    %873 = vector.extract_strided_slice %856 {offsets = [0, 256], sizes = [8, 128], strides = [1, 1]} : vector<8x512xf32> to vector<8x128xf32>
    %874 = math.tanh %873 : vector<8x128xf32>
    %875 = vector.extract_strided_slice %856 {offsets = [0, 384], sizes = [8, 128], strides = [1, 1]} : vector<8x512xf32> to vector<8x128xf32>
    %cst_349 = arith.constant 5.000000e-01 : f32
    %876 = vector.broadcast %cst_349 : f32 to vector<8x128xf32>
    %877 = arith.mulf %876, %875 : vector<8x128xf32>
    %878 = math.tanh %877 : vector<8x128xf32>
    %cst_350 = arith.constant 5.000000e-01 : f32
    %879 = vector.broadcast %cst_350 : f32 to vector<8x128xf32>
    %880 = arith.mulf %879, %878 : vector<8x128xf32>
    %cst_351 = arith.constant 5.000000e-01 : f32
    %881 = vector.broadcast %cst_351 : f32 to vector<8x128xf32>
    %882 = arith.addf %880, %881 : vector<8x128xf32>
    %883 = arith.mulf %872, %848 : vector<8x128xf32>
    %884 = arith.mulf %864, %874 : vector<8x128xf32>
    %885 = arith.addf %883, %884 : vector<8x128xf32>
    %886 = math.tanh %885 : vector<8x128xf32>
    %887 = arith.mulf %882, %886 : vector<8x128xf32>
    %c5_352 = arith.constant 5 : index
    %c0_353 = arith.constant 0 : index
    %c0_354 = arith.constant 0 : index
    %888 = vector.load %arg20[%c5_352, %c0_353, %c0_354] : memref<8x8x512xbf16, #tpu.memory_space<vmem>>, vector<1x8x512xbf16>
    %889 = vector.shape_cast %888 : vector<1x8x512xbf16> to vector<8x512xbf16>
    %890 = arith.extf %889 : vector<8x512xbf16> to vector<8x512xf32>
    %891 = arith.truncf %887 : vector<8x128xf32> to vector<8x128xbf16>
    %cst_355 = arith.constant dense<0.000000e+00> : vector<8x512xf32>
    %892 = tpu.matmul %891, %702, %cst_355 {dimension_numbers = #tpu.dot_dimension_numbers<[1], [0], [0], [1], [0, 0, 1, 1], [], []>} : vector<8x128xbf16>, vector<128x512xbf16>, vector<8x512xf32> -> vector<8x512xf32>
    %893 = arith.addf %890, %892 : vector<8x512xf32>
    %894 = vector.extract_strided_slice %893 {offsets = [0, 0], sizes = [8, 128], strides = [1, 1]} : vector<8x512xf32> to vector<8x128xf32>
    %cst_356 = arith.constant 5.000000e-01 : f32
    %895 = vector.broadcast %cst_356 : f32 to vector<8x128xf32>
    %896 = arith.mulf %895, %894 : vector<8x128xf32>
    %897 = math.tanh %896 : vector<8x128xf32>
    %cst_357 = arith.constant 5.000000e-01 : f32
    %898 = vector.broadcast %cst_357 : f32 to vector<8x128xf32>
    %899 = arith.mulf %898, %897 : vector<8x128xf32>
    %cst_358 = arith.constant 5.000000e-01 : f32
    %900 = vector.broadcast %cst_358 : f32 to vector<8x128xf32>
    %901 = arith.addf %899, %900 : vector<8x128xf32>
    %902 = vector.extract_strided_slice %893 {offsets = [0, 128], sizes = [8, 128], strides = [1, 1]} : vector<8x512xf32> to vector<8x128xf32>
    %cst_359 = arith.constant 5.000000e-01 : f32
    %903 = vector.broadcast %cst_359 : f32 to vector<8x128xf32>
    %904 = arith.mulf %903, %902 : vector<8x128xf32>
    %905 = math.tanh %904 : vector<8x128xf32>
    %cst_360 = arith.constant 5.000000e-01 : f32
    %906 = vector.broadcast %cst_360 : f32 to vector<8x128xf32>
    %907 = arith.mulf %906, %905 : vector<8x128xf32>
    %cst_361 = arith.constant 5.000000e-01 : f32
    %908 = vector.broadcast %cst_361 : f32 to vector<8x128xf32>
    %909 = arith.addf %907, %908 : vector<8x128xf32>
    %910 = vector.extract_strided_slice %893 {offsets = [0, 256], sizes = [8, 128], strides = [1, 1]} : vector<8x512xf32> to vector<8x128xf32>
    %911 = math.tanh %910 : vector<8x128xf32>
    %912 = vector.extract_strided_slice %893 {offsets = [0, 384], sizes = [8, 128], strides = [1, 1]} : vector<8x512xf32> to vector<8x128xf32>
    %cst_362 = arith.constant 5.000000e-01 : f32
    %913 = vector.broadcast %cst_362 : f32 to vector<8x128xf32>
    %914 = arith.mulf %913, %912 : vector<8x128xf32>
    %915 = math.tanh %914 : vector<8x128xf32>
    %cst_363 = arith.constant 5.000000e-01 : f32
    %916 = vector.broadcast %cst_363 : f32 to vector<8x128xf32>
    %917 = arith.mulf %916, %915 : vector<8x128xf32>
    %cst_364 = arith.constant 5.000000e-01 : f32
    %918 = vector.broadcast %cst_364 : f32 to vector<8x128xf32>
    %919 = arith.addf %917, %918 : vector<8x128xf32>
    %920 = arith.mulf %909, %885 : vector<8x128xf32>
    %921 = arith.mulf %901, %911 : vector<8x128xf32>
    %922 = arith.addf %920, %921 : vector<8x128xf32>
    %923 = math.tanh %922 : vector<8x128xf32>
    %924 = arith.mulf %919, %923 : vector<8x128xf32>
    %c6_365 = arith.constant 6 : index
    %c0_366 = arith.constant 0 : index
    %c0_367 = arith.constant 0 : index
    %925 = vector.load %arg20[%c6_365, %c0_366, %c0_367] : memref<8x8x512xbf16, #tpu.memory_space<vmem>>, vector<1x8x512xbf16>
    %926 = vector.shape_cast %925 : vector<1x8x512xbf16> to vector<8x512xbf16>
    %927 = arith.extf %926 : vector<8x512xbf16> to vector<8x512xf32>
    %928 = arith.truncf %924 : vector<8x128xf32> to vector<8x128xbf16>
    %cst_368 = arith.constant dense<0.000000e+00> : vector<8x512xf32>
    %929 = tpu.matmul %928, %702, %cst_368 {dimension_numbers = #tpu.dot_dimension_numbers<[1], [0], [0], [1], [0, 0, 1, 1], [], []>} : vector<8x128xbf16>, vector<128x512xbf16>, vector<8x512xf32> -> vector<8x512xf32>
    %930 = arith.addf %927, %929 : vector<8x512xf32>
    %931 = vector.extract_strided_slice %930 {offsets = [0, 0], sizes = [8, 128], strides = [1, 1]} : vector<8x512xf32> to vector<8x128xf32>
    %cst_369 = arith.constant 5.000000e-01 : f32
    %932 = vector.broadcast %cst_369 : f32 to vector<8x128xf32>
    %933 = arith.mulf %932, %931 : vector<8x128xf32>
    %934 = math.tanh %933 : vector<8x128xf32>
    %cst_370 = arith.constant 5.000000e-01 : f32
    %935 = vector.broadcast %cst_370 : f32 to vector<8x128xf32>
    %936 = arith.mulf %935, %934 : vector<8x128xf32>
    %cst_371 = arith.constant 5.000000e-01 : f32
    %937 = vector.broadcast %cst_371 : f32 to vector<8x128xf32>
    %938 = arith.addf %936, %937 : vector<8x128xf32>
    %939 = vector.extract_strided_slice %930 {offsets = [0, 128], sizes = [8, 128], strides = [1, 1]} : vector<8x512xf32> to vector<8x128xf32>
    %cst_372 = arith.constant 5.000000e-01 : f32
    %940 = vector.broadcast %cst_372 : f32 to vector<8x128xf32>
    %941 = arith.mulf %940, %939 : vector<8x128xf32>
    %942 = math.tanh %941 : vector<8x128xf32>
    %cst_373 = arith.constant 5.000000e-01 : f32
    %943 = vector.broadcast %cst_373 : f32 to vector<8x128xf32>
    %944 = arith.mulf %943, %942 : vector<8x128xf32>
    %cst_374 = arith.constant 5.000000e-01 : f32
    %945 = vector.broadcast %cst_374 : f32 to vector<8x128xf32>
    %946 = arith.addf %944, %945 : vector<8x128xf32>
    %947 = vector.extract_strided_slice %930 {offsets = [0, 256], sizes = [8, 128], strides = [1, 1]} : vector<8x512xf32> to vector<8x128xf32>
    %948 = math.tanh %947 : vector<8x128xf32>
    %949 = vector.extract_strided_slice %930 {offsets = [0, 384], sizes = [8, 128], strides = [1, 1]} : vector<8x512xf32> to vector<8x128xf32>
    %cst_375 = arith.constant 5.000000e-01 : f32
    %950 = vector.broadcast %cst_375 : f32 to vector<8x128xf32>
    %951 = arith.mulf %950, %949 : vector<8x128xf32>
    %952 = math.tanh %951 : vector<8x128xf32>
    %cst_376 = arith.constant 5.000000e-01 : f32
    %953 = vector.broadcast %cst_376 : f32 to vector<8x128xf32>
    %954 = arith.mulf %953, %952 : vector<8x128xf32>
    %cst_377 = arith.constant 5.000000e-01 : f32
    %955 = vector.broadcast %cst_377 : f32 to vector<8x128xf32>
    %956 = arith.addf %954, %955 : vector<8x128xf32>
    %957 = arith.mulf %946, %922 : vector<8x128xf32>
    %958 = arith.mulf %938, %948 : vector<8x128xf32>
    %959 = arith.addf %957, %958 : vector<8x128xf32>
    %960 = math.tanh %959 : vector<8x128xf32>
    %961 = arith.mulf %956, %960 : vector<8x128xf32>
    %c7_378 = arith.constant 7 : index
    %c0_379 = arith.constant 0 : index
    %c0_380 = arith.constant 0 : index
    %962 = vector.load %arg20[%c7_378, %c0_379, %c0_380] : memref<8x8x512xbf16, #tpu.memory_space<vmem>>, vector<1x8x512xbf16>
    %963 = vector.shape_cast %962 : vector<1x8x512xbf16> to vector<8x512xbf16>
    %964 = arith.extf %963 : vector<8x512xbf16> to vector<8x512xf32>
    %965 = arith.truncf %961 : vector<8x128xf32> to vector<8x128xbf16>
    %cst_381 = arith.constant dense<0.000000e+00> : vector<8x512xf32>
    %966 = tpu.matmul %965, %702, %cst_381 {dimension_numbers = #tpu.dot_dimension_numbers<[1], [0], [0], [1], [0, 0, 1, 1], [], []>} : vector<8x128xbf16>, vector<128x512xbf16>, vector<8x512xf32> -> vector<8x512xf32>
    %967 = arith.addf %964, %966 : vector<8x512xf32>
    %968 = vector.extract_strided_slice %967 {offsets = [0, 0], sizes = [8, 128], strides = [1, 1]} : vector<8x512xf32> to vector<8x128xf32>
    %cst_382 = arith.constant 5.000000e-01 : f32
    %969 = vector.broadcast %cst_382 : f32 to vector<8x128xf32>
    %970 = arith.mulf %969, %968 : vector<8x128xf32>
    %971 = math.tanh %970 : vector<8x128xf32>
    %cst_383 = arith.constant 5.000000e-01 : f32
    %972 = vector.broadcast %cst_383 : f32 to vector<8x128xf32>
    %973 = arith.mulf %972, %971 : vector<8x128xf32>
    %cst_384 = arith.constant 5.000000e-01 : f32
    %974 = vector.broadcast %cst_384 : f32 to vector<8x128xf32>
    %975 = arith.addf %973, %974 : vector<8x128xf32>
    %976 = vector.extract_strided_slice %967 {offsets = [0, 128], sizes = [8, 128], strides = [1, 1]} : vector<8x512xf32> to vector<8x128xf32>
    %cst_385 = arith.constant 5.000000e-01 : f32
    %977 = vector.broadcast %cst_385 : f32 to vector<8x128xf32>
    %978 = arith.mulf %977, %976 : vector<8x128xf32>
    %979 = math.tanh %978 : vector<8x128xf32>
    %cst_386 = arith.constant 5.000000e-01 : f32
    %980 = vector.broadcast %cst_386 : f32 to vector<8x128xf32>
    %981 = arith.mulf %980, %979 : vector<8x128xf32>
    %cst_387 = arith.constant 5.000000e-01 : f32
    %982 = vector.broadcast %cst_387 : f32 to vector<8x128xf32>
    %983 = arith.addf %981, %982 : vector<8x128xf32>
    %984 = vector.extract_strided_slice %967 {offsets = [0, 256], sizes = [8, 128], strides = [1, 1]} : vector<8x512xf32> to vector<8x128xf32>
    %985 = math.tanh %984 : vector<8x128xf32>
    %986 = vector.extract_strided_slice %967 {offsets = [0, 384], sizes = [8, 128], strides = [1, 1]} : vector<8x512xf32> to vector<8x128xf32>
    %cst_388 = arith.constant 5.000000e-01 : f32
    %987 = vector.broadcast %cst_388 : f32 to vector<8x128xf32>
    %988 = arith.mulf %987, %986 : vector<8x128xf32>
    %989 = math.tanh %988 : vector<8x128xf32>
    %cst_389 = arith.constant 5.000000e-01 : f32
    %990 = vector.broadcast %cst_389 : f32 to vector<8x128xf32>
    %991 = arith.mulf %990, %989 : vector<8x128xf32>
    %cst_390 = arith.constant 5.000000e-01 : f32
    %992 = vector.broadcast %cst_390 : f32 to vector<8x128xf32>
    %993 = arith.addf %991, %992 : vector<8x128xf32>
    %994 = arith.mulf %983, %959 : vector<8x128xf32>
    %995 = arith.mulf %975, %985 : vector<8x128xf32>
    %996 = arith.addf %994, %995 : vector<8x128xf32>
    %997 = math.tanh %996 : vector<8x128xf32>
    %998 = arith.mulf %993, %997 : vector<8x128xf32>
    %c7_391 = arith.constant 7 : index
    %c0_392 = arith.constant 0 : index
    %c0_393 = arith.constant 0 : index
    %999 = vector.load %arg21[%c7_391, %c0_392, %c0_393] : memref<8x8x256xbf16, #tpu.memory_space<vmem>>, vector<1x8x256xbf16>
    %1000 = vector.shape_cast %999 : vector<1x8x256xbf16> to vector<8x256xbf16>
    %c0_394 = arith.constant 0 : index
    %c0_395 = arith.constant 0 : index
    %1001 = vector.load %arg12[%c0_394, %c0_395] : memref<256x512xbf16, #tpu.memory_space<vmem>>, vector<256x512xbf16>
    %cst_396 = arith.constant dense<0.000000e+00> : vector<8x512xf32>
    %1002 = tpu.matmul %1000, %1001, %cst_396 {dimension_numbers = #tpu.dot_dimension_numbers<[1], [0], [0], [1], [0, 0, 1, 1], [], []>} : vector<8x256xbf16>, vector<256x512xbf16>, vector<8x512xf32> -> vector<8x512xf32>
    %c0_397 = arith.constant 0 : index
    %c0_398 = arith.constant 0 : index
    %1003 = vector.load %arg13[%c0_397, %c0_398] : memref<1x512xf32, #tpu.memory_space<vmem>>, vector<1x512xf32>
    %1004 = vector.broadcast %1003 : vector<1x512xf32> to vector<8x512xf32>
    %1005 = arith.addf %1002, %1004 : vector<8x512xf32>
    %1006 = vector.extract_strided_slice %1005 {offsets = [0, 0], sizes = [8, 128], strides = [1, 1]} : vector<8x512xf32> to vector<8x128xf32>
    %cst_399 = arith.constant 5.000000e-01 : f32
    %1007 = vector.broadcast %cst_399 : f32 to vector<8x128xf32>
    %1008 = arith.mulf %1007, %1006 : vector<8x128xf32>
    %1009 = math.tanh %1008 : vector<8x128xf32>
    %cst_400 = arith.constant 5.000000e-01 : f32
    %1010 = vector.broadcast %cst_400 : f32 to vector<8x128xf32>
    %1011 = arith.mulf %1010, %1009 : vector<8x128xf32>
    %cst_401 = arith.constant 5.000000e-01 : f32
    %1012 = vector.broadcast %cst_401 : f32 to vector<8x128xf32>
    %1013 = arith.addf %1011, %1012 : vector<8x128xf32>
    %1014 = vector.extract_strided_slice %1005 {offsets = [0, 128], sizes = [8, 128], strides = [1, 1]} : vector<8x512xf32> to vector<8x128xf32>
    %cst_402 = arith.constant 5.000000e-01 : f32
    %1015 = vector.broadcast %cst_402 : f32 to vector<8x128xf32>
    %1016 = arith.mulf %1015, %1014 : vector<8x128xf32>
    %1017 = math.tanh %1016 : vector<8x128xf32>
    %cst_403 = arith.constant 5.000000e-01 : f32
    %1018 = vector.broadcast %cst_403 : f32 to vector<8x128xf32>
    %1019 = arith.mulf %1018, %1017 : vector<8x128xf32>
    %cst_404 = arith.constant 5.000000e-01 : f32
    %1020 = vector.broadcast %cst_404 : f32 to vector<8x128xf32>
    %1021 = arith.addf %1019, %1020 : vector<8x128xf32>
    %1022 = vector.extract_strided_slice %1005 {offsets = [0, 256], sizes = [8, 128], strides = [1, 1]} : vector<8x512xf32> to vector<8x128xf32>
    %1023 = math.tanh %1022 : vector<8x128xf32>
    %1024 = vector.extract_strided_slice %1005 {offsets = [0, 384], sizes = [8, 128], strides = [1, 1]} : vector<8x512xf32> to vector<8x128xf32>
    %cst_405 = arith.constant 5.000000e-01 : f32
    %1025 = vector.broadcast %cst_405 : f32 to vector<8x128xf32>
    %1026 = arith.mulf %1025, %1024 : vector<8x128xf32>
    %1027 = math.tanh %1026 : vector<8x128xf32>
    %cst_406 = arith.constant 5.000000e-01 : f32
    %1028 = vector.broadcast %cst_406 : f32 to vector<8x128xf32>
    %1029 = arith.mulf %1028, %1027 : vector<8x128xf32>
    %cst_407 = arith.constant 5.000000e-01 : f32
    %1030 = vector.broadcast %cst_407 : f32 to vector<8x128xf32>
    %1031 = arith.addf %1029, %1030 : vector<8x128xf32>
    %1032 = arith.mulf %1021, %35 : vector<8x128xf32>
    %1033 = arith.mulf %1013, %1023 : vector<8x128xf32>
    %1034 = arith.addf %1032, %1033 : vector<8x128xf32>
    %1035 = math.tanh %1034 : vector<8x128xf32>
    %1036 = arith.mulf %1031, %1035 : vector<8x128xf32>
    %c0_408 = arith.constant 0 : index
    %c0_409 = arith.constant 0 : index
    %1037 = vector.load %arg15[%c0_408, %c0_409] : memref<128x128xbf16, #tpu.memory_space<vmem>>, vector<128x128xbf16>
    %1038 = arith.truncf %998 : vector<8x128xf32> to vector<8x128xbf16>
    %cst_410 = arith.constant dense<0.000000e+00> : vector<8x128xf32>
    %1039 = tpu.matmul %1038, %1037, %cst_410 {dimension_numbers = #tpu.dot_dimension_numbers<[1], [0], [0], [1], [0, 0, 1, 1], [], []>} : vector<8x128xbf16>, vector<128x128xbf16>, vector<8x128xf32> -> vector<8x128xf32>
    %c0_411 = arith.constant 0 : index
    %c0_412 = arith.constant 0 : index
    %1040 = vector.load %arg16[%c0_411, %c0_412] : memref<128x128xbf16, #tpu.memory_space<vmem>>, vector<128x128xbf16>
    %1041 = arith.truncf %1036 : vector<8x128xf32> to vector<8x128xbf16>
    %cst_413 = arith.constant dense<0.000000e+00> : vector<8x128xf32>
    %1042 = tpu.matmul %1041, %1040, %cst_413 {dimension_numbers = #tpu.dot_dimension_numbers<[1], [0], [0], [1], [0, 0, 1, 1], [], []>} : vector<8x128xbf16>, vector<128x128xbf16>, vector<8x128xf32> -> vector<8x128xf32>
    %1043 = arith.addf %1039, %1042 : vector<8x128xf32>
    %c0_414 = arith.constant 0 : index
    %c0_415 = arith.constant 0 : index
    %1044 = vector.load %arg17[%c0_414, %c0_415] : memref<1x128xf32, #tpu.memory_space<vmem>>, vector<1x128xf32>
    %1045 = vector.broadcast %1044 : vector<1x128xf32> to vector<8x128xf32>
    %1046 = arith.addf %1043, %1045 : vector<8x128xf32>
    %c0_416 = arith.constant 0 : index
    %c0_417 = arith.constant 0 : index
    %1047 = vector.load %arg18[%c0_416, %c0_417] : memref<8x128xf32, #tpu.memory_space<vmem>>, vector<8x128xf32>
    tpu.vector_store %arg18[%c0_416, %c0_417], %1046 {strides = array<i32>} : memref<8x128xf32, #tpu.memory_space<vmem>>, vector<8x128xf32>,
    return
  }
  func.func @transform_0(%arg0: i32) -> (i32, i32, i32) {
    %c0_i32 = arith.constant 0 : i32
    %c0_i32_0 = arith.constant 0 : i32
    %c0_i32_1 = arith.constant 0 : i32
    return %c0_i32, %arg0, %c0_i32_0 : i32, i32, i32
  }
  func.func @transform_1(%arg0: i32) -> (i32, i32) {
    %c0_i32 = arith.constant 0 : i32
    %c0_i32_0 = arith.constant 0 : i32
    return %arg0, %c0_i32 : i32, i32
  }
  func.func @transform_2(%arg0: i32) -> (i32, i32) {
    %c0_i32 = arith.constant 0 : i32
    %c0_i32_0 = arith.constant 0 : i32
    %c0_i32_1 = arith.constant 0 : i32
    return %c0_i32, %c0_i32_0 : i32, i32
  }
  func.func @transform_3(%arg0: i32) -> (i32, i32) {
    %c0_i32 = arith.constant 0 : i32
    %c0_i32_0 = arith.constant 0 : i32
    %c0_i32_1 = arith.constant 0 : i32
    return %c0_i32, %c0_i32_0 : i32, i32
  }
  func.func @transform_4(%arg0: i32) -> (i32, i32) {
    %c0_i32 = arith.constant 0 : i32
    %c0_i32_0 = arith.constant 0 : i32
    %c0_i32_1 = arith.constant 0 : i32
    return %c0_i32, %c0_i32_0 : i32, i32
  }
  func.func @transform_5(%arg0: i32) -> (i32, i32) {
    %c0_i32 = arith.constant 0 : i32
    %c0_i32_0 = arith.constant 0 : i32
    %c0_i32_1 = arith.constant 0 : i32
    return %c0_i32, %c0_i32_0 : i32, i32
  }
  func.func @transform_6(%arg0: i32) -> (i32, i32) {
    %c0_i32 = arith.constant 0 : i32
    %c0_i32_0 = arith.constant 0 : i32
    %c0_i32_1 = arith.constant 0 : i32
    return %c0_i32, %c0_i32_0 : i32, i32
  }
  func.func @transform_7(%arg0: i32) -> (i32, i32) {
    %c0_i32 = arith.constant 0 : i32
    %c0_i32_0 = arith.constant 0 : i32
    %c0_i32_1 = arith.constant 0 : i32
    return %c0_i32, %c0_i32_0 : i32, i32
  }
  func.func @transform_8(%arg0: i32) -> (i32, i32) {
    %c0_i32 = arith.constant 0 : i32
    %c0_i32_0 = arith.constant 0 : i32
    %c0_i32_1 = arith.constant 0 : i32
    return %c0_i32, %c0_i32_0 : i32, i32
  }
  func.func @transform_9(%arg0: i32) -> (i32, i32) {
    %c0_i32 = arith.constant 0 : i32
    %c0_i32_0 = arith.constant 0 : i32
    %c0_i32_1 = arith.constant 0 : i32
    return %c0_i32, %c0_i32_0 : i32, i32
  }
  func.func @transform_10(%arg0: i32) -> (i32, i32) {
    %c0_i32 = arith.constant 0 : i32
    %c0_i32_0 = arith.constant 0 : i32
    %c0_i32_1 = arith.constant 0 : i32
    return %c0_i32, %c0_i32_0 : i32, i32
  }
  func.func @transform_11(%arg0: i32) -> (i32, i32) {
    %c0_i32 = arith.constant 0 : i32
    %c0_i32_0 = arith.constant 0 : i32
    %c0_i32_1 = arith.constant 0 : i32
    return %c0_i32, %c0_i32_0 : i32, i32
  }
  func.func @transform_12(%arg0: i32) -> (i32, i32) {
    %c0_i32 = arith.constant 0 : i32
    %c0_i32_0 = arith.constant 0 : i32
    %c0_i32_1 = arith.constant 0 : i32
    return %c0_i32, %c0_i32_0 : i32, i32
  }
  func.func @transform_13(%arg0: i32) -> (i32, i32) {
    %c0_i32 = arith.constant 0 : i32
    %c0_i32_0 = arith.constant 0 : i32
    %c0_i32_1 = arith.constant 0 : i32
    return %c0_i32, %c0_i32_0 : i32, i32
  }
  func.func @transform_14(%arg0: i32) -> (i32, i32) {
    %c0_i32 = arith.constant 0 : i32
    %c0_i32_0 = arith.constant 0 : i32
    %c0_i32_1 = arith.constant 0 : i32
    return %c0_i32, %c0_i32_0 : i32, i32
  }
  func.func @transform_15(%arg0: i32) -> (i32, i32) {
    %c0_i32 = arith.constant 0 : i32
    %c0_i32_0 = arith.constant 0 : i32
    %c0_i32_1 = arith.constant 0 : i32
    return %c0_i32, %c0_i32_0 : i32, i32
  }
  func.func @transform_16(%arg0: i32) -> (i32, i32) {
    %c0_i32 = arith.constant 0 : i32
    %c0_i32_0 = arith.constant 0 : i32
    %c0_i32_1 = arith.constant 0 : i32
    return %c0_i32, %c0_i32_0 : i32, i32
  }
  func.func @transform_17(%arg0: i32) -> (i32, i32) {
    %c0_i32 = arith.constant 0 : i32
    %c0_i32_0 = arith.constant 0 : i32
    return %arg0, %c0_i32 : i32, i32
  }
}

</mosaic_0001>

<llo_original>
// kernel: rnn_forward.1
$region0: #{rnn_forward.1}
  #allocation0 [shape = 'u32[]', space=smem, size = 0x4, offset = 0x4, fixed_abs, tag = 'smem constant byte address 0x4 - core index']
  #allocation1 [shape = 'u32[144,128]{1,0:T(1,128)}', space=vmem, size = 0x12000, scoped, tag = 'internal scratch']
  #allocation2 [shape = 'bf16[8,8,1024]{2,1,0:T(8,128)(2,1)}', space=vmem, size = 0x20000, scoped, tag = 'scratch operand']
  #allocation3 [shape = 'bf16[8,8,512]{2,1,0:T(8,128)(2,1)}', space=vmem, size = 0x10000, scoped, tag = 'scratch operand']
  #allocation4 [shape = 'bf16[8,8,256]{2,1,0:T(8,128)(2,1)}', space=vmem, size = 0x8000, scoped, tag = 'scratch operand']
  %s0 = inlined_call_operand.vmem [shape: f32[8,8,36], index: 0, kind: input, shape index: {}]
  %s1 = inlined_call_operand.vmem [shape: f32[8,27], index: 1, kind: input, shape index: {}]
  %s2 = inlined_call_operand.vmem [shape: bf16[36,32], index: 2, kind: input, shape index: {}]
  %s3 = inlined_call_operand.vmem [shape: f32[1,32], index: 3, kind: input, shape index: {}]
  %s4 = inlined_call_operand.vmem [shape: bf16[32,1024], index: 4, kind: input, shape index: {}]
  %s5 = inlined_call_operand.vmem [shape: bf16[27,1024], index: 5, kind: input, shape index: {}]
  %s6 = inlined_call_operand.vmem [shape: f32[1,1024], index: 6, kind: input, shape index: {}]
  %s7 = inlined_call_operand.vmem [shape: bf16[128,512], index: 7, kind: input, shape index: {}]
  %s8 = inlined_call_operand.vmem [shape: bf16[128,512], index: 8, kind: input, shape index: {}]
  %s9 = inlined_call_operand.vmem [shape: bf16[256,512], index: 9, kind: input, shape index: {}]
  %s10 = inlined_call_operand.vmem [shape: f32[1,512], index: 10, kind: input, shape index: {}]
  %s11 = inlined_call_operand.vmem [shape: bf16[256,512], index: 11, kind: input, shape index: {}]
  %s12 = inlined_call_operand.vmem [shape: f32[1,512], index: 12, kind: input, shape index: {}]
  %s13 = inlined_call_operand.vmem [shape: bf16[128,512], index: 13, kind: input, shape index: {}]
  %s14 = inlined_call_operand.vmem [shape: bf16[128,128], index: 14, kind: input, shape index: {}]
  %s15 = inlined_call_operand.vmem [shape: bf16[128,128], index: 15, kind: input, shape index: {}]
  %s16 = inlined_call_operand.vmem [shape: f32[1,128], index: 16, kind: input, shape index: {}]
  %s17 = inlined_call_operand.vmem [shape: f32[8,128], index: 17, kind: output, shape index: {}]
  %s18 = sld [smem:[#allocation0]]
  $region78: #{rnn_forward.1} parent=0
    _
  %s20 = ssub.s32 1, %s18
  %s21 = scalar_select 0, %s20, %s18
  // Predicated region
  $region2: #{rnn_forward.1} parent=0 // pred_check
    _
  $region3: #{rnn_forward.1} parent=0 // pred_check_branch
    %23 = sbr.rel (0) target = $region5
  $region4: #{rnn_forward.1} parent=0 // pred_region
    _
  $region5: #{rnn_forward.1} parent=0 // pred_fallthru
    _
  // Predicated region
  $region6: #{rnn_forward.1} parent=0 // pred_check
    _
  $region7: #{rnn_forward.1} parent=0 // pred_check_branch
    %25 = sbr.rel (0) target = $region9
  $region8: #{rnn_forward.1} parent=0 // pred_region
    _
  $region9: #{rnn_forward.1} parent=0 // pred_fallthru
    _
  // Predicated region
  $region10: #{rnn_forward.1} parent=0 // pred_check
    _
  $region11: #{rnn_forward.1} parent=0 // pred_check_branch
    %27 = sbr.rel (0) target = $region13
  $region12: #{rnn_forward.1} parent=0 // pred_region
    _
  $region13: #{rnn_forward.1} parent=0 // pred_fallthru
    _
  // Predicated region
  $region14: #{rnn_forward.1} parent=0 // pred_check
    _
  $region15: #{rnn_forward.1} parent=0 // pred_check_branch
    %29 = sbr.rel (0) target = $region17
  $region16: #{rnn_forward.1} parent=0 // pred_region
    _
  $region17: #{rnn_forward.1} parent=0 // pred_fallthru
    _
  // Predicated region
  $region18: #{rnn_forward.1} parent=0 // pred_check
    _
  $region19: #{rnn_forward.1} parent=0 // pred_check_branch
    %31 = sbr.rel (0) target = $region21
  $region20: #{rnn_forward.1} parent=0 // pred_region
    _
  $region21: #{rnn_forward.1} parent=0 // pred_fallthru
    _
  // Predicated region
  $region22: #{rnn_forward.1} parent=0 // pred_check
    _
  $region23: #{rnn_forward.1} parent=0 // pred_check_branch
    %33 = sbr.rel (0) target = $region25
  $region24: #{rnn_forward.1} parent=0 // pred_region
    _
  $region25: #{rnn_forward.1} parent=0 // pred_fallthru
    _
  // Predicated region
  $region26: #{rnn_forward.1} parent=0 // pred_check
    _
  $region27: #{rnn_forward.1} parent=0 // pred_check_branch
    %35 = sbr.rel (0) target = $region29
  $region28: #{rnn_forward.1} parent=0 // pred_region
    _
  $region29: #{rnn_forward.1} parent=0 // pred_fallthru
    _
  // Predicated region
  $region30: #{rnn_forward.1} parent=0 // pred_check
    _
  $region31: #{rnn_forward.1} parent=0 // pred_check_branch
    %37 = sbr.rel (0) target = $region33
  $region32: #{rnn_forward.1} parent=0 // pred_region
    _
  $region33: #{rnn_forward.1} parent=0 // pred_fallthru
    _
  // Predicated region
  $region34: #{rnn_forward.1} parent=0 // pred_check
    _
  $region35: #{rnn_forward.1} parent=0 // pred_check_branch
    %39 = sbr.rel (0) target = $region37
  $region36: #{rnn_forward.1} parent=0 // pred_region
    _
  $region37: #{rnn_forward.1} parent=0 // pred_fallthru
    _
  // Predicated region
  $region38: #{rnn_forward.1} parent=0 // pred_check
    _
  $region39: #{rnn_forward.1} parent=0 // pred_check_branch
    %41 = sbr.rel (0) target = $region41
  $region40: #{rnn_forward.1} parent=0 // pred_region
    _
  $region41: #{rnn_forward.1} parent=0 // pred_fallthru
    _
  // Predicated region
  $region42: #{rnn_forward.1} parent=0 // pred_check
    _
  $region43: #{rnn_forward.1} parent=0 // pred_check_branch
    %43 = sbr.rel (0) target = $region45
  $region44: #{rnn_forward.1} parent=0 // pred_region
    _
  $region45: #{rnn_forward.1} parent=0 // pred_fallthru
    _
  // Predicated region
  $region46: #{rnn_forward.1} parent=0 // pred_check
    _
  $region47: #{rnn_forward.1} parent=0 // pred_check_branch
    %45 = sbr.rel (0) target = $region49
  $region48: #{rnn_forward.1} parent=0 // pred_region
    _
  $region49: #{rnn_forward.1} parent=0 // pred_fallthru
    _
  // Predicated region
  $region50: #{rnn_forward.1} parent=0 // pred_check
    _
  $region51: #{rnn_forward.1} parent=0 // pred_check_branch
    %47 = sbr.rel (0) target = $region53
  $region52: #{rnn_forward.1} parent=0 // pred_region
    _
  $region53: #{rnn_forward.1} parent=0 // pred_fallthru
    _
  // Predicated region
  $region54: #{rnn_forward.1} parent=0 // pred_check
    _
  $region55: #{rnn_forward.1} parent=0 // pred_check_branch
    %49 = sbr.rel (0) target = $region57
  $region56: #{rnn_forward.1} parent=0 // pred_region
    _
  $region57: #{rnn_forward.1} parent=0 // pred_fallthru
    _
  // Predicated region
  $region58: #{rnn_forward.1} parent=0 // pred_check
    _
  $region59: #{rnn_forward.1} parent=0 // pred_check_branch
    %51 = sbr.rel (0) target = $region61
  $region60: #{rnn_forward.1} parent=0 // pred_region
    _
  $region61: #{rnn_forward.1} parent=0 // pred_fallthru
    _
  // Predicated region
  $region62: #{rnn_forward.1} parent=0 // pred_check
    _
  $region63: #{rnn_forward.1} parent=0 // pred_check_branch
    %53 = sbr.rel (0) target = $region65
  $region64: #{rnn_forward.1} parent=0 // pred_region
    _
  $region65: #{rnn_forward.1} parent=0 // pred_fallthru
    _
  // Predicated region
  $region66: #{rnn_forward.1} parent=0 // pred_check
    _
  $region67: #{rnn_forward.1} parent=0 // pred_check_branch
    %55 = sbr.rel (0) target = $region69
  $region68: #{rnn_forward.1} parent=0 // pred_region
    _
  $region69: #{rnn_forward.1} parent=0 // pred_fallthru
    _
  %v57 = vld [vmem:[%s0] sm:$0xff]
  %v58 = vld [vmem:[%s0 + $0x8] sm:$0xff]
  %v59 = vld [vmem:[%s0 + $0x10] sm:$0xff]
  %v60 = vld [vmem:[%s0 + $0x18] sm:$0xff]
  %v61 = vld [vmem:[%s0 + $0x20] sm:$0xff]
  %v62 = vld [vmem:[%s0 + $0x28] sm:$0xff]
  %v63 = vld [vmem:[%s0 + $0x30] sm:$0xff]
  %v64 = vld [vmem:[%s0 + $0x38] sm:$0xff]
  %v65 = vld [vmem:[%s2] sm:$0xf]
  %v66 = vld [vmem:[%s2 + $0x4] sm:$0xf]
  %v67 = vld [vmem:[%s2 + $0x8] sm:$0xf]
  %v68 = vld [vmem:[%s2 + $0xc] sm:$0xf]
  %v69 = vld [vmem:[%s2 + $0x10] sm:$0x3]
  %v70 = vpack.c.bf16 %v58, %v57
  %v71 = vpack.c.bf16 %v60, %v59
  %v72 = vpack.c.bf16 %v62, %v61
  %v73 = vpack.c.bf16 %v64, %v63
  %v74 = vld [vmem:[%s3] sm:$0x1]
  %v76 = vlaneseq
  %v77 = vshrl.u32 %v76, 7
  %v78 = vsub.s32 0, %v77
  %v79 = vrot.slane %v74, %v78
  %v86 = vunpack.c.l.b16 %v65
  %v87 = vunpack.c.l.b16 %v66
  %v88 = vunpack.c.l.b16 %v67
  %v89 = vunpack.c.l.b16 %v68
  %v90 = vunpack.c.l.b16 %v69
  %v91 = vpack.c.b16 %v87, %v86
  %v92 = vpack.c.b16 %v89, %v88
  %v93 = vpack.c.b16 %v90, %v90
  %vm96 = vcmask 293888
  %v98 = vsel %vm96, %v70, 0
  %v101 = vsel %vm96, %v71, 0
  %v104 = vsel %vm96, %v72, 0
  %v107 = vsel %vm96, %v73, 0
  %vm109 = vcmask 1041408
  %v111 = vsel %vm109, %v93, 0
  %113 = vmatprep.subr.bf16.mxu0 0
  %114 = vmatpush1.bf16.msra.mxu0 0
  %115 = vmatprep.subr.bf16.mxu0 0
  %116 = vmatpush1.bf16.msra.mxu0 0
  %117 = vmatprep.subr.bf16.mxu0 0
  %118 = vmatpush1.bf16.msra.mxu0 0
  %119 = vmatprep.subr.bf16.mxu0 0
  %120 = vmatpush1.bf16.msra.mxu0 0
  %121 = vmatprep.subr.bf16.mxu0 0
  %122 = vmatpush1.bf16.msra.mxu0 0
  %123 = vmatprep.subr.bf16.mxu0 0
  %124 = vmatpush1.bf16.msra.mxu0 %v111
  %125 = vmatprep.subr.bf16.mxu0 0
  %126 = vmatpush1.bf16.msra.mxu0 %v92
  %127 = vmatprep.subr.bf16.mxu0 0
  %128 = vmatpush1.bf16.msra.mxu0 %v91
  %129 = vmatprep.subr.bf16.mxu0 0
  %130 = vmatpush2.bf16.msra.mxu0 0
  %131 = vmatprep.subr.bf16.mxu0 0
  %132 = vmatpush2.bf16.msra.mxu0 0
  %133 = vmatprep.subr.bf16.mxu0 0
  %134 = vmatpush2.bf16.msra.mxu0 0
  %135 = vmatprep.subr.bf16.mxu0 0
  %136 = vmatpush2.bf16.msra.mxu0 0
  %137 = vmatprep.subr.bf16.mxu0 0
  %138 = vmatpush2.bf16.msra.mxu0 0
  %139 = vmatprep.subr.bf16.mxu0 0
  %140 = vmatpush2.bf16.msra.mxu0 0
  %141 = vmatprep.subr.bf16.mxu0 0
  %142 = vmatpush2.bf16.msra.mxu0 0
  %143 = vmatprep.subr.bf16.mxu0 0
  %144 = vmatpush2.bf16.msra.mxu0 0
  %145 = vmatprep.mubr.bf16.mxu0 0
  %146 = vmatmul.mubr.bf16.gmra.mxu0 %v98
  %v147 = vpop.f32.mrf.mxu0
  %v148 = vadd.f32 %v79, %v147
  %v149 = vpop.f32.mrf.mxu0
  %v150 = vpop.f32.mrf.mxu0
  %v151 = vadd.f32 %v79, %v150
  %v152 = vpop.f32.mrf.mxu0
  %153 = vmatprep.mubr.bf16.mxu0 0
  %154 = vmatmul.mubr.bf16.gmra.mxu0 %v101
  %v155 = vpop.f32.mrf.mxu0
  %v156 = vadd.f32 %v79, %v155
  %v157 = vpop.f32.mrf.mxu0
  %v158 = vpop.f32.mrf.mxu0
  %v159 = vadd.f32 %v79, %v158
  %v160 = vpop.f32.mrf.mxu0
  %161 = vmatprep.mubr.bf16.mxu0 0
  %162 = vmatmul.mubr.bf16.gmra.mxu0 %v104
  %v163 = vpop.f32.mrf.mxu0
  %v164 = vadd.f32 %v79, %v163
  %v165 = vpop.f32.mrf.mxu0
  %v166 = vpop.f32.mrf.mxu0
  %v167 = vadd.f32 %v79, %v166
  %v168 = vpop.f32.mrf.mxu0
  %169 = vmatprep.mubr.bf16.mxu0 0
  %170 = vmatmul.mubr.bf16.gmra.mxu0 %v107
  %v171 = vpop.f32.mrf.mxu0
  %v172 = vadd.f32 %v79, %v171
  %v173 = vpop.f32.mrf.mxu0
  %v174 = vpop.f32.mrf.mxu0
  %v175 = vadd.f32 %v79, %v174
  %v176 = vpop.f32.mrf.mxu0
  %177 = vdwg.mxu0
  %vm178 = vcmp.gt.f32.partialorder %v148, 0.0
  %vm179 = vcmp.gt.f32.partialorder %v151, 0.0
  %vm180 = vcmp.gt.f32.partialorder %v156, 0.0
  %vm181 = vcmp.gt.f32.partialorder %v159, 0.0
  %vm182 = vcmp.gt.f32.partialorder %v164, 0.0
  %vm183 = vcmp.gt.f32.partialorder %v167, 0.0
  %vm184 = vcmp.gt.f32.partialorder %v172, 0.0
  %vm185 = vcmp.gt.f32.partialorder %v175, 0.0
  %v186 = vmin.f32 %v148, 0.0
  %v187 = vmin.f32 %v151, 0.0
  %v188 = vmin.f32 %v156, 0.0
  %v189 = vmin.f32 %v159, 0.0
  %v190 = vmin.f32 %v164, 0.0
  %v191 = vmin.f32 %v167, 0.0
  %v192 = vmin.f32 %v172, 0.0
  %v193 = vmin.f32 %v175, 0.0
  %v194 = vmul.f32 %v186, 1.442695
  %v195 = vpow.pop %v194
  %v196 = vmul.f32 %v187, 1.442695
  %v197 = vpow.pop %v196
  %v198 = vmul.f32 %v188, 1.442695
  %v199 = vpow.pop %v198
  %v200 = vmul.f32 %v189, 1.442695
  %v201 = vpow.pop %v200
  %v202 = vmul.f32 %v190, 1.442695
  %v203 = vpow.pop %v202
  %v204 = vmul.f32 %v191, 1.442695
  %v205 = vpow.pop %v204
  %v206 = vmul.f32 %v192, 1.442695
  %v207 = vpow.pop %v206
  %v208 = vmul.f32 %v193, 1.442695
  %v209 = vpow.pop %v208
  %v210 = vsub.f32 %v195, 1.0
  %v211 = vsub.f32 %v197, 1.0
  %v212 = vsub.f32 %v199, 1.0
  %v213 = vsub.f32 %v201, 1.0
  %v214 = vsub.f32 %v203, 1.0
  %v215 = vsub.f32 %v205, 1.0
  %v216 = vsub.f32 %v207, 1.0
  %v217 = vsub.f32 %v209, 1.0
  %v218 = vsel %vm178, %v148, %v210
  %v219 = vsel %vm179, %v151, %v211
  %v220 = vsel %vm180, %v156, %v212
  %v221 = vsel %vm181, %v159, %v213
  %v222 = vsel %vm182, %v164, %v214
  %v223 = vsel %vm183, %v167, %v215
  %v224 = vsel %vm184, %v172, %v216
  %v225 = vsel %vm185, %v175, %v217
  %v226 = vld [vmem:[%s1] sm:$0xff]
  %v227 = vtanh.pop %v226
  %v228 = vld [vmem:[%s5] sm:$0xff]
  %v229 = vld [vmem:[%s5 + $0x8] sm:$0xff]
  %v230 = vld [vmem:[%s5 + $0x10] sm:$0xff]
  %v231 = vld [vmem:[%s5 + $0x18] sm:$0xff]
  %v232 = vld [vmem:[%s5 + $0x20] sm:$0xff]
  %v233 = vld [vmem:[%s5 + $0x28] sm:$0xff]
  %v234 = vld [vmem:[%s5 + $0x30] sm:$0xff]
  %v235 = vld [vmem:[%s5 + $0x38] sm:$0xff]
  %v236 = vld [vmem:[%s5 + $0x40] sm:$0xff]
  %v237 = vld [vmem:[%s5 + $0x48] sm:$0xff]
  %v238 = vld [vmem:[%s5 + $0x50] sm:$0xff]
  %v239 = vld [vmem:[%s5 + $0x58] sm:$0xff]
  %v240 = vld [vmem:[%s5 + $0x60] sm:$0x33]
  %v241 = vld [vmem:[%s5 + $0x68] sm:$0x33]
  %v242 = vld [vmem:[%s5 + $0x70] sm:$0x33]
  %v243 = vld [vmem:[%s5 + $0x78] sm:$0x33]
  %v244 = vpack.c.bf16 %v227, %v227
  %v245 = vld [vmem:[%s6] sm:$0xff]
  %v247 = vlaneseq
  %v248 = vshrl.u32 %v247, 7
  %v249 = vsub.s32 0, %v248
  %v250 = vrot.slane %v245, %v249
  %v251 = vlaneseq
  %v252 = vshrl.u32 %v251, 7
  %v253 = vsub.s32 1, %v252
  %v254 = vrot.slane %v245, %v253
  %v255 = vlaneseq
  %v256 = vshrl.u32 %v255, 7
  %v257 = vsub.s32 2, %v256
  %v258 = vrot.slane %v245, %v257
  %v259 = vlaneseq
  %v260 = vshrl.u32 %v259, 7
  %v261 = vsub.s32 3, %v260
  %v262 = vrot.slane %v245, %v261
  %v263 = vlaneseq
  %v264 = vshrl.u32 %v263, 7
  %v265 = vsub.s32 4, %v264
  %v266 = vrot.slane %v245, %v265
  %v267 = vlaneseq
  %v268 = vshrl.u32 %v267, 7
  %v269 = vsub.s32 5, %v268
  %v270 = vrot.slane %v245, %v269
  %v271 = vlaneseq
  %v272 = vshrl.u32 %v271, 7
  %v273 = vsub.s32 6, %v272
  %v274 = vrot.slane %v245, %v273
  %v275 = vlaneseq
  %v276 = vshrl.u32 %v275, 7
  %v277 = vsub.s32 7, %v276
  %v278 = vrot.slane %v245, %v277
  %v303 = vunpack.c.l.b16 %v228
  %v304 = vunpack.c.h.b16 %v228
  %v305 = vunpack.c.l.b16 %v229
  %v306 = vunpack.c.h.b16 %v229
  %v307 = vunpack.c.l.b16 %v230
  %v308 = vunpack.c.h.b16 %v230
  %v309 = vunpack.c.l.b16 %v231
  %v310 = vunpack.c.h.b16 %v231
  %v311 = vunpack.c.l.b16 %v232
  %v312 = vunpack.c.h.b16 %v232
  %v313 = vunpack.c.l.b16 %v233
  %v314 = vunpack.c.h.b16 %v233
  %v315 = vunpack.c.l.b16 %v234
  %v316 = vunpack.c.h.b16 %v234
  %v317 = vunpack.c.l.b16 %v235
  %v318 = vunpack.c.h.b16 %v235
  %v319 = vunpack.c.l.b16 %v236
  %v320 = vunpack.c.h.b16 %v236
  %v321 = vunpack.c.l.b16 %v237
  %v322 = vunpack.c.h.b16 %v237
  %v323 = vunpack.c.l.b16 %v238
  %v324 = vunpack.c.h.b16 %v238
  %v325 = vunpack.c.l.b16 %v239
  %v326 = vunpack.c.h.b16 %v239
  %v327 = vunpack.c.l.b16 %v240
  %v328 = vunpack.c.h.b16 %v240
  %v329 = vunpack.c.l.b16 %v241
  %v330 = vunpack.c.h.b16 %v241
  %v331 = vunpack.c.l.b16 %v242
  %v332 = vunpack.c.h.b16 %v242
  %v333 = vunpack.c.l.b16 %v243
  %v334 = vunpack.c.h.b16 %v243
  %v335 = vpack.c.b16 %v311, %v303
  %v336 = vpack.c.b16 %v312, %v304
  %v337 = vpack.c.b16 %v313, %v305
  %v338 = vpack.c.b16 %v314, %v306
  %v339 = vpack.c.b16 %v315, %v307
  %v340 = vpack.c.b16 %v316, %v308
  %v341 = vpack.c.b16 %v317, %v309
  %v342 = vpack.c.b16 %v318, %v310
  %v343 = vpack.c.b16 %v327, %v319
  %v344 = vpack.c.b16 %v328, %v320
  %v345 = vpack.c.b16 %v329, %v321
  %v346 = vpack.c.b16 %v330, %v322
  %v347 = vpack.c.b16 %v331, %v323
  %v348 = vpack.c.b16 %v332, %v324
  %v349 = vpack.c.b16 %v333, %v325
  %v350 = vpack.c.b16 %v334, %v326
  %vm359 = vcmask 220160
  %v361 = vsel %vm359, %v244, 0
  %vm363 = vcmask 1044480
  %vm364 = vcmask 1045504
  %v365 = vsel %vm363, 4294967295, 65535
  %v366 = vsel %vm364, %v365, 0
  %v368 = vand.u32 %v343, %v366
  %v371 = vand.u32 %v344, %v366
  %v374 = vand.u32 %v345, %v366
  %v377 = vand.u32 %v346, %v366
  %v380 = vand.u32 %v347, %v366
  %v383 = vand.u32 %v348, %v366
  %v386 = vand.u32 %v349, %v366
  %v389 = vand.u32 %v350, %v366
  %391 = vmatprep.subr.bf16.mxu0 0
  %392 = vmatpush1.bf16.msra.mxu0 0
  %393 = vmatprep.subr.bf16.mxu0 0
  %394 = vmatpush1.bf16.msra.mxu0 0
  %395 = vmatprep.subr.bf16.mxu0 0
  %396 = vmatpush1.bf16.msra.mxu0 0
  %397 = vmatprep.subr.bf16.mxu0 0
  %398 = vmatpush1.bf16.msra.mxu0 0
  %399 = vmatprep.subr.bf16.mxu0 0
  %400 = vmatpush1.bf16.msra.mxu0 0
  %401 = vmatprep.subr.bf16.mxu0 0
  %402 = vmatpush1.bf16.msra.mxu0 0
  %403 = vmatprep.subr.bf16.mxu0 %v371
  %404 = vmatpush1.bf16.msra.mxu0 %v368
  %405 = vmatprep.subr.bf16.mxu0 %v336
  %406 = vmatpush1.bf16.msra.mxu0 %v335
  %407 = vmatprep.subr.bf16.mxu0 0
  %408 = vmatpush2.bf16.msra.mxu0 0
  %409 = vmatprep.subr.bf16.mxu0 0
  %410 = vmatpush2.bf16.msra.mxu0 0
  %411 = vmatprep.subr.bf16.mxu0 0
  %412 = vmatpush2.bf16.msra.mxu0 0
  %413 = vmatprep.subr.bf16.mxu0 0
  %414 = vmatpush2.bf16.msra.mxu0 0
  %415 = vmatprep.subr.bf16.mxu0 0
  %416 = vmatpush2.bf16.msra.mxu0 0
  %417 = vmatprep.subr.bf16.mxu0 0
  %418 = vmatpush2.bf16.msra.mxu0 0
  %419 = vmatprep.subr.bf16.mxu0 0
  %420 = vmatpush2.bf16.msra.mxu0 0
  %421 = vmatprep.subr.bf16.mxu0 0
  %422 = vmatpush2.bf16.msra.mxu0 0
  %423 = vmatprep.mubr.bf16.mxu0 0
  %424 = vmatmul.mubr.bf16.gmra.mxu0 %v361
  %v425 = vpop.f32.mrf.mxu0
  %v426 = vadd.f32 %v250, %v425
  %v427 = vpop.f32.mrf.mxu0
  %v428 = vadd.f32 %v254, %v427
  %v429 = vpop.f32.mrf.mxu0
  %v430 = vpop.f32.mrf.mxu0
  %431 = vdwg.mxu0
  %432 = vmatprep.subr.bf16.mxu0 0
  %433 = vmatpush1.bf16.msra.mxu0 0
  %434 = vmatprep.subr.bf16.mxu0 0
  %435 = vmatpush1.bf16.msra.mxu0 0
  %436 = vmatprep.subr.bf16.mxu0 0
  %437 = vmatpush1.bf16.msra.mxu0 0
  %438 = vmatprep.subr.bf16.mxu0 0
  %439 = vmatpush1.bf16.msra.mxu0 0
  %440 = vmatprep.subr.bf16.mxu0 0
  %441 = vmatpush1.bf16.msra.mxu0 0
  %442 = vmatprep.subr.bf16.mxu0 0
  %443 = vmatpush1.bf16.msra.mxu0 0
  %444 = vmatprep.subr.bf16.mxu0 %v377
  %445 = vmatpush1.bf16.msra.mxu0 %v374
  %446 = vmatprep.subr.bf16.mxu0 %v338
  %447 = vmatpush1.bf16.msra.mxu0 %v337
  %448 = vmatprep.subr.bf16.mxu0 0
  %449 = vmatpush2.bf16.msra.mxu0 0
  %450 = vmatprep.subr.bf16.mxu0 0
  %451 = vmatpush2.bf16.msra.mxu0 0
  %452 = vmatprep.subr.bf16.mxu0 0
  %453 = vmatpush2.bf16.msra.mxu0 0
  %454 = vmatprep.subr.bf16.mxu0 0
  %455 = vmatpush2.bf16.msra.mxu0 0
  %456 = vmatprep.subr.bf16.mxu0 0
  %457 = vmatpush2.bf16.msra.mxu0 0
  %458 = vmatprep.subr.bf16.mxu0 0
  %459 = vmatpush2.bf16.msra.mxu0 0
  %460 = vmatprep.subr.bf16.mxu0 0
  %461 = vmatpush2.bf16.msra.mxu0 0
  %462 = vmatprep.subr.bf16.mxu0 0
  %463 = vmatpush2.bf16.msra.mxu0 0
  %464 = vmatprep.mubr.bf16.mxu0 0
  %465 = vmatmul.mubr.bf16.gmra.mxu0 %v361
  %v466 = vpop.f32.mrf.mxu0
  %v467 = vadd.f32 %v258, %v466
  %v468 = vpop.f32.mrf.mxu0
  %v469 = vadd.f32 %v262, %v468
  %v470 = vpop.f32.mrf.mxu0
  %v471 = vpop.f32.mrf.mxu0
  %472 = vdwg.mxu0
  %473 = vmatprep.subr.bf16.mxu0 0
  %474 = vmatpush1.bf16.msra.mxu0 0
  %475 = vmatprep.subr.bf16.mxu0 0
  %476 = vmatpush1.bf16.msra.mxu0 0
  %477 = vmatprep.subr.bf16.mxu0 0
  %478 = vmatpush1.bf16.msra.mxu0 0
  %479 = vmatprep.subr.bf16.mxu0 0
  %480 = vmatpush1.bf16.msra.mxu0 0
  %481 = vmatprep.subr.bf16.mxu0 0
  %482 = vmatpush1.bf16.msra.mxu0 0
  %483 = vmatprep.subr.bf16.mxu0 0
  %484 = vmatpush1.bf16.msra.mxu0 0
  %485 = vmatprep.subr.bf16.mxu0 %v383
  %486 = vmatpush1.bf16.msra.mxu0 %v380
  %487 = vmatprep.subr.bf16.mxu0 %v340
  %488 = vmatpush1.bf16.msra.mxu0 %v339
  %489 = vmatprep.subr.bf16.mxu0 0
  %490 = vmatpush2.bf16.msra.mxu0 0
  %491 = vmatprep.subr.bf16.mxu0 0
  %492 = vmatpush2.bf16.msra.mxu0 0
  %493 = vmatprep.subr.bf16.mxu0 0
  %494 = vmatpush2.bf16.msra.mxu0 0
  %495 = vmatprep.subr.bf16.mxu0 0
  %496 = vmatpush2.bf16.msra.mxu0 0
  %497 = vmatprep.subr.bf16.mxu0 0
  %498 = vmatpush2.bf16.msra.mxu0 0
  %499 = vmatprep.subr.bf16.mxu0 0
  %500 = vmatpush2.bf16.msra.mxu0 0
  %501 = vmatprep.subr.bf16.mxu0 0
  %502 = vmatpush2.bf16.msra.mxu0 0
  %503 = vmatprep.subr.bf16.mxu0 0
  %504 = vmatpush2.bf16.msra.mxu0 0
  %505 = vmatprep.mubr.bf16.mxu0 0
  %506 = vmatmul.mubr.bf16.gmra.mxu0 %v361
  %v507 = vpop.f32.mrf.mxu0
  %v508 = vadd.f32 %v266, %v507
  %v509 = vpop.f32.mrf.mxu0
  %v510 = vadd.f32 %v270, %v509
  %v511 = vpop.f32.mrf.mxu0
  %v512 = vpop.f32.mrf.mxu0
  %513 = vdwg.mxu0
  %514 = vmatprep.subr.bf16.mxu0 0
  %515 = vmatpush1.bf16.msra.mxu0 0
  %516 = vmatprep.subr.bf16.mxu0 0
  %517 = vmatpush1.bf16.msra.mxu0 0
  %518 = vmatprep.subr.bf16.mxu0 0
  %519 = vmatpush1.bf16.msra.mxu0 0
  %520 = vmatprep.subr.bf16.mxu0 0
  %521 = vmatpush1.bf16.msra.mxu0 0
  %522 = vmatprep.subr.bf16.mxu0 0
  %523 = vmatpush1.bf16.msra.mxu0 0
  %524 = vmatprep.subr.bf16.mxu0 0
  %525 = vmatpush1.bf16.msra.mxu0 0
  %526 = vmatprep.subr.bf16.mxu0 %v389
  %527 = vmatpush1.bf16.msra.mxu0 %v386
  %528 = vmatprep.subr.bf16.mxu0 %v342
  %529 = vmatpush1.bf16.msra.mxu0 %v341
  %530 = vmatprep.subr.bf16.mxu0 0
  %531 = vmatpush2.bf16.msra.mxu0 0
  %532 = vmatprep.subr.bf16.mxu0 0
  %533 = vmatpush2.bf16.msra.mxu0 0
  %534 = vmatprep.subr.bf16.mxu0 0
  %535 = vmatpush2.bf16.msra.mxu0 0
  %536 = vmatprep.subr.bf16.mxu0 0
  %537 = vmatpush2.bf16.msra.mxu0 0
  %538 = vmatprep.subr.bf16.mxu0 0
  %539 = vmatpush2.bf16.msra.mxu0 0
  %540 = vmatprep.subr.bf16.mxu0 0
  %541 = vmatpush2.bf16.msra.mxu0 0
  %542 = vmatprep.subr.bf16.mxu0 0
  %543 = vmatpush2.bf16.msra.mxu0 0
  %544 = vmatprep.subr.bf16.mxu0 0
  %545 = vmatpush2.bf16.msra.mxu0 0
  %546 = vmatprep.mubr.bf16.mxu0 0
  %547 = vmatmul.mubr.bf16.gmra.mxu0 %v361
  %v548 = vpop.f32.mrf.mxu0
  %v549 = vadd.f32 %v274, %v548
  %v550 = vpop.f32.mrf.mxu0
  %v551 = vadd.f32 %v278, %v550
  %v552 = vpop.f32.mrf.mxu0
  %v553 = vpop.f32.mrf.mxu0
  %554 = vdwg.mxu0
  %v555 = vld [vmem:[%s4] sm:$0xff]
  %v556 = vld [vmem:[%s4 + $0x8] sm:$0xff]
  %v557 = vld [vmem:[%s4 + $0x10] sm:$0xff]
  %v558 = vld [vmem:[%s4 + $0x18] sm:$0xff]
  %v559 = vld [vmem:[%s4 + $0x20] sm:$0xff]
  %v560 = vld [vmem:[%s4 + $0x28] sm:$0xff]
  %v561 = vld [vmem:[%s4 + $0x30] sm:$0xff]
  %v562 = vld [vmem:[%s4 + $0x38] sm:$0xff]
  %v563 = vld [vmem:[%s4 + $0x40] sm:$0xff]
  %v564 = vld [vmem:[%s4 + $0x48] sm:$0xff]
  %v565 = vld [vmem:[%s4 + $0x50] sm:$0xff]
  %v566 = vld [vmem:[%s4 + $0x58] sm:$0xff]
  %v567 = vld [vmem:[%s4 + $0x60] sm:$0xff]
  %v568 = vld [vmem:[%s4 + $0x68] sm:$0xff]
  %v569 = vld [vmem:[%s4 + $0x70] sm:$0xff]
  %v570 = vld [vmem:[%s4 + $0x78] sm:$0xff]
  %v571 = vpack.c.bf16 %v219, %v218
  %v572 = vpack.c.bf16 %v221, %v220
  %v573 = vpack.c.bf16 %v223, %v222
  %v574 = vpack.c.bf16 %v225, %v224
  %v591 = vunpack.c.l.b16 %v555
  %v592 = vunpack.c.h.b16 %v555
  %v593 = vunpack.c.l.b16 %v556
  %v594 = vunpack.c.h.b16 %v556
  %v595 = vunpack.c.l.b16 %v557
  %v596 = vunpack.c.h.b16 %v557
  %v597 = vunpack.c.l.b16 %v558
  %v598 = vunpack.c.h.b16 %v558
  %v599 = vunpack.c.l.b16 %v559
  %v600 = vunpack.c.h.b16 %v559
  %v601 = vunpack.c.l.b16 %v560
  %v602 = vunpack.c.h.b16 %v560
  %v603 = vunpack.c.l.b16 %v561
  %v604 = vunpack.c.h.b16 %v561
  %v605 = vunpack.c.l.b16 %v562
  %v606 = vunpack.c.h.b16 %v562
  %v607 = vunpack.c.l.b16 %v563
  %v608 = vunpack.c.h.b16 %v563
  %v609 = vunpack.c.l.b16 %v564
  %v610 = vunpack.c.h.b16 %v564
  %v611 = vunpack.c.l.b16 %v565
  %v612 = vunpack.c.h.b16 %v565
  %v613 = vunpack.c.l.b16 %v566
  %v614 = vunpack.c.h.b16 %v566
  %v615 = vunpack.c.l.b16 %v567
  %v616 = vunpack.c.h.b16 %v567
  %v617 = vunpack.c.l.b16 %v568
  %v618 = vunpack.c.h.b16 %v568
  %v619 = vunpack.c.l.b16 %v569
  %v620 = vunpack.c.h.b16 %v569
  %v621 = vunpack.c.l.b16 %v570
  %v622 = vunpack.c.h.b16 %v570
  %v623 = vpack.c.b16 %v599, %v591
  %v624 = vpack.c.b16 %v600, %v592
  %v625 = vpack.c.b16 %v601, %v593
  %v626 = vpack.c.b16 %v602, %v594
  %v627 = vpack.c.b16 %v603, %v595
  %v628 = vpack.c.b16 %v604, %v596
  %v629 = vpack.c.b16 %v605, %v597
  %v630 = vpack.c.b16 %v606, %v598
  %v631 = vpack.c.b16 %v615, %v607
  %v632 = vpack.c.b16 %v616, %v608
  %v633 = vpack.c.b16 %v617, %v609
  %v634 = vpack.c.b16 %v618, %v610
  %v635 = vpack.c.b16 %v619, %v611
  %v636 = vpack.c.b16 %v620, %v612
  %v637 = vpack.c.b16 %v621, %v613
  %v638 = vpack.c.b16 %v622, %v614
  %vm655 = vcmask 261120
  %v657 = vsel %vm655, %v571, 0
  %v660 = vsel %vm655, %v572, 0
  %v663 = vsel %vm655, %v573, 0
  %v666 = vsel %vm655, %v574, 0
  %668 = vmatprep.subr.bf16.mxu0 0
  %669 = vmatpush1.bf16.msra.mxu0 0
  %670 = vmatprep.subr.bf16.mxu0 0
  %671 = vmatpush1.bf16.msra.mxu0 0
  %672 = vmatprep.subr.bf16.mxu0 0
  %673 = vmatpush1.bf16.msra.mxu0 0
  %674 = vmatprep.subr.bf16.mxu0 0
  %675 = vmatpush1.bf16.msra.mxu0 0
  %676 = vmatprep.subr.bf16.mxu0 0
  %677 = vmatpush1.bf16.msra.mxu0 0
  %678 = vmatprep.subr.bf16.mxu0 0
  %679 = vmatpush1.bf16.msra.mxu0 0
  %680 = vmatprep.subr.bf16.mxu0 %v632
  %681 = vmatpush1.bf16.msra.mxu0 %v631
  %682 = vmatprep.subr.bf16.mxu0 %v624
  %683 = vmatpush1.bf16.msra.mxu0 %v623
  %684 = vmatprep.subr.bf16.mxu0 0
  %685 = vmatpush2.bf16.msra.mxu0 0
  %686 = vmatprep.subr.bf16.mxu0 0
  %687 = vmatpush2.bf16.msra.mxu0 0
  %688 = vmatprep.subr.bf16.mxu0 0
  %689 = vmatpush2.bf16.msra.mxu0 0
  %690 = vmatprep.subr.bf16.mxu0 0
  %691 = vmatpush2.bf16.msra.mxu0 0
  %692 = vmatprep.subr.bf16.mxu0 0
  %693 = vmatpush2.bf16.msra.mxu0 0
  %694 = vmatprep.subr.bf16.mxu0 0
  %695 = vmatpush2.bf16.msra.mxu0 0
  %696 = vmatprep.subr.bf16.mxu0 0
  %697 = vmatpush2.bf16.msra.mxu0 0
  %698 = vmatprep.subr.bf16.mxu0 0
  %699 = vmatpush2.bf16.msra.mxu0 0
  %700 = vmatprep.mubr.bf16.mxu0 0
  %701 = vmatmul.mubr.bf16.gmra.mxu0 %v657
  %v702 = vpop.f32.mrf.mxu0
  %v703 = vadd.f32 0.0, %v702
  %v704 = vpop.f32.mrf.mxu0
  %v705 = vadd.f32 0.0, %v704
  %v706 = vpop.f32.mrf.mxu0
  %v707 = vadd.f32 0.0, %v706
  %v708 = vpop.f32.mrf.mxu0
  %v709 = vadd.f32 0.0, %v708
  %710 = vmatprep.mubr.bf16.mxu0 0
  %711 = vmatmul.mubr.bf16.gmra.mxu0 %v660
  %v712 = vpop.f32.mrf.mxu0
  %v713 = vadd.f32 0.0, %v712
  %v714 = vpop.f32.mrf.mxu0
  %v715 = vadd.f32 0.0, %v714
  %v716 = vpop.f32.mrf.mxu0
  %v717 = vadd.f32 0.0, %v716
  %v718 = vpop.f32.mrf.mxu0
  %v719 = vadd.f32 0.0, %v718
  %720 = vmatprep.mubr.bf16.mxu0 0
  %721 = vmatmul.mubr.bf16.gmra.mxu0 %v663
  %v722 = vpop.f32.mrf.mxu0
  %v723 = vadd.f32 0.0, %v722
  %v724 = vpop.f32.mrf.mxu0
  %v725 = vadd.f32 0.0, %v724
  %v726 = vpop.f32.mrf.mxu0
  %v727 = vadd.f32 0.0, %v726
  %v728 = vpop.f32.mrf.mxu0
  %v729 = vadd.f32 0.0, %v728
  %730 = vmatprep.mubr.bf16.mxu0 0
  %731 = vmatmul.mubr.bf16.gmra.mxu0 %v666
  %v732 = vpop.f32.mrf.mxu0
  %v733 = vadd.f32 0.0, %v732
  %v734 = vpop.f32.mrf.mxu0
  %v735 = vadd.f32 0.0, %v734
  %v736 = vpop.f32.mrf.mxu0
  %v737 = vadd.f32 0.0, %v736
  %v738 = vpop.f32.mrf.mxu0
  %v739 = vadd.f32 0.0, %v738
  %740 = vdwg.mxu0
  %741 = vmatprep.subr.bf16.mxu0 0
  %742 = vmatpush1.bf16.msra.mxu0 0
  %743 = vmatprep.subr.bf16.mxu0 0
  %744 = vmatpush1.bf16.msra.mxu0 0
  %745 = vmatprep.subr.bf16.mxu0 0
  %746 = vmatpush1.bf16.msra.mxu0 0
  %747 = vmatprep.subr.bf16.mxu0 0
  %748 = vmatpush1.bf16.msra.mxu0 0
  %749 = vmatprep.subr.bf16.mxu0 0
  %750 = vmatpush1.bf16.msra.mxu0 0
  %751 = vmatprep.subr.bf16.mxu0 0
  %752 = vmatpush1.bf16.msra.mxu0 0
  %753 = vmatprep.subr.bf16.mxu0 %v634
  %754 = vmatpush1.bf16.msra.mxu0 %v633
  %755 = vmatprep.subr.bf16.mxu0 %v626
  %756 = vmatpush1.bf16.msra.mxu0 %v625
  %757 = vmatprep.subr.bf16.mxu0 0
  %758 = vmatpush2.bf16.msra.mxu0 0
  %759 = vmatprep.subr.bf16.mxu0 0
  %760 = vmatpush2.bf16.msra.mxu0 0
  %761 = vmatprep.subr.bf16.mxu0 0
  %762 = vmatpush2.bf16.msra.mxu0 0
  %763 = vmatprep.subr.bf16.mxu0 0
  %764 = vmatpush2.bf16.msra.mxu0 0
  %765 = vmatprep.subr.bf16.mxu0 0
  %766 = vmatpush2.bf16.msra.mxu0 0
  %767 = vmatprep.subr.bf16.mxu0 0
  %768 = vmatpush2.bf16.msra.mxu0 0
  %769 = vmatprep.subr.bf16.mxu0 0
  %770 = vmatpush2.bf16.msra.mxu0 0
  %771 = vmatprep.subr.bf16.mxu0 0
  %772 = vmatpush2.bf16.msra.mxu0 0
  %773 = vmatprep.mubr.bf16.mxu0 0
  %774 = vmatmul.mubr.bf16.gmra.mxu0 %v657
  %v775 = vpop.f32.mrf.mxu0
  %v776 = vadd.f32 0.0, %v775
  %v777 = vpop.f32.mrf.mxu0
  %v778 = vadd.f32 0.0, %v777
  %v779 = vpop.f32.mrf.mxu0
  %v780 = vadd.f32 0.0, %v779
  %v781 = vpop.f32.mrf.mxu0
  %v782 = vadd.f32 0.0, %v781
  %783 = vmatprep.mubr.bf16.mxu0 0
  %784 = vmatmul.mubr.bf16.gmra.mxu0 %v660
  %v785 = vpop.f32.mrf.mxu0
  %v786 = vadd.f32 0.0, %v785
  %v787 = vpop.f32.mrf.mxu0
  %v788 = vadd.f32 0.0, %v787
  %v789 = vpop.f32.mrf.mxu0
  %v790 = vadd.f32 0.0, %v789
  %v791 = vpop.f32.mrf.mxu0
  %v792 = vadd.f32 0.0, %v791
  %793 = vmatprep.mubr.bf16.mxu0 0
  %794 = vmatmul.mubr.bf16.gmra.mxu0 %v663
  %v795 = vpop.f32.mrf.mxu0
  %v796 = vadd.f32 0.0, %v795
  %v797 = vpop.f32.mrf.mxu0
  %v798 = vadd.f32 0.0, %v797
  %v799 = vpop.f32.mrf.mxu0
  %v800 = vadd.f32 0.0, %v799
  %v801 = vpop.f32.mrf.mxu0
  %v802 = vadd.f32 0.0, %v801
  %803 = vmatprep.mubr.bf16.mxu0 0
  %804 = vmatmul.mubr.bf16.gmra.mxu0 %v666
  %v805 = vpop.f32.mrf.mxu0
  %v806 = vadd.f32 0.0, %v805
  %v807 = vpop.f32.mrf.mxu0
  %v808 = vadd.f32 0.0, %v807
  %v809 = vpop.f32.mrf.mxu0
  %v810 = vadd.f32 0.0, %v809
  %v811 = vpop.f32.mrf.mxu0
  %v812 = vadd.f32 0.0, %v811
  %813 = vdwg.mxu0
  %814 = vmatprep.subr.bf16.mxu0 0
  %815 = vmatpush1.bf16.msra.mxu0 0
  %816 = vmatprep.subr.bf16.mxu0 0
  %817 = vmatpush1.bf16.msra.mxu0 0
  %818 = vmatprep.subr.bf16.mxu0 0
  %819 = vmatpush1.bf16.msra.mxu0 0
  %820 = vmatprep.subr.bf16.mxu0 0
  %821 = vmatpush1.bf16.msra.mxu0 0
  %822 = vmatprep.subr.bf16.mxu0 0
  %823 = vmatpush1.bf16.msra.mxu0 0
  %824 = vmatprep.subr.bf16.mxu0 0
  %825 = vmatpush1.bf16.msra.mxu0 0
  %826 = vmatprep.subr.bf16.mxu0 %v636
  %827 = vmatpush1.bf16.msra.mxu0 %v635
  %828 = vmatprep.subr.bf16.mxu0 %v628
  %829 = vmatpush1.bf16.msra.mxu0 %v627
  %830 = vmatprep.subr.bf16.mxu0 0
  %831 = vmatpush2.bf16.msra.mxu0 0
  %832 = vmatprep.subr.bf16.mxu0 0
  %833 = vmatpush2.bf16.msra.mxu0 0
  %834 = vmatprep.subr.bf16.mxu0 0
  %835 = vmatpush2.bf16.msra.mxu0 0
  %836 = vmatprep.subr.bf16.mxu0 0
  %837 = vmatpush2.bf16.msra.mxu0 0
  %838 = vmatprep.subr.bf16.mxu0 0
  %839 = vmatpush2.bf16.msra.mxu0 0
  %840 = vmatprep.subr.bf16.mxu0 0
  %841 = vmatpush2.bf16.msra.mxu0 0
  %842 = vmatprep.subr.bf16.mxu0 0
  %843 = vmatpush2.bf16.msra.mxu0 0
  %844 = vmatprep.subr.bf16.mxu0 0
  %845 = vmatpush2.bf16.msra.mxu0 0
  %846 = vmatprep.mubr.bf16.mxu0 0
  %847 = vmatmul.mubr.bf16.gmra.mxu0 %v657
  %v848 = vpop.f32.mrf.mxu0
  %v849 = vadd.f32 0.0, %v848
  %v850 = vpop.f32.mrf.mxu0
  %v851 = vadd.f32 0.0, %v850
  %v852 = vpop.f32.mrf.mxu0
  %v853 = vadd.f32 0.0, %v852
  %v854 = vpop.f32.mrf.mxu0
  %v855 = vadd.f32 0.0, %v854
  %856 = vmatprep.mubr.bf16.mxu0 0
  %857 = vmatmul.mubr.bf16.gmra.mxu0 %v660
  %v858 = vpop.f32.mrf.mxu0
  %v859 = vadd.f32 0.0, %v858
  %v860 = vpop.f32.mrf.mxu0
  %v861 = vadd.f32 0.0, %v860
  %v862 = vpop.f32.mrf.mxu0
  %v863 = vadd.f32 0.0, %v862
  %v864 = vpop.f32.mrf.mxu0
  %v865 = vadd.f32 0.0, %v864
  %866 = vmatprep.mubr.bf16.mxu0 0
  %867 = vmatmul.mubr.bf16.gmra.mxu0 %v663
  %v868 = vpop.f32.mrf.mxu0
  %v869 = vadd.f32 0.0, %v868
  %v870 = vpop.f32.mrf.mxu0
  %v871 = vadd.f32 0.0, %v870
  %v872 = vpop.f32.mrf.mxu0
  %v873 = vadd.f32 0.0, %v872
  %v874 = vpop.f32.mrf.mxu0
  %v875 = vadd.f32 0.0, %v874
  %876 = vmatprep.mubr.bf16.mxu0 0
  %877 = vmatmul.mubr.bf16.gmra.mxu0 %v666
  %v878 = vpop.f32.mrf.mxu0
  %v879 = vadd.f32 0.0, %v878
  %v880 = vpop.f32.mrf.mxu0
  %v881 = vadd.f32 0.0, %v880
  %v882 = vpop.f32.mrf.mxu0
  %v883 = vadd.f32 0.0, %v882
  %v884 = vpop.f32.mrf.mxu0
  %v885 = vadd.f32 0.0, %v884
  %886 = vdwg.mxu0
  %887 = vmatprep.subr.bf16.mxu0 0
  %888 = vmatpush1.bf16.msra.mxu0 0
  %889 = vmatprep.subr.bf16.mxu0 0
  %890 = vmatpush1.bf16.msra.mxu0 0
  %891 = vmatprep.subr.bf16.mxu0 0
  %892 = vmatpush1.bf16.msra.mxu0 0
  %893 = vmatprep.subr.bf16.mxu0 0
  %894 = vmatpush1.bf16.msra.mxu0 0
  %895 = vmatprep.subr.bf16.mxu0 0
  %896 = vmatpush1.bf16.msra.mxu0 0
  %897 = vmatprep.subr.bf16.mxu0 0
  %898 = vmatpush1.bf16.msra.mxu0 0
  %899 = vmatprep.subr.bf16.mxu0 %v638
  %900 = vmatpush1.bf16.msra.mxu0 %v637
  %901 = vmatprep.subr.bf16.mxu0 %v630
  %902 = vmatpush1.bf16.msra.mxu0 %v629
  %903 = vmatprep.subr.bf16.mxu0 0
  %904 = vmatpush2.bf16.msra.mxu0 0
  %905 = vmatprep.subr.bf16.mxu0 0
  %906 = vmatpush2.bf16.msra.mxu0 0
  %907 = vmatprep.subr.bf16.mxu0 0
  %908 = vmatpush2.bf16.msra.mxu0 0
  %909 = vmatprep.subr.bf16.mxu0 0
  %910 = vmatpush2.bf16.msra.mxu0 0
  %911 = vmatprep.subr.bf16.mxu0 0
  %912 = vmatpush2.bf16.msra.mxu0 0
  %913 = vmatprep.subr.bf16.mxu0 0
  %914 = vmatpush2.bf16.msra.mxu0 0
  %915 = vmatprep.subr.bf16.mxu0 0
  %916 = vmatpush2.bf16.msra.mxu0 0
  %917 = vmatprep.subr.bf16.mxu0 0
  %918 = vmatpush2.bf16.msra.mxu0 0
  %919 = vmatprep.mubr.bf16.mxu0 0
  %920 = vmatmul.mubr.bf16.gmra.mxu0 %v657
  %v921 = vpop.f32.mrf.mxu0
  %v922 = vadd.f32 0.0, %v921
  %v923 = vpop.f32.mrf.mxu0
  %v924 = vadd.f32 0.0, %v923
  %v925 = vpop.f32.mrf.mxu0
  %v926 = vadd.f32 0.0, %v925
  %v927 = vpop.f32.mrf.mxu0
  %v928 = vadd.f32 0.0, %v927
  %929 = vmatprep.mubr.bf16.mxu0 0
  %930 = vmatmul.mubr.bf16.gmra.mxu0 %v660
  %v931 = vpop.f32.mrf.mxu0
  %v932 = vadd.f32 0.0, %v931
  %v933 = vpop.f32.mrf.mxu0
  %v934 = vadd.f32 0.0, %v933
  %v935 = vpop.f32.mrf.mxu0
  %v936 = vadd.f32 0.0, %v935
  %v937 = vpop.f32.mrf.mxu0
  %v938 = vadd.f32 0.0, %v937
  %939 = vmatprep.mubr.bf16.mxu0 0
  %940 = vmatmul.mubr.bf16.gmra.mxu0 %v663
  %v941 = vpop.f32.mrf.mxu0
  %v942 = vadd.f32 0.0, %v941
  %v943 = vpop.f32.mrf.mxu0
  %v944 = vadd.f32 0.0, %v943
  %v945 = vpop.f32.mrf.mxu0
  %v946 = vadd.f32 0.0, %v945
  %v947 = vpop.f32.mrf.mxu0
  %v948 = vadd.f32 0.0, %v947
  %949 = vmatprep.mubr.bf16.mxu0 0
  %950 = vmatmul.mubr.bf16.gmra.mxu0 %v666
  %v951 = vpop.f32.mrf.mxu0
  %v952 = vadd.f32 0.0, %v951
  %v953 = vpop.f32.mrf.mxu0
  %v954 = vadd.f32 0.0, %v953
  %v955 = vpop.f32.mrf.mxu0
  %v956 = vadd.f32 0.0, %v955
  %v957 = vpop.f32.mrf.mxu0
  %v958 = vadd.f32 0.0, %v957
  %959 = vdwg.mxu0
  %v960 = vadd.f32 %v703, %v426
  %v961 = vadd.f32 %v705, %v428
  %v962 = vadd.f32 %v776, %v467
  %v963 = vadd.f32 %v778, %v469
  %v964 = vadd.f32 %v849, %v508
  %v965 = vadd.f32 %v851, %v510
  %v966 = vadd.f32 %v922, %v549
  %v967 = vadd.f32 %v924, %v551
  %v968 = vadd.f32 %v707, %v426
  %v969 = vadd.f32 %v709, %v428
  %v970 = vadd.f32 %v780, %v467
  %v971 = vadd.f32 %v782, %v469
  %v972 = vadd.f32 %v853, %v508
  %v973 = vadd.f32 %v855, %v510
  %v974 = vadd.f32 %v926, %v549
  %v975 = vadd.f32 %v928, %v551
  %v976 = vadd.f32 %v713, %v426
  %v977 = vadd.f32 %v715, %v428
  %v978 = vadd.f32 %v786, %v467
  %v979 = vadd.f32 %v788, %v469
  %v980 = vadd.f32 %v859, %v508
  %v981 = vadd.f32 %v861, %v510
  %v982 = vadd.f32 %v932, %v549
  %v983 = vadd.f32 %v934, %v551
  %v984 = vadd.f32 %v717, %v426
  %v985 = vadd.f32 %v719, %v428
  %v986 = vadd.f32 %v790, %v467
  %v987 = vadd.f32 %v792, %v469
  %v988 = vadd.f32 %v863, %v508
  %v989 = vadd.f32 %v865, %v510
  %v990 = vadd.f32 %v936, %v549
  %v991 = vadd.f32 %v938, %v551
  %v992 = vadd.f32 %v723, %v426
  %v993 = vadd.f32 %v725, %v428
  %v994 = vadd.f32 %v796, %v467
  %v995 = vadd.f32 %v798, %v469
  %v996 = vadd.f32 %v869, %v508
  %v997 = vadd.f32 %v871, %v510
  %v998 = vadd.f32 %v942, %v549
  %v999 = vadd.f32 %v944, %v551
  %v1000 = vadd.f32 %v727, %v426
  %v1001 = vadd.f32 %v729, %v428
  %v1002 = vadd.f32 %v800, %v467
  %v1003 = vadd.f32 %v802, %v469
  %v1004 = vadd.f32 %v873, %v508
  %v1005 = vadd.f32 %v875, %v510
  %v1006 = vadd.f32 %v946, %v549
  %v1007 = vadd.f32 %v948, %v551
  %v1008 = vadd.f32 %v733, %v426
  %v1009 = vadd.f32 %v735, %v428
  %v1010 = vadd.f32 %v806, %v467
  %v1011 = vadd.f32 %v808, %v469
  %v1012 = vadd.f32 %v879, %v508
  %v1013 = vadd.f32 %v881, %v510
  %v1014 = vadd.f32 %v952, %v549
  %v1015 = vadd.f32 %v954, %v551
  %v1016 = vadd.f32 %v737, %v426
  %v1017 = vadd.f32 %v739, %v428
  %v1018 = vadd.f32 %v810, %v467
  %v1019 = vadd.f32 %v812, %v469
  %v1020 = vadd.f32 %v883, %v508
  %v1021 = vadd.f32 %v885, %v510
  %v1022 = vadd.f32 %v956, %v549
  %v1023 = vadd.f32 %v958, %v551
  %v1024 = vpack.c.bf16 %v960, %v960
  %v1025 = vpack.c.bf16 %v961, %v961
  %v1026 = vpack.c.bf16 %v962, %v962
  %v1027 = vpack.c.bf16 %v963, %v963
  %v1028 = vpack.c.bf16 %v964, %v964
  %v1029 = vpack.c.bf16 %v965, %v965
  %v1030 = vpack.c.bf16 %v966, %v966
  %v1031 = vpack.c.bf16 %v967, %v967
  %v1032 = vpack.c.bf16 %v968, %v968
  %v1033 = vpack.c.bf16 %v969, %v969
  %v1034 = vpack.c.bf16 %v970, %v970
  %v1035 = vpack.c.bf16 %v971, %v971
  %v1036 = vpack.c.bf16 %v972, %v972
  %v1037 = vpack.c.bf16 %v973, %v973
  %v1038 = vpack.c.bf16 %v974, %v974
  %v1039 = vpack.c.bf16 %v975, %v975
  %v1040 = vpack.c.bf16 %v976, %v976
  %v1041 = vpack.c.bf16 %v977, %v977
  %v1042 = vpack.c.bf16 %v978, %v978
  %v1043 = vpack.c.bf16 %v979, %v979
  %v1044 = vpack.c.bf16 %v980, %v980
  %v1045 = vpack.c.bf16 %v981, %v981
  %v1046 = vpack.c.bf16 %v982, %v982
  %v1047 = vpack.c.bf16 %v983, %v983
  %v1048 = vpack.c.bf16 %v984, %v984
  %v1049 = vpack.c.bf16 %v985, %v985
  %v1050 = vpack.c.bf16 %v986, %v986
  %v1051 = vpack.c.bf16 %v987, %v987
  %v1052 = vpack.c.bf16 %v988, %v988
  %v1053 = vpack.c.bf16 %v989, %v989
  %v1054 = vpack.c.bf16 %v990, %v990
  %v1055 = vpack.c.bf16 %v991, %v991
  %v1056 = vpack.c.bf16 %v992, %v992
  %v1057 = vpack.c.bf16 %v993, %v993
  %v1058 = vpack.c.bf16 %v994, %v994
  %v1059 = vpack.c.bf16 %v995, %v995
  %v1060 = vpack.c.bf16 %v996, %v996
  %v1061 = vpack.c.bf16 %v997, %v997
  %v1062 = vpack.c.bf16 %v998, %v998
  %v1063 = vpack.c.bf16 %v999, %v999
  %v1064 = vpack.c.bf16 %v1000, %v1000
  %v1065 = vpack.c.bf16 %v1001, %v1001
  %v1066 = vpack.c.bf16 %v1002, %v1002
  %v1067 = vpack.c.bf16 %v1003, %v1003
  %v1068 = vpack.c.bf16 %v1004, %v1004
  %v1069 = vpack.c.bf16 %v1005, %v1005
  %v1070 = vpack.c.bf16 %v1006, %v1006
  %v1071 = vpack.c.bf16 %v1007, %v1007
  %v1072 = vpack.c.bf16 %v1008, %v1008
  %v1073 = vpack.c.bf16 %v1009, %v1009
  %v1074 = vpack.c.bf16 %v1010, %v1010
  %v1075 = vpack.c.bf16 %v1011, %v1011
  %v1076 = vpack.c.bf16 %v1012, %v1012
  %v1077 = vpack.c.bf16 %v1013, %v1013
  %v1078 = vpack.c.bf16 %v1014, %v1014
  %v1079 = vpack.c.bf16 %v1015, %v1015
  %v1080 = vpack.c.bf16 %v1016, %v1016
  %v1081 = vpack.c.bf16 %v1017, %v1017
  %v1082 = vpack.c.bf16 %v1018, %v1018
  %v1083 = vpack.c.bf16 %v1019, %v1019
  %v1084 = vpack.c.bf16 %v1020, %v1020
  %v1085 = vpack.c.bf16 %v1021, %v1021
  %v1086 = vpack.c.bf16 %v1022, %v1022
  %v1087 = vpack.c.bf16 %v1023, %v1023
  %v1152 = vunpack.c.l.b16 %v1024
  %v1153 = vunpack.c.l.b16 %v1025
  %v1154 = vunpack.c.l.b16 %v1026
  %v1155 = vunpack.c.l.b16 %v1027
  %v1156 = vunpack.c.l.b16 %v1028
  %v1157 = vunpack.c.l.b16 %v1029
  %v1158 = vunpack.c.l.b16 %v1030
  %v1159 = vunpack.c.l.b16 %v1031
  %v1160 = vunpack.c.l.b16 %v1032
  %v1161 = vunpack.c.l.b16 %v1033
  %v1162 = vunpack.c.l.b16 %v1034
  %v1163 = vunpack.c.l.b16 %v1035
  %v1164 = vunpack.c.l.b16 %v1036
  %v1165 = vunpack.c.l.b16 %v1037
  %v1166 = vunpack.c.l.b16 %v1038
  %v1167 = vunpack.c.l.b16 %v1039
  %v1168 = vunpack.c.l.b16 %v1040
  %v1169 = vunpack.c.l.b16 %v1041
  %v1170 = vunpack.c.l.b16 %v1042
  %v1171 = vunpack.c.l.b16 %v1043
  %v1172 = vunpack.c.l.b16 %v1044
  %v1173 = vunpack.c.l.b16 %v1045
  %v1174 = vunpack.c.l.b16 %v1046
  %v1175 = vunpack.c.l.b16 %v1047
  %v1176 = vunpack.c.l.b16 %v1048
  %v1177 = vunpack.c.l.b16 %v1049
  %v1178 = vunpack.c.l.b16 %v1050
  %v1179 = vunpack.c.l.b16 %v1051
  %v1180 = vunpack.c.l.b16 %v1052
  %v1181 = vunpack.c.l.b16 %v1053
  %v1182 = vunpack.c.l.b16 %v1054
  %v1183 = vunpack.c.l.b16 %v1055
  %v1184 = vunpack.c.l.b16 %v1056
  %v1185 = vunpack.c.l.b16 %v1057
  %v1186 = vunpack.c.l.b16 %v1058
  %v1187 = vunpack.c.l.b16 %v1059
  %v1188 = vunpack.c.l.b16 %v1060
  %v1189 = vunpack.c.l.b16 %v1061
  %v1190 = vunpack.c.l.b16 %v1062
  %v1191 = vunpack.c.l.b16 %v1063
  %v1192 = vunpack.c.l.b16 %v1064
  %v1193 = vunpack.c.l.b16 %v1065
  %v1194 = vunpack.c.l.b16 %v1066
  %v1195 = vunpack.c.l.b16 %v1067
  %v1196 = vunpack.c.l.b16 %v1068
  %v1197 = vunpack.c.l.b16 %v1069
  %v1198 = vunpack.c.l.b16 %v1070
  %v1199 = vunpack.c.l.b16 %v1071
  %v1200 = vunpack.c.l.b16 %v1072
  %v1201 = vunpack.c.l.b16 %v1073
  %v1202 = vunpack.c.l.b16 %v1074
  %v1203 = vunpack.c.l.b16 %v1075
  %v1204 = vunpack.c.l.b16 %v1076
  %v1205 = vunpack.c.l.b16 %v1077
  %v1206 = vunpack.c.l.b16 %v1078
  %v1207 = vunpack.c.l.b16 %v1079
  %v1208 = vunpack.c.l.b16 %v1080
  %v1209 = vunpack.c.l.b16 %v1081
  %v1210 = vunpack.c.l.b16 %v1082
  %v1211 = vunpack.c.l.b16 %v1083
  %v1212 = vunpack.c.l.b16 %v1084
  %v1213 = vunpack.c.l.b16 %v1085
  %v1214 = vunpack.c.l.b16 %v1086
  %v1215 = vunpack.c.l.b16 %v1087
  %v1216 = vpack.c.b16 %v1153, %v1152
  %v1217 = vpack.c.b16 %v1155, %v1154
  %v1218 = vpack.c.b16 %v1157, %v1156
  %v1219 = vpack.c.b16 %v1159, %v1158
  %v1220 = vpack.c.b16 %v1161, %v1160
  %v1221 = vpack.c.b16 %v1163, %v1162
  %v1222 = vpack.c.b16 %v1165, %v1164
  %v1223 = vpack.c.b16 %v1167, %v1166
  %v1224 = vpack.c.b16 %v1169, %v1168
  %v1225 = vpack.c.b16 %v1171, %v1170
  %v1226 = vpack.c.b16 %v1173, %v1172
  %v1227 = vpack.c.b16 %v1175, %v1174
  %v1228 = vpack.c.b16 %v1177, %v1176
  %v1229 = vpack.c.b16 %v1179, %v1178
  %v1230 = vpack.c.b16 %v1181, %v1180
  %v1231 = vpack.c.b16 %v1183, %v1182
  %v1232 = vpack.c.b16 %v1185, %v1184
  %v1233 = vpack.c.b16 %v1187, %v1186
  %v1234 = vpack.c.b16 %v1189, %v1188
  %v1235 = vpack.c.b16 %v1191, %v1190
  %v1236 = vpack.c.b16 %v1193, %v1192
  %v1237 = vpack.c.b16 %v1195, %v1194
  %v1238 = vpack.c.b16 %v1197, %v1196
  %v1239 = vpack.c.b16 %v1199, %v1198
  %v1240 = vpack.c.b16 %v1201, %v1200
  %v1241 = vpack.c.b16 %v1203, %v1202
  %v1242 = vpack.c.b16 %v1205, %v1204
  %v1243 = vpack.c.b16 %v1207, %v1206
  %v1244 = vpack.c.b16 %v1209, %v1208
  %v1245 = vpack.c.b16 %v1211, %v1210
  %v1246 = vpack.c.b16 %v1213, %v1212
  %v1247 = vpack.c.b16 %v1215, %v1214
  %1280 = vst [vmem:[#allocation2] sm:$0xff] %v1216
  %1281 = vst [vmem:[#allocation2 + $0x8] sm:$0xff] %v1217
  %1282 = vst [vmem:[#allocation2 + $0x10] sm:$0xff] %v1218
  %1283 = vst [vmem:[#allocation2 + $0x18] sm:$0xff] %v1219
  %1284 = vst [vmem:[#allocation2 + $0x20] sm:$0xff] %v1220
  %1285 = vst [vmem:[#allocation2 + $0x28] sm:$0xff] %v1221
  %1286 = vst [vmem:[#allocation2 + $0x30] sm:$0xff] %v1222
  %1287 = vst [vmem:[#allocation2 + $0x38] sm:$0xff] %v1223
  %1288 = vst [vmem:[#allocation2 + $0x40] sm:$0xff] %v1224
  %1289 = vst [vmem:[#allocation2 + $0x48] sm:$0xff] %v1225
  %1290 = vst [vmem:[#allocation2 + $0x50] sm:$0xff] %v1226
  %1291 = vst [vmem:[#allocation2 + $0x58] sm:$0xff] %v1227
  %1292 = vst [vmem:[#allocation2 + $0x60] sm:$0xff] %v1228
  %1293 = vst [vmem:[#allocation2 + $0x68] sm:$0xff] %v1229
  %1294 = vst [vmem:[#allocation2 + $0x70] sm:$0xff] %v1230
  %1295 = vst [vmem:[#allocation2 + $0x78] sm:$0xff] %v1231
  %1296 = vst [vmem:[#allocation2 + $0x80] sm:$0xff] %v1232
  %1297 = vst [vmem:[#allocation2 + $0x88] sm:$0xff] %v1233
  %1298 = vst [vmem:[#allocation2 + $0x90] sm:$0xff] %v1234
  %1299 = vst [vmem:[#allocation2 + $0x98] sm:$0xff] %v1235
  %1300 = vst [vmem:[#allocation2 + $0xa0] sm:$0xff] %v1236
  %1301 = vst [vmem:[#allocation2 + $0xa8] sm:$0xff] %v1237
  %1302 = vst [vmem:[#allocation2 + $0xb0] sm:$0xff] %v1238
  %1303 = vst [vmem:[#allocation2 + $0xb8] sm:$0xff] %v1239
  %1304 = vst [vmem:[#allocation2 + $0xc0] sm:$0xff] %v1240
  %1305 = vst [vmem:[#allocation2 + $0xc8] sm:$0xff] %v1241
  %1306 = vst [vmem:[#allocation2 + $0xd0] sm:$0xff] %v1242
  %1307 = vst [vmem:[#allocation2 + $0xd8] sm:$0xff] %v1243
  %1308 = vst [vmem:[#allocation2 + $0xe0] sm:$0xff] %v1244
  %1309 = vst [vmem:[#allocation2 + $0xe8] sm:$0xff] %v1245
  %1310 = vst [vmem:[#allocation2 + $0xf0] sm:$0xff] %v1246
  %1311 = vst [vmem:[#allocation2 + $0xf8] sm:$0xff] %v1247
  %v1312 = vld [vmem:[%s7] sm:$0xff]
  %v1313 = vld [vmem:[%s7 + $0x8] sm:$0xff]
  %v1314 = vld [vmem:[%s7 + $0x10] sm:$0xff]
  %v1315 = vld [vmem:[%s7 + $0x18] sm:$0xff]
  %v1316 = vld [vmem:[%s7 + $0x20] sm:$0xff]
  %v1317 = vld [vmem:[%s7 + $0x28] sm:$0xff]
  %v1318 = vld [vmem:[%s7 + $0x30] sm:$0xff]
  %v1319 = vld [vmem:[%s7 + $0x38] sm:$0xff]
  %v1320 = vld [vmem:[%s7 + $0x40] sm:$0xff]
  %v1321 = vld [vmem:[%s7 + $0x48] sm:$0xff]
  %v1322 = vld [vmem:[%s7 + $0x50] sm:$0xff]
  %v1323 = vld [vmem:[%s7 + $0x58] sm:$0xff]
  %v1324 = vld [vmem:[%s7 + $0x60] sm:$0xff]
  %v1325 = vld [vmem:[%s7 + $0x68] sm:$0xff]
  %v1326 = vld [vmem:[%s7 + $0x70] sm:$0xff]
  %v1327 = vld [vmem:[%s7 + $0x78] sm:$0xff]
  %v1328 = vld [vmem:[%s7 + $0x80] sm:$0xff]
  %v1329 = vld [vmem:[%s7 + $0x88] sm:$0xff]
  %v1330 = vld [vmem:[%s7 + $0x90] sm:$0xff]
  %v1331 = vld [vmem:[%s7 + $0x98] sm:$0xff]
  %v1332 = vld [vmem:[%s7 + $0xa0] sm:$0xff]
  %v1333 = vld [vmem:[%s7 + $0xa8] sm:$0xff]
  %v1334 = vld [vmem:[%s7 + $0xb0] sm:$0xff]
  %v1335 = vld [vmem:[%s7 + $0xb8] sm:$0xff]
  %v1336 = vld [vmem:[%s7 + $0xc0] sm:$0xff]
  %v1337 = vld [vmem:[%s7 + $0xc8] sm:$0xff]
  %v1338 = vld [vmem:[%s7 + $0xd0] sm:$0xff]
  %v1339 = vld [vmem:[%s7 + $0xd8] sm:$0xff]
  %v1340 = vld [vmem:[%s7 + $0xe0] sm:$0xff]
  %v1341 = vld [vmem:[%s7 + $0xe8] sm:$0xff]
  %v1342 = vld [vmem:[%s7 + $0xf0] sm:$0xff]
  %v1343 = vld [vmem:[%s7 + $0xf8] sm:$0xff]
  %v1344 = vld [vmem:[%s8] sm:$0xff]
  %v1345 = vld [vmem:[%s8 + $0x8] sm:$0xff]
  %v1346 = vld [vmem:[%s8 + $0x10] sm:$0xff]
  %v1347 = vld [vmem:[%s8 + $0x18] sm:$0xff]
  %v1348 = vld [vmem:[%s8 + $0x20] sm:$0xff]
  %v1349 = vld [vmem:[%s8 + $0x28] sm:$0xff]
  %v1350 = vld [vmem:[%s8 + $0x30] sm:$0xff]
  %v1351 = vld [vmem:[%s8 + $0x38] sm:$0xff]
  %v1352 = vld [vmem:[%s8 + $0x40] sm:$0xff]
  %v1353 = vld [vmem:[%s8 + $0x48] sm:$0xff]
  %v1354 = vld [vmem:[%s8 + $0x50] sm:$0xff]
  %v1355 = vld [vmem:[%s8 + $0x58] sm:$0xff]
  %v1356 = vld [vmem:[%s8 + $0x60] sm:$0xff]
  %v1357 = vld [vmem:[%s8 + $0x68] sm:$0xff]
  %v1358 = vld [vmem:[%s8 + $0x70] sm:$0xff]
  %v1359 = vld [vmem:[%s8 + $0x78] sm:$0xff]
  %v1360 = vld [vmem:[%s8 + $0x80] sm:$0xff]
  %v1361 = vld [vmem:[%s8 + $0x88] sm:$0xff]
  %v1362 = vld [vmem:[%s8 + $0x90] sm:$0xff]
  %v1363 = vld [vmem:[%s8 + $0x98] sm:$0xff]
  %v1364 = vld [vmem:[%s8 + $0xa0] sm:$0xff]
  %v1365 = vld [vmem:[%s8 + $0xa8] sm:$0xff]
  %v1366 = vld [vmem:[%s8 + $0xb0] sm:$0xff]
  %v1367 = vld [vmem:[%s8 + $0xb8] sm:$0xff]
  %v1368 = vld [vmem:[%s8 + $0xc0] sm:$0xff]
  %v1369 = vld [vmem:[%s8 + $0xc8] sm:$0xff]
  %v1370 = vld [vmem:[%s8 + $0xd0] sm:$0xff]
  %v1371 = vld [vmem:[%s8 + $0xd8] sm:$0xff]
  %v1372 = vld [vmem:[%s8 + $0xe0] sm:$0xff]
  %v1373 = vld [vmem:[%s8 + $0xe8] sm:$0xff]
  %v1374 = vld [vmem:[%s8 + $0xf0] sm:$0xff]
  %v1375 = vld [vmem:[%s8 + $0xf8] sm:$0xff]
  %v1376 = vld [vmem:[#allocation2] sm:$0xff]
  %v1377 = vld [vmem:[#allocation2 + $0x8] sm:$0xff]
  %v1378 = vunpack.c.l.bf16 %v1376
  %v1379 = vunpack.c.h.bf16 %v1376
  %v1380 = vunpack.c.l.bf16 %v1377
  %v1381 = vunpack.c.h.bf16 %v1377
  %v1414 = vunpack.c.l.b16 %v1312
  %v1415 = vunpack.c.h.b16 %v1312
  %v1416 = vunpack.c.l.b16 %v1313
  %v1417 = vunpack.c.h.b16 %v1313
  %v1418 = vunpack.c.l.b16 %v1314
  %v1419 = vunpack.c.h.b16 %v1314
  %v1420 = vunpack.c.l.b16 %v1315
  %v1421 = vunpack.c.h.b16 %v1315
  %v1422 = vunpack.c.l.b16 %v1316
  %v1423 = vunpack.c.h.b16 %v1316
  %v1424 = vunpack.c.l.b16 %v1317
  %v1425 = vunpack.c.h.b16 %v1317
  %v1426 = vunpack.c.l.b16 %v1318
  %v1427 = vunpack.c.h.b16 %v1318
  %v1428 = vunpack.c.l.b16 %v1319
  %v1429 = vunpack.c.h.b16 %v1319
  %v1430 = vunpack.c.l.b16 %v1320
  %v1431 = vunpack.c.h.b16 %v1320
  %v1432 = vunpack.c.l.b16 %v1321
  %v1433 = vunpack.c.h.b16 %v1321
  %v1434 = vunpack.c.l.b16 %v1322
  %v1435 = vunpack.c.h.b16 %v1322
  %v1436 = vunpack.c.l.b16 %v1323
  %v1437 = vunpack.c.h.b16 %v1323
  %v1438 = vunpack.c.l.b16 %v1324
  %v1439 = vunpack.c.h.b16 %v1324
  %v1440 = vunpack.c.l.b16 %v1325
  %v1441 = vunpack.c.h.b16 %v1325
  %v1442 = vunpack.c.l.b16 %v1326
  %v1443 = vunpack.c.h.b16 %v1326
  %v1444 = vunpack.c.l.b16 %v1327
  %v1445 = vunpack.c.h.b16 %v1327
  %v1446 = vunpack.c.l.b16 %v1328
  %v1447 = vunpack.c.h.b16 %v1328
  %v1448 = vunpack.c.l.b16 %v1329
  %v1449 = vunpack.c.h.b16 %v1329
  %v1450 = vunpack.c.l.b16 %v1330
  %v1451 = vunpack.c.h.b16 %v1330
  %v1452 = vunpack.c.l.b16 %v1331
  %v1453 = vunpack.c.h.b16 %v1331
  %v1454 = vunpack.c.l.b16 %v1332
  %v1455 = vunpack.c.h.b16 %v1332
  %v1456 = vunpack.c.l.b16 %v1333
  %v1457 = vunpack.c.h.b16 %v1333
  %v1458 = vunpack.c.l.b16 %v1334
  %v1459 = vunpack.c.h.b16 %v1334
  %v1460 = vunpack.c.l.b16 %v1335
  %v1461 = vunpack.c.h.b16 %v1335
  %v1462 = vunpack.c.l.b16 %v1336
  %v1463 = vunpack.c.h.b16 %v1336
  %v1464 = vunpack.c.l.b16 %v1337
  %v1465 = vunpack.c.h.b16 %v1337
  %v1466 = vunpack.c.l.b16 %v1338
  %v1467 = vunpack.c.h.b16 %v1338
  %v1468 = vunpack.c.l.b16 %v1339
  %v1469 = vunpack.c.h.b16 %v1339
  %v1470 = vunpack.c.l.b16 %v1340
  %v1471 = vunpack.c.h.b16 %v1340
  %v1472 = vunpack.c.l.b16 %v1341
  %v1473 = vunpack.c.h.b16 %v1341
  %v1474 = vunpack.c.l.b16 %v1342
  %v1475 = vunpack.c.h.b16 %v1342
  %v1476 = vunpack.c.l.b16 %v1343
  %v1477 = vunpack.c.h.b16 %v1343
  %v1478 = vpack.c.b16 %v1418, %v1414
  %v1479 = vpack.c.b16 %v1419, %v1415
  %v1480 = vpack.c.b16 %v1420, %v1416
  %v1481 = vpack.c.b16 %v1421, %v1417
  %v1482 = vpack.c.b16 %v1426, %v1422
  %v1483 = vpack.c.b16 %v1427, %v1423
  %v1484 = vpack.c.b16 %v1428, %v1424
  %v1485 = vpack.c.b16 %v1429, %v1425
  %v1486 = vpack.c.b16 %v1434, %v1430
  %v1487 = vpack.c.b16 %v1435, %v1431
  %v1488 = vpack.c.b16 %v1436, %v1432
  %v1489 = vpack.c.b16 %v1437, %v1433
  %v1490 = vpack.c.b16 %v1442, %v1438
  %v1491 = vpack.c.b16 %v1443, %v1439
  %v1492 = vpack.c.b16 %v1444, %v1440
  %v1493 = vpack.c.b16 %v1445, %v1441
  %v1494 = vpack.c.b16 %v1450, %v1446
  %v1495 = vpack.c.b16 %v1451, %v1447
  %v1496 = vpack.c.b16 %v1452, %v1448
  %v1497 = vpack.c.b16 %v1453, %v1449
  %v1498 = vpack.c.b16 %v1458, %v1454
  %v1499 = vpack.c.b16 %v1459, %v1455
  %v1500 = vpack.c.b16 %v1460, %v1456
  %v1501 = vpack.c.b16 %v1461, %v1457
  %v1502 = vpack.c.b16 %v1466, %v1462
  %v1503 = vpack.c.b16 %v1467, %v1463
  %v1504 = vpack.c.b16 %v1468, %v1464
  %v1505 = vpack.c.b16 %v1469, %v1465
  %v1506 = vpack.c.b16 %v1474, %v1470
  %v1507 = vpack.c.b16 %v1475, %v1471
  %v1508 = vpack.c.b16 %v1476, %v1472
  %v1509 = vpack.c.b16 %v1477, %v1473
  %1542 = vmatprep.subr.bf16.mxu0 %v1507
  %1543 = vmatpush1.bf16.msra.mxu0 %v1506
  %1544 = vmatprep.subr.bf16.mxu0 %v1503
  %1545 = vmatpush1.bf16.msra.mxu0 %v1502
  %1546 = vmatprep.subr.bf16.mxu0 %v1499
  %1547 = vmatpush1.bf16.msra.mxu0 %v1498
  %1548 = vmatprep.subr.bf16.mxu0 %v1495
  %1549 = vmatpush1.bf16.msra.mxu0 %v1494
  %1550 = vmatprep.subr.bf16.mxu0 %v1491
  %1551 = vmatpush1.bf16.msra.mxu0 %v1490
  %1552 = vmatprep.subr.bf16.mxu0 %v1487
  %1553 = vmatpush1.bf16.msra.mxu0 %v1486
  %1554 = vmatprep.subr.bf16.mxu0 %v1483
  %1555 = vmatpush1.bf16.msra.mxu0 %v1482
  %1556 = vmatprep.subr.bf16.mxu0 %v1479
  %1557 = vmatpush1.bf16.msra.mxu0 %v1478
  %1558 = vmatprep.subr.bf16.mxu0 0
  %1559 = vmatpush2.bf16.msra.mxu0 0
  %1560 = vmatprep.subr.bf16.mxu0 0
  %1561 = vmatpush2.bf16.msra.mxu0 0
  %1562 = vmatprep.subr.bf16.mxu0 0
  %1563 = vmatpush2.bf16.msra.mxu0 0
  %1564 = vmatprep.subr.bf16.mxu0 0
  %1565 = vmatpush2.bf16.msra.mxu0 0
  %1566 = vmatprep.subr.bf16.mxu0 0
  %1567 = vmatpush2.bf16.msra.mxu0 0
  %1568 = vmatprep.subr.bf16.mxu0 0
  %1569 = vmatpush2.bf16.msra.mxu0 0
  %1570 = vmatprep.subr.bf16.mxu0 0
  %1571 = vmatpush2.bf16.msra.mxu0 0
  %1572 = vmatprep.subr.bf16.mxu0 0
  %1573 = vmatpush2.bf16.msra.mxu0 0
  %1574 = vmatprep.mubr.bf16.mxu0 0
  %1575 = vmatmul.mubr.bf16.gmra.mxu0 0
  %v1576 = vpop.f32.mrf.mxu0
  %v1577 = vadd.f32 0.0, %v1576
  %v1578 = vpop.f32.mrf.mxu0
  %v1579 = vadd.f32 0.0, %v1578
  %v1580 = vpop.f32.mrf.mxu0
  %v1581 = vpop.f32.mrf.mxu0
  %1582 = vdwg.mxu0
  %1583 = vmatprep.subr.bf16.mxu0 %v1509
  %1584 = vmatpush1.bf16.msra.mxu0 %v1508
  %1585 = vmatprep.subr.bf16.mxu0 %v1505
  %1586 = vmatpush1.bf16.msra.mxu0 %v1504
  %1587 = vmatprep.subr.bf16.mxu0 %v1501
  %1588 = vmatpush1.bf16.msra.mxu0 %v1500
  %1589 = vmatprep.subr.bf16.mxu0 %v1497
  %1590 = vmatpush1.bf16.msra.mxu0 %v1496
  %1591 = vmatprep.subr.bf16.mxu0 %v1493
  %1592 = vmatpush1.bf16.msra.mxu0 %v1492
  %1593 = vmatprep.subr.bf16.mxu0 %v1489
  %1594 = vmatpush1.bf16.msra.mxu0 %v1488
  %1595 = vmatprep.subr.bf16.mxu0 %v1485
  %1596 = vmatpush1.bf16.msra.mxu0 %v1484
  %1597 = vmatprep.subr.bf16.mxu0 %v1481
  %1598 = vmatpush1.bf16.msra.mxu0 %v1480
  %1599 = vmatprep.subr.bf16.mxu0 0
  %1600 = vmatpush2.bf16.msra.mxu0 0
  %1601 = vmatprep.subr.bf16.mxu0 0
  %1602 = vmatpush2.bf16.msra.mxu0 0
  %1603 = vmatprep.subr.bf16.mxu0 0
  %1604 = vmatpush2.bf16.msra.mxu0 0
  %1605 = vmatprep.subr.bf16.mxu0 0
  %1606 = vmatpush2.bf16.msra.mxu0 0
  %1607 = vmatprep.subr.bf16.mxu0 0
  %1608 = vmatpush2.bf16.msra.mxu0 0
  %1609 = vmatprep.subr.bf16.mxu0 0
  %1610 = vmatpush2.bf16.msra.mxu0 0
  %1611 = vmatprep.subr.bf16.mxu0 0
  %1612 = vmatpush2.bf16.msra.mxu0 0
  %1613 = vmatprep.subr.bf16.mxu0 0
  %1614 = vmatpush2.bf16.msra.mxu0 0
  %1615 = vmatprep.mubr.bf16.mxu0 0
  %1616 = vmatmul.mubr.bf16.gmra.mxu0 0
  %v1617 = vpop.f32.mrf.mxu0
  %v1618 = vadd.f32 0.0, %v1617
  %v1619 = vpop.f32.mrf.mxu0
  %v1620 = vadd.f32 0.0, %v1619
  %v1621 = vpop.f32.mrf.mxu0
  %v1622 = vpop.f32.mrf.mxu0
  %1623 = vdwg.mxu0
  %v1624 = vadd.f32 %v1378, %v1577
  %v1625 = vadd.f32 %v1379, %v1579
  %v1626 = vadd.f32 %v1380, %v1618
  %v1627 = vadd.f32 %v1381, %v1620
  %v1628 = vmul.f32 %v1624, 0.5
  %v1629 = vtanh.pop %v1628
  %v1630 = vmul.f32 %v1629, 0.5
  %v1631 = vadd.f32 %v1630, 0.5
  %v1632 = vmul.f32 %v1625, 0.5
  %v1633 = vtanh.pop %v1632
  %v1634 = vmul.f32 %v1633, 0.5
  %v1635 = vadd.f32 %v1634, 0.5
  %v1636 = vtanh.pop %v1626
  %v1637 = vmul.f32 %v1627, 0.5
  %v1638 = vtanh.pop %v1637
  %v1639 = vmul.f32 %v1638, 0.5
  %v1640 = vadd.f32 %v1639, 0.5
  %v1641 = vmul.f32 %v1635, 0.0
  %v1642 = vmul.f32 %v1631, %v1636
  %v1643 = vadd.f32 %v1641, %v1642
  %v1644 = vtanh.pop %v1643
  %v1645 = vmul.f32 %v1640, %v1644
  %v1646 = vpack.c.bf16 %v1645, %v1645
  %1647 = vst [vmem:[#allocation4] sm:$0xf] %v1646
  %s1648 = scalar_lea.vmem [#allocation2], 224
  %v1649 = vld [vmem:[%s1648 + $0x10] sm:$0xff]
  %v1650 = vld [vmem:[%s1648 + $0x18] sm:$0xff]
  %v1651 = vunpack.c.l.bf16 %v1649
  %v1652 = vunpack.c.h.bf16 %v1649
  %v1653 = vunpack.c.l.bf16 %v1650
  %v1654 = vunpack.c.h.bf16 %v1650
  %v1687 = vunpack.c.l.b16 %v1344
  %v1688 = vunpack.c.h.b16 %v1344
  %v1689 = vunpack.c.l.b16 %v1345
  %v1690 = vunpack.c.h.b16 %v1345
  %v1691 = vunpack.c.l.b16 %v1346
  %v1692 = vunpack.c.h.b16 %v1346
  %v1693 = vunpack.c.l.b16 %v1347
  %v1694 = vunpack.c.h.b16 %v1347
  %v1695 = vunpack.c.l.b16 %v1348
  %v1696 = vunpack.c.h.b16 %v1348
  %v1697 = vunpack.c.l.b16 %v1349
  %v1698 = vunpack.c.h.b16 %v1349
  %v1699 = vunpack.c.l.b16 %v1350
  %v1700 = vunpack.c.h.b16 %v1350
  %v1701 = vunpack.c.l.b16 %v1351
  %v1702 = vunpack.c.h.b16 %v1351
  %v1703 = vunpack.c.l.b16 %v1352
  %v1704 = vunpack.c.h.b16 %v1352
  %v1705 = vunpack.c.l.b16 %v1353
  %v1706 = vunpack.c.h.b16 %v1353
  %v1707 = vunpack.c.l.b16 %v1354
  %v1708 = vunpack.c.h.b16 %v1354
  %v1709 = vunpack.c.l.b16 %v1355
  %v1710 = vunpack.c.h.b16 %v1355
  %v1711 = vunpack.c.l.b16 %v1356
  %v1712 = vunpack.c.h.b16 %v1356
  %v1713 = vunpack.c.l.b16 %v1357
  %v1714 = vunpack.c.h.b16 %v1357
  %v1715 = vunpack.c.l.b16 %v1358
  %v1716 = vunpack.c.h.b16 %v1358
  %v1717 = vunpack.c.l.b16 %v1359
  %v1718 = vunpack.c.h.b16 %v1359
  %v1719 = vunpack.c.l.b16 %v1360
  %v1720 = vunpack.c.h.b16 %v1360
  %v1721 = vunpack.c.l.b16 %v1361
  %v1722 = vunpack.c.h.b16 %v1361
  %v1723 = vunpack.c.l.b16 %v1362
  %v1724 = vunpack.c.h.b16 %v1362
  %v1725 = vunpack.c.l.b16 %v1363
  %v1726 = vunpack.c.h.b16 %v1363
  %v1727 = vunpack.c.l.b16 %v1364
  %v1728 = vunpack.c.h.b16 %v1364
  %v1729 = vunpack.c.l.b16 %v1365
  %v1730 = vunpack.c.h.b16 %v1365
  %v1731 = vunpack.c.l.b16 %v1366
  %v1732 = vunpack.c.h.b16 %v1366
  %v1733 = vunpack.c.l.b16 %v1367
  %v1734 = vunpack.c.h.b16 %v1367
  %v1735 = vunpack.c.l.b16 %v1368
  %v1736 = vunpack.c.h.b16 %v1368
  %v1737 = vunpack.c.l.b16 %v1369
  %v1738 = vunpack.c.h.b16 %v1369
  %v1739 = vunpack.c.l.b16 %v1370
  %v1740 = vunpack.c.h.b16 %v1370
  %v1741 = vunpack.c.l.b16 %v1371
  %v1742 = vunpack.c.h.b16 %v1371
  %v1743 = vunpack.c.l.b16 %v1372
  %v1744 = vunpack.c.h.b16 %v1372
  %v1745 = vunpack.c.l.b16 %v1373
  %v1746 = vunpack.c.h.b16 %v1373
  %v1747 = vunpack.c.l.b16 %v1374
  %v1748 = vunpack.c.h.b16 %v1374
  %v1749 = vunpack.c.l.b16 %v1375
  %v1750 = vunpack.c.h.b16 %v1375
  %v1751 = vpack.c.b16 %v1691, %v1687
  %v1752 = vpack.c.b16 %v1692, %v1688
  %v1753 = vpack.c.b16 %v1693, %v1689
  %v1754 = vpack.c.b16 %v1694, %v1690
  %v1755 = vpack.c.b16 %v1699, %v1695
  %v1756 = vpack.c.b16 %v1700, %v1696
  %v1757 = vpack.c.b16 %v1701, %v1697
  %v1758 = vpack.c.b16 %v1702, %v1698
  %v1759 = vpack.c.b16 %v1707, %v1703
  %v1760 = vpack.c.b16 %v1708, %v1704
  %v1761 = vpack.c.b16 %v1709, %v1705
  %v1762 = vpack.c.b16 %v1710, %v1706
  %v1763 = vpack.c.b16 %v1715, %v1711
  %v1764 = vpack.c.b16 %v1716, %v1712
  %v1765 = vpack.c.b16 %v1717, %v1713
  %v1766 = vpack.c.b16 %v1718, %v1714
  %v1767 = vpack.c.b16 %v1723, %v1719
  %v1768 = vpack.c.b16 %v1724, %v1720
  %v1769 = vpack.c.b16 %v1725, %v1721
  %v1770 = vpack.c.b16 %v1726, %v1722
  %v1771 = vpack.c.b16 %v1731, %v1727
  %v1772 = vpack.c.b16 %v1732, %v1728
  %v1773 = vpack.c.b16 %v1733, %v1729
  %v1774 = vpack.c.b16 %v1734, %v1730
  %v1775 = vpack.c.b16 %v1739, %v1735
  %v1776 = vpack.c.b16 %v1740, %v1736
  %v1777 = vpack.c.b16 %v1741, %v1737
  %v1778 = vpack.c.b16 %v1742, %v1738
  %v1779 = vpack.c.b16 %v1747, %v1743
  %v1780 = vpack.c.b16 %v1748, %v1744
  %v1781 = vpack.c.b16 %v1749, %v1745
  %v1782 = vpack.c.b16 %v1750, %v1746
  %1815 = vmatprep.subr.bf16.mxu0 %v1780
  %1816 = vmatpush1.bf16.msra.mxu0 %v1779
  %1817 = vmatprep.subr.bf16.mxu0 %v1776
  %1818 = vmatpush1.bf16.msra.mxu0 %v1775
  %1819 = vmatprep.subr.bf16.mxu0 %v1772
  %1820 = vmatpush1.bf16.msra.mxu0 %v1771
  %1821 = vmatprep.subr.bf16.mxu0 %v1768
  %1822 = vmatpush1.bf16.msra.mxu0 %v1767
  %1823 = vmatprep.subr.bf16.mxu0 %v1764
  %1824 = vmatpush1.bf16.msra.mxu0 %v1763
  %1825 = vmatprep.subr.bf16.mxu0 %v1760
  %1826 = vmatpush1.bf16.msra.mxu0 %v1759
  %1827 = vmatprep.subr.bf16.mxu0 %v1756
  %1828 = vmatpush1.bf16.msra.mxu0 %v1755
  %1829 = vmatprep.subr.bf16.mxu0 %v1752
  %1830 = vmatpush1.bf16.msra.mxu0 %v1751
  %1831 = vmatprep.subr.bf16.mxu0 0
  %1832 = vmatpush2.bf16.msra.mxu0 0
  %1833 = vmatprep.subr.bf16.mxu0 0
  %1834 = vmatpush2.bf16.msra.mxu0 0
  %1835 = vmatprep.subr.bf16.mxu0 0
  %1836 = vmatpush2.bf16.msra.mxu0 0
  %1837 = vmatprep.subr.bf16.mxu0 0
  %1838 = vmatpush2.bf16.msra.mxu0 0
  %1839 = vmatprep.subr.bf16.mxu0 0
  %1840 = vmatpush2.bf16.msra.mxu0 0
  %1841 = vmatprep.subr.bf16.mxu0 0
  %1842 = vmatpush2.bf16.msra.mxu0 0
  %1843 = vmatprep.subr.bf16.mxu0 0
  %1844 = vmatpush2.bf16.msra.mxu0 0
  %1845 = vmatprep.subr.bf16.mxu0 0
  %1846 = vmatpush2.bf16.msra.mxu0 0
  %1847 = vmatprep.mubr.bf16.mxu0 0
  %1848 = vmatmul.mubr.bf16.gmra.mxu0 0
  %v1849 = vpop.f32.mrf.mxu0
  %v1850 = vadd.f32 0.0, %v1849
  %v1851 = vpop.f32.mrf.mxu0
  %v1852 = vadd.f32 0.0, %v1851
  %v1853 = vpop.f32.mrf.mxu0
  %v1854 = vpop.f32.mrf.mxu0
  %1855 = vdwg.mxu0
  %1856 = vmatprep.subr.bf16.mxu0 %v1782
  %1857 = vmatpush1.bf16.msra.mxu0 %v1781
  %1858 = vmatprep.subr.bf16.mxu0 %v1778
  %1859 = vmatpush1.bf16.msra.mxu0 %v1777
  %1860 = vmatprep.subr.bf16.mxu0 %v1774
  %1861 = vmatpush1.bf16.msra.mxu0 %v1773
  %1862 = vmatprep.subr.bf16.mxu0 %v1770
  %1863 = vmatpush1.bf16.msra.mxu0 %v1769
  %1864 = vmatprep.subr.bf16.mxu0 %v1766
  %1865 = vmatpush1.bf16.msra.mxu0 %v1765
  %1866 = vmatprep.subr.bf16.mxu0 %v1762
  %1867 = vmatpush1.bf16.msra.mxu0 %v1761
  %1868 = vmatprep.subr.bf16.mxu0 %v1758
  %1869 = vmatpush1.bf16.msra.mxu0 %v1757
  %1870 = vmatprep.subr.bf16.mxu0 %v1754
  %1871 = vmatpush1.bf16.msra.mxu0 %v1753
  %1872 = vmatprep.subr.bf16.mxu0 0
  %1873 = vmatpush2.bf16.msra.mxu0 0
  %1874 = vmatprep.subr.bf16.mxu0 0
  %1875 = vmatpush2.bf16.msra.mxu0 0
  %1876 = vmatprep.subr.bf16.mxu0 0
  %1877 = vmatpush2.bf16.msra.mxu0 0
  %1878 = vmatprep.subr.bf16.mxu0 0
  %1879 = vmatpush2.bf16.msra.mxu0 0
  %1880 = vmatprep.subr.bf16.mxu0 0
  %1881 = vmatpush2.bf16.msra.mxu0 0
  %1882 = vmatprep.subr.bf16.mxu0 0
  %1883 = vmatpush2.bf16.msra.mxu0 0
  %1884 = vmatprep.subr.bf16.mxu0 0
  %1885 = vmatpush2.bf16.msra.mxu0 0
  %1886 = vmatprep.subr.bf16.mxu0 0
  %1887 = vmatpush2.bf16.msra.mxu0 0
  %1888 = vmatprep.mubr.bf16.mxu0 0
  %1889 = vmatmul.mubr.bf16.gmra.mxu0 0
  %v1890 = vpop.f32.mrf.mxu0
  %v1891 = vadd.f32 0.0, %v1890
  %v1892 = vpop.f32.mrf.mxu0
  %v1893 = vadd.f32 0.0, %v1892
  %v1894 = vpop.f32.mrf.mxu0
  %v1895 = vpop.f32.mrf.mxu0
  %1896 = vdwg.mxu0
  %v1897 = vadd.f32 %v1651, %v1850
  %v1898 = vadd.f32 %v1652, %v1852
  %v1899 = vadd.f32 %v1653, %v1891
  %v1900 = vadd.f32 %v1654, %v1893
  %v1901 = vmul.f32 %v1897, 0.5
  %v1902 = vtanh.pop %v1901
  %v1903 = vmul.f32 %v1902, 0.5
  %v1904 = vadd.f32 %v1903, 0.5
  %v1905 = vmul.f32 %v1898, 0.5
  %v1906 = vtanh.pop %v1905
  %v1907 = vmul.f32 %v1906, 0.5
  %v1908 = vadd.f32 %v1907, 0.5
  %v1909 = vtanh.pop %v1899
  %v1910 = vmul.f32 %v1900, 0.5
  %v1911 = vtanh.pop %v1910
  %v1912 = vmul.f32 %v1911, 0.5
  %v1913 = vadd.f32 %v1912, 0.5
  %v1914 = vmul.f32 %v1908, 0.0
  %v1915 = vmul.f32 %v1904, %v1909
  %v1916 = vadd.f32 %v1914, %v1915
  %v1917 = vtanh.pop %v1916
  %v1918 = vmul.f32 %v1913, %v1917
  %v1919 = vpack.c.bf16 %v1918, %v1918
  %s1920 = scalar_lea.vmem [#allocation4], 56
  %1921 = vst [vmem:[%s1920 + $0x4] sm:$0xf] %v1919
  %s1922 = scalar_lea.vmem [#allocation2], 32
  %v1923 = vld [vmem:[%s1922] sm:$0xff]
  %v1924 = vld [vmem:[%s1922 + $0x8] sm:$0xff]
  %v1925 = vunpack.c.l.bf16 %v1923
  %v1926 = vunpack.c.h.bf16 %v1923
  %v1927 = vunpack.c.l.bf16 %v1924
  %v1928 = vunpack.c.h.bf16 %v1924
  %1929 = vmatprep.subr.bf16.mxu0 %v1507
  %1930 = vmatpush1.bf16.msra.mxu0 %v1506
  %1931 = vmatprep.subr.bf16.mxu0 %v1503
  %1932 = vmatpush1.bf16.msra.mxu0 %v1502
  %1933 = vmatprep.subr.bf16.mxu0 %v1499
  %1934 = vmatpush1.bf16.msra.mxu0 %v1498
  %1935 = vmatprep.subr.bf16.mxu0 %v1495
  %1936 = vmatpush1.bf16.msra.mxu0 %v1494
  %1937 = vmatprep.subr.bf16.mxu0 %v1491
  %1938 = vmatpush1.bf16.msra.mxu0 %v1490
  %1939 = vmatprep.subr.bf16.mxu0 %v1487
  %1940 = vmatpush1.bf16.msra.mxu0 %v1486
  %1941 = vmatprep.subr.bf16.mxu0 %v1483
  %1942 = vmatpush1.bf16.msra.mxu0 %v1482
  %1943 = vmatprep.subr.bf16.mxu0 %v1479
  %1944 = vmatpush1.bf16.msra.mxu0 %v1478
  %1945 = vmatprep.subr.bf16.mxu0 0
  %1946 = vmatpush2.bf16.msra.mxu0 0
  %1947 = vmatprep.subr.bf16.mxu0 0
  %1948 = vmatpush2.bf16.msra.mxu0 0
  %1949 = vmatprep.subr.bf16.mxu0 0
  %1950 = vmatpush2.bf16.msra.mxu0 0
  %1951 = vmatprep.subr.bf16.mxu0 0
  %1952 = vmatpush2.bf16.msra.mxu0 0
  %1953 = vmatprep.subr.bf16.mxu0 0
  %1954 = vmatpush2.bf16.msra.mxu0 0
  %1955 = vmatprep.subr.bf16.mxu0 0
  %1956 = vmatpush2.bf16.msra.mxu0 0
  %1957 = vmatprep.subr.bf16.mxu0 0
  %1958 = vmatpush2.bf16.msra.mxu0 0
  %1959 = vmatprep.subr.bf16.mxu0 0
  %1960 = vmatpush2.bf16.msra.mxu0 0
  %1961 = vmatprep.mubr.bf16.mxu0 0
  %1962 = vmatmul.mubr.bf16.gmra.mxu0 %v1646
  %v1963 = vpop.f32.mrf.mxu0
  %v1964 = vadd.f32 0.0, %v1963
  %v1965 = vpop.f32.mrf.mxu0
  %v1966 = vadd.f32 0.0, %v1965
  %v1967 = vpop.f32.mrf.mxu0
  %v1968 = vpop.f32.mrf.mxu0
  %1969 = vdwg.mxu0
  %1970 = vmatprep.subr.bf16.mxu0 %v1509
  %1971 = vmatpush1.bf16.msra.mxu0 %v1508
  %1972 = vmatprep.subr.bf16.mxu0 %v1505
  %1973 = vmatpush1.bf16.msra.mxu0 %v1504
  %1974 = vmatprep.subr.bf16.mxu0 %v1501
  %1975 = vmatpush1.bf16.msra.mxu0 %v1500
  %1976 = vmatprep.subr.bf16.mxu0 %v1497
  %1977 = vmatpush1.bf16.msra.mxu0 %v1496
  %1978 = vmatprep.subr.bf16.mxu0 %v1493
  %1979 = vmatpush1.bf16.msra.mxu0 %v1492
  %1980 = vmatprep.subr.bf16.mxu0 %v1489
  %1981 = vmatpush1.bf16.msra.mxu0 %v1488
  %1982 = vmatprep.subr.bf16.mxu0 %v1485
  %1983 = vmatpush1.bf16.msra.mxu0 %v1484
  %1984 = vmatprep.subr.bf16.mxu0 %v1481
  %1985 = vmatpush1.bf16.msra.mxu0 %v1480
  %1986 = vmatprep.subr.bf16.mxu0 0
  %1987 = vmatpush2.bf16.msra.mxu0 0
  %1988 = vmatprep.subr.bf16.mxu0 0
  %1989 = vmatpush2.bf16.msra.mxu0 0
  %1990 = vmatprep.subr.bf16.mxu0 0
  %1991 = vmatpush2.bf16.msra.mxu0 0
  %1992 = vmatprep.subr.bf16.mxu0 0
  %1993 = vmatpush2.bf16.msra.mxu0 0
  %1994 = vmatprep.subr.bf16.mxu0 0
  %1995 = vmatpush2.bf16.msra.mxu0 0
  %1996 = vmatprep.subr.bf16.mxu0 0
  %1997 = vmatpush2.bf16.msra.mxu0 0
  %1998 = vmatprep.subr.bf16.mxu0 0
  %1999 = vmatpush2.bf16.msra.mxu0 0
  %2000 = vmatprep.subr.bf16.mxu0 0
  %2001 = vmatpush2.bf16.msra.mxu0 0
  %2002 = vmatprep.mubr.bf16.mxu0 0
  %2003 = vmatmul.mubr.bf16.gmra.mxu0 %v1646
  %v2004 = vpop.f32.mrf.mxu0
  %v2005 = vadd.f32 0.0, %v2004
  %v2006 = vpop.f32.mrf.mxu0
  %v2007 = vadd.f32 0.0, %v2006
  %v2008 = vpop.f32.mrf.mxu0
  %v2009 = vpop.f32.mrf.mxu0
  %2010 = vdwg.mxu0
  %v2011 = vadd.f32 %v1925, %v1964
  %v2012 = vadd.f32 %v1926, %v1966
  %v2013 = vadd.f32 %v1927, %v2005
  %v2014 = vadd.f32 %v1928, %v2007
  %v2015 = vmul.f32 %v2011, 0.5
  %v2016 = vtanh.pop %v2015
  %v2017 = vmul.f32 %v2016, 0.5
  %v2018 = vadd.f32 %v2017, 0.5
  %v2019 = vmul.f32 %v2012, 0.5
  %v2020 = vtanh.pop %v2019
  %v2021 = vmul.f32 %v2020, 0.5
  %v2022 = vadd.f32 %v2021, 0.5
  %v2023 = vtanh.pop %v2013
  %v2024 = vmul.f32 %v2014, 0.5
  %v2025 = vtanh.pop %v2024
  %v2026 = vmul.f32 %v2025, 0.5
  %v2027 = vadd.f32 %v2026, 0.5
  %v2028 = vmul.f32 %v2022, %v1643
  %v2029 = vmul.f32 %v2018, %v2023
  %v2030 = vadd.f32 %v2028, %v2029
  %v2031 = vtanh.pop %v2030
  %v2032 = vmul.f32 %v2027, %v2031
  %v2033 = vpack.c.bf16 %v2032, %v2032
  %s2034 = scalar_lea.vmem [#allocation4], 8
  %2035 = vst [vmem:[%s2034] sm:$0xf] %v2033
  %s2036 = scalar_lea.vmem [#allocation2], 192
  %v2037 = vld [vmem:[%s2036 + $0x10] sm:$0xff]
  %v2038 = vld [vmem:[%s2036 + $0x18] sm:$0xff]
  %v2039 = vunpack.c.l.bf16 %v2037
  %v2040 = vunpack.c.h.bf16 %v2037
  %v2041 = vunpack.c.l.bf16 %v2038
  %v2042 = vunpack.c.h.bf16 %v2038
  %2043 = vmatprep.subr.bf16.mxu0 %v1780
  %2044 = vmatpush1.bf16.msra.mxu0 %v1779
  %2045 = vmatprep.subr.bf16.mxu0 %v1776
  %2046 = vmatpush1.bf16.msra.mxu0 %v1775
  %2047 = vmatprep.subr.bf16.mxu0 %v1772
  %2048 = vmatpush1.bf16.msra.mxu0 %v1771
  %2049 = vmatprep.subr.bf16.mxu0 %v1768
  %2050 = vmatpush1.bf16.msra.mxu0 %v1767
  %2051 = vmatprep.subr.bf16.mxu0 %v1764
  %2052 = vmatpush1.bf16.msra.mxu0 %v1763
  %2053 = vmatprep.subr.bf16.mxu0 %v1760
  %2054 = vmatpush1.bf16.msra.mxu0 %v1759
  %2055 = vmatprep.subr.bf16.mxu0 %v1756
  %2056 = vmatpush1.bf16.msra.mxu0 %v1755
  %2057 = vmatprep.subr.bf16.mxu0 %v1752
  %2058 = vmatpush1.bf16.msra.mxu0 %v1751
  %2059 = vmatprep.subr.bf16.mxu0 0
  %2060 = vmatpush2.bf16.msra.mxu0 0
  %2061 = vmatprep.subr.bf16.mxu0 0
  %2062 = vmatpush2.bf16.msra.mxu0 0
  %2063 = vmatprep.subr.bf16.mxu0 0
  %2064 = vmatpush2.bf16.msra.mxu0 0
  %2065 = vmatprep.subr.bf16.mxu0 0
  %2066 = vmatpush2.bf16.msra.mxu0 0
  %2067 = vmatprep.subr.bf16.mxu0 0
  %2068 = vmatpush2.bf16.msra.mxu0 0
  %2069 = vmatprep.subr.bf16.mxu0 0
  %2070 = vmatpush2.bf16.msra.mxu0 0
  %2071 = vmatprep.subr.bf16.mxu0 0
  %2072 = vmatpush2.bf16.msra.mxu0 0
  %2073 = vmatprep.subr.bf16.mxu0 0
  %2074 = vmatpush2.bf16.msra.mxu0 0
  %2075 = vmatprep.mubr.bf16.mxu0 0
  %2076 = vmatmul.mubr.bf16.gmra.mxu0 %v1919
  %v2077 = vpop.f32.mrf.mxu0
  %v2078 = vadd.f32 0.0, %v2077
  %v2079 = vpop.f32.mrf.mxu0
  %v2080 = vadd.f32 0.0, %v2079
  %v2081 = vpop.f32.mrf.mxu0
  %v2082 = vpop.f32.mrf.mxu0
  %2083 = vdwg.mxu0
  %2084 = vmatprep.subr.bf16.mxu0 %v1782
  %2085 = vmatpush1.bf16.msra.mxu0 %v1781
  %2086 = vmatprep.subr.bf16.mxu0 %v1778
  %2087 = vmatpush1.bf16.msra.mxu0 %v1777
  %2088 = vmatprep.subr.bf16.mxu0 %v1774
  %2089 = vmatpush1.bf16.msra.mxu0 %v1773
  %2090 = vmatprep.subr.bf16.mxu0 %v1770
  %2091 = vmatpush1.bf16.msra.mxu0 %v1769
  %2092 = vmatprep.subr.bf16.mxu0 %v1766
  %2093 = vmatpush1.bf16.msra.mxu0 %v1765
  %2094 = vmatprep.subr.bf16.mxu0 %v1762
  %2095 = vmatpush1.bf16.msra.mxu0 %v1761
  %2096 = vmatprep.subr.bf16.mxu0 %v1758
  %2097 = vmatpush1.bf16.msra.mxu0 %v1757
  %2098 = vmatprep.subr.bf16.mxu0 %v1754
  %2099 = vmatpush1.bf16.msra.mxu0 %v1753
  %2100 = vmatprep.subr.bf16.mxu0 0
  %2101 = vmatpush2.bf16.msra.mxu0 0
  %2102 = vmatprep.subr.bf16.mxu0 0
  %2103 = vmatpush2.bf16.msra.mxu0 0
  %2104 = vmatprep.subr.bf16.mxu0 0
  %2105 = vmatpush2.bf16.msra.mxu0 0
  %2106 = vmatprep.subr.bf16.mxu0 0
  %2107 = vmatpush2.bf16.msra.mxu0 0
  %2108 = vmatprep.subr.bf16.mxu0 0
  %2109 = vmatpush2.bf16.msra.mxu0 0
  %2110 = vmatprep.subr.bf16.mxu0 0
  %2111 = vmatpush2.bf16.msra.mxu0 0
  %2112 = vmatprep.subr.bf16.mxu0 0
  %2113 = vmatpush2.bf16.msra.mxu0 0
  %2114 = vmatprep.subr.bf16.mxu0 0
  %2115 = vmatpush2.bf16.msra.mxu0 0
  %2116 = vmatprep.mubr.bf16.mxu0 0
  %2117 = vmatmul.mubr.bf16.gmra.mxu0 %v1919
  %v2118 = vpop.f32.mrf.mxu0
  %v2119 = vadd.f32 0.0, %v2118
  %v2120 = vpop.f32.mrf.mxu0
  %v2121 = vadd.f32 0.0, %v2120
  %v2122 = vpop.f32.mrf.mxu0
  %v2123 = vpop.f32.mrf.mxu0
  %2124 = vdwg.mxu0
  %v2125 = vadd.f32 %v2039, %v2078
  %v2126 = vadd.f32 %v2040, %v2080
  %v2127 = vadd.f32 %v2041, %v2119
  %v2128 = vadd.f32 %v2042, %v2121
  %v2129 = vmul.f32 %v2125, 0.5
  %v2130 = vtanh.pop %v2129
  %v2131 = vmul.f32 %v2130, 0.5
  %v2132 = vadd.f32 %v2131, 0.5
  %v2133 = vmul.f32 %v2126, 0.5
  %v2134 = vtanh.pop %v2133
  %v2135 = vmul.f32 %v2134, 0.5
  %v2136 = vadd.f32 %v2135, 0.5
  %v2137 = vtanh.pop %v2127
  %v2138 = vmul.f32 %v2128, 0.5
  %v2139 = vtanh.pop %v2138
  %v2140 = vmul.f32 %v2139, 0.5
  %v2141 = vadd.f32 %v2140, 0.5
  %v2142 = vmul.f32 %v2136, %v1916
  %v2143 = vmul.f32 %v2132, %v2137
  %v2144 = vadd.f32 %v2142, %v2143
  %v2145 = vtanh.pop %v2144
  %v2146 = vmul.f32 %v2141, %v2145
  %v2147 = vpack.c.bf16 %v2146, %v2146
  %s2148 = scalar_lea.vmem [#allocation4], 48
  %2149 = vst [vmem:[%s2148 + $0x4] sm:$0xf] %v2147
  %s2150 = scalar_lea.vmem [#allocation2], 64
  %v2151 = vld [vmem:[%s2150] sm:$0xff]
  %v2152 = vld [vmem:[%s2150 + $0x8] sm:$0xff]
  %v2153 = vunpack.c.l.bf16 %v2151
  %v2154 = vunpack.c.h.bf16 %v2151
  %v2155 = vunpack.c.l.bf16 %v2152
  %v2156 = vunpack.c.h.bf16 %v2152
  %2157 = vmatprep.subr.bf16.mxu0 %v1507
  %2158 = vmatpush1.bf16.msra.mxu0 %v1506
  %2159 = vmatprep.subr.bf16.mxu0 %v1503
  %2160 = vmatpush1.bf16.msra.mxu0 %v1502
  %2161 = vmatprep.subr.bf16.mxu0 %v1499
  %2162 = vmatpush1.bf16.msra.mxu0 %v1498
  %2163 = vmatprep.subr.bf16.mxu0 %v1495
  %2164 = vmatpush1.bf16.msra.mxu0 %v1494
  %2165 = vmatprep.subr.bf16.mxu0 %v1491
  %2166 = vmatpush1.bf16.msra.mxu0 %v1490
  %2167 = vmatprep.subr.bf16.mxu0 %v1487
  %2168 = vmatpush1.bf16.msra.mxu0 %v1486
  %2169 = vmatprep.subr.bf16.mxu0 %v1483
  %2170 = vmatpush1.bf16.msra.mxu0 %v1482
  %2171 = vmatprep.subr.bf16.mxu0 %v1479
  %2172 = vmatpush1.bf16.msra.mxu0 %v1478
  %2173 = vmatprep.subr.bf16.mxu0 0
  %2174 = vmatpush2.bf16.msra.mxu0 0
  %2175 = vmatprep.subr.bf16.mxu0 0
  %2176 = vmatpush2.bf16.msra.mxu0 0
  %2177 = vmatprep.subr.bf16.mxu0 0
  %2178 = vmatpush2.bf16.msra.mxu0 0
  %2179 = vmatprep.subr.bf16.mxu0 0
  %2180 = vmatpush2.bf16.msra.mxu0 0
  %2181 = vmatprep.subr.bf16.mxu0 0
  %2182 = vmatpush2.bf16.msra.mxu0 0
  %2183 = vmatprep.subr.bf16.mxu0 0
  %2184 = vmatpush2.bf16.msra.mxu0 0
  %2185 = vmatprep.subr.bf16.mxu0 0
  %2186 = vmatpush2.bf16.msra.mxu0 0
  %2187 = vmatprep.subr.bf16.mxu0 0
  %2188 = vmatpush2.bf16.msra.mxu0 0
  %2189 = vmatprep.mubr.bf16.mxu0 0
  %2190 = vmatmul.mubr.bf16.gmra.mxu0 %v2033
  %v2191 = vpop.f32.mrf.mxu0
  %v2192 = vadd.f32 0.0, %v2191
  %v2193 = vpop.f32.mrf.mxu0
  %v2194 = vadd.f32 0.0, %v2193
  %v2195 = vpop.f32.mrf.mxu0
  %v2196 = vpop.f32.mrf.mxu0
  %2197 = vdwg.mxu0
  %2198 = vmatprep.subr.bf16.mxu0 %v1509
  %2199 = vmatpush1.bf16.msra.mxu0 %v1508
  %2200 = vmatprep.subr.bf16.mxu0 %v1505
  %2201 = vmatpush1.bf16.msra.mxu0 %v1504
  %2202 = vmatprep.subr.bf16.mxu0 %v1501
  %2203 = vmatpush1.bf16.msra.mxu0 %v1500
  %2204 = vmatprep.subr.bf16.mxu0 %v1497
  %2205 = vmatpush1.bf16.msra.mxu0 %v1496
  %2206 = vmatprep.subr.bf16.mxu0 %v1493
  %2207 = vmatpush1.bf16.msra.mxu0 %v1492
  %2208 = vmatprep.subr.bf16.mxu0 %v1489
  %2209 = vmatpush1.bf16.msra.mxu0 %v1488
  %2210 = vmatprep.subr.bf16.mxu0 %v1485
  %2211 = vmatpush1.bf16.msra.mxu0 %v1484
  %2212 = vmatprep.subr.bf16.mxu0 %v1481
  %2213 = vmatpush1.bf16.msra.mxu0 %v1480
  %2214 = vmatprep.subr.bf16.mxu0 0
  %2215 = vmatpush2.bf16.msra.mxu0 0
  %2216 = vmatprep.subr.bf16.mxu0 0
  %2217 = vmatpush2.bf16.msra.mxu0 0
  %2218 = vmatprep.subr.bf16.mxu0 0
  %2219 = vmatpush2.bf16.msra.mxu0 0
  %2220 = vmatprep.subr.bf16.mxu0 0
  %2221 = vmatpush2.bf16.msra.mxu0 0
  %2222 = vmatprep.subr.bf16.mxu0 0
  %2223 = vmatpush2.bf16.msra.mxu0 0
  %2224 = vmatprep.subr.bf16.mxu0 0
  %2225 = vmatpush2.bf16.msra.mxu0 0
  %2226 = vmatprep.subr.bf16.mxu0 0
  %2227 = vmatpush2.bf16.msra.mxu0 0
  %2228 = vmatprep.subr.bf16.mxu0 0
  %2229 = vmatpush2.bf16.msra.mxu0 0
  %2230 = vmatprep.mubr.bf16.mxu0 0
  %2231 = vmatmul.mubr.bf16.gmra.mxu0 %v2033
  %v2232 = vpop.f32.mrf.mxu0
  %v2233 = vadd.f32 0.0, %v2232
  %v2234 = vpop.f32.mrf.mxu0
  %v2235 = vadd.f32 0.0, %v2234
  %v2236 = vpop.f32.mrf.mxu0
  %v2237 = vpop.f32.mrf.mxu0
  %2238 = vdwg.mxu0
  %v2239 = vadd.f32 %v2153, %v2192
  %v2240 = vadd.f32 %v2154, %v2194
  %v2241 = vadd.f32 %v2155, %v2233
  %v2242 = vadd.f32 %v2156, %v2235
  %v2243 = vmul.f32 %v2239, 0.5
  %v2244 = vtanh.pop %v2243
  %v2245 = vmul.f32 %v2244, 0.5
  %v2246 = vadd.f32 %v2245, 0.5
  %v2247 = vmul.f32 %v2240, 0.5
  %v2248 = vtanh.pop %v2247
  %v2249 = vmul.f32 %v2248, 0.5
  %v2250 = vadd.f32 %v2249, 0.5
  %v2251 = vtanh.pop %v2241
  %v2252 = vmul.f32 %v2242, 0.5
  %v2253 = vtanh.pop %v2252
  %v2254 = vmul.f32 %v2253, 0.5
  %v2255 = vadd.f32 %v2254, 0.5
  %v2256 = vmul.f32 %v2250, %v2030
  %v2257 = vmul.f32 %v2246, %v2251
  %v2258 = vadd.f32 %v2256, %v2257
  %v2259 = vtanh.pop %v2258
  %v2260 = vmul.f32 %v2255, %v2259
  %v2261 = vpack.c.bf16 %v2260, %v2260
  %s2262 = scalar_lea.vmem [#allocation4], 16
  %2263 = vst [vmem:[%s2262] sm:$0xf] %v2261
  %s2264 = scalar_lea.vmem [#allocation2], 160
  %v2265 = vld [vmem:[%s2264 + $0x10] sm:$0xff]
  %v2266 = vld [vmem:[%s2264 + $0x18] sm:$0xff]
  %v2267 = vunpack.c.l.bf16 %v2265
  %v2268 = vunpack.c.h.bf16 %v2265
  %v2269 = vunpack.c.l.bf16 %v2266
  %v2270 = vunpack.c.h.bf16 %v2266
  %2271 = vmatprep.subr.bf16.mxu0 %v1780
  %2272 = vmatpush1.bf16.msra.mxu0 %v1779
  %2273 = vmatprep.subr.bf16.mxu0 %v1776
  %2274 = vmatpush1.bf16.msra.mxu0 %v1775
  %2275 = vmatprep.subr.bf16.mxu0 %v1772
  %2276 = vmatpush1.bf16.msra.mxu0 %v1771
  %2277 = vmatprep.subr.bf16.mxu0 %v1768
  %2278 = vmatpush1.bf16.msra.mxu0 %v1767
  %2279 = vmatprep.subr.bf16.mxu0 %v1764
  %2280 = vmatpush1.bf16.msra.mxu0 %v1763
  %2281 = vmatprep.subr.bf16.mxu0 %v1760
  %2282 = vmatpush1.bf16.msra.mxu0 %v1759
  %2283 = vmatprep.subr.bf16.mxu0 %v1756
  %2284 = vmatpush1.bf16.msra.mxu0 %v1755
  %2285 = vmatprep.subr.bf16.mxu0 %v1752
  %2286 = vmatpush1.bf16.msra.mxu0 %v1751
  %2287 = vmatprep.subr.bf16.mxu0 0
  %2288 = vmatpush2.bf16.msra.mxu0 0
  %2289 = vmatprep.subr.bf16.mxu0 0
  %2290 = vmatpush2.bf16.msra.mxu0 0
  %2291 = vmatprep.subr.bf16.mxu0 0
  %2292 = vmatpush2.bf16.msra.mxu0 0
  %2293 = vmatprep.subr.bf16.mxu0 0
  %2294 = vmatpush2.bf16.msra.mxu0 0
  %2295 = vmatprep.subr.bf16.mxu0 0
  %2296 = vmatpush2.bf16.msra.mxu0 0
  %2297 = vmatprep.subr.bf16.mxu0 0
  %2298 = vmatpush2.bf16.msra.mxu0 0
  %2299 = vmatprep.subr.bf16.mxu0 0
  %2300 = vmatpush2.bf16.msra.mxu0 0
  %2301 = vmatprep.subr.bf16.mxu0 0
  %2302 = vmatpush2.bf16.msra.mxu0 0
  %2303 = vmatprep.mubr.bf16.mxu0 0
  %2304 = vmatmul.mubr.bf16.gmra.mxu0 %v2147
  %v2305 = vpop.f32.mrf.mxu0
  %v2306 = vadd.f32 0.0, %v2305
  %v2307 = vpop.f32.mrf.mxu0
  %v2308 = vadd.f32 0.0, %v2307
  %v2309 = vpop.f32.mrf.mxu0
  %v2310 = vpop.f32.mrf.mxu0
  %2311 = vdwg.mxu0
  %2312 = vmatprep.subr.bf16.mxu0 %v1782
  %2313 = vmatpush1.bf16.msra.mxu0 %v1781
  %2314 = vmatprep.subr.bf16.mxu0 %v1778
  %2315 = vmatpush1.bf16.msra.mxu0 %v1777
  %2316 = vmatprep.subr.bf16.mxu0 %v1774
  %2317 = vmatpush1.bf16.msra.mxu0 %v1773
  %2318 = vmatprep.subr.bf16.mxu0 %v1770
  %2319 = vmatpush1.bf16.msra.mxu0 %v1769
  %2320 = vmatprep.subr.bf16.mxu0 %v1766
  %2321 = vmatpush1.bf16.msra.mxu0 %v1765
  %2322 = vmatprep.subr.bf16.mxu0 %v1762
  %2323 = vmatpush1.bf16.msra.mxu0 %v1761
  %2324 = vmatprep.subr.bf16.mxu0 %v1758
  %2325 = vmatpush1.bf16.msra.mxu0 %v1757
  %2326 = vmatprep.subr.bf16.mxu0 %v1754
  %2327 = vmatpush1.bf16.msra.mxu0 %v1753
  %2328 = vmatprep.subr.bf16.mxu0 0
  %2329 = vmatpush2.bf16.msra.mxu0 0
  %2330 = vmatprep.subr.bf16.mxu0 0
  %2331 = vmatpush2.bf16.msra.mxu0 0
  %2332 = vmatprep.subr.bf16.mxu0 0
  %2333 = vmatpush2.bf16.msra.mxu0 0
  %2334 = vmatprep.subr.bf16.mxu0 0
  %2335 = vmatpush2.bf16.msra.mxu0 0
  %2336 = vmatprep.subr.bf16.mxu0 0
  %2337 = vmatpush2.bf16.msra.mxu0 0
  %2338 = vmatprep.subr.bf16.mxu0 0
  %2339 = vmatpush2.bf16.msra.mxu0 0
  %2340 = vmatprep.subr.bf16.mxu0 0
  %2341 = vmatpush2.bf16.msra.mxu0 0
  %2342 = vmatprep.subr.bf16.mxu0 0
  %2343 = vmatpush2.bf16.msra.mxu0 0
  %2344 = vmatprep.mubr.bf16.mxu0 0
  %2345 = vmatmul.mubr.bf16.gmra.mxu0 %v2147
  %v2346 = vpop.f32.mrf.mxu0
  %v2347 = vadd.f32 0.0, %v2346
  %v2348 = vpop.f32.mrf.mxu0
  %v2349 = vadd.f32 0.0, %v2348
  %v2350 = vpop.f32.mrf.mxu0
  %v2351 = vpop.f32.mrf.mxu0
  %2352 = vdwg.mxu0
  %v2353 = vadd.f32 %v2267, %v2306
  %v2354 = vadd.f32 %v2268, %v2308
  %v2355 = vadd.f32 %v2269, %v2347
  %v2356 = vadd.f32 %v2270, %v2349
  %v2357 = vmul.f32 %v2353, 0.5
  %v2358 = vtanh.pop %v2357
  %v2359 = vmul.f32 %v2358, 0.5
  %v2360 = vadd.f32 %v2359, 0.5
  %v2361 = vmul.f32 %v2354, 0.5
  %v2362 = vtanh.pop %v2361
  %v2363 = vmul.f32 %v2362, 0.5
  %v2364 = vadd.f32 %v2363, 0.5
  %v2365 = vtanh.pop %v2355
  %v2366 = vmul.f32 %v2356, 0.5
  %v2367 = vtanh.pop %v2366
  %v2368 = vmul.f32 %v2367, 0.5
  %v2369 = vadd.f32 %v2368, 0.5
  %v2370 = vmul.f32 %v2364, %v2144
  %v2371 = vmul.f32 %v2360, %v2365
  %v2372 = vadd.f32 %v2370, %v2371
  %v2373 = vtanh.pop %v2372
  %v2374 = vmul.f32 %v2369, %v2373
  %v2375 = vpack.c.bf16 %v2374, %v2374
  %s2376 = scalar_lea.vmem [#allocation4], 40
  %2377 = vst [vmem:[%s2376 + $0x4] sm:$0xf] %v2375
  %s2378 = scalar_lea.vmem [#allocation2], 96
  %v2379 = vld [vmem:[%s2378] sm:$0xff]
  %v2380 = vld [vmem:[%s2378 + $0x8] sm:$0xff]
  %v2381 = vunpack.c.l.bf16 %v2379
  %v2382 = vunpack.c.h.bf16 %v2379
  %v2383 = vunpack.c.l.bf16 %v2380
  %v2384 = vunpack.c.h.bf16 %v2380
  %2385 = vmatprep.subr.bf16.mxu0 %v1507
  %2386 = vmatpush1.bf16.msra.mxu0 %v1506
  %2387 = vmatprep.subr.bf16.mxu0 %v1503
  %2388 = vmatpush1.bf16.msra.mxu0 %v1502
  %2389 = vmatprep.subr.bf16.mxu0 %v1499
  %2390 = vmatpush1.bf16.msra.mxu0 %v1498
  %2391 = vmatprep.subr.bf16.mxu0 %v1495
  %2392 = vmatpush1.bf16.msra.mxu0 %v1494
  %2393 = vmatprep.subr.bf16.mxu0 %v1491
  %2394 = vmatpush1.bf16.msra.mxu0 %v1490
  %2395 = vmatprep.subr.bf16.mxu0 %v1487
  %2396 = vmatpush1.bf16.msra.mxu0 %v1486
  %2397 = vmatprep.subr.bf16.mxu0 %v1483
  %2398 = vmatpush1.bf16.msra.mxu0 %v1482
  %2399 = vmatprep.subr.bf16.mxu0 %v1479
  %2400 = vmatpush1.bf16.msra.mxu0 %v1478
  %2401 = vmatprep.subr.bf16.mxu0 0
  %2402 = vmatpush2.bf16.msra.mxu0 0
  %2403 = vmatprep.subr.bf16.mxu0 0
  %2404 = vmatpush2.bf16.msra.mxu0 0
  %2405 = vmatprep.subr.bf16.mxu0 0
  %2406 = vmatpush2.bf16.msra.mxu0 0
  %2407 = vmatprep.subr.bf16.mxu0 0
  %2408 = vmatpush2.bf16.msra.mxu0 0
  %2409 = vmatprep.subr.bf16.mxu0 0
  %2410 = vmatpush2.bf16.msra.mxu0 0
  %2411 = vmatprep.subr.bf16.mxu0 0
  %2412 = vmatpush2.bf16.msra.mxu0 0
  %2413 = vmatprep.subr.bf16.mxu0 0
  %2414 = vmatpush2.bf16.msra.mxu0 0
  %2415 = vmatprep.subr.bf16.mxu0 0
  %2416 = vmatpush2.bf16.msra.mxu0 0
  %2417 = vmatprep.mubr.bf16.mxu0 0
  %2418 = vmatmul.mubr.bf16.gmra.mxu0 %v2261
  %v2419 = vpop.f32.mrf.mxu0
  %v2420 = vadd.f32 0.0, %v2419
  %v2421 = vpop.f32.mrf.mxu0
  %v2422 = vadd.f32 0.0, %v2421
  %v2423 = vpop.f32.mrf.mxu0
  %v2424 = vpop.f32.mrf.mxu0
  %2425 = vdwg.mxu0
  %2426 = vmatprep.subr.bf16.mxu0 %v1509
  %2427 = vmatpush1.bf16.msra.mxu0 %v1508
  %2428 = vmatprep.subr.bf16.mxu0 %v1505
  %2429 = vmatpush1.bf16.msra.mxu0 %v1504
  %2430 = vmatprep.subr.bf16.mxu0 %v1501
  %2431 = vmatpush1.bf16.msra.mxu0 %v1500
  %2432 = vmatprep.subr.bf16.mxu0 %v1497
  %2433 = vmatpush1.bf16.msra.mxu0 %v1496
  %2434 = vmatprep.subr.bf16.mxu0 %v1493
  %2435 = vmatpush1.bf16.msra.mxu0 %v1492
  %2436 = vmatprep.subr.bf16.mxu0 %v1489
  %2437 = vmatpush1.bf16.msra.mxu0 %v1488
  %2438 = vmatprep.subr.bf16.mxu0 %v1485
  %2439 = vmatpush1.bf16.msra.mxu0 %v1484
  %2440 = vmatprep.subr.bf16.mxu0 %v1481
  %2441 = vmatpush1.bf16.msra.mxu0 %v1480
  %2442 = vmatprep.subr.bf16.mxu0 0
  %2443 = vmatpush2.bf16.msra.mxu0 0
  %2444 = vmatprep.subr.bf16.mxu0 0
  %2445 = vmatpush2.bf16.msra.mxu0 0
  %2446 = vmatprep.subr.bf16.mxu0 0
  %2447 = vmatpush2.bf16.msra.mxu0 0
  %2448 = vmatprep.subr.bf16.mxu0 0
  %2449 = vmatpush2.bf16.msra.mxu0 0
  %2450 = vmatprep.subr.bf16.mxu0 0
  %2451 = vmatpush2.bf16.msra.mxu0 0
  %2452 = vmatprep.subr.bf16.mxu0 0
  %2453 = vmatpush2.bf16.msra.mxu0 0
  %2454 = vmatprep.subr.bf16.mxu0 0
  %2455 = vmatpush2.bf16.msra.mxu0 0
  %2456 = vmatprep.subr.bf16.mxu0 0
  %2457 = vmatpush2.bf16.msra.mxu0 0
  %2458 = vmatprep.mubr.bf16.mxu0 0
  %2459 = vmatmul.mubr.bf16.gmra.mxu0 %v2261
  %v2460 = vpop.f32.mrf.mxu0
  %v2461 = vadd.f32 0.0, %v2460
  %v2462 = vpop.f32.mrf.mxu0
  %v2463 = vadd.f32 0.0, %v2462
  %v2464 = vpop.f32.mrf.mxu0
  %v2465 = vpop.f32.mrf.mxu0
  %2466 = vdwg.mxu0
  %v2467 = vadd.f32 %v2381, %v2420
  %v2468 = vadd.f32 %v2382, %v2422
  %v2469 = vadd.f32 %v2383, %v2461
  %v2470 = vadd.f32 %v2384, %v2463
  %v2471 = vmul.f32 %v2467, 0.5
  %v2472 = vtanh.pop %v2471
  %v2473 = vmul.f32 %v2472, 0.5
  %v2474 = vadd.f32 %v2473, 0.5
  %v2475 = vmul.f32 %v2468, 0.5
  %v2476 = vtanh.pop %v2475
  %v2477 = vmul.f32 %v2476, 0.5
  %v2478 = vadd.f32 %v2477, 0.5
  %v2479 = vtanh.pop %v2469
  %v2480 = vmul.f32 %v2470, 0.5
  %v2481 = vtanh.pop %v2480
  %v2482 = vmul.f32 %v2481, 0.5
  %v2483 = vadd.f32 %v2482, 0.5
  %v2484 = vmul.f32 %v2478, %v2258
  %v2485 = vmul.f32 %v2474, %v2479
  %v2486 = vadd.f32 %v2484, %v2485
  %v2487 = vtanh.pop %v2486
  %v2488 = vmul.f32 %v2483, %v2487
  %v2489 = vpack.c.bf16 %v2488, %v2488
  %s2490 = scalar_lea.vmem [#allocation4], 24
  %2491 = vst [vmem:[%s2490] sm:$0xf] %v2489
  %s2492 = scalar_lea.vmem [#allocation2], 128
  %v2493 = vld [vmem:[%s2492 + $0x10] sm:$0xff]
  %v2494 = vld [vmem:[%s2492 + $0x18] sm:$0xff]
  %v2495 = vunpack.c.l.bf16 %v2493
  %v2496 = vunpack.c.h.bf16 %v2493
  %v2497 = vunpack.c.l.bf16 %v2494
  %v2498 = vunpack.c.h.bf16 %v2494
  %2499 = vmatprep.subr.bf16.mxu0 %v1780
  %2500 = vmatpush1.bf16.msra.mxu0 %v1779
  %2501 = vmatprep.subr.bf16.mxu0 %v1776
  %2502 = vmatpush1.bf16.msra.mxu0 %v1775
  %2503 = vmatprep.subr.bf16.mxu0 %v1772
  %2504 = vmatpush1.bf16.msra.mxu0 %v1771
  %2505 = vmatprep.subr.bf16.mxu0 %v1768
  %2506 = vmatpush1.bf16.msra.mxu0 %v1767
  %2507 = vmatprep.subr.bf16.mxu0 %v1764
  %2508 = vmatpush1.bf16.msra.mxu0 %v1763
  %2509 = vmatprep.subr.bf16.mxu0 %v1760
  %2510 = vmatpush1.bf16.msra.mxu0 %v1759
  %2511 = vmatprep.subr.bf16.mxu0 %v1756
  %2512 = vmatpush1.bf16.msra.mxu0 %v1755
  %2513 = vmatprep.subr.bf16.mxu0 %v1752
  %2514 = vmatpush1.bf16.msra.mxu0 %v1751
  %2515 = vmatprep.subr.bf16.mxu0 0
  %2516 = vmatpush2.bf16.msra.mxu0 0
  %2517 = vmatprep.subr.bf16.mxu0 0
  %2518 = vmatpush2.bf16.msra.mxu0 0
  %2519 = vmatprep.subr.bf16.mxu0 0
  %2520 = vmatpush2.bf16.msra.mxu0 0
  %2521 = vmatprep.subr.bf16.mxu0 0
  %2522 = vmatpush2.bf16.msra.mxu0 0
  %2523 = vmatprep.subr.bf16.mxu0 0
  %2524 = vmatpush2.bf16.msra.mxu0 0
  %2525 = vmatprep.subr.bf16.mxu0 0
  %2526 = vmatpush2.bf16.msra.mxu0 0
  %2527 = vmatprep.subr.bf16.mxu0 0
  %2528 = vmatpush2.bf16.msra.mxu0 0
  %2529 = vmatprep.subr.bf16.mxu0 0
  %2530 = vmatpush2.bf16.msra.mxu0 0
  %2531 = vmatprep.mubr.bf16.mxu0 0
  %2532 = vmatmul.mubr.bf16.gmra.mxu0 %v2375
  %v2533 = vpop.f32.mrf.mxu0
  %v2534 = vadd.f32 0.0, %v2533
  %v2535 = vpop.f32.mrf.mxu0
  %v2536 = vadd.f32 0.0, %v2535
  %v2537 = vpop.f32.mrf.mxu0
  %v2538 = vpop.f32.mrf.mxu0
  %2539 = vdwg.mxu0
  %2540 = vmatprep.subr.bf16.mxu0 %v1782
  %2541 = vmatpush1.bf16.msra.mxu0 %v1781
  %2542 = vmatprep.subr.bf16.mxu0 %v1778
  %2543 = vmatpush1.bf16.msra.mxu0 %v1777
  %2544 = vmatprep.subr.bf16.mxu0 %v1774
  %2545 = vmatpush1.bf16.msra.mxu0 %v1773
  %2546 = vmatprep.subr.bf16.mxu0 %v1770
  %2547 = vmatpush1.bf16.msra.mxu0 %v1769
  %2548 = vmatprep.subr.bf16.mxu0 %v1766
  %2549 = vmatpush1.bf16.msra.mxu0 %v1765
  %2550 = vmatprep.subr.bf16.mxu0 %v1762
  %2551 = vmatpush1.bf16.msra.mxu0 %v1761
  %2552 = vmatprep.subr.bf16.mxu0 %v1758
  %2553 = vmatpush1.bf16.msra.mxu0 %v1757
  %2554 = vmatprep.subr.bf16.mxu0 %v1754
  %2555 = vmatpush1.bf16.msra.mxu0 %v1753
  %2556 = vmatprep.subr.bf16.mxu0 0
  %2557 = vmatpush2.bf16.msra.mxu0 0
  %2558 = vmatprep.subr.bf16.mxu0 0
  %2559 = vmatpush2.bf16.msra.mxu0 0
  %2560 = vmatprep.subr.bf16.mxu0 0
  %2561 = vmatpush2.bf16.msra.mxu0 0
  %2562 = vmatprep.subr.bf16.mxu0 0
  %2563 = vmatpush2.bf16.msra.mxu0 0
  %2564 = vmatprep.subr.bf16.mxu0 0
  %2565 = vmatpush2.bf16.msra.mxu0 0
  %2566 = vmatprep.subr.bf16.mxu0 0
  %2567 = vmatpush2.bf16.msra.mxu0 0
  %2568 = vmatprep.subr.bf16.mxu0 0
  %2569 = vmatpush2.bf16.msra.mxu0 0
  %2570 = vmatprep.subr.bf16.mxu0 0
  %2571 = vmatpush2.bf16.msra.mxu0 0
  %2572 = vmatprep.mubr.bf16.mxu0 0
  %2573 = vmatmul.mubr.bf16.gmra.mxu0 %v2375
  %v2574 = vpop.f32.mrf.mxu0
  %v2575 = vadd.f32 0.0, %v2574
  %v2576 = vpop.f32.mrf.mxu0
  %v2577 = vadd.f32 0.0, %v2576
  %v2578 = vpop.f32.mrf.mxu0
  %v2579 = vpop.f32.mrf.mxu0
  %2580 = vdwg.mxu0
  %v2581 = vadd.f32 %v2495, %v2534
  %v2582 = vadd.f32 %v2496, %v2536
  %v2583 = vadd.f32 %v2497, %v2575
  %v2584 = vadd.f32 %v2498, %v2577
  %v2585 = vmul.f32 %v2581, 0.5
  %v2586 = vtanh.pop %v2585
  %v2587 = vmul.f32 %v2586, 0.5
  %v2588 = vadd.f32 %v2587, 0.5
  %v2589 = vmul.f32 %v2582, 0.5
  %v2590 = vtanh.pop %v2589
  %v2591 = vmul.f32 %v2590, 0.5
  %v2592 = vadd.f32 %v2591, 0.5
  %v2593 = vtanh.pop %v2583
  %v2594 = vmul.f32 %v2584, 0.5
  %v2595 = vtanh.pop %v2594
  %v2596 = vmul.f32 %v2595, 0.5
  %v2597 = vadd.f32 %v2596, 0.5
  %v2598 = vmul.f32 %v2592, %v2372
  %v2599 = vmul.f32 %v2588, %v2593
  %v2600 = vadd.f32 %v2598, %v2599
  %v2601 = vtanh.pop %v2600
  %v2602 = vmul.f32 %v2597, %v2601
  %v2603 = vpack.c.bf16 %v2602, %v2602
  %s2604 = scalar_lea.vmem [#allocation4], 32
  %2605 = vst [vmem:[%s2604 + $0x4] sm:$0xf] %v2603
  %v2606 = vld [vmem:[%s2492] sm:$0xff]
  %v2607 = vld [vmem:[%s2492 + $0x8] sm:$0xff]
  %v2608 = vunpack.c.l.bf16 %v2606
  %v2609 = vunpack.c.h.bf16 %v2606
  %v2610 = vunpack.c.l.bf16 %v2607
  %v2611 = vunpack.c.h.bf16 %v2607
  %2612 = vmatprep.subr.bf16.mxu0 %v1507
  %2613 = vmatpush1.bf16.msra.mxu0 %v1506
  %2614 = vmatprep.subr.bf16.mxu0 %v1503
  %2615 = vmatpush1.bf16.msra.mxu0 %v1502
  %2616 = vmatprep.subr.bf16.mxu0 %v1499
  %2617 = vmatpush1.bf16.msra.mxu0 %v1498
  %2618 = vmatprep.subr.bf16.mxu0 %v1495
  %2619 = vmatpush1.bf16.msra.mxu0 %v1494
  %2620 = vmatprep.subr.bf16.mxu0 %v1491
  %2621 = vmatpush1.bf16.msra.mxu0 %v1490
  %2622 = vmatprep.subr.bf16.mxu0 %v1487
  %2623 = vmatpush1.bf16.msra.mxu0 %v1486
  %2624 = vmatprep.subr.bf16.mxu0 %v1483
  %2625 = vmatpush1.bf16.msra.mxu0 %v1482
  %2626 = vmatprep.subr.bf16.mxu0 %v1479
  %2627 = vmatpush1.bf16.msra.mxu0 %v1478
  %2628 = vmatprep.subr.bf16.mxu0 0
  %2629 = vmatpush2.bf16.msra.mxu0 0
  %2630 = vmatprep.subr.bf16.mxu0 0
  %2631 = vmatpush2.bf16.msra.mxu0 0
  %2632 = vmatprep.subr.bf16.mxu0 0
  %2633 = vmatpush2.bf16.msra.mxu0 0
  %2634 = vmatprep.subr.bf16.mxu0 0
  %2635 = vmatpush2.bf16.msra.mxu0 0
  %2636 = vmatprep.subr.bf16.mxu0 0
  %2637 = vmatpush2.bf16.msra.mxu0 0
  %2638 = vmatprep.subr.bf16.mxu0 0
  %2639 = vmatpush2.bf16.msra.mxu0 0
  %2640 = vmatprep.subr.bf16.mxu0 0
  %2641 = vmatpush2.bf16.msra.mxu0 0
  %2642 = vmatprep.subr.bf16.mxu0 0
  %2643 = vmatpush2.bf16.msra.mxu0 0
  %2644 = vmatprep.mubr.bf16.mxu0 0
  %2645 = vmatmul.mubr.bf16.gmra.mxu0 %v2489
  %v2646 = vpop.f32.mrf.mxu0
  %v2647 = vadd.f32 0.0, %v2646
  %v2648 = vpop.f32.mrf.mxu0
  %v2649 = vadd.f32 0.0, %v2648
  %v2650 = vpop.f32.mrf.mxu0
  %v2651 = vpop.f32.mrf.mxu0
  %2652 = vdwg.mxu0
  %2653 = vmatprep.subr.bf16.mxu0 %v1509
  %2654 = vmatpush1.bf16.msra.mxu0 %v1508
  %2655 = vmatprep.subr.bf16.mxu0 %v1505
  %2656 = vmatpush1.bf16.msra.mxu0 %v1504
  %2657 = vmatprep.subr.bf16.mxu0 %v1501
  %2658 = vmatpush1.bf16.msra.mxu0 %v1500
  %2659 = vmatprep.subr.bf16.mxu0 %v1497
  %2660 = vmatpush1.bf16.msra.mxu0 %v1496
  %2661 = vmatprep.subr.bf16.mxu0 %v1493
  %2662 = vmatpush1.bf16.msra.mxu0 %v1492
  %2663 = vmatprep.subr.bf16.mxu0 %v1489
  %2664 = vmatpush1.bf16.msra.mxu0 %v1488
  %2665 = vmatprep.subr.bf16.mxu0 %v1485
  %2666 = vmatpush1.bf16.msra.mxu0 %v1484
  %2667 = vmatprep.subr.bf16.mxu0 %v1481
  %2668 = vmatpush1.bf16.msra.mxu0 %v1480
  %2669 = vmatprep.subr.bf16.mxu0 0
  %2670 = vmatpush2.bf16.msra.mxu0 0
  %2671 = vmatprep.subr.bf16.mxu0 0
  %2672 = vmatpush2.bf16.msra.mxu0 0
  %2673 = vmatprep.subr.bf16.mxu0 0
  %2674 = vmatpush2.bf16.msra.mxu0 0
  %2675 = vmatprep.subr.bf16.mxu0 0
  %2676 = vmatpush2.bf16.msra.mxu0 0
  %2677 = vmatprep.subr.bf16.mxu0 0
  %2678 = vmatpush2.bf16.msra.mxu0 0
  %2679 = vmatprep.subr.bf16.mxu0 0
  %2680 = vmatpush2.bf16.msra.mxu0 0
  %2681 = vmatprep.subr.bf16.mxu0 0
  %2682 = vmatpush2.bf16.msra.mxu0 0
  %2683 = vmatprep.subr.bf16.mxu0 0
  %2684 = vmatpush2.bf16.msra.mxu0 0
  %2685 = vmatprep.mubr.bf16.mxu0 0
  %2686 = vmatmul.mubr.bf16.gmra.mxu0 %v2489
  %v2687 = vpop.f32.mrf.mxu0
  %v2688 = vadd.f32 0.0, %v2687
  %v2689 = vpop.f32.mrf.mxu0
  %v2690 = vadd.f32 0.0, %v2689
  %v2691 = vpop.f32.mrf.mxu0
  %v2692 = vpop.f32.mrf.mxu0
  %2693 = vdwg.mxu0
  %v2694 = vadd.f32 %v2608, %v2647
  %v2695 = vadd.f32 %v2609, %v2649
  %v2696 = vadd.f32 %v2610, %v2688
  %v2697 = vadd.f32 %v2611, %v2690
  %v2698 = vmul.f32 %v2694, 0.5
  %v2699 = vtanh.pop %v2698
  %v2700 = vmul.f32 %v2699, 0.5
  %v2701 = vadd.f32 %v2700, 0.5
  %v2702 = vmul.f32 %v2695, 0.5
  %v2703 = vtanh.pop %v2702
  %v2704 = vmul.f32 %v2703, 0.5
  %v2705 = vadd.f32 %v2704, 0.5
  %v2706 = vtanh.pop %v2696
  %v2707 = vmul.f32 %v2697, 0.5
  %v2708 = vtanh.pop %v2707
  %v2709 = vmul.f32 %v2708, 0.5
  %v2710 = vadd.f32 %v2709, 0.5
  %v2711 = vmul.f32 %v2705, %v2486
  %v2712 = vmul.f32 %v2701, %v2706
  %v2713 = vadd.f32 %v2711, %v2712
  %v2714 = vtanh.pop %v2713
  %v2715 = vmul.f32 %v2710, %v2714
  %v2716 = vpack.c.bf16 %v2715, %v2715
  %2717 = vst [vmem:[%s2604] sm:$0xf] %v2716
  %v2718 = vld [vmem:[%s2378 + $0x10] sm:$0xff]
  %v2719 = vld [vmem:[%s2378 + $0x18] sm:$0xff]
  %v2720 = vunpack.c.l.bf16 %v2718
  %v2721 = vunpack.c.h.bf16 %v2718
  %v2722 = vunpack.c.l.bf16 %v2719
  %v2723 = vunpack.c.h.bf16 %v2719
  %2724 = vmatprep.subr.bf16.mxu0 %v1780
  %2725 = vmatpush1.bf16.msra.mxu0 %v1779
  %2726 = vmatprep.subr.bf16.mxu0 %v1776
  %2727 = vmatpush1.bf16.msra.mxu0 %v1775
  %2728 = vmatprep.subr.bf16.mxu0 %v1772
  %2729 = vmatpush1.bf16.msra.mxu0 %v1771
  %2730 = vmatprep.subr.bf16.mxu0 %v1768
  %2731 = vmatpush1.bf16.msra.mxu0 %v1767
  %2732 = vmatprep.subr.bf16.mxu0 %v1764
  %2733 = vmatpush1.bf16.msra.mxu0 %v1763
  %2734 = vmatprep.subr.bf16.mxu0 %v1760
  %2735 = vmatpush1.bf16.msra.mxu0 %v1759
  %2736 = vmatprep.subr.bf16.mxu0 %v1756
  %2737 = vmatpush1.bf16.msra.mxu0 %v1755
  %2738 = vmatprep.subr.bf16.mxu0 %v1752
  %2739 = vmatpush1.bf16.msra.mxu0 %v1751
  %2740 = vmatprep.subr.bf16.mxu0 0
  %2741 = vmatpush2.bf16.msra.mxu0 0
  %2742 = vmatprep.subr.bf16.mxu0 0
  %2743 = vmatpush2.bf16.msra.mxu0 0
  %2744 = vmatprep.subr.bf16.mxu0 0
  %2745 = vmatpush2.bf16.msra.mxu0 0
  %2746 = vmatprep.subr.bf16.mxu0 0
  %2747 = vmatpush2.bf16.msra.mxu0 0
  %2748 = vmatprep.subr.bf16.mxu0 0
  %2749 = vmatpush2.bf16.msra.mxu0 0
  %2750 = vmatprep.subr.bf16.mxu0 0
  %2751 = vmatpush2.bf16.msra.mxu0 0
  %2752 = vmatprep.subr.bf16.mxu0 0
  %2753 = vmatpush2.bf16.msra.mxu0 0
  %2754 = vmatprep.subr.bf16.mxu0 0
  %2755 = vmatpush2.bf16.msra.mxu0 0
  %2756 = vmatprep.mubr.bf16.mxu0 0
  %2757 = vmatmul.mubr.bf16.gmra.mxu0 %v2603
  %v2758 = vpop.f32.mrf.mxu0
  %v2759 = vadd.f32 0.0, %v2758
  %v2760 = vpop.f32.mrf.mxu0
  %v2761 = vadd.f32 0.0, %v2760
  %v2762 = vpop.f32.mrf.mxu0
  %v2763 = vpop.f32.mrf.mxu0
  %2764 = vdwg.mxu0
  %2765 = vmatprep.subr.bf16.mxu0 %v1782
  %2766 = vmatpush1.bf16.msra.mxu0 %v1781
  %2767 = vmatprep.subr.bf16.mxu0 %v1778
  %2768 = vmatpush1.bf16.msra.mxu0 %v1777
  %2769 = vmatprep.subr.bf16.mxu0 %v1774
  %2770 = vmatpush1.bf16.msra.mxu0 %v1773
  %2771 = vmatprep.subr.bf16.mxu0 %v1770
  %2772 = vmatpush1.bf16.msra.mxu0 %v1769
  %2773 = vmatprep.subr.bf16.mxu0 %v1766
  %2774 = vmatpush1.bf16.msra.mxu0 %v1765
  %2775 = vmatprep.subr.bf16.mxu0 %v1762
  %2776 = vmatpush1.bf16.msra.mxu0 %v1761
  %2777 = vmatprep.subr.bf16.mxu0 %v1758
  %2778 = vmatpush1.bf16.msra.mxu0 %v1757
  %2779 = vmatprep.subr.bf16.mxu0 %v1754
  %2780 = vmatpush1.bf16.msra.mxu0 %v1753
  %2781 = vmatprep.subr.bf16.mxu0 0
  %2782 = vmatpush2.bf16.msra.mxu0 0
  %2783 = vmatprep.subr.bf16.mxu0 0
  %2784 = vmatpush2.bf16.msra.mxu0 0
  %2785 = vmatprep.subr.bf16.mxu0 0
  %2786 = vmatpush2.bf16.msra.mxu0 0
  %2787 = vmatprep.subr.bf16.mxu0 0
  %2788 = vmatpush2.bf16.msra.mxu0 0
  %2789 = vmatprep.subr.bf16.mxu0 0
  %2790 = vmatpush2.bf16.msra.mxu0 0
  %2791 = vmatprep.subr.bf16.mxu0 0
  %2792 = vmatpush2.bf16.msra.mxu0 0
  %2793 = vmatprep.subr.bf16.mxu0 0
  %2794 = vmatpush2.bf16.msra.mxu0 0
  %2795 = vmatprep.subr.bf16.mxu0 0
  %2796 = vmatpush2.bf16.msra.mxu0 0
  %2797 = vmatprep.mubr.bf16.mxu0 0
  %2798 = vmatmul.mubr.bf16.gmra.mxu0 %v2603
  %v2799 = vpop.f32.mrf.mxu0
  %v2800 = vadd.f32 0.0, %v2799
  %v2801 = vpop.f32.mrf.mxu0
  %v2802 = vadd.f32 0.0, %v2801
  %v2803 = vpop.f32.mrf.mxu0
  %v2804 = vpop.f32.mrf.mxu0
  %2805 = vdwg.mxu0
  %v2806 = vadd.f32 %v2720, %v2759
  %v2807 = vadd.f32 %v2721, %v2761
  %v2808 = vadd.f32 %v2722, %v2800
  %v2809 = vadd.f32 %v2723, %v2802
  %v2810 = vmul.f32 %v2806, 0.5
  %v2811 = vtanh.pop %v2810
  %v2812 = vmul.f32 %v2811, 0.5
  %v2813 = vadd.f32 %v2812, 0.5
  %v2814 = vmul.f32 %v2807, 0.5
  %v2815 = vtanh.pop %v2814
  %v2816 = vmul.f32 %v2815, 0.5
  %v2817 = vadd.f32 %v2816, 0.5
  %v2818 = vtanh.pop %v2808
  %v2819 = vmul.f32 %v2809, 0.5
  %v2820 = vtanh.pop %v2819
  %v2821 = vmul.f32 %v2820, 0.5
  %v2822 = vadd.f32 %v2821, 0.5
  %v2823 = vmul.f32 %v2817, %v2600
  %v2824 = vmul.f32 %v2813, %v2818
  %v2825 = vadd.f32 %v2823, %v2824
  %v2826 = vtanh.pop %v2825
  %v2827 = vmul.f32 %v2822, %v2826
  %v2828 = vpack.c.bf16 %v2827, %v2827
  %2829 = vst [vmem:[%s2490 + $0x4] sm:$0xf] %v2828
  %v2830 = vld [vmem:[%s2264] sm:$0xff]
  %v2831 = vld [vmem:[%s2264 + $0x8] sm:$0xff]
  %v2832 = vunpack.c.l.bf16 %v2830
  %v2833 = vunpack.c.h.bf16 %v2830
  %v2834 = vunpack.c.l.bf16 %v2831
  %v2835 = vunpack.c.h.bf16 %v2831
  %2836 = vmatprep.subr.bf16.mxu0 %v1507
  %2837 = vmatpush1.bf16.msra.mxu0 %v1506
  %2838 = vmatprep.subr.bf16.mxu0 %v1503
  %2839 = vmatpush1.bf16.msra.mxu0 %v1502
  %2840 = vmatprep.subr.bf16.mxu0 %v1499
  %2841 = vmatpush1.bf16.msra.mxu0 %v1498
  %2842 = vmatprep.subr.bf16.mxu0 %v1495
  %2843 = vmatpush1.bf16.msra.mxu0 %v1494
  %2844 = vmatprep.subr.bf16.mxu0 %v1491
  %2845 = vmatpush1.bf16.msra.mxu0 %v1490
  %2846 = vmatprep.subr.bf16.mxu0 %v1487
  %2847 = vmatpush1.bf16.msra.mxu0 %v1486
  %2848 = vmatprep.subr.bf16.mxu0 %v1483
  %2849 = vmatpush1.bf16.msra.mxu0 %v1482
  %2850 = vmatprep.subr.bf16.mxu0 %v1479
  %2851 = vmatpush1.bf16.msra.mxu0 %v1478
  %2852 = vmatprep.subr.bf16.mxu0 0
  %2853 = vmatpush2.bf16.msra.mxu0 0
  %2854 = vmatprep.subr.bf16.mxu0 0
  %2855 = vmatpush2.bf16.msra.mxu0 0
  %2856 = vmatprep.subr.bf16.mxu0 0
  %2857 = vmatpush2.bf16.msra.mxu0 0
  %2858 = vmatprep.subr.bf16.mxu0 0
  %2859 = vmatpush2.bf16.msra.mxu0 0
  %2860 = vmatprep.subr.bf16.mxu0 0
  %2861 = vmatpush2.bf16.msra.mxu0 0
  %2862 = vmatprep.subr.bf16.mxu0 0
  %2863 = vmatpush2.bf16.msra.mxu0 0
  %2864 = vmatprep.subr.bf16.mxu0 0
  %2865 = vmatpush2.bf16.msra.mxu0 0
  %2866 = vmatprep.subr.bf16.mxu0 0
  %2867 = vmatpush2.bf16.msra.mxu0 0
  %2868 = vmatprep.mubr.bf16.mxu0 0
  %2869 = vmatmul.mubr.bf16.gmra.mxu0 %v2716
  %v2870 = vpop.f32.mrf.mxu0
  %v2871 = vadd.f32 0.0, %v2870
  %v2872 = vpop.f32.mrf.mxu0
  %v2873 = vadd.f32 0.0, %v2872
  %v2874 = vpop.f32.mrf.mxu0
  %v2875 = vpop.f32.mrf.mxu0
  %2876 = vdwg.mxu0
  %2877 = vmatprep.subr.bf16.mxu0 %v1509
  %2878 = vmatpush1.bf16.msra.mxu0 %v1508
  %2879 = vmatprep.subr.bf16.mxu0 %v1505
  %2880 = vmatpush1.bf16.msra.mxu0 %v1504
  %2881 = vmatprep.subr.bf16.mxu0 %v1501
  %2882 = vmatpush1.bf16.msra.mxu0 %v1500
  %2883 = vmatprep.subr.bf16.mxu0 %v1497
  %2884 = vmatpush1.bf16.msra.mxu0 %v1496
  %2885 = vmatprep.subr.bf16.mxu0 %v1493
  %2886 = vmatpush1.bf16.msra.mxu0 %v1492
  %2887 = vmatprep.subr.bf16.mxu0 %v1489
  %2888 = vmatpush1.bf16.msra.mxu0 %v1488
  %2889 = vmatprep.subr.bf16.mxu0 %v1485
  %2890 = vmatpush1.bf16.msra.mxu0 %v1484
  %2891 = vmatprep.subr.bf16.mxu0 %v1481
  %2892 = vmatpush1.bf16.msra.mxu0 %v1480
  %2893 = vmatprep.subr.bf16.mxu0 0
  %2894 = vmatpush2.bf16.msra.mxu0 0
  %2895 = vmatprep.subr.bf16.mxu0 0
  %2896 = vmatpush2.bf16.msra.mxu0 0
  %2897 = vmatprep.subr.bf16.mxu0 0
  %2898 = vmatpush2.bf16.msra.mxu0 0
  %2899 = vmatprep.subr.bf16.mxu0 0
  %2900 = vmatpush2.bf16.msra.mxu0 0
  %2901 = vmatprep.subr.bf16.mxu0 0
  %2902 = vmatpush2.bf16.msra.mxu0 0
  %2903 = vmatprep.subr.bf16.mxu0 0
  %2904 = vmatpush2.bf16.msra.mxu0 0
  %2905 = vmatprep.subr.bf16.mxu0 0
  %2906 = vmatpush2.bf16.msra.mxu0 0
  %2907 = vmatprep.subr.bf16.mxu0 0
  %2908 = vmatpush2.bf16.msra.mxu0 0
  %2909 = vmatprep.mubr.bf16.mxu0 0
  %2910 = vmatmul.mubr.bf16.gmra.mxu0 %v2716
  %v2911 = vpop.f32.mrf.mxu0
  %v2912 = vadd.f32 0.0, %v2911
  %v2913 = vpop.f32.mrf.mxu0
  %v2914 = vadd.f32 0.0, %v2913
  %v2915 = vpop.f32.mrf.mxu0
  %v2916 = vpop.f32.mrf.mxu0
  %2917 = vdwg.mxu0
  %v2918 = vadd.f32 %v2832, %v2871
  %v2919 = vadd.f32 %v2833, %v2873
  %v2920 = vadd.f32 %v2834, %v2912
  %v2921 = vadd.f32 %v2835, %v2914
  %v2922 = vmul.f32 %v2918, 0.5
  %v2923 = vtanh.pop %v2922
  %v2924 = vmul.f32 %v2923, 0.5
  %v2925 = vadd.f32 %v2924, 0.5
  %v2926 = vmul.f32 %v2919, 0.5
  %v2927 = vtanh.pop %v2926
  %v2928 = vmul.f32 %v2927, 0.5
  %v2929 = vadd.f32 %v2928, 0.5
  %v2930 = vtanh.pop %v2920
  %v2931 = vmul.f32 %v2921, 0.5
  %v2932 = vtanh.pop %v2931
  %v2933 = vmul.f32 %v2932, 0.5
  %v2934 = vadd.f32 %v2933, 0.5
  %v2935 = vmul.f32 %v2929, %v2713
  %v2936 = vmul.f32 %v2925, %v2930
  %v2937 = vadd.f32 %v2935, %v2936
  %v2938 = vtanh.pop %v2937
  %v2939 = vmul.f32 %v2934, %v2938
  %v2940 = vpack.c.bf16 %v2939, %v2939
  %2941 = vst [vmem:[%s2376] sm:$0xf] %v2940
  %v2942 = vld [vmem:[%s2150 + $0x10] sm:$0xff]
  %v2943 = vld [vmem:[%s2150 + $0x18] sm:$0xff]
  %v2944 = vunpack.c.l.bf16 %v2942
  %v2945 = vunpack.c.h.bf16 %v2942
  %v2946 = vunpack.c.l.bf16 %v2943
  %v2947 = vunpack.c.h.bf16 %v2943
  %2948 = vmatprep.subr.bf16.mxu0 %v1780
  %2949 = vmatpush1.bf16.msra.mxu0 %v1779
  %2950 = vmatprep.subr.bf16.mxu0 %v1776
  %2951 = vmatpush1.bf16.msra.mxu0 %v1775
  %2952 = vmatprep.subr.bf16.mxu0 %v1772
  %2953 = vmatpush1.bf16.msra.mxu0 %v1771
  %2954 = vmatprep.subr.bf16.mxu0 %v1768
  %2955 = vmatpush1.bf16.msra.mxu0 %v1767
  %2956 = vmatprep.subr.bf16.mxu0 %v1764
  %2957 = vmatpush1.bf16.msra.mxu0 %v1763
  %2958 = vmatprep.subr.bf16.mxu0 %v1760
  %2959 = vmatpush1.bf16.msra.mxu0 %v1759
  %2960 = vmatprep.subr.bf16.mxu0 %v1756
  %2961 = vmatpush1.bf16.msra.mxu0 %v1755
  %2962 = vmatprep.subr.bf16.mxu0 %v1752
  %2963 = vmatpush1.bf16.msra.mxu0 %v1751
  %2964 = vmatprep.subr.bf16.mxu0 0
  %2965 = vmatpush2.bf16.msra.mxu0 0
  %2966 = vmatprep.subr.bf16.mxu0 0
  %2967 = vmatpush2.bf16.msra.mxu0 0
  %2968 = vmatprep.subr.bf16.mxu0 0
  %2969 = vmatpush2.bf16.msra.mxu0 0
  %2970 = vmatprep.subr.bf16.mxu0 0
  %2971 = vmatpush2.bf16.msra.mxu0 0
  %2972 = vmatprep.subr.bf16.mxu0 0
  %2973 = vmatpush2.bf16.msra.mxu0 0
  %2974 = vmatprep.subr.bf16.mxu0 0
  %2975 = vmatpush2.bf16.msra.mxu0 0
  %2976 = vmatprep.subr.bf16.mxu0 0
  %2977 = vmatpush2.bf16.msra.mxu0 0
  %2978 = vmatprep.subr.bf16.mxu0 0
  %2979 = vmatpush2.bf16.msra.mxu0 0
  %2980 = vmatprep.mubr.bf16.mxu0 0
  %2981 = vmatmul.mubr.bf16.gmra.mxu0 %v2828
  %v2982 = vpop.f32.mrf.mxu0
  %v2983 = vadd.f32 0.0, %v2982
  %v2984 = vpop.f32.mrf.mxu0
  %v2985 = vadd.f32 0.0, %v2984
  %v2986 = vpop.f32.mrf.mxu0
  %v2987 = vpop.f32.mrf.mxu0
  %2988 = vdwg.mxu0
  %2989 = vmatprep.subr.bf16.mxu0 %v1782
  %2990 = vmatpush1.bf16.msra.mxu0 %v1781
  %2991 = vmatprep.subr.bf16.mxu0 %v1778
  %2992 = vmatpush1.bf16.msra.mxu0 %v1777
  %2993 = vmatprep.subr.bf16.mxu0 %v1774
  %2994 = vmatpush1.bf16.msra.mxu0 %v1773
  %2995 = vmatprep.subr.bf16.mxu0 %v1770
  %2996 = vmatpush1.bf16.msra.mxu0 %v1769
  %2997 = vmatprep.subr.bf16.mxu0 %v1766
  %2998 = vmatpush1.bf16.msra.mxu0 %v1765
  %2999 = vmatprep.subr.bf16.mxu0 %v1762
  %3000 = vmatpush1.bf16.msra.mxu0 %v1761
  %3001 = vmatprep.subr.bf16.mxu0 %v1758
  %3002 = vmatpush1.bf16.msra.mxu0 %v1757
  %3003 = vmatprep.subr.bf16.mxu0 %v1754
  %3004 = vmatpush1.bf16.msra.mxu0 %v1753
  %3005 = vmatprep.subr.bf16.mxu0 0
  %3006 = vmatpush2.bf16.msra.mxu0 0
  %3007 = vmatprep.subr.bf16.mxu0 0
  %3008 = vmatpush2.bf16.msra.mxu0 0
  %3009 = vmatprep.subr.bf16.mxu0 0
  %3010 = vmatpush2.bf16.msra.mxu0 0
  %3011 = vmatprep.subr.bf16.mxu0 0
  %3012 = vmatpush2.bf16.msra.mxu0 0
  %3013 = vmatprep.subr.bf16.mxu0 0
  %3014 = vmatpush2.bf16.msra.mxu0 0
  %3015 = vmatprep.subr.bf16.mxu0 0
  %3016 = vmatpush2.bf16.msra.mxu0 0
  %3017 = vmatprep.subr.bf16.mxu0 0
  %3018 = vmatpush2.bf16.msra.mxu0 0
  %3019 = vmatprep.subr.bf16.mxu0 0
  %3020 = vmatpush2.bf16.msra.mxu0 0
  %3021 = vmatprep.mubr.bf16.mxu0 0
  %3022 = vmatmul.mubr.bf16.gmra.mxu0 %v2828
  %v3023 = vpop.f32.mrf.mxu0
  %v3024 = vadd.f32 0.0, %v3023
  %v3025 = vpop.f32.mrf.mxu0
  %v3026 = vadd.f32 0.0, %v3025
  %v3027 = vpop.f32.mrf.mxu0
  %v3028 = vpop.f32.mrf.mxu0
  %3029 = vdwg.mxu0
  %v3030 = vadd.f32 %v2944, %v2983
  %v3031 = vadd.f32 %v2945, %v2985
  %v3032 = vadd.f32 %v2946, %v3024
  %v3033 = vadd.f32 %v2947, %v3026
  %v3034 = vmul.f32 %v3030, 0.5
  %v3035 = vtanh.pop %v3034
  %v3036 = vmul.f32 %v3035, 0.5
  %v3037 = vadd.f32 %v3036, 0.5
  %v3038 = vmul.f32 %v3031, 0.5
  %v3039 = vtanh.pop %v3038
  %v3040 = vmul.f32 %v3039, 0.5
  %v3041 = vadd.f32 %v3040, 0.5
  %v3042 = vtanh.pop %v3032
  %v3043 = vmul.f32 %v3033, 0.5
  %v3044 = vtanh.pop %v3043
  %v3045 = vmul.f32 %v3044, 0.5
  %v3046 = vadd.f32 %v3045, 0.5
  %v3047 = vmul.f32 %v3041, %v2825
  %v3048 = vmul.f32 %v3037, %v3042
  %v3049 = vadd.f32 %v3047, %v3048
  %v3050 = vtanh.pop %v3049
  %v3051 = vmul.f32 %v3046, %v3050
  %v3052 = vpack.c.bf16 %v3051, %v3051
  %3053 = vst [vmem:[%s2262 + $0x4] sm:$0xf] %v3052
  %v3054 = vld [vmem:[%s2036] sm:$0xff]
  %v3055 = vld [vmem:[%s2036 + $0x8] sm:$0xff]
  %v3056 = vunpack.c.l.bf16 %v3054
  %v3057 = vunpack.c.h.bf16 %v3054
  %v3058 = vunpack.c.l.bf16 %v3055
  %v3059 = vunpack.c.h.bf16 %v3055
  %3060 = vmatprep.subr.bf16.mxu0 %v1507
  %3061 = vmatpush1.bf16.msra.mxu0 %v1506
  %3062 = vmatprep.subr.bf16.mxu0 %v1503
  %3063 = vmatpush1.bf16.msra.mxu0 %v1502
  %3064 = vmatprep.subr.bf16.mxu0 %v1499
  %3065 = vmatpush1.bf16.msra.mxu0 %v1498
  %3066 = vmatprep.subr.bf16.mxu0 %v1495
  %3067 = vmatpush1.bf16.msra.mxu0 %v1494
  %3068 = vmatprep.subr.bf16.mxu0 %v1491
  %3069 = vmatpush1.bf16.msra.mxu0 %v1490
  %3070 = vmatprep.subr.bf16.mxu0 %v1487
  %3071 = vmatpush1.bf16.msra.mxu0 %v1486
  %3072 = vmatprep.subr.bf16.mxu0 %v1483
  %3073 = vmatpush1.bf16.msra.mxu0 %v1482
  %3074 = vmatprep.subr.bf16.mxu0 %v1479
  %3075 = vmatpush1.bf16.msra.mxu0 %v1478
  %3076 = vmatprep.subr.bf16.mxu0 0
  %3077 = vmatpush2.bf16.msra.mxu0 0
  %3078 = vmatprep.subr.bf16.mxu0 0
  %3079 = vmatpush2.bf16.msra.mxu0 0
  %3080 = vmatprep.subr.bf16.mxu0 0
  %3081 = vmatpush2.bf16.msra.mxu0 0
  %3082 = vmatprep.subr.bf16.mxu0 0
  %3083 = vmatpush2.bf16.msra.mxu0 0
  %3084 = vmatprep.subr.bf16.mxu0 0
  %3085 = vmatpush2.bf16.msra.mxu0 0
  %3086 = vmatprep.subr.bf16.mxu0 0
  %3087 = vmatpush2.bf16.msra.mxu0 0
  %3088 = vmatprep.subr.bf16.mxu0 0
  %3089 = vmatpush2.bf16.msra.mxu0 0
  %3090 = vmatprep.subr.bf16.mxu0 0
  %3091 = vmatpush2.bf16.msra.mxu0 0
  %3092 = vmatprep.mubr.bf16.mxu0 0
  %3093 = vmatmul.mubr.bf16.gmra.mxu0 %v2940
  %v3094 = vpop.f32.mrf.mxu0
  %v3095 = vadd.f32 0.0, %v3094
  %v3096 = vpop.f32.mrf.mxu0
  %v3097 = vadd.f32 0.0, %v3096
  %v3098 = vpop.f32.mrf.mxu0
  %v3099 = vpop.f32.mrf.mxu0
  %3100 = vdwg.mxu0
  %3101 = vmatprep.subr.bf16.mxu0 %v1509
  %3102 = vmatpush1.bf16.msra.mxu0 %v1508
  %3103 = vmatprep.subr.bf16.mxu0 %v1505
  %3104 = vmatpush1.bf16.msra.mxu0 %v1504
  %3105 = vmatprep.subr.bf16.mxu0 %v1501
  %3106 = vmatpush1.bf16.msra.mxu0 %v1500
  %3107 = vmatprep.subr.bf16.mxu0 %v1497
  %3108 = vmatpush1.bf16.msra.mxu0 %v1496
  %3109 = vmatprep.subr.bf16.mxu0 %v1493
  %3110 = vmatpush1.bf16.msra.mxu0 %v1492
  %3111 = vmatprep.subr.bf16.mxu0 %v1489
  %3112 = vmatpush1.bf16.msra.mxu0 %v1488
  %3113 = vmatprep.subr.bf16.mxu0 %v1485
  %3114 = vmatpush1.bf16.msra.mxu0 %v1484
  %3115 = vmatprep.subr.bf16.mxu0 %v1481
  %3116 = vmatpush1.bf16.msra.mxu0 %v1480
  %3117 = vmatprep.subr.bf16.mxu0 0
  %3118 = vmatpush2.bf16.msra.mxu0 0
  %3119 = vmatprep.subr.bf16.mxu0 0
  %3120 = vmatpush2.bf16.msra.mxu0 0
  %3121 = vmatprep.subr.bf16.mxu0 0
  %3122 = vmatpush2.bf16.msra.mxu0 0
  %3123 = vmatprep.subr.bf16.mxu0 0
  %3124 = vmatpush2.bf16.msra.mxu0 0
  %3125 = vmatprep.subr.bf16.mxu0 0
  %3126 = vmatpush2.bf16.msra.mxu0 0
  %3127 = vmatprep.subr.bf16.mxu0 0
  %3128 = vmatpush2.bf16.msra.mxu0 0
  %3129 = vmatprep.subr.bf16.mxu0 0
  %3130 = vmatpush2.bf16.msra.mxu0 0
  %3131 = vmatprep.subr.bf16.mxu0 0
  %3132 = vmatpush2.bf16.msra.mxu0 0
  %3133 = vmatprep.mubr.bf16.mxu0 0
  %3134 = vmatmul.mubr.bf16.gmra.mxu0 %v2940
  %v3135 = vpop.f32.mrf.mxu0
  %v3136 = vadd.f32 0.0, %v3135
  %v3137 = vpop.f32.mrf.mxu0
  %v3138 = vadd.f32 0.0, %v3137
  %v3139 = vpop.f32.mrf.mxu0
  %v3140 = vpop.f32.mrf.mxu0
  %3141 = vdwg.mxu0
  %v3142 = vadd.f32 %v3056, %v3095
  %v3143 = vadd.f32 %v3057, %v3097
  %v3144 = vadd.f32 %v3058, %v3136
  %v3145 = vadd.f32 %v3059, %v3138
  %v3146 = vmul.f32 %v3142, 0.5
  %v3147 = vtanh.pop %v3146
  %v3148 = vmul.f32 %v3147, 0.5
  %v3149 = vadd.f32 %v3148, 0.5
  %v3150 = vmul.f32 %v3143, 0.5
  %v3151 = vtanh.pop %v3150
  %v3152 = vmul.f32 %v3151, 0.5
  %v3153 = vadd.f32 %v3152, 0.5
  %v3154 = vtanh.pop %v3144
  %v3155 = vmul.f32 %v3145, 0.5
  %v3156 = vtanh.pop %v3155
  %v3157 = vmul.f32 %v3156, 0.5
  %v3158 = vadd.f32 %v3157, 0.5
  %v3159 = vmul.f32 %v3153, %v2937
  %v3160 = vmul.f32 %v3149, %v3154
  %v3161 = vadd.f32 %v3159, %v3160
  %v3162 = vtanh.pop %v3161
  %v3163 = vmul.f32 %v3158, %v3162
  %v3164 = vpack.c.bf16 %v3163, %v3163
  %3165 = vst [vmem:[%s2148] sm:$0xf] %v3164
  %v3166 = vld [vmem:[%s1922 + $0x10] sm:$0xff]
  %v3167 = vld [vmem:[%s1922 + $0x18] sm:$0xff]
  %v3168 = vunpack.c.l.bf16 %v3166
  %v3169 = vunpack.c.h.bf16 %v3166
  %v3170 = vunpack.c.l.bf16 %v3167
  %v3171 = vunpack.c.h.bf16 %v3167
  %3172 = vmatprep.subr.bf16.mxu0 %v1780
  %3173 = vmatpush1.bf16.msra.mxu0 %v1779
  %3174 = vmatprep.subr.bf16.mxu0 %v1776
  %3175 = vmatpush1.bf16.msra.mxu0 %v1775
  %3176 = vmatprep.subr.bf16.mxu0 %v1772
  %3177 = vmatpush1.bf16.msra.mxu0 %v1771
  %3178 = vmatprep.subr.bf16.mxu0 %v1768
  %3179 = vmatpush1.bf16.msra.mxu0 %v1767
  %3180 = vmatprep.subr.bf16.mxu0 %v1764
  %3181 = vmatpush1.bf16.msra.mxu0 %v1763
  %3182 = vmatprep.subr.bf16.mxu0 %v1760
  %3183 = vmatpush1.bf16.msra.mxu0 %v1759
  %3184 = vmatprep.subr.bf16.mxu0 %v1756
  %3185 = vmatpush1.bf16.msra.mxu0 %v1755
  %3186 = vmatprep.subr.bf16.mxu0 %v1752
  %3187 = vmatpush1.bf16.msra.mxu0 %v1751
  %3188 = vmatprep.subr.bf16.mxu0 0
  %3189 = vmatpush2.bf16.msra.mxu0 0
  %3190 = vmatprep.subr.bf16.mxu0 0
  %3191 = vmatpush2.bf16.msra.mxu0 0
  %3192 = vmatprep.subr.bf16.mxu0 0
  %3193 = vmatpush2.bf16.msra.mxu0 0
  %3194 = vmatprep.subr.bf16.mxu0 0
  %3195 = vmatpush2.bf16.msra.mxu0 0
  %3196 = vmatprep.subr.bf16.mxu0 0
  %3197 = vmatpush2.bf16.msra.mxu0 0
  %3198 = vmatprep.subr.bf16.mxu0 0
  %3199 = vmatpush2.bf16.msra.mxu0 0
  %3200 = vmatprep.subr.bf16.mxu0 0
  %3201 = vmatpush2.bf16.msra.mxu0 0
  %3202 = vmatprep.subr.bf16.mxu0 0
  %3203 = vmatpush2.bf16.msra.mxu0 0
  %3204 = vmatprep.mubr.bf16.mxu0 0
  %3205 = vmatmul.mubr.bf16.gmra.mxu0 %v3052
  %v3206 = vpop.f32.mrf.mxu0
  %v3207 = vadd.f32 0.0, %v3206
  %v3208 = vpop.f32.mrf.mxu0
  %v3209 = vadd.f32 0.0, %v3208
  %v3210 = vpop.f32.mrf.mxu0
  %v3211 = vpop.f32.mrf.mxu0
  %3212 = vdwg.mxu0
  %3213 = vmatprep.subr.bf16.mxu0 %v1782
  %3214 = vmatpush1.bf16.msra.mxu0 %v1781
  %3215 = vmatprep.subr.bf16.mxu0 %v1778
  %3216 = vmatpush1.bf16.msra.mxu0 %v1777
  %3217 = vmatprep.subr.bf16.mxu0 %v1774
  %3218 = vmatpush1.bf16.msra.mxu0 %v1773
  %3219 = vmatprep.subr.bf16.mxu0 %v1770
  %3220 = vmatpush1.bf16.msra.mxu0 %v1769
  %3221 = vmatprep.subr.bf16.mxu0 %v1766
  %3222 = vmatpush1.bf16.msra.mxu0 %v1765
  %3223 = vmatprep.subr.bf16.mxu0 %v1762
  %3224 = vmatpush1.bf16.msra.mxu0 %v1761
  %3225 = vmatprep.subr.bf16.mxu0 %v1758
  %3226 = vmatpush1.bf16.msra.mxu0 %v1757
  %3227 = vmatprep.subr.bf16.mxu0 %v1754
  %3228 = vmatpush1.bf16.msra.mxu0 %v1753
  %3229 = vmatprep.subr.bf16.mxu0 0
  %3230 = vmatpush2.bf16.msra.mxu0 0
  %3231 = vmatprep.subr.bf16.mxu0 0
  %3232 = vmatpush2.bf16.msra.mxu0 0
  %3233 = vmatprep.subr.bf16.mxu0 0
  %3234 = vmatpush2.bf16.msra.mxu0 0
  %3235 = vmatprep.subr.bf16.mxu0 0
  %3236 = vmatpush2.bf16.msra.mxu0 0
  %3237 = vmatprep.subr.bf16.mxu0 0
  %3238 = vmatpush2.bf16.msra.mxu0 0
  %3239 = vmatprep.subr.bf16.mxu0 0
  %3240 = vmatpush2.bf16.msra.mxu0 0
  %3241 = vmatprep.subr.bf16.mxu0 0
  %3242 = vmatpush2.bf16.msra.mxu0 0
  %3243 = vmatprep.subr.bf16.mxu0 0
  %3244 = vmatpush2.bf16.msra.mxu0 0
  %3245 = vmatprep.mubr.bf16.mxu0 0
  %3246 = vmatmul.mubr.bf16.gmra.mxu0 %v3052
  %v3247 = vpop.f32.mrf.mxu0
  %v3248 = vadd.f32 0.0, %v3247
  %v3249 = vpop.f32.mrf.mxu0
  %v3250 = vadd.f32 0.0, %v3249
  %v3251 = vpop.f32.mrf.mxu0
  %v3252 = vpop.f32.mrf.mxu0
  %3253 = vdwg.mxu0
  %v3254 = vadd.f32 %v3168, %v3207
  %v3255 = vadd.f32 %v3169, %v3209
  %v3256 = vadd.f32 %v3170, %v3248
  %v3257 = vadd.f32 %v3171, %v3250
  %v3258 = vmul.f32 %v3254, 0.5
  %v3259 = vtanh.pop %v3258
  %v3260 = vmul.f32 %v3259, 0.5
  %v3261 = vadd.f32 %v3260, 0.5
  %v3262 = vmul.f32 %v3255, 0.5
  %v3263 = vtanh.pop %v3262
  %v3264 = vmul.f32 %v3263, 0.5
  %v3265 = vadd.f32 %v3264, 0.5
  %v3266 = vtanh.pop %v3256
  %v3267 = vmul.f32 %v3257, 0.5
  %v3268 = vtanh.pop %v3267
  %v3269 = vmul.f32 %v3268, 0.5
  %v3270 = vadd.f32 %v3269, 0.5
  %v3271 = vmul.f32 %v3265, %v3049
  %v3272 = vmul.f32 %v3261, %v3266
  %v3273 = vadd.f32 %v3271, %v3272
  %v3274 = vtanh.pop %v3273
  %v3275 = vmul.f32 %v3270, %v3274
  %v3276 = vpack.c.bf16 %v3275, %v3275
  %3277 = vst [vmem:[%s2034 + $0x4] sm:$0xf] %v3276
  %v3278 = vld [vmem:[%s1648] sm:$0xff]
  %v3279 = vld [vmem:[%s1648 + $0x8] sm:$0xff]
  %v3280 = vunpack.c.l.bf16 %v3278
  %v3281 = vunpack.c.h.bf16 %v3278
  %v3282 = vunpack.c.l.bf16 %v3279
  %v3283 = vunpack.c.h.bf16 %v3279
  %3284 = vmatprep.subr.bf16.mxu0 %v1507
  %3285 = vmatpush1.bf16.msra.mxu0 %v1506
  %3286 = vmatprep.subr.bf16.mxu0 %v1503
  %3287 = vmatpush1.bf16.msra.mxu0 %v1502
  %3288 = vmatprep.subr.bf16.mxu0 %v1499
  %3289 = vmatpush1.bf16.msra.mxu0 %v1498
  %3290 = vmatprep.subr.bf16.mxu0 %v1495
  %3291 = vmatpush1.bf16.msra.mxu0 %v1494
  %3292 = vmatprep.subr.bf16.mxu0 %v1491
  %3293 = vmatpush1.bf16.msra.mxu0 %v1490
  %3294 = vmatprep.subr.bf16.mxu0 %v1487
  %3295 = vmatpush1.bf16.msra.mxu0 %v1486
  %3296 = vmatprep.subr.bf16.mxu0 %v1483
  %3297 = vmatpush1.bf16.msra.mxu0 %v1482
  %3298 = vmatprep.subr.bf16.mxu0 %v1479
  %3299 = vmatpush1.bf16.msra.mxu0 %v1478
  %3300 = vmatprep.subr.bf16.mxu0 0
  %3301 = vmatpush2.bf16.msra.mxu0 0
  %3302 = vmatprep.subr.bf16.mxu0 0
  %3303 = vmatpush2.bf16.msra.mxu0 0
  %3304 = vmatprep.subr.bf16.mxu0 0
  %3305 = vmatpush2.bf16.msra.mxu0 0
  %3306 = vmatprep.subr.bf16.mxu0 0
  %3307 = vmatpush2.bf16.msra.mxu0 0
  %3308 = vmatprep.subr.bf16.mxu0 0
  %3309 = vmatpush2.bf16.msra.mxu0 0
  %3310 = vmatprep.subr.bf16.mxu0 0
  %3311 = vmatpush2.bf16.msra.mxu0 0
  %3312 = vmatprep.subr.bf16.mxu0 0
  %3313 = vmatpush2.bf16.msra.mxu0 0
  %3314 = vmatprep.subr.bf16.mxu0 0
  %3315 = vmatpush2.bf16.msra.mxu0 0
  %3316 = vmatprep.mubr.bf16.mxu0 0
  %3317 = vmatmul.mubr.bf16.gmra.mxu0 %v3164
  %v3318 = vpop.f32.mrf.mxu0
  %v3319 = vadd.f32 0.0, %v3318
  %v3320 = vpop.f32.mrf.mxu0
  %v3321 = vadd.f32 0.0, %v3320
  %v3322 = vpop.f32.mrf.mxu0
  %v3323 = vpop.f32.mrf.mxu0
  %3324 = vdwg.mxu0
  %3325 = vmatprep.subr.bf16.mxu0 %v1509
  %3326 = vmatpush1.bf16.msra.mxu0 %v1508
  %3327 = vmatprep.subr.bf16.mxu0 %v1505
  %3328 = vmatpush1.bf16.msra.mxu0 %v1504
  %3329 = vmatprep.subr.bf16.mxu0 %v1501
  %3330 = vmatpush1.bf16.msra.mxu0 %v1500
  %3331 = vmatprep.subr.bf16.mxu0 %v1497
  %3332 = vmatpush1.bf16.msra.mxu0 %v1496
  %3333 = vmatprep.subr.bf16.mxu0 %v1493
  %3334 = vmatpush1.bf16.msra.mxu0 %v1492
  %3335 = vmatprep.subr.bf16.mxu0 %v1489
  %3336 = vmatpush1.bf16.msra.mxu0 %v1488
  %3337 = vmatprep.subr.bf16.mxu0 %v1485
  %3338 = vmatpush1.bf16.msra.mxu0 %v1484
  %3339 = vmatprep.subr.bf16.mxu0 %v1481
  %3340 = vmatpush1.bf16.msra.mxu0 %v1480
  %3341 = vmatprep.subr.bf16.mxu0 0
  %3342 = vmatpush2.bf16.msra.mxu0 0
  %3343 = vmatprep.subr.bf16.mxu0 0
  %3344 = vmatpush2.bf16.msra.mxu0 0
  %3345 = vmatprep.subr.bf16.mxu0 0
  %3346 = vmatpush2.bf16.msra.mxu0 0
  %3347 = vmatprep.subr.bf16.mxu0 0
  %3348 = vmatpush2.bf16.msra.mxu0 0
  %3349 = vmatprep.subr.bf16.mxu0 0
  %3350 = vmatpush2.bf16.msra.mxu0 0
  %3351 = vmatprep.subr.bf16.mxu0 0
  %3352 = vmatpush2.bf16.msra.mxu0 0
  %3353 = vmatprep.subr.bf16.mxu0 0
  %3354 = vmatpush2.bf16.msra.mxu0 0
  %3355 = vmatprep.subr.bf16.mxu0 0
  %3356 = vmatpush2.bf16.msra.mxu0 0
  %3357 = vmatprep.mubr.bf16.mxu0 0
  %3358 = vmatmul.mubr.bf16.gmra.mxu0 %v3164
  %v3359 = vpop.f32.mrf.mxu0
  %v3360 = vadd.f32 0.0, %v3359
  %v3361 = vpop.f32.mrf.mxu0
  %v3362 = vadd.f32 0.0, %v3361
  %v3363 = vpop.f32.mrf.mxu0
  %v3364 = vpop.f32.mrf.mxu0
  %3365 = vdwg.mxu0
  %v3366 = vadd.f32 %v3280, %v3319
  %v3367 = vadd.f32 %v3281, %v3321
  %v3368 = vadd.f32 %v3282, %v3360
  %v3369 = vadd.f32 %v3283, %v3362
  %v3370 = vmul.f32 %v3366, 0.5
  %v3371 = vtanh.pop %v3370
  %v3372 = vmul.f32 %v3371, 0.5
  %v3373 = vadd.f32 %v3372, 0.5
  %v3374 = vmul.f32 %v3367, 0.5
  %v3375 = vtanh.pop %v3374
  %v3376 = vmul.f32 %v3375, 0.5
  %v3377 = vadd.f32 %v3376, 0.5
  %v3378 = vtanh.pop %v3368
  %v3379 = vmul.f32 %v3369, 0.5
  %v3380 = vtanh.pop %v3379
  %v3381 = vmul.f32 %v3380, 0.5
  %v3382 = vadd.f32 %v3381, 0.5
  %v3383 = vmul.f32 %v3377, %v3161
  %v3384 = vmul.f32 %v3373, %v3378
  %v3385 = vadd.f32 %v3383, %v3384
  %v3386 = vtanh.pop %v3385
  %v3387 = vmul.f32 %v3382, %v3386
  %v3388 = vpack.c.bf16 %v3387, %v3387
  %3389 = vst [vmem:[%s1920] sm:$0xf] %v3388
  %v3390 = vld [vmem:[#allocation2 + $0x10] sm:$0xff]
  %v3391 = vld [vmem:[#allocation2 + $0x18] sm:$0xff]
  %v3392 = vunpack.c.l.bf16 %v3390
  %v3393 = vunpack.c.h.bf16 %v3390
  %v3394 = vunpack.c.l.bf16 %v3391
  %v3395 = vunpack.c.h.bf16 %v3391
  %3396 = vmatprep.subr.bf16.mxu0 %v1780
  %3397 = vmatpush1.bf16.msra.mxu0 %v1779
  %3398 = vmatprep.subr.bf16.mxu0 %v1776
  %3399 = vmatpush1.bf16.msra.mxu0 %v1775
  %3400 = vmatprep.subr.bf16.mxu0 %v1772
  %3401 = vmatpush1.bf16.msra.mxu0 %v1771
  %3402 = vmatprep.subr.bf16.mxu0 %v1768
  %3403 = vmatpush1.bf16.msra.mxu0 %v1767
  %3404 = vmatprep.subr.bf16.mxu0 %v1764
  %3405 = vmatpush1.bf16.msra.mxu0 %v1763
  %3406 = vmatprep.subr.bf16.mxu0 %v1760
  %3407 = vmatpush1.bf16.msra.mxu0 %v1759
  %3408 = vmatprep.subr.bf16.mxu0 %v1756
  %3409 = vmatpush1.bf16.msra.mxu0 %v1755
  %3410 = vmatprep.subr.bf16.mxu0 %v1752
  %3411 = vmatpush1.bf16.msra.mxu0 %v1751
  %3412 = vmatprep.subr.bf16.mxu0 0
  %3413 = vmatpush2.bf16.msra.mxu0 0
  %3414 = vmatprep.subr.bf16.mxu0 0
  %3415 = vmatpush2.bf16.msra.mxu0 0
  %3416 = vmatprep.subr.bf16.mxu0 0
  %3417 = vmatpush2.bf16.msra.mxu0 0
  %3418 = vmatprep.subr.bf16.mxu0 0
  %3419 = vmatpush2.bf16.msra.mxu0 0
  %3420 = vmatprep.subr.bf16.mxu0 0
  %3421 = vmatpush2.bf16.msra.mxu0 0
  %3422 = vmatprep.subr.bf16.mxu0 0
  %3423 = vmatpush2.bf16.msra.mxu0 0
  %3424 = vmatprep.subr.bf16.mxu0 0
  %3425 = vmatpush2.bf16.msra.mxu0 0
  %3426 = vmatprep.subr.bf16.mxu0 0
  %3427 = vmatpush2.bf16.msra.mxu0 0
  %3428 = vmatprep.mubr.bf16.mxu0 0
  %3429 = vmatmul.mubr.bf16.gmra.mxu0 %v3276
  %v3430 = vpop.f32.mrf.mxu0
  %v3431 = vadd.f32 0.0, %v3430
  %v3432 = vpop.f32.mrf.mxu0
  %v3433 = vadd.f32 0.0, %v3432
  %v3434 = vpop.f32.mrf.mxu0
  %v3435 = vpop.f32.mrf.mxu0
  %3436 = vdwg.mxu0
  %3437 = vmatprep.subr.bf16.mxu0 %v1782
  %3438 = vmatpush1.bf16.msra.mxu0 %v1781
  %3439 = vmatprep.subr.bf16.mxu0 %v1778
  %3440 = vmatpush1.bf16.msra.mxu0 %v1777
  %3441 = vmatprep.subr.bf16.mxu0 %v1774
  %3442 = vmatpush1.bf16.msra.mxu0 %v1773
  %3443 = vmatprep.subr.bf16.mxu0 %v1770
  %3444 = vmatpush1.bf16.msra.mxu0 %v1769
  %3445 = vmatprep.subr.bf16.mxu0 %v1766
  %3446 = vmatpush1.bf16.msra.mxu0 %v1765
  %3447 = vmatprep.subr.bf16.mxu0 %v1762
  %3448 = vmatpush1.bf16.msra.mxu0 %v1761
  %3449 = vmatprep.subr.bf16.mxu0 %v1758
  %3450 = vmatpush1.bf16.msra.mxu0 %v1757
  %3451 = vmatprep.subr.bf16.mxu0 %v1754
  %3452 = vmatpush1.bf16.msra.mxu0 %v1753
  %3453 = vmatprep.subr.bf16.mxu0 0
  %3454 = vmatpush2.bf16.msra.mxu0 0
  %3455 = vmatprep.subr.bf16.mxu0 0
  %3456 = vmatpush2.bf16.msra.mxu0 0
  %3457 = vmatprep.subr.bf16.mxu0 0
  %3458 = vmatpush2.bf16.msra.mxu0 0
  %3459 = vmatprep.subr.bf16.mxu0 0
  %3460 = vmatpush2.bf16.msra.mxu0 0
  %3461 = vmatprep.subr.bf16.mxu0 0
  %3462 = vmatpush2.bf16.msra.mxu0 0
  %3463 = vmatprep.subr.bf16.mxu0 0
  %3464 = vmatpush2.bf16.msra.mxu0 0
  %3465 = vmatprep.subr.bf16.mxu0 0
  %3466 = vmatpush2.bf16.msra.mxu0 0
  %3467 = vmatprep.subr.bf16.mxu0 0
  %3468 = vmatpush2.bf16.msra.mxu0 0
  %3469 = vmatprep.mubr.bf16.mxu0 0
  %3470 = vmatmul.mubr.bf16.gmra.mxu0 %v3276
  %v3471 = vpop.f32.mrf.mxu0
  %v3472 = vadd.f32 0.0, %v3471
  %v3473 = vpop.f32.mrf.mxu0
  %v3474 = vadd.f32 0.0, %v3473
  %v3475 = vpop.f32.mrf.mxu0
  %v3476 = vpop.f32.mrf.mxu0
  %3477 = vdwg.mxu0
  %v3478 = vadd.f32 %v3392, %v3431
  %v3479 = vadd.f32 %v3393, %v3433
  %v3480 = vadd.f32 %v3394, %v3472
  %v3481 = vadd.f32 %v3395, %v3474
  %v3482 = vmul.f32 %v3478, 0.5
  %v3483 = vtanh.pop %v3482
  %v3484 = vmul.f32 %v3483, 0.5
  %v3485 = vadd.f32 %v3484, 0.5
  %v3486 = vmul.f32 %v3479, 0.5
  %v3487 = vtanh.pop %v3486
  %v3488 = vmul.f32 %v3487, 0.5
  %v3489 = vadd.f32 %v3488, 0.5
  %v3490 = vtanh.pop %v3480
  %v3491 = vmul.f32 %v3481, 0.5
  %v3492 = vtanh.pop %v3491
  %v3493 = vmul.f32 %v3492, 0.5
  %v3494 = vadd.f32 %v3493, 0.5
  %v3495 = vmul.f32 %v3489, %v3273
  %v3496 = vmul.f32 %v3485, %v3490
  %v3497 = vadd.f32 %v3495, %v3496
  %v3498 = vtanh.pop %v3497
  %v3499 = vmul.f32 %v3494, %v3498
  %v3500 = vpack.c.bf16 %v3499, %v3499
  %3501 = vst [vmem:[#allocation4 + $0x4] sm:$0xf] %v3500
  %v3502 = vld [vmem:[#allocation4] sm:$0xff]
  %v3503 = vld [vmem:[#allocation4 + $0x8] sm:$0xff]
  %v3504 = vld [vmem:[#allocation4 + $0x10] sm:$0xff]
  %v3505 = vld [vmem:[#allocation4 + $0x18] sm:$0xff]
  %v3506 = vld [vmem:[#allocation4 + $0x20] sm:$0xff]
  %v3507 = vld [vmem:[#allocation4 + $0x28] sm:$0xff]
  %v3508 = vld [vmem:[#allocation4 + $0x30] sm:$0xff]
  %v3509 = vld [vmem:[#allocation4 + $0x38] sm:$0xff]
  %v3510 = vld [vmem:[%s9] sm:$0xff]
  %v3511 = vld [vmem:[%s9 + $0x8] sm:$0xff]
  %v3512 = vld [vmem:[%s9 + $0x10] sm:$0xff]
  %v3513 = vld [vmem:[%s9 + $0x18] sm:$0xff]
  %v3514 = vld [vmem:[%s9 + $0x20] sm:$0xff]
  %v3515 = vld [vmem:[%s9 + $0x28] sm:$0xff]
  %v3516 = vld [vmem:[%s9 + $0x30] sm:$0xff]
  %v3517 = vld [vmem:[%s9 + $0x38] sm:$0xff]
  %v3518 = vld [vmem:[%s9 + $0x40] sm:$0xff]
  %v3519 = vld [vmem:[%s9 + $0x48] sm:$0xff]
  %v3520 = vld [vmem:[%s9 + $0x50] sm:$0xff]
  %v3521 = vld [vmem:[%s9 + $0x58] sm:$0xff]
  %v3522 = vld [vmem:[%s9 + $0x60] sm:$0xff]
  %v3523 = vld [vmem:[%s9 + $0x68] sm:$0xff]
  %v3524 = vld [vmem:[%s9 + $0x70] sm:$0xff]
  %v3525 = vld [vmem:[%s9 + $0x78] sm:$0xff]
  %v3526 = vld [vmem:[%s9 + $0x80] sm:$0xff]
  %v3527 = vld [vmem:[%s9 + $0x88] sm:$0xff]
  %v3528 = vld [vmem:[%s9 + $0x90] sm:$0xff]
  %v3529 = vld [vmem:[%s9 + $0x98] sm:$0xff]
  %v3530 = vld [vmem:[%s9 + $0xa0] sm:$0xff]
  %v3531 = vld [vmem:[%s9 + $0xa8] sm:$0xff]
  %v3532 = vld [vmem:[%s9 + $0xb0] sm:$0xff]
  %v3533 = vld [vmem:[%s9 + $0xb8] sm:$0xff]
  %v3534 = vld [vmem:[%s9 + $0xc0] sm:$0xff]
  %v3535 = vld [vmem:[%s9 + $0xc8] sm:$0xff]
  %v3536 = vld [vmem:[%s9 + $0xd0] sm:$0xff]
  %v3537 = vld [vmem:[%s9 + $0xd8] sm:$0xff]
  %v3538 = vld [vmem:[%s9 + $0xe0] sm:$0xff]
  %v3539 = vld [vmem:[%s9 + $0xe8] sm:$0xff]
  %v3540 = vld [vmem:[%s9 + $0xf0] sm:$0xff]
  %v3541 = vld [vmem:[%s9 + $0xf8] sm:$0xff]
  %v3542 = vld [vmem:[%s9 + $0x100] sm:$0xff]
  %v3543 = vld [vmem:[%s9 + $0x108] sm:$0xff]
  %v3544 = vld [vmem:[%s9 + $0x110] sm:$0xff]
  %v3545 = vld [vmem:[%s9 + $0x118] sm:$0xff]
  %v3546 = vld [vmem:[%s9 + $0x120] sm:$0xff]
  %v3547 = vld [vmem:[%s9 + $0x128] sm:$0xff]
  %v3548 = vld [vmem:[%s9 + $0x130] sm:$0xff]
  %v3549 = vld [vmem:[%s9 + $0x138] sm:$0xff]
  %v3550 = vld [vmem:[%s9 + $0x140] sm:$0xff]
  %v3551 = vld [vmem:[%s9 + $0x148] sm:$0xff]
  %v3552 = vld [vmem:[%s9 + $0x150] sm:$0xff]
  %v3553 = vld [vmem:[%s9 + $0x158] sm:$0xff]
  %v3554 = vld [vmem:[%s9 + $0x160] sm:$0xff]
  %v3555 = vld [vmem:[%s9 + $0x168] sm:$0xff]
  %v3556 = vld [vmem:[%s9 + $0x170] sm:$0xff]
  %v3557 = vld [vmem:[%s9 + $0x178] sm:$0xff]
  %v3558 = vld [vmem:[%s9 + $0x180] sm:$0xff]
  %v3559 = vld [vmem:[%s9 + $0x188] sm:$0xff]
  %v3560 = vld [vmem:[%s9 + $0x190] sm:$0xff]
  %v3561 = vld [vmem:[%s9 + $0x198] sm:$0xff]
  %v3562 = vld [vmem:[%s9 + $0x1a0] sm:$0xff]
  %v3563 = vld [vmem:[%s9 + $0x1a8] sm:$0xff]
  %v3564 = vld [vmem:[%s9 + $0x1b0] sm:$0xff]
  %v3565 = vld [vmem:[%s9 + $0x1b8] sm:$0xff]
  %v3566 = vld [vmem:[%s9 + $0x1c0] sm:$0xff]
  %v3567 = vld [vmem:[%s9 + $0x1c8] sm:$0xff]
  %v3568 = vld [vmem:[%s9 + $0x1d0] sm:$0xff]
  %v3569 = vld [vmem:[%s9 + $0x1d8] sm:$0xff]
  %v3570 = vld [vmem:[%s9 + $0x1e0] sm:$0xff]
  %v3571 = vld [vmem:[%s9 + $0x1e8] sm:$0xff]
  %v3572 = vld [vmem:[%s9 + $0x1f0] sm:$0xff]
  %v3573 = vld [vmem:[%s9 + $0x1f8] sm:$0xff]
  %v3574 = vld [vmem:[%s10] sm:$0xf]
  %v3576 = vlaneseq
  %v3577 = vshrl.u32 %v3576, 7
  %v3578 = vsub.s32 0, %v3577
  %v3579 = vrot.slane %v3574, %v3578
  %v3580 = vlaneseq
  %v3581 = vshrl.u32 %v3580, 7
  %v3582 = vsub.s32 1, %v3581
  %v3583 = vrot.slane %v3574, %v3582
  %v3584 = vlaneseq
  %v3585 = vshrl.u32 %v3584, 7
  %v3586 = vsub.s32 2, %v3585
  %v3587 = vrot.slane %v3574, %v3586
  %v3588 = vlaneseq
  %v3589 = vshrl.u32 %v3588, 7
  %v3590 = vsub.s32 3, %v3589
  %v3591 = vrot.slane %v3574, %v3590
  %v3604 = vunpack.c.l.b16 %v3502
  %v3605 = vunpack.c.h.b16 %v3502
  %v3606 = vunpack.c.l.b16 %v3503
  %v3607 = vunpack.c.h.b16 %v3503
  %v3608 = vunpack.c.l.b16 %v3504
  %v3609 = vunpack.c.h.b16 %v3504
  %v3610 = vunpack.c.l.b16 %v3505
  %v3611 = vunpack.c.h.b16 %v3505
  %v3612 = vunpack.c.l.b16 %v3506
  %v3613 = vunpack.c.h.b16 %v3506
  %v3614 = vunpack.c.l.b16 %v3507
  %v3615 = vunpack.c.h.b16 %v3507
  %v3616 = vunpack.c.l.b16 %v3508
  %v3617 = vunpack.c.h.b16 %v3508
  %v3618 = vunpack.c.l.b16 %v3509
  %v3619 = vunpack.c.h.b16 %v3509
  %v3620 = vpack.c.b16 %v3606, %v3604
  %v3621 = vpack.c.b16 %v3607, %v3605
  %v3622 = vpack.c.b16 %v3610, %v3608
  %v3623 = vpack.c.b16 %v3611, %v3609
  %v3624 = vpack.c.b16 %v3614, %v3612
  %v3625 = vpack.c.b16 %v3615, %v3613
  %v3626 = vpack.c.b16 %v3618, %v3616
  %v3627 = vpack.c.b16 %v3619, %v3617
  %v3700 = vunpack.c.l.b16 %v3510
  %v3701 = vunpack.c.h.b16 %v3510
  %v3702 = vunpack.c.l.b16 %v3511
  %v3703 = vunpack.c.h.b16 %v3511
  %v3704 = vunpack.c.l.b16 %v3512
  %v3705 = vunpack.c.h.b16 %v3512
  %v3706 = vunpack.c.l.b16 %v3513
  %v3707 = vunpack.c.h.b16 %v3513
  %v3708 = vunpack.c.l.b16 %v3514
  %v3709 = vunpack.c.h.b16 %v3514
  %v3710 = vunpack.c.l.b16 %v3515
  %v3711 = vunpack.c.h.b16 %v3515
  %v3712 = vunpack.c.l.b16 %v3516
  %v3713 = vunpack.c.h.b16 %v3516
  %v3714 = vunpack.c.l.b16 %v3517
  %v3715 = vunpack.c.h.b16 %v3517
  %v3716 = vunpack.c.l.b16 %v3518
  %v3717 = vunpack.c.h.b16 %v3518
  %v3718 = vunpack.c.l.b16 %v3519
  %v3719 = vunpack.c.h.b16 %v3519
  %v3720 = vunpack.c.l.b16 %v3520
  %v3721 = vunpack.c.h.b16 %v3520
  %v3722 = vunpack.c.l.b16 %v3521
  %v3723 = vunpack.c.h.b16 %v3521
  %v3724 = vunpack.c.l.b16 %v3522
  %v3725 = vunpack.c.h.b16 %v3522
  %v3726 = vunpack.c.l.b16 %v3523
  %v3727 = vunpack.c.h.b16 %v3523
  %v3728 = vunpack.c.l.b16 %v3524
  %v3729 = vunpack.c.h.b16 %v3524
  %v3730 = vunpack.c.l.b16 %v3525
  %v3731 = vunpack.c.h.b16 %v3525
  %v3732 = vunpack.c.l.b16 %v3526
  %v3733 = vunpack.c.h.b16 %v3526
  %v3734 = vunpack.c.l.b16 %v3527
  %v3735 = vunpack.c.h.b16 %v3527
  %v3736 = vunpack.c.l.b16 %v3528
  %v3737 = vunpack.c.h.b16 %v3528
  %v3738 = vunpack.c.l.b16 %v3529
  %v3739 = vunpack.c.h.b16 %v3529
  %v3740 = vunpack.c.l.b16 %v3530
  %v3741 = vunpack.c.h.b16 %v3530
  %v3742 = vunpack.c.l.b16 %v3531
  %v3743 = vunpack.c.h.b16 %v3531
  %v3744 = vunpack.c.l.b16 %v3532
  %v3745 = vunpack.c.h.b16 %v3532
  %v3746 = vunpack.c.l.b16 %v3533
  %v3747 = vunpack.c.h.b16 %v3533
  %v3748 = vunpack.c.l.b16 %v3534
  %v3749 = vunpack.c.h.b16 %v3534
  %v3750 = vunpack.c.l.b16 %v3535
  %v3751 = vunpack.c.h.b16 %v3535
  %v3752 = vunpack.c.l.b16 %v3536
  %v3753 = vunpack.c.h.b16 %v3536
  %v3754 = vunpack.c.l.b16 %v3537
  %v3755 = vunpack.c.h.b16 %v3537
  %v3756 = vunpack.c.l.b16 %v3538
  %v3757 = vunpack.c.h.b16 %v3538
  %v3758 = vunpack.c.l.b16 %v3539
  %v3759 = vunpack.c.h.b16 %v3539
  %v3760 = vunpack.c.l.b16 %v3540
  %v3761 = vunpack.c.h.b16 %v3540
  %v3762 = vunpack.c.l.b16 %v3541
  %v3763 = vunpack.c.h.b16 %v3541
  %v3764 = vunpack.c.l.b16 %v3542
  %v3765 = vunpack.c.h.b16 %v3542
  %v3766 = vunpack.c.l.b16 %v3543
  %v3767 = vunpack.c.h.b16 %v3543
  %v3768 = vunpack.c.l.b16 %v3544
  %v3769 = vunpack.c.h.b16 %v3544
  %v3770 = vunpack.c.l.b16 %v3545
  %v3771 = vunpack.c.h.b16 %v3545
  %v3772 = vunpack.c.l.b16 %v3546
  %v3773 = vunpack.c.h.b16 %v3546
  %v3774 = vunpack.c.l.b16 %v3547
  %v3775 = vunpack.c.h.b16 %v3547
  %v3776 = vunpack.c.l.b16 %v3548
  %v3777 = vunpack.c.h.b16 %v3548
  %v3778 = vunpack.c.l.b16 %v3549
  %v3779 = vunpack.c.h.b16 %v3549
  %v3780 = vunpack.c.l.b16 %v3550
  %v3781 = vunpack.c.h.b16 %v3550
  %v3782 = vunpack.c.l.b16 %v3551
  %v3783 = vunpack.c.h.b16 %v3551
  %v3784 = vunpack.c.l.b16 %v3552
  %v3785 = vunpack.c.h.b16 %v3552
  %v3786 = vunpack.c.l.b16 %v3553
  %v3787 = vunpack.c.h.b16 %v3553
  %v3788 = vunpack.c.l.b16 %v3554
  %v3789 = vunpack.c.h.b16 %v3554
  %v3790 = vunpack.c.l.b16 %v3555
  %v3791 = vunpack.c.h.b16 %v3555
  %v3792 = vunpack.c.l.b16 %v3556
  %v3793 = vunpack.c.h.b16 %v3556
  %v3794 = vunpack.c.l.b16 %v3557
  %v3795 = vunpack.c.h.b16 %v3557
  %v3796 = vunpack.c.l.b16 %v3558
  %v3797 = vunpack.c.h.b16 %v3558
  %v3798 = vunpack.c.l.b16 %v3559
  %v3799 = vunpack.c.h.b16 %v3559
  %v3800 = vunpack.c.l.b16 %v3560
  %v3801 = vunpack.c.h.b16 %v3560
  %v3802 = vunpack.c.l.b16 %v3561
  %v3803 = vunpack.c.h.b16 %v3561
  %v3804 = vunpack.c.l.b16 %v3562
  %v3805 = vunpack.c.h.b16 %v3562
  %v3806 = vunpack.c.l.b16 %v3563
  %v3807 = vunpack.c.h.b16 %v3563
  %v3808 = vunpack.c.l.b16 %v3564
  %v3809 = vunpack.c.h.b16 %v3564
  %v3810 = vunpack.c.l.b16 %v3565
  %v3811 = vunpack.c.h.b16 %v3565
  %v3812 = vunpack.c.l.b16 %v3566
  %v3813 = vunpack.c.h.b16 %v3566
  %v3814 = vunpack.c.l.b16 %v3567
  %v3815 = vunpack.c.h.b16 %v3567
  %v3816 = vunpack.c.l.b16 %v3568
  %v3817 = vunpack.c.h.b16 %v3568
  %v3818 = vunpack.c.l.b16 %v3569
  %v3819 = vunpack.c.h.b16 %v3569
  %v3820 = vunpack.c.l.b16 %v3570
  %v3821 = vunpack.c.h.b16 %v3570
  %v3822 = vunpack.c.l.b16 %v3571
  %v3823 = vunpack.c.h.b16 %v3571
  %v3824 = vunpack.c.l.b16 %v3572
  %v3825 = vunpack.c.h.b16 %v3572
  %v3826 = vunpack.c.l.b16 %v3573
  %v3827 = vunpack.c.h.b16 %v3573
  %v3828 = vpack.c.b16 %v3704, %v3700
  %v3829 = vpack.c.b16 %v3705, %v3701
  %v3830 = vpack.c.b16 %v3706, %v3702
  %v3831 = vpack.c.b16 %v3707, %v3703
  %v3832 = vpack.c.b16 %v3712, %v3708
  %v3833 = vpack.c.b16 %v3713, %v3709
  %v3834 = vpack.c.b16 %v3714, %v3710
  %v3835 = vpack.c.b16 %v3715, %v3711
  %v3836 = vpack.c.b16 %v3720, %v3716
  %v3837 = vpack.c.b16 %v3721, %v3717
  %v3838 = vpack.c.b16 %v3722, %v3718
  %v3839 = vpack.c.b16 %v3723, %v3719
  %v3840 = vpack.c.b16 %v3728, %v3724
  %v3841 = vpack.c.b16 %v3729, %v3725
  %v3842 = vpack.c.b16 %v3730, %v3726
  %v3843 = vpack.c.b16 %v3731, %v3727
  %v3844 = vpack.c.b16 %v3736, %v3732
  %v3845 = vpack.c.b16 %v3737, %v3733
  %v3846 = vpack.c.b16 %v3738, %v3734
  %v3847 = vpack.c.b16 %v3739, %v3735
  %v3848 = vpack.c.b16 %v3744, %v3740
  %v3849 = vpack.c.b16 %v3745, %v3741
  %v3850 = vpack.c.b16 %v3746, %v3742
  %v3851 = vpack.c.b16 %v3747, %v3743
  %v3852 = vpack.c.b16 %v3752, %v3748
  %v3853 = vpack.c.b16 %v3753, %v3749
  %v3854 = vpack.c.b16 %v3754, %v3750
  %v3855 = vpack.c.b16 %v3755, %v3751
  %v3856 = vpack.c.b16 %v3760, %v3756
  %v3857 = vpack.c.b16 %v3761, %v3757
  %v3858 = vpack.c.b16 %v3762, %v3758
  %v3859 = vpack.c.b16 %v3763, %v3759
  %v3860 = vpack.c.b16 %v3768, %v3764
  %v3861 = vpack.c.b16 %v3769, %v3765
  %v3862 = vpack.c.b16 %v3770, %v3766
  %v3863 = vpack.c.b16 %v3771, %v3767
  %v3864 = vpack.c.b16 %v3776, %v3772
  %v3865 = vpack.c.b16 %v3777, %v3773
  %v3866 = vpack.c.b16 %v3778, %v3774
  %v3867 = vpack.c.b16 %v3779, %v3775
  %v3868 = vpack.c.b16 %v3784, %v3780
  %v3869 = vpack.c.b16 %v3785, %v3781
  %v3870 = vpack.c.b16 %v3786, %v3782
  %v3871 = vpack.c.b16 %v3787, %v3783
  %v3872 = vpack.c.b16 %v3792, %v3788
  %v3873 = vpack.c.b16 %v3793, %v3789
  %v3874 = vpack.c.b16 %v3794, %v3790
  %v3875 = vpack.c.b16 %v3795, %v3791
  %v3876 = vpack.c.b16 %v3800, %v3796
  %v3877 = vpack.c.b16 %v3801, %v3797
  %v3878 = vpack.c.b16 %v3802, %v3798
  %v3879 = vpack.c.b16 %v3803, %v3799
  %v3880 = vpack.c.b16 %v3808, %v3804
  %v3881 = vpack.c.b16 %v3809, %v3805
  %v3882 = vpack.c.b16 %v3810, %v3806
  %v3883 = vpack.c.b16 %v3811, %v3807
  %v3884 = vpack.c.b16 %v3816, %v3812
  %v3885 = vpack.c.b16 %v3817, %v3813
  %v3886 = vpack.c.b16 %v3818, %v3814
  %v3887 = vpack.c.b16 %v3819, %v3815
  %v3888 = vpack.c.b16 %v3824, %v3820
  %v3889 = vpack.c.b16 %v3825, %v3821
  %v3890 = vpack.c.b16 %v3826, %v3822
  %v3891 = vpack.c.b16 %v3827, %v3823
  %3956 = vmatprep.subr.bf16.mxu0 %v3857
  %3957 = vmatpush1.bf16.msra.mxu0 %v3856
  %3958 = vmatprep.subr.bf16.mxu0 %v3853
  %3959 = vmatpush1.bf16.msra.mxu0 %v3852
  %3960 = vmatprep.subr.bf16.mxu0 %v3849
  %3961 = vmatpush1.bf16.msra.mxu0 %v3848
  %3962 = vmatprep.subr.bf16.mxu0 %v3845
  %3963 = vmatpush1.bf16.msra.mxu0 %v3844
  %3964 = vmatprep.subr.bf16.mxu0 %v3841
  %3965 = vmatpush1.bf16.msra.mxu0 %v3840
  %3966 = vmatprep.subr.bf16.mxu0 %v3837
  %3967 = vmatpush1.bf16.msra.mxu0 %v3836
  %3968 = vmatprep.subr.bf16.mxu0 %v3833
  %3969 = vmatpush1.bf16.msra.mxu0 %v3832
  %3970 = vmatprep.subr.bf16.mxu0 %v3829
  %3971 = vmatpush1.bf16.msra.mxu0 %v3828
  %3972 = vmatprep.subr.bf16.mxu0 %v3889
  %3973 = vmatpush2.bf16.msra.mxu0 %v3888
  %3974 = vmatprep.subr.bf16.mxu0 %v3885
  %3975 = vmatpush2.bf16.msra.mxu0 %v3884
  %3976 = vmatprep.subr.bf16.mxu0 %v3881
  %3977 = vmatpush2.bf16.msra.mxu0 %v3880
  %3978 = vmatprep.subr.bf16.mxu0 %v3877
  %3979 = vmatpush2.bf16.msra.mxu0 %v3876
  %3980 = vmatprep.subr.bf16.mxu0 %v3873
  %3981 = vmatpush2.bf16.msra.mxu0 %v3872
  %3982 = vmatprep.subr.bf16.mxu0 %v3869
  %3983 = vmatpush2.bf16.msra.mxu0 %v3868
  %3984 = vmatprep.subr.bf16.mxu0 %v3865
  %3985 = vmatpush2.bf16.msra.mxu0 %v3864
  %3986 = vmatprep.subr.bf16.mxu0 %v3861
  %3987 = vmatpush2.bf16.msra.mxu0 %v3860
  %3988 = vmatprep.mubr.bf16.mxu0 %v3621
  %3989 = vmatmul.mubr.bf16.gmra.mxu0 %v3620
  %v3990 = vpop.f32.mrf.mxu0
  %v3991 = vadd.f32 %v3579, %v3990
  %v3992 = vpop.f32.mrf.mxu0
  %v3993 = vadd.f32 %v3583, %v3992
  %v3994 = vpop.f32.mrf.mxu0
  %v3995 = vadd.f32 %v3579, %v3994
  %v3996 = vpop.f32.mrf.mxu0
  %v3997 = vadd.f32 %v3583, %v3996
  %3998 = vmatprep.mubr.bf16.mxu0 %v3623
  %3999 = vmatmul.mubr.bf16.gmra.mxu0 %v3622
  %v4000 = vpop.f32.mrf.mxu0
  %v4001 = vadd.f32 %v3579, %v4000
  %v4002 = vpop.f32.mrf.mxu0
  %v4003 = vadd.f32 %v3583, %v4002
  %v4004 = vpop.f32.mrf.mxu0
  %v4005 = vadd.f32 %v3579, %v4004
  %v4006 = vpop.f32.mrf.mxu0
  %v4007 = vadd.f32 %v3583, %v4006
  %4008 = vmatprep.mubr.bf16.mxu0 %v3625
  %4009 = vmatmul.mubr.bf16.gmra.mxu0 %v3624
  %v4010 = vpop.f32.mrf.mxu0
  %v4011 = vadd.f32 %v3579, %v4010
  %v4012 = vpop.f32.mrf.mxu0
  %v4013 = vadd.f32 %v3583, %v4012
  %v4014 = vpop.f32.mrf.mxu0
  %v4015 = vadd.f32 %v3579, %v4014
  %v4016 = vpop.f32.mrf.mxu0
  %v4017 = vadd.f32 %v3583, %v4016
  %4018 = vmatprep.mubr.bf16.mxu0 %v3627
  %4019 = vmatmul.mubr.bf16.gmra.mxu0 %v3626
  %v4020 = vpop.f32.mrf.mxu0
  %v4021 = vadd.f32 %v3579, %v4020
  %v4022 = vpop.f32.mrf.mxu0
  %v4023 = vadd.f32 %v3583, %v4022
  %v4024 = vpop.f32.mrf.mxu0
  %v4025 = vadd.f32 %v3579, %v4024
  %v4026 = vpop.f32.mrf.mxu0
  %v4027 = vadd.f32 %v3583, %v4026
  %4028 = vdwg.mxu0
  %4029 = vmatprep.subr.bf16.mxu0 %v3859
  %4030 = vmatpush1.bf16.msra.mxu0 %v3858
  %4031 = vmatprep.subr.bf16.mxu0 %v3855
  %4032 = vmatpush1.bf16.msra.mxu0 %v3854
  %4033 = vmatprep.subr.bf16.mxu0 %v3851
  %4034 = vmatpush1.bf16.msra.mxu0 %v3850
  %4035 = vmatprep.subr.bf16.mxu0 %v3847
  %4036 = vmatpush1.bf16.msra.mxu0 %v3846
  %4037 = vmatprep.subr.bf16.mxu0 %v3843
  %4038 = vmatpush1.bf16.msra.mxu0 %v3842
  %4039 = vmatprep.subr.bf16.mxu0 %v3839
  %4040 = vmatpush1.bf16.msra.mxu0 %v3838
  %4041 = vmatprep.subr.bf16.mxu0 %v3835
  %4042 = vmatpush1.bf16.msra.mxu0 %v3834
  %4043 = vmatprep.subr.bf16.mxu0 %v3831
  %4044 = vmatpush1.bf16.msra.mxu0 %v3830
  %4045 = vmatprep.subr.bf16.mxu0 %v3891
  %4046 = vmatpush2.bf16.msra.mxu0 %v3890
  %4047 = vmatprep.subr.bf16.mxu0 %v3887
  %4048 = vmatpush2.bf16.msra.mxu0 %v3886
  %4049 = vmatprep.subr.bf16.mxu0 %v3883
  %4050 = vmatpush2.bf16.msra.mxu0 %v3882
  %4051 = vmatprep.subr.bf16.mxu0 %v3879
  %4052 = vmatpush2.bf16.msra.mxu0 %v3878
  %4053 = vmatprep.subr.bf16.mxu0 %v3875
  %4054 = vmatpush2.bf16.msra.mxu0 %v3874
  %4055 = vmatprep.subr.bf16.mxu0 %v3871
  %4056 = vmatpush2.bf16.msra.mxu0 %v3870
  %4057 = vmatprep.subr.bf16.mxu0 %v3867
  %4058 = vmatpush2.bf16.msra.mxu0 %v3866
  %4059 = vmatprep.subr.bf16.mxu0 %v3863
  %4060 = vmatpush2.bf16.msra.mxu0 %v3862
  %4061 = vmatprep.mubr.bf16.mxu0 %v3621
  %4062 = vmatmul.mubr.bf16.gmra.mxu0 %v3620
  %v4063 = vpop.f32.mrf.mxu0
  %v4064 = vadd.f32 %v3587, %v4063
  %v4065 = vpop.f32.mrf.mxu0
  %v4066 = vadd.f32 %v3591, %v4065
  %v4067 = vpop.f32.mrf.mxu0
  %v4068 = vadd.f32 %v3587, %v4067
  %v4069 = vpop.f32.mrf.mxu0
  %v4070 = vadd.f32 %v3591, %v4069
  %4071 = vmatprep.mubr.bf16.mxu0 %v3623
  %4072 = vmatmul.mubr.bf16.gmra.mxu0 %v3622
  %v4073 = vpop.f32.mrf.mxu0
  %v4074 = vadd.f32 %v3587, %v4073
  %v4075 = vpop.f32.mrf.mxu0
  %v4076 = vadd.f32 %v3591, %v4075
  %v4077 = vpop.f32.mrf.mxu0
  %v4078 = vadd.f32 %v3587, %v4077
  %v4079 = vpop.f32.mrf.mxu0
  %v4080 = vadd.f32 %v3591, %v4079
  %4081 = vmatprep.mubr.bf16.mxu0 %v3625
  %4082 = vmatmul.mubr.bf16.gmra.mxu0 %v3624
  %v4083 = vpop.f32.mrf.mxu0
  %v4084 = vadd.f32 %v3587, %v4083
  %v4085 = vpop.f32.mrf.mxu0
  %v4086 = vadd.f32 %v3591, %v4085
  %v4087 = vpop.f32.mrf.mxu0
  %v4088 = vadd.f32 %v3587, %v4087
  %v4089 = vpop.f32.mrf.mxu0
  %v4090 = vadd.f32 %v3591, %v4089
  %4091 = vmatprep.mubr.bf16.mxu0 %v3627
  %4092 = vmatmul.mubr.bf16.gmra.mxu0 %v3626
  %v4093 = vpop.f32.mrf.mxu0
  %v4094 = vadd.f32 %v3587, %v4093
  %v4095 = vpop.f32.mrf.mxu0
  %v4096 = vadd.f32 %v3591, %v4095
  %v4097 = vpop.f32.mrf.mxu0
  %v4098 = vadd.f32 %v3587, %v4097
  %v4099 = vpop.f32.mrf.mxu0
  %v4100 = vadd.f32 %v3591, %v4099
  %4101 = vdwg.mxu0
  %v4102 = vpack.c.bf16 %v3991, %v3991
  %v4103 = vpack.c.bf16 %v3993, %v3993
  %v4104 = vpack.c.bf16 %v4064, %v4064
  %v4105 = vpack.c.bf16 %v4066, %v4066
  %v4106 = vpack.c.bf16 %v3995, %v3995
  %v4107 = vpack.c.bf16 %v3997, %v3997
  %v4108 = vpack.c.bf16 %v4068, %v4068
  %v4109 = vpack.c.bf16 %v4070, %v4070
  %v4110 = vpack.c.bf16 %v4001, %v4001
  %v4111 = vpack.c.bf16 %v4003, %v4003
  %v4112 = vpack.c.bf16 %v4074, %v4074
  %v4113 = vpack.c.bf16 %v4076, %v4076
  %v4114 = vpack.c.bf16 %v4005, %v4005
  %v4115 = vpack.c.bf16 %v4007, %v4007
  %v4116 = vpack.c.bf16 %v4078, %v4078
  %v4117 = vpack.c.bf16 %v4080, %v4080
  %v4118 = vpack.c.bf16 %v4011, %v4011
  %v4119 = vpack.c.bf16 %v4013, %v4013
  %v4120 = vpack.c.bf16 %v4084, %v4084
  %v4121 = vpack.c.bf16 %v4086, %v4086
  %v4122 = vpack.c.bf16 %v4015, %v4015
  %v4123 = vpack.c.bf16 %v4017, %v4017
  %v4124 = vpack.c.bf16 %v4088, %v4088
  %v4125 = vpack.c.bf16 %v4090, %v4090
  %v4126 = vpack.c.bf16 %v4021, %v4021
  %v4127 = vpack.c.bf16 %v4023, %v4023
  %v4128 = vpack.c.bf16 %v4094, %v4094
  %v4129 = vpack.c.bf16 %v4096, %v4096
  %v4130 = vpack.c.bf16 %v4025, %v4025
  %v4131 = vpack.c.bf16 %v4027, %v4027
  %v4132 = vpack.c.bf16 %v4098, %v4098
  %v4133 = vpack.c.bf16 %v4100, %v4100
  %v4166 = vunpack.c.l.b16 %v4102
  %v4167 = vunpack.c.l.b16 %v4103
  %v4168 = vunpack.c.l.b16 %v4104
  %v4169 = vunpack.c.l.b16 %v4105
  %v4170 = vunpack.c.l.b16 %v4106
  %v4171 = vunpack.c.l.b16 %v4107
  %v4172 = vunpack.c.l.b16 %v4108
  %v4173 = vunpack.c.l.b16 %v4109
  %v4174 = vunpack.c.l.b16 %v4110
  %v4175 = vunpack.c.l.b16 %v4111
  %v4176 = vunpack.c.l.b16 %v4112
  %v4177 = vunpack.c.l.b16 %v4113
  %v4178 = vunpack.c.l.b16 %v4114
  %v4179 = vunpack.c.l.b16 %v4115
  %v4180 = vunpack.c.l.b16 %v4116
  %v4181 = vunpack.c.l.b16 %v4117
  %v4182 = vunpack.c.l.b16 %v4118
  %v4183 = vunpack.c.l.b16 %v4119
  %v4184 = vunpack.c.l.b16 %v4120
  %v4185 = vunpack.c.l.b16 %v4121
  %v4186 = vunpack.c.l.b16 %v4122
  %v4187 = vunpack.c.l.b16 %v4123
  %v4188 = vunpack.c.l.b16 %v4124
  %v4189 = vunpack.c.l.b16 %v4125
  %v4190 = vunpack.c.l.b16 %v4126
  %v4191 = vunpack.c.l.b16 %v4127
  %v4192 = vunpack.c.l.b16 %v4128
  %v4193 = vunpack.c.l.b16 %v4129
  %v4194 = vunpack.c.l.b16 %v4130
  %v4195 = vunpack.c.l.b16 %v4131
  %v4196 = vunpack.c.l.b16 %v4132
  %v4197 = vunpack.c.l.b16 %v4133
  %v4198 = vpack.c.b16 %v4167, %v4166
  %v4199 = vpack.c.b16 %v4169, %v4168
  %v4200 = vpack.c.b16 %v4171, %v4170
  %v4201 = vpack.c.b16 %v4173, %v4172
  %v4202 = vpack.c.b16 %v4175, %v4174
  %v4203 = vpack.c.b16 %v4177, %v4176
  %v4204 = vpack.c.b16 %v4179, %v4178
  %v4205 = vpack.c.b16 %v4181, %v4180
  %v4206 = vpack.c.b16 %v4183, %v4182
  %v4207 = vpack.c.b16 %v4185, %v4184
  %v4208 = vpack.c.b16 %v4187, %v4186
  %v4209 = vpack.c.b16 %v4189, %v4188
  %v4210 = vpack.c.b16 %v4191, %v4190
  %v4211 = vpack.c.b16 %v4193, %v4192
  %v4212 = vpack.c.b16 %v4195, %v4194
  %v4213 = vpack.c.b16 %v4197, %v4196
  %4230 = vst [vmem:[#allocation3] sm:$0xff] %v4198
  %4231 = vst [vmem:[#allocation3 + $0x8] sm:$0xff] %v4199
  %4232 = vst [vmem:[#allocation3 + $0x10] sm:$0xff] %v4200
  %4233 = vst [vmem:[#allocation3 + $0x18] sm:$0xff] %v4201
  %4234 = vst [vmem:[#allocation3 + $0x20] sm:$0xff] %v4202
  %4235 = vst [vmem:[#allocation3 + $0x28] sm:$0xff] %v4203
  %4236 = vst [vmem:[#allocation3 + $0x30] sm:$0xff] %v4204
  %4237 = vst [vmem:[#allocation3 + $0x38] sm:$0xff] %v4205
  %4238 = vst [vmem:[#allocation3 + $0x40] sm:$0xff] %v4206
  %4239 = vst [vmem:[#allocation3 + $0x48] sm:$0xff] %v4207
  %4240 = vst [vmem:[#allocation3 + $0x50] sm:$0xff] %v4208
  %4241 = vst [vmem:[#allocation3 + $0x58] sm:$0xff] %v4209
  %4242 = vst [vmem:[#allocation3 + $0x60] sm:$0xff] %v4210
  %4243 = vst [vmem:[#allocation3 + $0x68] sm:$0xff] %v4211
  %4244 = vst [vmem:[#allocation3 + $0x70] sm:$0xff] %v4212
  %4245 = vst [vmem:[#allocation3 + $0x78] sm:$0xff] %v4213
  %v4246 = vld [vmem:[%s13] sm:$0xff]
  %v4247 = vld [vmem:[%s13 + $0x8] sm:$0xff]
  %v4248 = vld [vmem:[%s13 + $0x10] sm:$0xff]
  %v4249 = vld [vmem:[%s13 + $0x18] sm:$0xff]
  %v4250 = vld [vmem:[%s13 + $0x20] sm:$0xff]
  %v4251 = vld [vmem:[%s13 + $0x28] sm:$0xff]
  %v4252 = vld [vmem:[%s13 + $0x30] sm:$0xff]
  %v4253 = vld [vmem:[%s13 + $0x38] sm:$0xff]
  %v4254 = vld [vmem:[%s13 + $0x40] sm:$0xff]
  %v4255 = vld [vmem:[%s13 + $0x48] sm:$0xff]
  %v4256 = vld [vmem:[%s13 + $0x50] sm:$0xff]
  %v4257 = vld [vmem:[%s13 + $0x58] sm:$0xff]
  %v4258 = vld [vmem:[%s13 + $0x60] sm:$0xff]
  %v4259 = vld [vmem:[%s13 + $0x68] sm:$0xff]
  %v4260 = vld [vmem:[%s13 + $0x70] sm:$0xff]
  %v4261 = vld [vmem:[%s13 + $0x78] sm:$0xff]
  %v4262 = vld [vmem:[%s13 + $0x80] sm:$0xff]
  %v4263 = vld [vmem:[%s13 + $0x88] sm:$0xff]
  %v4264 = vld [vmem:[%s13 + $0x90] sm:$0xff]
  %v4265 = vld [vmem:[%s13 + $0x98] sm:$0xff]
  %v4266 = vld [vmem:[%s13 + $0xa0] sm:$0xff]
  %v4267 = vld [vmem:[%s13 + $0xa8] sm:$0xff]
  %v4268 = vld [vmem:[%s13 + $0xb0] sm:$0xff]
  %v4269 = vld [vmem:[%s13 + $0xb8] sm:$0xff]
  %v4270 = vld [vmem:[%s13 + $0xc0] sm:$0xff]
  %v4271 = vld [vmem:[%s13 + $0xc8] sm:$0xff]
  %v4272 = vld [vmem:[%s13 + $0xd0] sm:$0xff]
  %v4273 = vld [vmem:[%s13 + $0xd8] sm:$0xff]
  %v4274 = vld [vmem:[%s13 + $0xe0] sm:$0xff]
  %v4275 = vld [vmem:[%s13 + $0xe8] sm:$0xff]
  %v4276 = vld [vmem:[%s13 + $0xf0] sm:$0xff]
  %v4277 = vld [vmem:[%s13 + $0xf8] sm:$0xff]
  %v4278 = vld [vmem:[#allocation3] sm:$0xff]
  %v4279 = vld [vmem:[#allocation3 + $0x8] sm:$0xff]
  %v4280 = vunpack.c.l.bf16 %v4278
  %v4281 = vunpack.c.h.bf16 %v4278
  %v4282 = vunpack.c.l.bf16 %v4279
  %v4283 = vunpack.c.h.bf16 %v4279
  %v4316 = vunpack.c.l.b16 %v4246
  %v4317 = vunpack.c.h.b16 %v4246
  %v4318 = vunpack.c.l.b16 %v4247
  %v4319 = vunpack.c.h.b16 %v4247
  %v4320 = vunpack.c.l.b16 %v4248
  %v4321 = vunpack.c.h.b16 %v4248
  %v4322 = vunpack.c.l.b16 %v4249
  %v4323 = vunpack.c.h.b16 %v4249
  %v4324 = vunpack.c.l.b16 %v4250
  %v4325 = vunpack.c.h.b16 %v4250
  %v4326 = vunpack.c.l.b16 %v4251
  %v4327 = vunpack.c.h.b16 %v4251
  %v4328 = vunpack.c.l.b16 %v4252
  %v4329 = vunpack.c.h.b16 %v4252
  %v4330 = vunpack.c.l.b16 %v4253
  %v4331 = vunpack.c.h.b16 %v4253
  %v4332 = vunpack.c.l.b16 %v4254
  %v4333 = vunpack.c.h.b16 %v4254
  %v4334 = vunpack.c.l.b16 %v4255
  %v4335 = vunpack.c.h.b16 %v4255
  %v4336 = vunpack.c.l.b16 %v4256
  %v4337 = vunpack.c.h.b16 %v4256
  %v4338 = vunpack.c.l.b16 %v4257
  %v4339 = vunpack.c.h.b16 %v4257
  %v4340 = vunpack.c.l.b16 %v4258
  %v4341 = vunpack.c.h.b16 %v4258
  %v4342 = vunpack.c.l.b16 %v4259
  %v4343 = vunpack.c.h.b16 %v4259
  %v4344 = vunpack.c.l.b16 %v4260
  %v4345 = vunpack.c.h.b16 %v4260
  %v4346 = vunpack.c.l.b16 %v4261
  %v4347 = vunpack.c.h.b16 %v4261
  %v4348 = vunpack.c.l.b16 %v4262
  %v4349 = vunpack.c.h.b16 %v4262
  %v4350 = vunpack.c.l.b16 %v4263
  %v4351 = vunpack.c.h.b16 %v4263
  %v4352 = vunpack.c.l.b16 %v4264
  %v4353 = vunpack.c.h.b16 %v4264
  %v4354 = vunpack.c.l.b16 %v4265
  %v4355 = vunpack.c.h.b16 %v4265
  %v4356 = vunpack.c.l.b16 %v4266
  %v4357 = vunpack.c.h.b16 %v4266
  %v4358 = vunpack.c.l.b16 %v4267
  %v4359 = vunpack.c.h.b16 %v4267
  %v4360 = vunpack.c.l.b16 %v4268
  %v4361 = vunpack.c.h.b16 %v4268
  %v4362 = vunpack.c.l.b16 %v4269
  %v4363 = vunpack.c.h.b16 %v4269
  %v4364 = vunpack.c.l.b16 %v4270
  %v4365 = vunpack.c.h.b16 %v4270
  %v4366 = vunpack.c.l.b16 %v4271
  %v4367 = vunpack.c.h.b16 %v4271
  %v4368 = vunpack.c.l.b16 %v4272
  %v4369 = vunpack.c.h.b16 %v4272
  %v4370 = vunpack.c.l.b16 %v4273
  %v4371 = vunpack.c.h.b16 %v4273
  %v4372 = vunpack.c.l.b16 %v4274
  %v4373 = vunpack.c.h.b16 %v4274
  %v4374 = vunpack.c.l.b16 %v4275
  %v4375 = vunpack.c.h.b16 %v4275
  %v4376 = vunpack.c.l.b16 %v4276
  %v4377 = vunpack.c.h.b16 %v4276
  %v4378 = vunpack.c.l.b16 %v4277
  %v4379 = vunpack.c.h.b16 %v4277
  %v4380 = vpack.c.b16 %v4320, %v4316
  %v4381 = vpack.c.b16 %v4321, %v4317
  %v4382 = vpack.c.b16 %v4322, %v4318
  %v4383 = vpack.c.b16 %v4323, %v4319
  %v4384 = vpack.c.b16 %v4328, %v4324
  %v4385 = vpack.c.b16 %v4329, %v4325
  %v4386 = vpack.c.b16 %v4330, %v4326
  %v4387 = vpack.c.b16 %v4331, %v4327
  %v4388 = vpack.c.b16 %v4336, %v4332
  %v4389 = vpack.c.b16 %v4337, %v4333
  %v4390 = vpack.c.b16 %v4338, %v4334
  %v4391 = vpack.c.b16 %v4339, %v4335
  %v4392 = vpack.c.b16 %v4344, %v4340
  %v4393 = vpack.c.b16 %v4345, %v4341
  %v4394 = vpack.c.b16 %v4346, %v4342
  %v4395 = vpack.c.b16 %v4347, %v4343
  %v4396 = vpack.c.b16 %v4352, %v4348
  %v4397 = vpack.c.b16 %v4353, %v4349
  %v4398 = vpack.c.b16 %v4354, %v4350
  %v4399 = vpack.c.b16 %v4355, %v4351
  %v4400 = vpack.c.b16 %v4360, %v4356
  %v4401 = vpack.c.b16 %v4361, %v4357
  %v4402 = vpack.c.b16 %v4362, %v4358
  %v4403 = vpack.c.b16 %v4363, %v4359
  %v4404 = vpack.c.b16 %v4368, %v4364
  %v4405 = vpack.c.b16 %v4369, %v4365
  %v4406 = vpack.c.b16 %v4370, %v4366
  %v4407 = vpack.c.b16 %v4371, %v4367
  %v4408 = vpack.c.b16 %v4376, %v4372
  %v4409 = vpack.c.b16 %v4377, %v4373
  %v4410 = vpack.c.b16 %v4378, %v4374
  %v4411 = vpack.c.b16 %v4379, %v4375
  %4444 = vmatprep.subr.bf16.mxu0 %v4409
  %4445 = vmatpush1.bf16.msra.mxu0 %v4408
  %4446 = vmatprep.subr.bf16.mxu0 %v4405
  %4447 = vmatpush1.bf16.msra.mxu0 %v4404
  %4448 = vmatprep.subr.bf16.mxu0 %v4401
  %4449 = vmatpush1.bf16.msra.mxu0 %v4400
  %4450 = vmatprep.subr.bf16.mxu0 %v4397
  %4451 = vmatpush1.bf16.msra.mxu0 %v4396
  %4452 = vmatprep.subr.bf16.mxu0 %v4393
  %4453 = vmatpush1.bf16.msra.mxu0 %v4392
  %4454 = vmatprep.subr.bf16.mxu0 %v4389
  %4455 = vmatpush1.bf16.msra.mxu0 %v4388
  %4456 = vmatprep.subr.bf16.mxu0 %v4385
  %4457 = vmatpush1.bf16.msra.mxu0 %v4384
  %4458 = vmatprep.subr.bf16.mxu0 %v4381
  %4459 = vmatpush1.bf16.msra.mxu0 %v4380
  %4460 = vmatprep.subr.bf16.mxu0 0
  %4461 = vmatpush2.bf16.msra.mxu0 0
  %4462 = vmatprep.subr.bf16.mxu0 0
  %4463 = vmatpush2.bf16.msra.mxu0 0
  %4464 = vmatprep.subr.bf16.mxu0 0
  %4465 = vmatpush2.bf16.msra.mxu0 0
  %4466 = vmatprep.subr.bf16.mxu0 0
  %4467 = vmatpush2.bf16.msra.mxu0 0
  %4468 = vmatprep.subr.bf16.mxu0 0
  %4469 = vmatpush2.bf16.msra.mxu0 0
  %4470 = vmatprep.subr.bf16.mxu0 0
  %4471 = vmatpush2.bf16.msra.mxu0 0
  %4472 = vmatprep.subr.bf16.mxu0 0
  %4473 = vmatpush2.bf16.msra.mxu0 0
  %4474 = vmatprep.subr.bf16.mxu0 0
  %4475 = vmatpush2.bf16.msra.mxu0 0
  %4476 = vmatprep.mubr.bf16.mxu0 0
  %4477 = vmatmul.mubr.bf16.gmra.mxu0 0
  %v4478 = vpop.f32.mrf.mxu0
  %v4479 = vadd.f32 0.0, %v4478
  %v4480 = vpop.f32.mrf.mxu0
  %v4481 = vadd.f32 0.0, %v4480
  %v4482 = vpop.f32.mrf.mxu0
  %v4483 = vpop.f32.mrf.mxu0
  %4484 = vdwg.mxu0
  %4485 = vmatprep.subr.bf16.mxu0 %v4411
  %4486 = vmatpush1.bf16.msra.mxu0 %v4410
  %4487 = vmatprep.subr.bf16.mxu0 %v4407
  %4488 = vmatpush1.bf16.msra.mxu0 %v4406
  %4489 = vmatprep.subr.bf16.mxu0 %v4403
  %4490 = vmatpush1.bf16.msra.mxu0 %v4402
  %4491 = vmatprep.subr.bf16.mxu0 %v4399
  %4492 = vmatpush1.bf16.msra.mxu0 %v4398
  %4493 = vmatprep.subr.bf16.mxu0 %v4395
  %4494 = vmatpush1.bf16.msra.mxu0 %v4394
  %4495 = vmatprep.subr.bf16.mxu0 %v4391
  %4496 = vmatpush1.bf16.msra.mxu0 %v4390
  %4497 = vmatprep.subr.bf16.mxu0 %v4387
  %4498 = vmatpush1.bf16.msra.mxu0 %v4386
  %4499 = vmatprep.subr.bf16.mxu0 %v4383
  %4500 = vmatpush1.bf16.msra.mxu0 %v4382
  %4501 = vmatprep.subr.bf16.mxu0 0
  %4502 = vmatpush2.bf16.msra.mxu0 0
  %4503 = vmatprep.subr.bf16.mxu0 0
  %4504 = vmatpush2.bf16.msra.mxu0 0
  %4505 = vmatprep.subr.bf16.mxu0 0
  %4506 = vmatpush2.bf16.msra.mxu0 0
  %4507 = vmatprep.subr.bf16.mxu0 0
  %4508 = vmatpush2.bf16.msra.mxu0 0
  %4509 = vmatprep.subr.bf16.mxu0 0
  %4510 = vmatpush2.bf16.msra.mxu0 0
  %4511 = vmatprep.subr.bf16.mxu0 0
  %4512 = vmatpush2.bf16.msra.mxu0 0
  %4513 = vmatprep.subr.bf16.mxu0 0
  %4514 = vmatpush2.bf16.msra.mxu0 0
  %4515 = vmatprep.subr.bf16.mxu0 0
  %4516 = vmatpush2.bf16.msra.mxu0 0
  %4517 = vmatprep.mubr.bf16.mxu0 0
  %4518 = vmatmul.mubr.bf16.gmra.mxu0 0
  %v4519 = vpop.f32.mrf.mxu0
  %v4520 = vadd.f32 0.0, %v4519
  %v4521 = vpop.f32.mrf.mxu0
  %v4522 = vadd.f32 0.0, %v4521
  %v4523 = vpop.f32.mrf.mxu0
  %v4524 = vpop.f32.mrf.mxu0
  %4525 = vdwg.mxu0
  %v4526 = vadd.f32 %v4280, %v4479
  %v4527 = vadd.f32 %v4281, %v4481
  %v4528 = vadd.f32 %v4282, %v4520
  %v4529 = vadd.f32 %v4283, %v4522
  %v4530 = vmul.f32 %v4526, 0.5
  %v4531 = vtanh.pop %v4530
  %v4532 = vmul.f32 %v4531, 0.5
  %v4533 = vadd.f32 %v4532, 0.5
  %v4534 = vmul.f32 %v4527, 0.5
  %v4535 = vtanh.pop %v4534
  %v4536 = vmul.f32 %v4535, 0.5
  %v4537 = vadd.f32 %v4536, 0.5
  %v4538 = vtanh.pop %v4528
  %v4539 = vmul.f32 %v4529, 0.5
  %v4540 = vtanh.pop %v4539
  %v4541 = vmul.f32 %v4540, 0.5
  %v4542 = vadd.f32 %v4541, 0.5
  %v4543 = vmul.f32 %v4537, 0.0
  %v4544 = vmul.f32 %v4533, %v4538
  %v4545 = vadd.f32 %v4543, %v4544
  %v4546 = vtanh.pop %v4545
  %v4547 = vmul.f32 %v4542, %v4546
  %s4548 = scalar_lea.vmem [#allocation3], 16
  %v4549 = vld [vmem:[%s4548] sm:$0xff]
  %v4550 = vld [vmem:[%s4548 + $0x8] sm:$0xff]
  %v4551 = vunpack.c.l.bf16 %v4549
  %v4552 = vunpack.c.h.bf16 %v4549
  %v4553 = vunpack.c.l.bf16 %v4550
  %v4554 = vunpack.c.h.bf16 %v4550
  %v4555 = vpack.c.bf16 %v4547, %v4547
  %4556 = vmatprep.subr.bf16.mxu0 %v4409
  %4557 = vmatpush1.bf16.msra.mxu0 %v4408
  %4558 = vmatprep.subr.bf16.mxu0 %v4405
  %4559 = vmatpush1.bf16.msra.mxu0 %v4404
  %4560 = vmatprep.subr.bf16.mxu0 %v4401
  %4561 = vmatpush1.bf16.msra.mxu0 %v4400
  %4562 = vmatprep.subr.bf16.mxu0 %v4397
  %4563 = vmatpush1.bf16.msra.mxu0 %v4396
  %4564 = vmatprep.subr.bf16.mxu0 %v4393
  %4565 = vmatpush1.bf16.msra.mxu0 %v4392
  %4566 = vmatprep.subr.bf16.mxu0 %v4389
  %4567 = vmatpush1.bf16.msra.mxu0 %v4388
  %4568 = vmatprep.subr.bf16.mxu0 %v4385
  %4569 = vmatpush1.bf16.msra.mxu0 %v4384
  %4570 = vmatprep.subr.bf16.mxu0 %v4381
  %4571 = vmatpush1.bf16.msra.mxu0 %v4380
  %4572 = vmatprep.subr.bf16.mxu0 0
  %4573 = vmatpush2.bf16.msra.mxu0 0
  %4574 = vmatprep.subr.bf16.mxu0 0
  %4575 = vmatpush2.bf16.msra.mxu0 0
  %4576 = vmatprep.subr.bf16.mxu0 0
  %4577 = vmatpush2.bf16.msra.mxu0 0
  %4578 = vmatprep.subr.bf16.mxu0 0
  %4579 = vmatpush2.bf16.msra.mxu0 0
  %4580 = vmatprep.subr.bf16.mxu0 0
  %4581 = vmatpush2.bf16.msra.mxu0 0
  %4582 = vmatprep.subr.bf16.mxu0 0
  %4583 = vmatpush2.bf16.msra.mxu0 0
  %4584 = vmatprep.subr.bf16.mxu0 0
  %4585 = vmatpush2.bf16.msra.mxu0 0
  %4586 = vmatprep.subr.bf16.mxu0 0
  %4587 = vmatpush2.bf16.msra.mxu0 0
  %4588 = vmatprep.mubr.bf16.mxu0 0
  %4589 = vmatmul.mubr.bf16.gmra.mxu0 %v4555
  %v4590 = vpop.f32.mrf.mxu0
  %v4591 = vadd.f32 0.0, %v4590
  %v4592 = vpop.f32.mrf.mxu0
  %v4593 = vadd.f32 0.0, %v4592
  %v4594 = vpop.f32.mrf.mxu0
  %v4595 = vpop.f32.mrf.mxu0
  %4596 = vdwg.mxu0
  %4597 = vmatprep.subr.bf16.mxu0 %v4411
  %4598 = vmatpush1.bf16.msra.mxu0 %v4410
  %4599 = vmatprep.subr.bf16.mxu0 %v4407
  %4600 = vmatpush1.bf16.msra.mxu0 %v4406
  %4601 = vmatprep.subr.bf16.mxu0 %v4403
  %4602 = vmatpush1.bf16.msra.mxu0 %v4402
  %4603 = vmatprep.subr.bf16.mxu0 %v4399
  %4604 = vmatpush1.bf16.msra.mxu0 %v4398
  %4605 = vmatprep.subr.bf16.mxu0 %v4395
  %4606 = vmatpush1.bf16.msra.mxu0 %v4394
  %4607 = vmatprep.subr.bf16.mxu0 %v4391
  %4608 = vmatpush1.bf16.msra.mxu0 %v4390
  %4609 = vmatprep.subr.bf16.mxu0 %v4387
  %4610 = vmatpush1.bf16.msra.mxu0 %v4386
  %4611 = vmatprep.subr.bf16.mxu0 %v4383
  %4612 = vmatpush1.bf16.msra.mxu0 %v4382
  %4613 = vmatprep.subr.bf16.mxu0 0
  %4614 = vmatpush2.bf16.msra.mxu0 0
  %4615 = vmatprep.subr.bf16.mxu0 0
  %4616 = vmatpush2.bf16.msra.mxu0 0
  %4617 = vmatprep.subr.bf16.mxu0 0
  %4618 = vmatpush2.bf16.msra.mxu0 0
  %4619 = vmatprep.subr.bf16.mxu0 0
  %4620 = vmatpush2.bf16.msra.mxu0 0
  %4621 = vmatprep.subr.bf16.mxu0 0
  %4622 = vmatpush2.bf16.msra.mxu0 0
  %4623 = vmatprep.subr.bf16.mxu0 0
  %4624 = vmatpush2.bf16.msra.mxu0 0
  %4625 = vmatprep.subr.bf16.mxu0 0
  %4626 = vmatpush2.bf16.msra.mxu0 0
  %4627 = vmatprep.subr.bf16.mxu0 0
  %4628 = vmatpush2.bf16.msra.mxu0 0
  %4629 = vmatprep.mubr.bf16.mxu0 0
  %4630 = vmatmul.mubr.bf16.gmra.mxu0 %v4555
  %v4631 = vpop.f32.mrf.mxu0
  %v4632 = vadd.f32 0.0, %v4631
  %v4633 = vpop.f32.mrf.mxu0
  %v4634 = vadd.f32 0.0, %v4633
  %v4635 = vpop.f32.mrf.mxu0
  %v4636 = vpop.f32.mrf.mxu0
  %4637 = vdwg.mxu0
  %v4638 = vadd.f32 %v4551, %v4591
  %v4639 = vadd.f32 %v4552, %v4593
  %v4640 = vadd.f32 %v4553, %v4632
  %v4641 = vadd.f32 %v4554, %v4634
  %v4642 = vmul.f32 %v4638, 0.5
  %v4643 = vtanh.pop %v4642
  %v4644 = vmul.f32 %v4643, 0.5
  %v4645 = vadd.f32 %v4644, 0.5
  %v4646 = vmul.f32 %v4639, 0.5
  %v4647 = vtanh.pop %v4646
  %v4648 = vmul.f32 %v4647, 0.5
  %v4649 = vadd.f32 %v4648, 0.5
  %v4650 = vtanh.pop %v4640
  %v4651 = vmul.f32 %v4641, 0.5
  %v4652 = vtanh.pop %v4651
  %v4653 = vmul.f32 %v4652, 0.5
  %v4654 = vadd.f32 %v4653, 0.5
  %v4655 = vmul.f32 %v4649, %v4545
  %v4656 = vmul.f32 %v4645, %v4650
  %v4657 = vadd.f32 %v4655, %v4656
  %v4658 = vtanh.pop %v4657
  %v4659 = vmul.f32 %v4654, %v4658
  %s4660 = scalar_lea.vmem [#allocation3], 32
  %v4661 = vld [vmem:[%s4660] sm:$0xff]
  %v4662 = vld [vmem:[%s4660 + $0x8] sm:$0xff]
  %v4663 = vunpack.c.l.bf16 %v4661
  %v4664 = vunpack.c.h.bf16 %v4661
  %v4665 = vunpack.c.l.bf16 %v4662
  %v4666 = vunpack.c.h.bf16 %v4662
  %v4667 = vpack.c.bf16 %v4659, %v4659
  %4668 = vmatprep.subr.bf16.mxu0 %v4409
  %4669 = vmatpush1.bf16.msra.mxu0 %v4408
  %4670 = vmatprep.subr.bf16.mxu0 %v4405
  %4671 = vmatpush1.bf16.msra.mxu0 %v4404
  %4672 = vmatprep.subr.bf16.mxu0 %v4401
  %4673 = vmatpush1.bf16.msra.mxu0 %v4400
  %4674 = vmatprep.subr.bf16.mxu0 %v4397
  %4675 = vmatpush1.bf16.msra.mxu0 %v4396
  %4676 = vmatprep.subr.bf16.mxu0 %v4393
  %4677 = vmatpush1.bf16.msra.mxu0 %v4392
  %4678 = vmatprep.subr.bf16.mxu0 %v4389
  %4679 = vmatpush1.bf16.msra.mxu0 %v4388
  %4680 = vmatprep.subr.bf16.mxu0 %v4385
  %4681 = vmatpush1.bf16.msra.mxu0 %v4384
  %4682 = vmatprep.subr.bf16.mxu0 %v4381
  %4683 = vmatpush1.bf16.msra.mxu0 %v4380
  %4684 = vmatprep.subr.bf16.mxu0 0
  %4685 = vmatpush2.bf16.msra.mxu0 0
  %4686 = vmatprep.subr.bf16.mxu0 0
  %4687 = vmatpush2.bf16.msra.mxu0 0
  %4688 = vmatprep.subr.bf16.mxu0 0
  %4689 = vmatpush2.bf16.msra.mxu0 0
  %4690 = vmatprep.subr.bf16.mxu0 0
  %4691 = vmatpush2.bf16.msra.mxu0 0
  %4692 = vmatprep.subr.bf16.mxu0 0
  %4693 = vmatpush2.bf16.msra.mxu0 0
  %4694 = vmatprep.subr.bf16.mxu0 0
  %4695 = vmatpush2.bf16.msra.mxu0 0
  %4696 = vmatprep.subr.bf16.mxu0 0
  %4697 = vmatpush2.bf16.msra.mxu0 0
  %4698 = vmatprep.subr.bf16.mxu0 0
  %4699 = vmatpush2.bf16.msra.mxu0 0
  %4700 = vmatprep.mubr.bf16.mxu0 0
  %4701 = vmatmul.mubr.bf16.gmra.mxu0 %v4667
  %v4702 = vpop.f32.mrf.mxu0
  %v4703 = vadd.f32 0.0, %v4702
  %v4704 = vpop.f32.mrf.mxu0
  %v4705 = vadd.f32 0.0, %v4704
  %v4706 = vpop.f32.mrf.mxu0
  %v4707 = vpop.f32.mrf.mxu0
  %4708 = vdwg.mxu0
  %4709 = vmatprep.subr.bf16.mxu0 %v4411
  %4710 = vmatpush1.bf16.msra.mxu0 %v4410
  %4711 = vmatprep.subr.bf16.mxu0 %v4407
  %4712 = vmatpush1.bf16.msra.mxu0 %v4406
  %4713 = vmatprep.subr.bf16.mxu0 %v4403
  %4714 = vmatpush1.bf16.msra.mxu0 %v4402
  %4715 = vmatprep.subr.bf16.mxu0 %v4399
  %4716 = vmatpush1.bf16.msra.mxu0 %v4398
  %4717 = vmatprep.subr.bf16.mxu0 %v4395
  %4718 = vmatpush1.bf16.msra.mxu0 %v4394
  %4719 = vmatprep.subr.bf16.mxu0 %v4391
  %4720 = vmatpush1.bf16.msra.mxu0 %v4390
  %4721 = vmatprep.subr.bf16.mxu0 %v4387
  %4722 = vmatpush1.bf16.msra.mxu0 %v4386
  %4723 = vmatprep.subr.bf16.mxu0 %v4383
  %4724 = vmatpush1.bf16.msra.mxu0 %v4382
  %4725 = vmatprep.subr.bf16.mxu0 0
  %4726 = vmatpush2.bf16.msra.mxu0 0
  %4727 = vmatprep.subr.bf16.mxu0 0
  %4728 = vmatpush2.bf16.msra.mxu0 0
  %4729 = vmatprep.subr.bf16.mxu0 0
  %4730 = vmatpush2.bf16.msra.mxu0 0
  %4731 = vmatprep.subr.bf16.mxu0 0
  %4732 = vmatpush2.bf16.msra.mxu0 0
  %4733 = vmatprep.subr.bf16.mxu0 0
  %4734 = vmatpush2.bf16.msra.mxu0 0
  %4735 = vmatprep.subr.bf16.mxu0 0
  %4736 = vmatpush2.bf16.msra.mxu0 0
  %4737 = vmatprep.subr.bf16.mxu0 0
  %4738 = vmatpush2.bf16.msra.mxu0 0
  %4739 = vmatprep.subr.bf16.mxu0 0
  %4740 = vmatpush2.bf16.msra.mxu0 0
  %4741 = vmatprep.mubr.bf16.mxu0 0
  %4742 = vmatmul.mubr.bf16.gmra.mxu0 %v4667
  %v4743 = vpop.f32.mrf.mxu0
  %v4744 = vadd.f32 0.0, %v4743
  %v4745 = vpop.f32.mrf.mxu0
  %v4746 = vadd.f32 0.0, %v4745
  %v4747 = vpop.f32.mrf.mxu0
  %v4748 = vpop.f32.mrf.mxu0
  %4749 = vdwg.mxu0
  %v4750 = vadd.f32 %v4663, %v4703
  %v4751 = vadd.f32 %v4664, %v4705
  %v4752 = vadd.f32 %v4665, %v4744
  %v4753 = vadd.f32 %v4666, %v4746
  %v4754 = vmul.f32 %v4750, 0.5
  %v4755 = vtanh.pop %v4754
  %v4756 = vmul.f32 %v4755, 0.5
  %v4757 = vadd.f32 %v4756, 0.5
  %v4758 = vmul.f32 %v4751, 0.5
  %v4759 = vtanh.pop %v4758
  %v4760 = vmul.f32 %v4759, 0.5
  %v4761 = vadd.f32 %v4760, 0.5
  %v4762 = vtanh.pop %v4752
  %v4763 = vmul.f32 %v4753, 0.5
  %v4764 = vtanh.pop %v4763
  %v4765 = vmul.f32 %v4764, 0.5
  %v4766 = vadd.f32 %v4765, 0.5
  %v4767 = vmul.f32 %v4761, %v4657
  %v4768 = vmul.f32 %v4757, %v4762
  %v4769 = vadd.f32 %v4767, %v4768
  %v4770 = vtanh.pop %v4769
  %v4771 = vmul.f32 %v4766, %v4770
  %s4772 = scalar_lea.vmem [#allocation3], 48
  %v4773 = vld [vmem:[%s4772] sm:$0xff]
  %v4774 = vld [vmem:[%s4772 + $0x8] sm:$0xff]
  %v4775 = vunpack.c.l.bf16 %v4773
  %v4776 = vunpack.c.h.bf16 %v4773
  %v4777 = vunpack.c.l.bf16 %v4774
  %v4778 = vunpack.c.h.bf16 %v4774
  %v4779 = vpack.c.bf16 %v4771, %v4771
  %4780 = vmatprep.subr.bf16.mxu0 %v4409
  %4781 = vmatpush1.bf16.msra.mxu0 %v4408
  %4782 = vmatprep.subr.bf16.mxu0 %v4405
  %4783 = vmatpush1.bf16.msra.mxu0 %v4404
  %4784 = vmatprep.subr.bf16.mxu0 %v4401
  %4785 = vmatpush1.bf16.msra.mxu0 %v4400
  %4786 = vmatprep.subr.bf16.mxu0 %v4397
  %4787 = vmatpush1.bf16.msra.mxu0 %v4396
  %4788 = vmatprep.subr.bf16.mxu0 %v4393
  %4789 = vmatpush1.bf16.msra.mxu0 %v4392
  %4790 = vmatprep.subr.bf16.mxu0 %v4389
  %4791 = vmatpush1.bf16.msra.mxu0 %v4388
  %4792 = vmatprep.subr.bf16.mxu0 %v4385
  %4793 = vmatpush1.bf16.msra.mxu0 %v4384
  %4794 = vmatprep.subr.bf16.mxu0 %v4381
  %4795 = vmatpush1.bf16.msra.mxu0 %v4380
  %4796 = vmatprep.subr.bf16.mxu0 0
  %4797 = vmatpush2.bf16.msra.mxu0 0
  %4798 = vmatprep.subr.bf16.mxu0 0
  %4799 = vmatpush2.bf16.msra.mxu0 0
  %4800 = vmatprep.subr.bf16.mxu0 0
  %4801 = vmatpush2.bf16.msra.mxu0 0
  %4802 = vmatprep.subr.bf16.mxu0 0
  %4803 = vmatpush2.bf16.msra.mxu0 0
  %4804 = vmatprep.subr.bf16.mxu0 0
  %4805 = vmatpush2.bf16.msra.mxu0 0
  %4806 = vmatprep.subr.bf16.mxu0 0
  %4807 = vmatpush2.bf16.msra.mxu0 0
  %4808 = vmatprep.subr.bf16.mxu0 0
  %4809 = vmatpush2.bf16.msra.mxu0 0
  %4810 = vmatprep.subr.bf16.mxu0 0
  %4811 = vmatpush2.bf16.msra.mxu0 0
  %4812 = vmatprep.mubr.bf16.mxu0 0
  %4813 = vmatmul.mubr.bf16.gmra.mxu0 %v4779
  %v4814 = vpop.f32.mrf.mxu0
  %v4815 = vadd.f32 0.0, %v4814
  %v4816 = vpop.f32.mrf.mxu0
  %v4817 = vadd.f32 0.0, %v4816
  %v4818 = vpop.f32.mrf.mxu0
  %v4819 = vpop.f32.mrf.mxu0
  %4820 = vdwg.mxu0
  %4821 = vmatprep.subr.bf16.mxu0 %v4411
  %4822 = vmatpush1.bf16.msra.mxu0 %v4410
  %4823 = vmatprep.subr.bf16.mxu0 %v4407
  %4824 = vmatpush1.bf16.msra.mxu0 %v4406
  %4825 = vmatprep.subr.bf16.mxu0 %v4403
  %4826 = vmatpush1.bf16.msra.mxu0 %v4402
  %4827 = vmatprep.subr.bf16.mxu0 %v4399
  %4828 = vmatpush1.bf16.msra.mxu0 %v4398
  %4829 = vmatprep.subr.bf16.mxu0 %v4395
  %4830 = vmatpush1.bf16.msra.mxu0 %v4394
  %4831 = vmatprep.subr.bf16.mxu0 %v4391
  %4832 = vmatpush1.bf16.msra.mxu0 %v4390
  %4833 = vmatprep.subr.bf16.mxu0 %v4387
  %4834 = vmatpush1.bf16.msra.mxu0 %v4386
  %4835 = vmatprep.subr.bf16.mxu0 %v4383
  %4836 = vmatpush1.bf16.msra.mxu0 %v4382
  %4837 = vmatprep.subr.bf16.mxu0 0
  %4838 = vmatpush2.bf16.msra.mxu0 0
  %4839 = vmatprep.subr.bf16.mxu0 0
  %4840 = vmatpush2.bf16.msra.mxu0 0
  %4841 = vmatprep.subr.bf16.mxu0 0
  %4842 = vmatpush2.bf16.msra.mxu0 0
  %4843 = vmatprep.subr.bf16.mxu0 0
  %4844 = vmatpush2.bf16.msra.mxu0 0
  %4845 = vmatprep.subr.bf16.mxu0 0
  %4846 = vmatpush2.bf16.msra.mxu0 0
  %4847 = vmatprep.subr.bf16.mxu0 0
  %4848 = vmatpush2.bf16.msra.mxu0 0
  %4849 = vmatprep.subr.bf16.mxu0 0
  %4850 = vmatpush2.bf16.msra.mxu0 0
  %4851 = vmatprep.subr.bf16.mxu0 0
  %4852 = vmatpush2.bf16.msra.mxu0 0
  %4853 = vmatprep.mubr.bf16.mxu0 0
  %4854 = vmatmul.mubr.bf16.gmra.mxu0 %v4779
  %v4855 = vpop.f32.mrf.mxu0
  %v4856 = vadd.f32 0.0, %v4855
  %v4857 = vpop.f32.mrf.mxu0
  %v4858 = vadd.f32 0.0, %v4857
  %v4859 = vpop.f32.mrf.mxu0
  %v4860 = vpop.f32.mrf.mxu0
  %4861 = vdwg.mxu0
  %v4862 = vadd.f32 %v4775, %v4815
  %v4863 = vadd.f32 %v4776, %v4817
  %v4864 = vadd.f32 %v4777, %v4856
  %v4865 = vadd.f32 %v4778, %v4858
  %v4866 = vmul.f32 %v4862, 0.5
  %v4867 = vtanh.pop %v4866
  %v4868 = vmul.f32 %v4867, 0.5
  %v4869 = vadd.f32 %v4868, 0.5
  %v4870 = vmul.f32 %v4863, 0.5
  %v4871 = vtanh.pop %v4870
  %v4872 = vmul.f32 %v4871, 0.5
  %v4873 = vadd.f32 %v4872, 0.5
  %v4874 = vtanh.pop %v4864
  %v4875 = vmul.f32 %v4865, 0.5
  %v4876 = vtanh.pop %v4875
  %v4877 = vmul.f32 %v4876, 0.5
  %v4878 = vadd.f32 %v4877, 0.5
  %v4879 = vmul.f32 %v4873, %v4769
  %v4880 = vmul.f32 %v4869, %v4874
  %v4881 = vadd.f32 %v4879, %v4880
  %v4882 = vtanh.pop %v4881
  %v4883 = vmul.f32 %v4878, %v4882
  %s4884 = scalar_lea.vmem [#allocation3], 64
  %v4885 = vld [vmem:[%s4884] sm:$0xff]
  %v4886 = vld [vmem:[%s4884 + $0x8] sm:$0xff]
  %v4887 = vunpack.c.l.bf16 %v4885
  %v4888 = vunpack.c.h.bf16 %v4885
  %v4889 = vunpack.c.l.bf16 %v4886
  %v4890 = vunpack.c.h.bf16 %v4886
  %v4891 = vpack.c.bf16 %v4883, %v4883
  %4892 = vmatprep.subr.bf16.mxu0 %v4409
  %4893 = vmatpush1.bf16.msra.mxu0 %v4408
  %4894 = vmatprep.subr.bf16.mxu0 %v4405
  %4895 = vmatpush1.bf16.msra.mxu0 %v4404
  %4896 = vmatprep.subr.bf16.mxu0 %v4401
  %4897 = vmatpush1.bf16.msra.mxu0 %v4400
  %4898 = vmatprep.subr.bf16.mxu0 %v4397
  %4899 = vmatpush1.bf16.msra.mxu0 %v4396
  %4900 = vmatprep.subr.bf16.mxu0 %v4393
  %4901 = vmatpush1.bf16.msra.mxu0 %v4392
  %4902 = vmatprep.subr.bf16.mxu0 %v4389
  %4903 = vmatpush1.bf16.msra.mxu0 %v4388
  %4904 = vmatprep.subr.bf16.mxu0 %v4385
  %4905 = vmatpush1.bf16.msra.mxu0 %v4384
  %4906 = vmatprep.subr.bf16.mxu0 %v4381
  %4907 = vmatpush1.bf16.msra.mxu0 %v4380
  %4908 = vmatprep.subr.bf16.mxu0 0
  %4909 = vmatpush2.bf16.msra.mxu0 0
  %4910 = vmatprep.subr.bf16.mxu0 0
  %4911 = vmatpush2.bf16.msra.mxu0 0
  %4912 = vmatprep.subr.bf16.mxu0 0
  %4913 = vmatpush2.bf16.msra.mxu0 0
  %4914 = vmatprep.subr.bf16.mxu0 0
  %4915 = vmatpush2.bf16.msra.mxu0 0
  %4916 = vmatprep.subr.bf16.mxu0 0
  %4917 = vmatpush2.bf16.msra.mxu0 0
  %4918 = vmatprep.subr.bf16.mxu0 0
  %4919 = vmatpush2.bf16.msra.mxu0 0
  %4920 = vmatprep.subr.bf16.mxu0 0
  %4921 = vmatpush2.bf16.msra.mxu0 0
  %4922 = vmatprep.subr.bf16.mxu0 0
  %4923 = vmatpush2.bf16.msra.mxu0 0
  %4924 = vmatprep.mubr.bf16.mxu0 0
  %4925 = vmatmul.mubr.bf16.gmra.mxu0 %v4891
  %v4926 = vpop.f32.mrf.mxu0
  %v4927 = vadd.f32 0.0, %v4926
  %v4928 = vpop.f32.mrf.mxu0
  %v4929 = vadd.f32 0.0, %v4928
  %v4930 = vpop.f32.mrf.mxu0
  %v4931 = vpop.f32.mrf.mxu0
  %4932 = vdwg.mxu0
  %4933 = vmatprep.subr.bf16.mxu0 %v4411
  %4934 = vmatpush1.bf16.msra.mxu0 %v4410
  %4935 = vmatprep.subr.bf16.mxu0 %v4407
  %4936 = vmatpush1.bf16.msra.mxu0 %v4406
  %4937 = vmatprep.subr.bf16.mxu0 %v4403
  %4938 = vmatpush1.bf16.msra.mxu0 %v4402
  %4939 = vmatprep.subr.bf16.mxu0 %v4399
  %4940 = vmatpush1.bf16.msra.mxu0 %v4398
  %4941 = vmatprep.subr.bf16.mxu0 %v4395
  %4942 = vmatpush1.bf16.msra.mxu0 %v4394
  %4943 = vmatprep.subr.bf16.mxu0 %v4391
  %4944 = vmatpush1.bf16.msra.mxu0 %v4390
  %4945 = vmatprep.subr.bf16.mxu0 %v4387
  %4946 = vmatpush1.bf16.msra.mxu0 %v4386
  %4947 = vmatprep.subr.bf16.mxu0 %v4383
  %4948 = vmatpush1.bf16.msra.mxu0 %v4382
  %4949 = vmatprep.subr.bf16.mxu0 0
  %4950 = vmatpush2.bf16.msra.mxu0 0
  %4951 = vmatprep.subr.bf16.mxu0 0
  %4952 = vmatpush2.bf16.msra.mxu0 0
  %4953 = vmatprep.subr.bf16.mxu0 0
  %4954 = vmatpush2.bf16.msra.mxu0 0
  %4955 = vmatprep.subr.bf16.mxu0 0
  %4956 = vmatpush2.bf16.msra.mxu0 0
  %4957 = vmatprep.subr.bf16.mxu0 0
  %4958 = vmatpush2.bf16.msra.mxu0 0
  %4959 = vmatprep.subr.bf16.mxu0 0
  %4960 = vmatpush2.bf16.msra.mxu0 0
  %4961 = vmatprep.subr.bf16.mxu0 0
  %4962 = vmatpush2.bf16.msra.mxu0 0
  %4963 = vmatprep.subr.bf16.mxu0 0
  %4964 = vmatpush2.bf16.msra.mxu0 0
  %4965 = vmatprep.mubr.bf16.mxu0 0
  %4966 = vmatmul.mubr.bf16.gmra.mxu0 %v4891
  %v4967 = vpop.f32.mrf.mxu0
  %v4968 = vadd.f32 0.0, %v4967
  %v4969 = vpop.f32.mrf.mxu0
  %v4970 = vadd.f32 0.0, %v4969
  %v4971 = vpop.f32.mrf.mxu0
  %v4972 = vpop.f32.mrf.mxu0
  %4973 = vdwg.mxu0
  %v4974 = vadd.f32 %v4887, %v4927
  %v4975 = vadd.f32 %v4888, %v4929
  %v4976 = vadd.f32 %v4889, %v4968
  %v4977 = vadd.f32 %v4890, %v4970
  %v4978 = vmul.f32 %v4974, 0.5
  %v4979 = vtanh.pop %v4978
  %v4980 = vmul.f32 %v4979, 0.5
  %v4981 = vadd.f32 %v4980, 0.5
  %v4982 = vmul.f32 %v4975, 0.5
  %v4983 = vtanh.pop %v4982
  %v4984 = vmul.f32 %v4983, 0.5
  %v4985 = vadd.f32 %v4984, 0.5
  %v4986 = vtanh.pop %v4976
  %v4987 = vmul.f32 %v4977, 0.5
  %v4988 = vtanh.pop %v4987
  %v4989 = vmul.f32 %v4988, 0.5
  %v4990 = vadd.f32 %v4989, 0.5
  %v4991 = vmul.f32 %v4985, %v4881
  %v4992 = vmul.f32 %v4981, %v4986
  %v4993 = vadd.f32 %v4991, %v4992
  %v4994 = vtanh.pop %v4993
  %v4995 = vmul.f32 %v4990, %v4994
  %s4996 = scalar_lea.vmem [#allocation3], 80
  %v4997 = vld [vmem:[%s4996] sm:$0xff]
  %v4998 = vld [vmem:[%s4996 + $0x8] sm:$0xff]
  %v4999 = vunpack.c.l.bf16 %v4997
  %v5000 = vunpack.c.h.bf16 %v4997
  %v5001 = vunpack.c.l.bf16 %v4998
  %v5002 = vunpack.c.h.bf16 %v4998
  %v5003 = vpack.c.bf16 %v4995, %v4995
  %5004 = vmatprep.subr.bf16.mxu0 %v4409
  %5005 = vmatpush1.bf16.msra.mxu0 %v4408
  %5006 = vmatprep.subr.bf16.mxu0 %v4405
  %5007 = vmatpush1.bf16.msra.mxu0 %v4404
  %5008 = vmatprep.subr.bf16.mxu0 %v4401
  %5009 = vmatpush1.bf16.msra.mxu0 %v4400
  %5010 = vmatprep.subr.bf16.mxu0 %v4397
  %5011 = vmatpush1.bf16.msra.mxu0 %v4396
  %5012 = vmatprep.subr.bf16.mxu0 %v4393
  %5013 = vmatpush1.bf16.msra.mxu0 %v4392
  %5014 = vmatprep.subr.bf16.mxu0 %v4389
  %5015 = vmatpush1.bf16.msra.mxu0 %v4388
  %5016 = vmatprep.subr.bf16.mxu0 %v4385
  %5017 = vmatpush1.bf16.msra.mxu0 %v4384
  %5018 = vmatprep.subr.bf16.mxu0 %v4381
  %5019 = vmatpush1.bf16.msra.mxu0 %v4380
  %5020 = vmatprep.subr.bf16.mxu0 0
  %5021 = vmatpush2.bf16.msra.mxu0 0
  %5022 = vmatprep.subr.bf16.mxu0 0
  %5023 = vmatpush2.bf16.msra.mxu0 0
  %5024 = vmatprep.subr.bf16.mxu0 0
  %5025 = vmatpush2.bf16.msra.mxu0 0
  %5026 = vmatprep.subr.bf16.mxu0 0
  %5027 = vmatpush2.bf16.msra.mxu0 0
  %5028 = vmatprep.subr.bf16.mxu0 0
  %5029 = vmatpush2.bf16.msra.mxu0 0
  %5030 = vmatprep.subr.bf16.mxu0 0
  %5031 = vmatpush2.bf16.msra.mxu0 0
  %5032 = vmatprep.subr.bf16.mxu0 0
  %5033 = vmatpush2.bf16.msra.mxu0 0
  %5034 = vmatprep.subr.bf16.mxu0 0
  %5035 = vmatpush2.bf16.msra.mxu0 0
  %5036 = vmatprep.mubr.bf16.mxu0 0
  %5037 = vmatmul.mubr.bf16.gmra.mxu0 %v5003
  %v5038 = vpop.f32.mrf.mxu0
  %v5039 = vadd.f32 0.0, %v5038
  %v5040 = vpop.f32.mrf.mxu0
  %v5041 = vadd.f32 0.0, %v5040
  %v5042 = vpop.f32.mrf.mxu0
  %v5043 = vpop.f32.mrf.mxu0
  %5044 = vdwg.mxu0
  %5045 = vmatprep.subr.bf16.mxu0 %v4411
  %5046 = vmatpush1.bf16.msra.mxu0 %v4410
  %5047 = vmatprep.subr.bf16.mxu0 %v4407
  %5048 = vmatpush1.bf16.msra.mxu0 %v4406
  %5049 = vmatprep.subr.bf16.mxu0 %v4403
  %5050 = vmatpush1.bf16.msra.mxu0 %v4402
  %5051 = vmatprep.subr.bf16.mxu0 %v4399
  %5052 = vmatpush1.bf16.msra.mxu0 %v4398
  %5053 = vmatprep.subr.bf16.mxu0 %v4395
  %5054 = vmatpush1.bf16.msra.mxu0 %v4394
  %5055 = vmatprep.subr.bf16.mxu0 %v4391
  %5056 = vmatpush1.bf16.msra.mxu0 %v4390
  %5057 = vmatprep.subr.bf16.mxu0 %v4387
  %5058 = vmatpush1.bf16.msra.mxu0 %v4386
  %5059 = vmatprep.subr.bf16.mxu0 %v4383
  %5060 = vmatpush1.bf16.msra.mxu0 %v4382
  %5061 = vmatprep.subr.bf16.mxu0 0
  %5062 = vmatpush2.bf16.msra.mxu0 0
  %5063 = vmatprep.subr.bf16.mxu0 0
  %5064 = vmatpush2.bf16.msra.mxu0 0
  %5065 = vmatprep.subr.bf16.mxu0 0
  %5066 = vmatpush2.bf16.msra.mxu0 0
  %5067 = vmatprep.subr.bf16.mxu0 0
  %5068 = vmatpush2.bf16.msra.mxu0 0
  %5069 = vmatprep.subr.bf16.mxu0 0
  %5070 = vmatpush2.bf16.msra.mxu0 0
  %5071 = vmatprep.subr.bf16.mxu0 0
  %5072 = vmatpush2.bf16.msra.mxu0 0
  %5073 = vmatprep.subr.bf16.mxu0 0
  %5074 = vmatpush2.bf16.msra.mxu0 0
  %5075 = vmatprep.subr.bf16.mxu0 0
  %5076 = vmatpush2.bf16.msra.mxu0 0
  %5077 = vmatprep.mubr.bf16.mxu0 0
  %5078 = vmatmul.mubr.bf16.gmra.mxu0 %v5003
  %v5079 = vpop.f32.mrf.mxu0
  %v5080 = vadd.f32 0.0, %v5079
  %v5081 = vpop.f32.mrf.mxu0
  %v5082 = vadd.f32 0.0, %v5081
  %v5083 = vpop.f32.mrf.mxu0
  %v5084 = vpop.f32.mrf.mxu0
  %5085 = vdwg.mxu0
  %v5086 = vadd.f32 %v4999, %v5039
  %v5087 = vadd.f32 %v5000, %v5041
  %v5088 = vadd.f32 %v5001, %v5080
  %v5089 = vadd.f32 %v5002, %v5082
  %v5090 = vmul.f32 %v5086, 0.5
  %v5091 = vtanh.pop %v5090
  %v5092 = vmul.f32 %v5091, 0.5
  %v5093 = vadd.f32 %v5092, 0.5
  %v5094 = vmul.f32 %v5087, 0.5
  %v5095 = vtanh.pop %v5094
  %v5096 = vmul.f32 %v5095, 0.5
  %v5097 = vadd.f32 %v5096, 0.5
  %v5098 = vtanh.pop %v5088
  %v5099 = vmul.f32 %v5089, 0.5
  %v5100 = vtanh.pop %v5099
  %v5101 = vmul.f32 %v5100, 0.5
  %v5102 = vadd.f32 %v5101, 0.5
  %v5103 = vmul.f32 %v5097, %v4993
  %v5104 = vmul.f32 %v5093, %v5098
  %v5105 = vadd.f32 %v5103, %v5104
  %v5106 = vtanh.pop %v5105
  %v5107 = vmul.f32 %v5102, %v5106
  %s5108 = scalar_lea.vmem [#allocation3], 96
  %v5109 = vld [vmem:[%s5108] sm:$0xff]
  %v5110 = vld [vmem:[%s5108 + $0x8] sm:$0xff]
  %v5111 = vunpack.c.l.bf16 %v5109
  %v5112 = vunpack.c.h.bf16 %v5109
  %v5113 = vunpack.c.l.bf16 %v5110
  %v5114 = vunpack.c.h.bf16 %v5110
  %v5115 = vpack.c.bf16 %v5107, %v5107
  %5116 = vmatprep.subr.bf16.mxu0 %v4409
  %5117 = vmatpush1.bf16.msra.mxu0 %v4408
  %5118 = vmatprep.subr.bf16.mxu0 %v4405
  %5119 = vmatpush1.bf16.msra.mxu0 %v4404
  %5120 = vmatprep.subr.bf16.mxu0 %v4401
  %5121 = vmatpush1.bf16.msra.mxu0 %v4400
  %5122 = vmatprep.subr.bf16.mxu0 %v4397
  %5123 = vmatpush1.bf16.msra.mxu0 %v4396
  %5124 = vmatprep.subr.bf16.mxu0 %v4393
  %5125 = vmatpush1.bf16.msra.mxu0 %v4392
  %5126 = vmatprep.subr.bf16.mxu0 %v4389
  %5127 = vmatpush1.bf16.msra.mxu0 %v4388
  %5128 = vmatprep.subr.bf16.mxu0 %v4385
  %5129 = vmatpush1.bf16.msra.mxu0 %v4384
  %5130 = vmatprep.subr.bf16.mxu0 %v4381
  %5131 = vmatpush1.bf16.msra.mxu0 %v4380
  %5132 = vmatprep.subr.bf16.mxu0 0
  %5133 = vmatpush2.bf16.msra.mxu0 0
  %5134 = vmatprep.subr.bf16.mxu0 0
  %5135 = vmatpush2.bf16.msra.mxu0 0
  %5136 = vmatprep.subr.bf16.mxu0 0
  %5137 = vmatpush2.bf16.msra.mxu0 0
  %5138 = vmatprep.subr.bf16.mxu0 0
  %5139 = vmatpush2.bf16.msra.mxu0 0
  %5140 = vmatprep.subr.bf16.mxu0 0
  %5141 = vmatpush2.bf16.msra.mxu0 0
  %5142 = vmatprep.subr.bf16.mxu0 0
  %5143 = vmatpush2.bf16.msra.mxu0 0
  %5144 = vmatprep.subr.bf16.mxu0 0
  %5145 = vmatpush2.bf16.msra.mxu0 0
  %5146 = vmatprep.subr.bf16.mxu0 0
  %5147 = vmatpush2.bf16.msra.mxu0 0
  %5148 = vmatprep.mubr.bf16.mxu0 0
  %5149 = vmatmul.mubr.bf16.gmra.mxu0 %v5115
  %v5150 = vpop.f32.mrf.mxu0
  %v5151 = vadd.f32 0.0, %v5150
  %v5152 = vpop.f32.mrf.mxu0
  %v5153 = vadd.f32 0.0, %v5152
  %v5154 = vpop.f32.mrf.mxu0
  %v5155 = vpop.f32.mrf.mxu0
  %5156 = vdwg.mxu0
  %5157 = vmatprep.subr.bf16.mxu0 %v4411
  %5158 = vmatpush1.bf16.msra.mxu0 %v4410
  %5159 = vmatprep.subr.bf16.mxu0 %v4407
  %5160 = vmatpush1.bf16.msra.mxu0 %v4406
  %5161 = vmatprep.subr.bf16.mxu0 %v4403
  %5162 = vmatpush1.bf16.msra.mxu0 %v4402
  %5163 = vmatprep.subr.bf16.mxu0 %v4399
  %5164 = vmatpush1.bf16.msra.mxu0 %v4398
  %5165 = vmatprep.subr.bf16.mxu0 %v4395
  %5166 = vmatpush1.bf16.msra.mxu0 %v4394
  %5167 = vmatprep.subr.bf16.mxu0 %v4391
  %5168 = vmatpush1.bf16.msra.mxu0 %v4390
  %5169 = vmatprep.subr.bf16.mxu0 %v4387
  %5170 = vmatpush1.bf16.msra.mxu0 %v4386
  %5171 = vmatprep.subr.bf16.mxu0 %v4383
  %5172 = vmatpush1.bf16.msra.mxu0 %v4382
  %5173 = vmatprep.subr.bf16.mxu0 0
  %5174 = vmatpush2.bf16.msra.mxu0 0
  %5175 = vmatprep.subr.bf16.mxu0 0
  %5176 = vmatpush2.bf16.msra.mxu0 0
  %5177 = vmatprep.subr.bf16.mxu0 0
  %5178 = vmatpush2.bf16.msra.mxu0 0
  %5179 = vmatprep.subr.bf16.mxu0 0
  %5180 = vmatpush2.bf16.msra.mxu0 0
  %5181 = vmatprep.subr.bf16.mxu0 0
  %5182 = vmatpush2.bf16.msra.mxu0 0
  %5183 = vmatprep.subr.bf16.mxu0 0
  %5184 = vmatpush2.bf16.msra.mxu0 0
  %5185 = vmatprep.subr.bf16.mxu0 0
  %5186 = vmatpush2.bf16.msra.mxu0 0
  %5187 = vmatprep.subr.bf16.mxu0 0
  %5188 = vmatpush2.bf16.msra.mxu0 0
  %5189 = vmatprep.mubr.bf16.mxu0 0
  %5190 = vmatmul.mubr.bf16.gmra.mxu0 %v5115
  %v5191 = vpop.f32.mrf.mxu0
  %v5192 = vadd.f32 0.0, %v5191
  %v5193 = vpop.f32.mrf.mxu0
  %v5194 = vadd.f32 0.0, %v5193
  %v5195 = vpop.f32.mrf.mxu0
  %v5196 = vpop.f32.mrf.mxu0
  %5197 = vdwg.mxu0
  %v5198 = vadd.f32 %v5111, %v5151
  %v5199 = vadd.f32 %v5112, %v5153
  %v5200 = vadd.f32 %v5113, %v5192
  %v5201 = vadd.f32 %v5114, %v5194
  %v5202 = vmul.f32 %v5198, 0.5
  %v5203 = vtanh.pop %v5202
  %v5204 = vmul.f32 %v5203, 0.5
  %v5205 = vadd.f32 %v5204, 0.5
  %v5206 = vmul.f32 %v5199, 0.5
  %v5207 = vtanh.pop %v5206
  %v5208 = vmul.f32 %v5207, 0.5
  %v5209 = vadd.f32 %v5208, 0.5
  %v5210 = vtanh.pop %v5200
  %v5211 = vmul.f32 %v5201, 0.5
  %v5212 = vtanh.pop %v5211
  %v5213 = vmul.f32 %v5212, 0.5
  %v5214 = vadd.f32 %v5213, 0.5
  %v5215 = vmul.f32 %v5209, %v5105
  %v5216 = vmul.f32 %v5205, %v5210
  %v5217 = vadd.f32 %v5215, %v5216
  %v5218 = vtanh.pop %v5217
  %v5219 = vmul.f32 %v5214, %v5218
  %s5220 = scalar_lea.vmem [#allocation3], 112
  %v5221 = vld [vmem:[%s5220] sm:$0xff]
  %v5222 = vld [vmem:[%s5220 + $0x8] sm:$0xff]
  %v5223 = vunpack.c.l.bf16 %v5221
  %v5224 = vunpack.c.h.bf16 %v5221
  %v5225 = vunpack.c.l.bf16 %v5222
  %v5226 = vunpack.c.h.bf16 %v5222
  %v5227 = vpack.c.bf16 %v5219, %v5219
  %5228 = vmatprep.subr.bf16.mxu0 %v4409
  %5229 = vmatpush1.bf16.msra.mxu0 %v4408
  %5230 = vmatprep.subr.bf16.mxu0 %v4405
  %5231 = vmatpush1.bf16.msra.mxu0 %v4404
  %5232 = vmatprep.subr.bf16.mxu0 %v4401
  %5233 = vmatpush1.bf16.msra.mxu0 %v4400
  %5234 = vmatprep.subr.bf16.mxu0 %v4397
  %5235 = vmatpush1.bf16.msra.mxu0 %v4396
  %5236 = vmatprep.subr.bf16.mxu0 %v4393
  %5237 = vmatpush1.bf16.msra.mxu0 %v4392
  %5238 = vmatprep.subr.bf16.mxu0 %v4389
  %5239 = vmatpush1.bf16.msra.mxu0 %v4388
  %5240 = vmatprep.subr.bf16.mxu0 %v4385
  %5241 = vmatpush1.bf16.msra.mxu0 %v4384
  %5242 = vmatprep.subr.bf16.mxu0 %v4381
  %5243 = vmatpush1.bf16.msra.mxu0 %v4380
  %5244 = vmatprep.subr.bf16.mxu0 0
  %5245 = vmatpush2.bf16.msra.mxu0 0
  %5246 = vmatprep.subr.bf16.mxu0 0
  %5247 = vmatpush2.bf16.msra.mxu0 0
  %5248 = vmatprep.subr.bf16.mxu0 0
  %5249 = vmatpush2.bf16.msra.mxu0 0
  %5250 = vmatprep.subr.bf16.mxu0 0
  %5251 = vmatpush2.bf16.msra.mxu0 0
  %5252 = vmatprep.subr.bf16.mxu0 0
  %5253 = vmatpush2.bf16.msra.mxu0 0
  %5254 = vmatprep.subr.bf16.mxu0 0
  %5255 = vmatpush2.bf16.msra.mxu0 0
  %5256 = vmatprep.subr.bf16.mxu0 0
  %5257 = vmatpush2.bf16.msra.mxu0 0
  %5258 = vmatprep.subr.bf16.mxu0 0
  %5259 = vmatpush2.bf16.msra.mxu0 0
  %5260 = vmatprep.mubr.bf16.mxu0 0
  %5261 = vmatmul.mubr.bf16.gmra.mxu0 %v5227
  %v5262 = vpop.f32.mrf.mxu0
  %v5263 = vadd.f32 0.0, %v5262
  %v5264 = vpop.f32.mrf.mxu0
  %v5265 = vadd.f32 0.0, %v5264
  %v5266 = vpop.f32.mrf.mxu0
  %v5267 = vpop.f32.mrf.mxu0
  %5268 = vdwg.mxu0
  %5269 = vmatprep.subr.bf16.mxu0 %v4411
  %5270 = vmatpush1.bf16.msra.mxu0 %v4410
  %5271 = vmatprep.subr.bf16.mxu0 %v4407
  %5272 = vmatpush1.bf16.msra.mxu0 %v4406
  %5273 = vmatprep.subr.bf16.mxu0 %v4403
  %5274 = vmatpush1.bf16.msra.mxu0 %v4402
  %5275 = vmatprep.subr.bf16.mxu0 %v4399
  %5276 = vmatpush1.bf16.msra.mxu0 %v4398
  %5277 = vmatprep.subr.bf16.mxu0 %v4395
  %5278 = vmatpush1.bf16.msra.mxu0 %v4394
  %5279 = vmatprep.subr.bf16.mxu0 %v4391
  %5280 = vmatpush1.bf16.msra.mxu0 %v4390
  %5281 = vmatprep.subr.bf16.mxu0 %v4387
  %5282 = vmatpush1.bf16.msra.mxu0 %v4386
  %5283 = vmatprep.subr.bf16.mxu0 %v4383
  %5284 = vmatpush1.bf16.msra.mxu0 %v4382
  %5285 = vmatprep.subr.bf16.mxu0 0
  %5286 = vmatpush2.bf16.msra.mxu0 0
  %5287 = vmatprep.subr.bf16.mxu0 0
  %5288 = vmatpush2.bf16.msra.mxu0 0
  %5289 = vmatprep.subr.bf16.mxu0 0
  %5290 = vmatpush2.bf16.msra.mxu0 0
  %5291 = vmatprep.subr.bf16.mxu0 0
  %5292 = vmatpush2.bf16.msra.mxu0 0
  %5293 = vmatprep.subr.bf16.mxu0 0
  %5294 = vmatpush2.bf16.msra.mxu0 0
  %5295 = vmatprep.subr.bf16.mxu0 0
  %5296 = vmatpush2.bf16.msra.mxu0 0
  %5297 = vmatprep.subr.bf16.mxu0 0
  %5298 = vmatpush2.bf16.msra.mxu0 0
  %5299 = vmatprep.subr.bf16.mxu0 0
  %5300 = vmatpush2.bf16.msra.mxu0 0
  %5301 = vmatprep.mubr.bf16.mxu0 0
  %5302 = vmatmul.mubr.bf16.gmra.mxu0 %v5227
  %v5303 = vpop.f32.mrf.mxu0
  %v5304 = vadd.f32 0.0, %v5303
  %v5305 = vpop.f32.mrf.mxu0
  %v5306 = vadd.f32 0.0, %v5305
  %v5307 = vpop.f32.mrf.mxu0
  %v5308 = vpop.f32.mrf.mxu0
  %5309 = vdwg.mxu0
  %v5310 = vadd.f32 %v5223, %v5263
  %v5311 = vadd.f32 %v5224, %v5265
  %v5312 = vadd.f32 %v5225, %v5304
  %v5313 = vadd.f32 %v5226, %v5306
  %v5314 = vmul.f32 %v5310, 0.5
  %v5315 = vtanh.pop %v5314
  %v5316 = vmul.f32 %v5315, 0.5
  %v5317 = vadd.f32 %v5316, 0.5
  %v5318 = vmul.f32 %v5311, 0.5
  %v5319 = vtanh.pop %v5318
  %v5320 = vmul.f32 %v5319, 0.5
  %v5321 = vadd.f32 %v5320, 0.5
  %v5322 = vtanh.pop %v5312
  %v5323 = vmul.f32 %v5313, 0.5
  %v5324 = vtanh.pop %v5323
  %v5325 = vmul.f32 %v5324, 0.5
  %v5326 = vadd.f32 %v5325, 0.5
  %v5327 = vmul.f32 %v5321, %v5217
  %v5328 = vmul.f32 %v5317, %v5322
  %v5329 = vadd.f32 %v5327, %v5328
  %v5330 = vtanh.pop %v5329
  %v5331 = vmul.f32 %v5326, %v5330
  %v5332 = vld [vmem:[%s1920] sm:$0xff]
  %v5333 = vld [vmem:[%s11] sm:$0xff]
  %v5334 = vld [vmem:[%s11 + $0x8] sm:$0xff]
  %v5335 = vld [vmem:[%s11 + $0x10] sm:$0xff]
  %v5336 = vld [vmem:[%s11 + $0x18] sm:$0xff]
  %v5337 = vld [vmem:[%s11 + $0x20] sm:$0xff]
  %v5338 = vld [vmem:[%s11 + $0x28] sm:$0xff]
  %v5339 = vld [vmem:[%s11 + $0x30] sm:$0xff]
  %v5340 = vld [vmem:[%s11 + $0x38] sm:$0xff]
  %v5341 = vld [vmem:[%s11 + $0x40] sm:$0xff]
  %v5342 = vld [vmem:[%s11 + $0x48] sm:$0xff]
  %v5343 = vld [vmem:[%s11 + $0x50] sm:$0xff]
  %v5344 = vld [vmem:[%s11 + $0x58] sm:$0xff]
  %v5345 = vld [vmem:[%s11 + $0x60] sm:$0xff]
  %v5346 = vld [vmem:[%s11 + $0x68] sm:$0xff]
  %v5347 = vld [vmem:[%s11 + $0x70] sm:$0xff]
  %v5348 = vld [vmem:[%s11 + $0x78] sm:$0xff]
  %v5349 = vld [vmem:[%s11 + $0x80] sm:$0xff]
  %v5350 = vld [vmem:[%s11 + $0x88] sm:$0xff]
  %v5351 = vld [vmem:[%s11 + $0x90] sm:$0xff]
  %v5352 = vld [vmem:[%s11 + $0x98] sm:$0xff]
  %v5353 = vld [vmem:[%s11 + $0xa0] sm:$0xff]
  %v5354 = vld [vmem:[%s11 + $0xa8] sm:$0xff]
  %v5355 = vld [vmem:[%s11 + $0xb0] sm:$0xff]
  %v5356 = vld [vmem:[%s11 + $0xb8] sm:$0xff]
  %v5357 = vld [vmem:[%s11 + $0xc0] sm:$0xff]
  %v5358 = vld [vmem:[%s11 + $0xc8] sm:$0xff]
  %v5359 = vld [vmem:[%s11 + $0xd0] sm:$0xff]
  %v5360 = vld [vmem:[%s11 + $0xd8] sm:$0xff]
  %v5361 = vld [vmem:[%s11 + $0xe0] sm:$0xff]
  %v5362 = vld [vmem:[%s11 + $0xe8] sm:$0xff]
  %v5363 = vld [vmem:[%s11 + $0xf0] sm:$0xff]
  %v5364 = vld [vmem:[%s11 + $0xf8] sm:$0xff]
  %v5365 = vld [vmem:[%s11 + $0x100] sm:$0xff]
  %v5366 = vld [vmem:[%s11 + $0x108] sm:$0xff]
  %v5367 = vld [vmem:[%s11 + $0x110] sm:$0xff]
  %v5368 = vld [vmem:[%s11 + $0x118] sm:$0xff]
  %v5369 = vld [vmem:[%s11 + $0x120] sm:$0xff]
  %v5370 = vld [vmem:[%s11 + $0x128] sm:$0xff]
  %v5371 = vld [vmem:[%s11 + $0x130] sm:$0xff]
  %v5372 = vld [vmem:[%s11 + $0x138] sm:$0xff]
  %v5373 = vld [vmem:[%s11 + $0x140] sm:$0xff]
  %v5374 = vld [vmem:[%s11 + $0x148] sm:$0xff]
  %v5375 = vld [vmem:[%s11 + $0x150] sm:$0xff]
  %v5376 = vld [vmem:[%s11 + $0x158] sm:$0xff]
  %v5377 = vld [vmem:[%s11 + $0x160] sm:$0xff]
  %v5378 = vld [vmem:[%s11 + $0x168] sm:$0xff]
  %v5379 = vld [vmem:[%s11 + $0x170] sm:$0xff]
  %v5380 = vld [vmem:[%s11 + $0x178] sm:$0xff]
  %v5381 = vld [vmem:[%s11 + $0x180] sm:$0xff]
  %v5382 = vld [vmem:[%s11 + $0x188] sm:$0xff]
  %v5383 = vld [vmem:[%s11 + $0x190] sm:$0xff]
  %v5384 = vld [vmem:[%s11 + $0x198] sm:$0xff]
  %v5385 = vld [vmem:[%s11 + $0x1a0] sm:$0xff]
  %v5386 = vld [vmem:[%s11 + $0x1a8] sm:$0xff]
  %v5387 = vld [vmem:[%s11 + $0x1b0] sm:$0xff]
  %v5388 = vld [vmem:[%s11 + $0x1b8] sm:$0xff]
  %v5389 = vld [vmem:[%s11 + $0x1c0] sm:$0xff]
  %v5390 = vld [vmem:[%s11 + $0x1c8] sm:$0xff]
  %v5391 = vld [vmem:[%s11 + $0x1d0] sm:$0xff]
  %v5392 = vld [vmem:[%s11 + $0x1d8] sm:$0xff]
  %v5393 = vld [vmem:[%s11 + $0x1e0] sm:$0xff]
  %v5394 = vld [vmem:[%s11 + $0x1e8] sm:$0xff]
  %v5395 = vld [vmem:[%s11 + $0x1f0] sm:$0xff]
  %v5396 = vld [vmem:[%s11 + $0x1f8] sm:$0xff]
  %v5397 = vld [vmem:[%s12] sm:$0xf]
  %v5399 = vlaneseq
  %v5400 = vshrl.u32 %v5399, 7
  %v5401 = vsub.s32 0, %v5400
  %v5402 = vrot.slane %v5397, %v5401
  %v5403 = vlaneseq
  %v5404 = vshrl.u32 %v5403, 7
  %v5405 = vsub.s32 1, %v5404
  %v5406 = vrot.slane %v5397, %v5405
  %v5407 = vlaneseq
  %v5408 = vshrl.u32 %v5407, 7
  %v5409 = vsub.s32 2, %v5408
  %v5410 = vrot.slane %v5397, %v5409
  %v5411 = vlaneseq
  %v5412 = vshrl.u32 %v5411, 7
  %v5413 = vsub.s32 3, %v5412
  %v5414 = vrot.slane %v5397, %v5413
  %v5420 = vunpack.c.l.b16 %v5332
  %v5421 = vunpack.c.h.b16 %v5332
  %v5422 = vpack.c.b16 %v5420, %v5420
  %v5423 = vpack.c.b16 %v5421, %v5421
  %v5490 = vunpack.c.l.b16 %v5333
  %v5491 = vunpack.c.h.b16 %v5333
  %v5492 = vunpack.c.l.b16 %v5334
  %v5493 = vunpack.c.h.b16 %v5334
  %v5494 = vunpack.c.l.b16 %v5335
  %v5495 = vunpack.c.h.b16 %v5335
  %v5496 = vunpack.c.l.b16 %v5336
  %v5497 = vunpack.c.h.b16 %v5336
  %v5498 = vunpack.c.l.b16 %v5337
  %v5499 = vunpack.c.h.b16 %v5337
  %v5500 = vunpack.c.l.b16 %v5338
  %v5501 = vunpack.c.h.b16 %v5338
  %v5502 = vunpack.c.l.b16 %v5339
  %v5503 = vunpack.c.h.b16 %v5339
  %v5504 = vunpack.c.l.b16 %v5340
  %v5505 = vunpack.c.h.b16 %v5340
  %v5506 = vunpack.c.l.b16 %v5341
  %v5507 = vunpack.c.h.b16 %v5341
  %v5508 = vunpack.c.l.b16 %v5342
  %v5509 = vunpack.c.h.b16 %v5342
  %v5510 = vunpack.c.l.b16 %v5343
  %v5511 = vunpack.c.h.b16 %v5343
  %v5512 = vunpack.c.l.b16 %v5344
  %v5513 = vunpack.c.h.b16 %v5344
  %v5514 = vunpack.c.l.b16 %v5345
  %v5515 = vunpack.c.h.b16 %v5345
  %v5516 = vunpack.c.l.b16 %v5346
  %v5517 = vunpack.c.h.b16 %v5346
  %v5518 = vunpack.c.l.b16 %v5347
  %v5519 = vunpack.c.h.b16 %v5347
  %v5520 = vunpack.c.l.b16 %v5348
  %v5521 = vunpack.c.h.b16 %v5348
  %v5522 = vunpack.c.l.b16 %v5349
  %v5523 = vunpack.c.h.b16 %v5349
  %v5524 = vunpack.c.l.b16 %v5350
  %v5525 = vunpack.c.h.b16 %v5350
  %v5526 = vunpack.c.l.b16 %v5351
  %v5527 = vunpack.c.h.b16 %v5351
  %v5528 = vunpack.c.l.b16 %v5352
  %v5529 = vunpack.c.h.b16 %v5352
  %v5530 = vunpack.c.l.b16 %v5353
  %v5531 = vunpack.c.h.b16 %v5353
  %v5532 = vunpack.c.l.b16 %v5354
  %v5533 = vunpack.c.h.b16 %v5354
  %v5534 = vunpack.c.l.b16 %v5355
  %v5535 = vunpack.c.h.b16 %v5355
  %v5536 = vunpack.c.l.b16 %v5356
  %v5537 = vunpack.c.h.b16 %v5356
  %v5538 = vunpack.c.l.b16 %v5357
  %v5539 = vunpack.c.h.b16 %v5357
  %v5540 = vunpack.c.l.b16 %v5358
  %v5541 = vunpack.c.h.b16 %v5358
  %v5542 = vunpack.c.l.b16 %v5359
  %v5543 = vunpack.c.h.b16 %v5359
  %v5544 = vunpack.c.l.b16 %v5360
  %v5545 = vunpack.c.h.b16 %v5360
  %v5546 = vunpack.c.l.b16 %v5361
  %v5547 = vunpack.c.h.b16 %v5361
  %v5548 = vunpack.c.l.b16 %v5362
  %v5549 = vunpack.c.h.b16 %v5362
  %v5550 = vunpack.c.l.b16 %v5363
  %v5551 = vunpack.c.h.b16 %v5363
  %v5552 = vunpack.c.l.b16 %v5364
  %v5553 = vunpack.c.h.b16 %v5364
  %v5554 = vunpack.c.l.b16 %v5365
  %v5555 = vunpack.c.h.b16 %v5365
  %v5556 = vunpack.c.l.b16 %v5366
  %v5557 = vunpack.c.h.b16 %v5366
  %v5558 = vunpack.c.l.b16 %v5367
  %v5559 = vunpack.c.h.b16 %v5367
  %v5560 = vunpack.c.l.b16 %v5368
  %v5561 = vunpack.c.h.b16 %v5368
  %v5562 = vunpack.c.l.b16 %v5369
  %v5563 = vunpack.c.h.b16 %v5369
  %v5564 = vunpack.c.l.b16 %v5370
  %v5565 = vunpack.c.h.b16 %v5370
  %v5566 = vunpack.c.l.b16 %v5371
  %v5567 = vunpack.c.h.b16 %v5371
  %v5568 = vunpack.c.l.b16 %v5372
  %v5569 = vunpack.c.h.b16 %v5372
  %v5570 = vunpack.c.l.b16 %v5373
  %v5571 = vunpack.c.h.b16 %v5373
  %v5572 = vunpack.c.l.b16 %v5374
  %v5573 = vunpack.c.h.b16 %v5374
  %v5574 = vunpack.c.l.b16 %v5375
  %v5575 = vunpack.c.h.b16 %v5375
  %v5576 = vunpack.c.l.b16 %v5376
  %v5577 = vunpack.c.h.b16 %v5376
  %v5578 = vunpack.c.l.b16 %v5377
  %v5579 = vunpack.c.h.b16 %v5377
  %v5580 = vunpack.c.l.b16 %v5378
  %v5581 = vunpack.c.h.b16 %v5378
  %v5582 = vunpack.c.l.b16 %v5379
  %v5583 = vunpack.c.h.b16 %v5379
  %v5584 = vunpack.c.l.b16 %v5380
  %v5585 = vunpack.c.h.b16 %v5380
  %v5586 = vunpack.c.l.b16 %v5381
  %v5587 = vunpack.c.h.b16 %v5381
  %v5588 = vunpack.c.l.b16 %v5382
  %v5589 = vunpack.c.h.b16 %v5382
  %v5590 = vunpack.c.l.b16 %v5383
  %v5591 = vunpack.c.h.b16 %v5383
  %v5592 = vunpack.c.l.b16 %v5384
  %v5593 = vunpack.c.h.b16 %v5384
  %v5594 = vunpack.c.l.b16 %v5385
  %v5595 = vunpack.c.h.b16 %v5385
  %v5596 = vunpack.c.l.b16 %v5386
  %v5597 = vunpack.c.h.b16 %v5386
  %v5598 = vunpack.c.l.b16 %v5387
  %v5599 = vunpack.c.h.b16 %v5387
  %v5600 = vunpack.c.l.b16 %v5388
  %v5601 = vunpack.c.h.b16 %v5388
  %v5602 = vunpack.c.l.b16 %v5389
  %v5603 = vunpack.c.h.b16 %v5389
  %v5604 = vunpack.c.l.b16 %v5390
  %v5605 = vunpack.c.h.b16 %v5390
  %v5606 = vunpack.c.l.b16 %v5391
  %v5607 = vunpack.c.h.b16 %v5391
  %v5608 = vunpack.c.l.b16 %v5392
  %v5609 = vunpack.c.h.b16 %v5392
  %v5610 = vunpack.c.l.b16 %v5393
  %v5611 = vunpack.c.h.b16 %v5393
  %v5612 = vunpack.c.l.b16 %v5394
  %v5613 = vunpack.c.h.b16 %v5394
  %v5614 = vunpack.c.l.b16 %v5395
  %v5615 = vunpack.c.h.b16 %v5395
  %v5616 = vunpack.c.l.b16 %v5396
  %v5617 = vunpack.c.h.b16 %v5396
  %v5618 = vpack.c.b16 %v5494, %v5490
  %v5619 = vpack.c.b16 %v5495, %v5491
  %v5620 = vpack.c.b16 %v5496, %v5492
  %v5621 = vpack.c.b16 %v5497, %v5493
  %v5622 = vpack.c.b16 %v5502, %v5498
  %v5623 = vpack.c.b16 %v5503, %v5499
  %v5624 = vpack.c.b16 %v5504, %v5500
  %v5625 = vpack.c.b16 %v5505, %v5501
  %v5626 = vpack.c.b16 %v5510, %v5506
  %v5627 = vpack.c.b16 %v5511, %v5507
  %v5628 = vpack.c.b16 %v5512, %v5508
  %v5629 = vpack.c.b16 %v5513, %v5509
  %v5630 = vpack.c.b16 %v5518, %v5514
  %v5631 = vpack.c.b16 %v5519, %v5515
  %v5632 = vpack.c.b16 %v5520, %v5516
  %v5633 = vpack.c.b16 %v5521, %v5517
  %v5634 = vpack.c.b16 %v5526, %v5522
  %v5635 = vpack.c.b16 %v5527, %v5523
  %v5636 = vpack.c.b16 %v5528, %v5524
  %v5637 = vpack.c.b16 %v5529, %v5525
  %v5638 = vpack.c.b16 %v5534, %v5530
  %v5639 = vpack.c.b16 %v5535, %v5531
  %v5640 = vpack.c.b16 %v5536, %v5532
  %v5641 = vpack.c.b16 %v5537, %v5533
  %v5642 = vpack.c.b16 %v5542, %v5538
  %v5643 = vpack.c.b16 %v5543, %v5539
  %v5644 = vpack.c.b16 %v5544, %v5540
  %v5645 = vpack.c.b16 %v5545, %v5541
  %v5646 = vpack.c.b16 %v5550, %v5546
  %v5647 = vpack.c.b16 %v5551, %v5547
  %v5648 = vpack.c.b16 %v5552, %v5548
  %v5649 = vpack.c.b16 %v5553, %v5549
  %v5650 = vpack.c.b16 %v5558, %v5554
  %v5651 = vpack.c.b16 %v5559, %v5555
  %v5652 = vpack.c.b16 %v5560, %v5556
  %v5653 = vpack.c.b16 %v5561, %v5557
  %v5654 = vpack.c.b16 %v5566, %v5562
  %v5655 = vpack.c.b16 %v5567, %v5563
  %v5656 = vpack.c.b16 %v5568, %v5564
  %v5657 = vpack.c.b16 %v5569, %v5565
  %v5658 = vpack.c.b16 %v5574, %v5570
  %v5659 = vpack.c.b16 %v5575, %v5571
  %v5660 = vpack.c.b16 %v5576, %v5572
  %v5661 = vpack.c.b16 %v5577, %v5573
  %v5662 = vpack.c.b16 %v5582, %v5578
  %v5663 = vpack.c.b16 %v5583, %v5579
  %v5664 = vpack.c.b16 %v5584, %v5580
  %v5665 = vpack.c.b16 %v5585, %v5581
  %v5666 = vpack.c.b16 %v5590, %v5586
  %v5667 = vpack.c.b16 %v5591, %v5587
  %v5668 = vpack.c.b16 %v5592, %v5588
  %v5669 = vpack.c.b16 %v5593, %v5589
  %v5670 = vpack.c.b16 %v5598, %v5594
  %v5671 = vpack.c.b16 %v5599, %v5595
  %v5672 = vpack.c.b16 %v5600, %v5596
  %v5673 = vpack.c.b16 %v5601, %v5597
  %v5674 = vpack.c.b16 %v5606, %v5602
  %v5675 = vpack.c.b16 %v5607, %v5603
  %v5676 = vpack.c.b16 %v5608, %v5604
  %v5677 = vpack.c.b16 %v5609, %v5605
  %v5678 = vpack.c.b16 %v5614, %v5610
  %v5679 = vpack.c.b16 %v5615, %v5611
  %v5680 = vpack.c.b16 %v5616, %v5612
  %v5681 = vpack.c.b16 %v5617, %v5613
  %5746 = vmatprep.subr.bf16.mxu0 %v5647
  %5747 = vmatpush1.bf16.msra.mxu0 %v5646
  %5748 = vmatprep.subr.bf16.mxu0 %v5643
  %5749 = vmatpush1.bf16.msra.mxu0 %v5642
  %5750 = vmatprep.subr.bf16.mxu0 %v5639
  %5751 = vmatpush1.bf16.msra.mxu0 %v5638
  %5752 = vmatprep.subr.bf16.mxu0 %v5635
  %5753 = vmatpush1.bf16.msra.mxu0 %v5634
  %5754 = vmatprep.subr.bf16.mxu0 %v5631
  %5755 = vmatpush1.bf16.msra.mxu0 %v5630
  %5756 = vmatprep.subr.bf16.mxu0 %v5627
  %5757 = vmatpush1.bf16.msra.mxu0 %v5626
  %5758 = vmatprep.subr.bf16.mxu0 %v5623
  %5759 = vmatpush1.bf16.msra.mxu0 %v5622
  %5760 = vmatprep.subr.bf16.mxu0 %v5619
  %5761 = vmatpush1.bf16.msra.mxu0 %v5618
  %5762 = vmatprep.subr.bf16.mxu0 %v5679
  %5763 = vmatpush2.bf16.msra.mxu0 %v5678
  %5764 = vmatprep.subr.bf16.mxu0 %v5675
  %5765 = vmatpush2.bf16.msra.mxu0 %v5674
  %5766 = vmatprep.subr.bf16.mxu0 %v5671
  %5767 = vmatpush2.bf16.msra.mxu0 %v5670
  %5768 = vmatprep.subr.bf16.mxu0 %v5667
  %5769 = vmatpush2.bf16.msra.mxu0 %v5666
  %5770 = vmatprep.subr.bf16.mxu0 %v5663
  %5771 = vmatpush2.bf16.msra.mxu0 %v5662
  %5772 = vmatprep.subr.bf16.mxu0 %v5659
  %5773 = vmatpush2.bf16.msra.mxu0 %v5658
  %5774 = vmatprep.subr.bf16.mxu0 %v5655
  %5775 = vmatpush2.bf16.msra.mxu0 %v5654
  %5776 = vmatprep.subr.bf16.mxu0 %v5651
  %5777 = vmatpush2.bf16.msra.mxu0 %v5650
  %5778 = vmatprep.mubr.bf16.mxu0 %v5423
  %5779 = vmatmul.mubr.bf16.gmra.mxu0 %v5422
  %v5780 = vpop.f32.mrf.mxu0
  %v5781 = vadd.f32 %v5402, %v5780
  %v5782 = vpop.f32.mrf.mxu0
  %v5783 = vadd.f32 %v5406, %v5782
  %v5784 = vpop.f32.mrf.mxu0
  %v5785 = vpop.f32.mrf.mxu0
  %5786 = vdwg.mxu0
  %5787 = vmatprep.subr.bf16.mxu0 %v5649
  %5788 = vmatpush1.bf16.msra.mxu0 %v5648
  %5789 = vmatprep.subr.bf16.mxu0 %v5645
  %5790 = vmatpush1.bf16.msra.mxu0 %v5644
  %5791 = vmatprep.subr.bf16.mxu0 %v5641
  %5792 = vmatpush1.bf16.msra.mxu0 %v5640
  %5793 = vmatprep.subr.bf16.mxu0 %v5637
  %5794 = vmatpush1.bf16.msra.mxu0 %v5636
  %5795 = vmatprep.subr.bf16.mxu0 %v5633
  %5796 = vmatpush1.bf16.msra.mxu0 %v5632
  %5797 = vmatprep.subr.bf16.mxu0 %v5629
  %5798 = vmatpush1.bf16.msra.mxu0 %v5628
  %5799 = vmatprep.subr.bf16.mxu0 %v5625
  %5800 = vmatpush1.bf16.msra.mxu0 %v5624
  %5801 = vmatprep.subr.bf16.mxu0 %v5621
  %5802 = vmatpush1.bf16.msra.mxu0 %v5620
  %5803 = vmatprep.subr.bf16.mxu0 %v5681
  %5804 = vmatpush2.bf16.msra.mxu0 %v5680
  %5805 = vmatprep.subr.bf16.mxu0 %v5677
  %5806 = vmatpush2.bf16.msra.mxu0 %v5676
  %5807 = vmatprep.subr.bf16.mxu0 %v5673
  %5808 = vmatpush2.bf16.msra.mxu0 %v5672
  %5809 = vmatprep.subr.bf16.mxu0 %v5669
  %5810 = vmatpush2.bf16.msra.mxu0 %v5668
  %5811 = vmatprep.subr.bf16.mxu0 %v5665
  %5812 = vmatpush2.bf16.msra.mxu0 %v5664
  %5813 = vmatprep.subr.bf16.mxu0 %v5661
  %5814 = vmatpush2.bf16.msra.mxu0 %v5660
  %5815 = vmatprep.subr.bf16.mxu0 %v5657
  %5816 = vmatpush2.bf16.msra.mxu0 %v5656
  %5817 = vmatprep.subr.bf16.mxu0 %v5653
  %5818 = vmatpush2.bf16.msra.mxu0 %v5652
  %5819 = vmatprep.mubr.bf16.mxu0 %v5423
  %5820 = vmatmul.mubr.bf16.gmra.mxu0 %v5422
  %v5821 = vpop.f32.mrf.mxu0
  %v5822 = vadd.f32 %v5410, %v5821
  %v5823 = vpop.f32.mrf.mxu0
  %v5824 = vadd.f32 %v5414, %v5823
  %v5825 = vpop.f32.mrf.mxu0
  %v5826 = vpop.f32.mrf.mxu0
  %5827 = vdwg.mxu0
  %v5828 = vmul.f32 %v5781, 0.5
  %v5829 = vtanh.pop %v5828
  %v5830 = vmul.f32 %v5829, 0.5
  %v5831 = vadd.f32 %v5830, 0.5
  %v5832 = vmul.f32 %v5783, 0.5
  %v5833 = vtanh.pop %v5832
  %v5834 = vmul.f32 %v5833, 0.5
  %v5835 = vadd.f32 %v5834, 0.5
  %v5836 = vtanh.pop %v5822
  %v5837 = vmul.f32 %v5824, 0.5
  %v5838 = vtanh.pop %v5837
  %v5839 = vmul.f32 %v5838, 0.5
  %v5840 = vadd.f32 %v5839, 0.5
  %v5841 = vmul.f32 %v5835, 0.0
  %v5842 = vmul.f32 %v5831, %v5836
  %v5843 = vadd.f32 %v5841, %v5842
  %v5844 = vtanh.pop %v5843
  %v5845 = vmul.f32 %v5840, %v5844
  %v5846 = vld [vmem:[%s14] sm:$0xf]
  %v5847 = vld [vmem:[%s14 + $0x4] sm:$0xf]
  %v5848 = vld [vmem:[%s14 + $0x8] sm:$0xf]
  %v5849 = vld [vmem:[%s14 + $0xc] sm:$0xf]
  %v5850 = vld [vmem:[%s14 + $0x10] sm:$0xf]
  %v5851 = vld [vmem:[%s14 + $0x14] sm:$0xf]
  %v5852 = vld [vmem:[%s14 + $0x18] sm:$0xf]
  %v5853 = vld [vmem:[%s14 + $0x1c] sm:$0xf]
  %v5854 = vld [vmem:[%s14 + $0x20] sm:$0xf]
  %v5855 = vld [vmem:[%s14 + $0x24] sm:$0xf]
  %v5856 = vld [vmem:[%s14 + $0x28] sm:$0xf]
  %v5857 = vld [vmem:[%s14 + $0x2c] sm:$0xf]
  %v5858 = vld [vmem:[%s14 + $0x30] sm:$0xf]
  %v5859 = vld [vmem:[%s14 + $0x34] sm:$0xf]
  %v5860 = vld [vmem:[%s14 + $0x38] sm:$0xf]
  %v5861 = vld [vmem:[%s14 + $0x3c] sm:$0xf]
  %v5862 = vpack.c.bf16 %v5331, %v5331
  %v5863 = vld [vmem:[%s15] sm:$0xf]
  %v5864 = vld [vmem:[%s15 + $0x4] sm:$0xf]
  %v5865 = vld [vmem:[%s15 + $0x8] sm:$0xf]
  %v5866 = vld [vmem:[%s15 + $0xc] sm:$0xf]
  %v5867 = vld [vmem:[%s15 + $0x10] sm:$0xf]
  %v5868 = vld [vmem:[%s15 + $0x14] sm:$0xf]
  %v5869 = vld [vmem:[%s15 + $0x18] sm:$0xf]
  %v5870 = vld [vmem:[%s15 + $0x1c] sm:$0xf]
  %v5871 = vld [vmem:[%s15 + $0x20] sm:$0xf]
  %v5872 = vld [vmem:[%s15 + $0x24] sm:$0xf]
  %v5873 = vld [vmem:[%s15 + $0x28] sm:$0xf]
  %v5874 = vld [vmem:[%s15 + $0x2c] sm:$0xf]
  %v5875 = vld [vmem:[%s15 + $0x30] sm:$0xf]
  %v5876 = vld [vmem:[%s15 + $0x34] sm:$0xf]
  %v5877 = vld [vmem:[%s15 + $0x38] sm:$0xf]
  %v5878 = vld [vmem:[%s15 + $0x3c] sm:$0xf]
  %v5879 = vpack.c.bf16 %v5845, %v5845
  %v5896 = vunpack.c.l.b16 %v5863
  %v5897 = vunpack.c.l.b16 %v5864
  %v5898 = vunpack.c.l.b16 %v5865
  %v5899 = vunpack.c.l.b16 %v5866
  %v5900 = vunpack.c.l.b16 %v5867
  %v5901 = vunpack.c.l.b16 %v5868
  %v5902 = vunpack.c.l.b16 %v5869
  %v5903 = vunpack.c.l.b16 %v5870
  %v5904 = vunpack.c.l.b16 %v5871
  %v5905 = vunpack.c.l.b16 %v5872
  %v5906 = vunpack.c.l.b16 %v5873
  %v5907 = vunpack.c.l.b16 %v5874
  %v5908 = vunpack.c.l.b16 %v5875
  %v5909 = vunpack.c.l.b16 %v5876
  %v5910 = vunpack.c.l.b16 %v5877
  %v5911 = vunpack.c.l.b16 %v5878
  %v5912 = vpack.c.b16 %v5897, %v5896
  %v5913 = vpack.c.b16 %v5899, %v5898
  %v5914 = vpack.c.b16 %v5901, %v5900
  %v5915 = vpack.c.b16 %v5903, %v5902
  %v5916 = vpack.c.b16 %v5905, %v5904
  %v5917 = vpack.c.b16 %v5907, %v5906
  %v5918 = vpack.c.b16 %v5909, %v5908
  %v5919 = vpack.c.b16 %v5911, %v5910
  %5928 = vmatprep.subr.bf16.mxu0 0
  %5929 = vmatpush1.bf16.msra.mxu0 %v5919
  %5930 = vmatprep.subr.bf16.mxu0 0
  %5931 = vmatpush1.bf16.msra.mxu0 %v5918
  %5932 = vmatprep.subr.bf16.mxu0 0
  %5933 = vmatpush1.bf16.msra.mxu0 %v5917
  %5934 = vmatprep.subr.bf16.mxu0 0
  %5935 = vmatpush1.bf16.msra.mxu0 %v5916
  %5936 = vmatprep.subr.bf16.mxu0 0
  %5937 = vmatpush1.bf16.msra.mxu0 %v5915
  %5938 = vmatprep.subr.bf16.mxu0 0
  %5939 = vmatpush1.bf16.msra.mxu0 %v5914
  %5940 = vmatprep.subr.bf16.mxu0 0
  %5941 = vmatpush1.bf16.msra.mxu0 %v5913
  %5942 = vmatprep.subr.bf16.mxu0 0
  %5943 = vmatpush1.bf16.msra.mxu0 %v5912
  %5944 = vmatprep.subr.bf16.mxu0 0
  %5945 = vmatpush2.bf16.msra.mxu0 0
  %5946 = vmatprep.subr.bf16.mxu0 0
  %5947 = vmatpush2.bf16.msra.mxu0 0
  %5948 = vmatprep.subr.bf16.mxu0 0
  %5949 = vmatpush2.bf16.msra.mxu0 0
  %5950 = vmatprep.subr.bf16.mxu0 0
  %5951 = vmatpush2.bf16.msra.mxu0 0
  %5952 = vmatprep.subr.bf16.mxu0 0
  %5953 = vmatpush2.bf16.msra.mxu0 0
  %5954 = vmatprep.subr.bf16.mxu0 0
  %5955 = vmatpush2.bf16.msra.mxu0 0
  %5956 = vmatprep.subr.bf16.mxu0 0
  %5957 = vmatpush2.bf16.msra.mxu0 0
  %5958 = vmatprep.subr.bf16.mxu0 0
  %5959 = vmatpush2.bf16.msra.mxu0 0
  %5960 = vmatprep.mubr.bf16.mxu0 0
  %5961 = vmatmul.mubr.bf16.gmra.mxu0 %v5879
  %v5962 = vpop.f32.mrf.mxu0
  %v5963 = vadd.f32 0.0, %v5962
  %v5964 = vpop.f32.mrf.mxu0
  %v5965 = vpop.f32.mrf.mxu0
  %v5966 = vpop.f32.mrf.mxu0
  %5967 = vdwg.mxu0
  %v5984 = vunpack.c.l.b16 %v5846
  %v5985 = vunpack.c.l.b16 %v5847
  %v5986 = vunpack.c.l.b16 %v5848
  %v5987 = vunpack.c.l.b16 %v5849
  %v5988 = vunpack.c.l.b16 %v5850
  %v5989 = vunpack.c.l.b16 %v5851
  %v5990 = vunpack.c.l.b16 %v5852
  %v5991 = vunpack.c.l.b16 %v5853
  %v5992 = vunpack.c.l.b16 %v5854
  %v5993 = vunpack.c.l.b16 %v5855
  %v5994 = vunpack.c.l.b16 %v5856
  %v5995 = vunpack.c.l.b16 %v5857
  %v5996 = vunpack.c.l.b16 %v5858
  %v5997 = vunpack.c.l.b16 %v5859
  %v5998 = vunpack.c.l.b16 %v5860
  %v5999 = vunpack.c.l.b16 %v5861
  %v6000 = vpack.c.b16 %v5985, %v5984
  %v6001 = vpack.c.b16 %v5987, %v5986
  %v6002 = vpack.c.b16 %v5989, %v5988
  %v6003 = vpack.c.b16 %v5991, %v5990
  %v6004 = vpack.c.b16 %v5993, %v5992
  %v6005 = vpack.c.b16 %v5995, %v5994
  %v6006 = vpack.c.b16 %v5997, %v5996
  %v6007 = vpack.c.b16 %v5999, %v5998
  %6016 = vmatprep.subr.bf16.mxu0 0
  %6017 = vmatpush1.bf16.msra.mxu0 %v6007
  %6018 = vmatprep.subr.bf16.mxu0 0
  %6019 = vmatpush1.bf16.msra.mxu0 %v6006
  %6020 = vmatprep.subr.bf16.mxu0 0
  %6021 = vmatpush1.bf16.msra.mxu0 %v6005
  %6022 = vmatprep.subr.bf16.mxu0 0
  %6023 = vmatpush1.bf16.msra.mxu0 %v6004
  %6024 = vmatprep.subr.bf16.mxu0 0
  %6025 = vmatpush1.bf16.msra.mxu0 %v6003
  %6026 = vmatprep.subr.bf16.mxu0 0
  %6027 = vmatpush1.bf16.msra.mxu0 %v6002
  %6028 = vmatprep.subr.bf16.mxu0 0
  %6029 = vmatpush1.bf16.msra.mxu0 %v6001
  %6030 = vmatprep.subr.bf16.mxu0 0
  %6031 = vmatpush1.bf16.msra.mxu0 %v6000
  %6032 = vmatprep.subr.bf16.mxu0 0
  %6033 = vmatpush2.bf16.msra.mxu0 0
  %6034 = vmatprep.subr.bf16.mxu0 0
  %6035 = vmatpush2.bf16.msra.mxu0 0
  %6036 = vmatprep.subr.bf16.mxu0 0
  %6037 = vmatpush2.bf16.msra.mxu0 0
  %6038 = vmatprep.subr.bf16.mxu0 0
  %6039 = vmatpush2.bf16.msra.mxu0 0
  %6040 = vmatprep.subr.bf16.mxu0 0
  %6041 = vmatpush2.bf16.msra.mxu0 0
  %6042 = vmatprep.subr.bf16.mxu0 0
  %6043 = vmatpush2.bf16.msra.mxu0 0
  %6044 = vmatprep.subr.bf16.mxu0 0
  %6045 = vmatpush2.bf16.msra.mxu0 0
  %6046 = vmatprep.subr.bf16.mxu0 0
  %6047 = vmatpush2.bf16.msra.mxu0 0
  %6048 = vmatprep.mubr.bf16.mxu0 0
  %6049 = vmatmul.mubr.bf16.gmra.mxu0 %v5862
  %v6050 = vpop.f32.mrf.mxu0
  %v6051 = vadd.f32 %v5963, %v6050
  %v6052 = vpop.f32.mrf.mxu0
  %v6053 = vpop.f32.mrf.mxu0
  %v6054 = vpop.f32.mrf.mxu0
  %6055 = vdwg.mxu0
  %v6056 = vld [vmem:[%s16] sm:$0x1]
  %v6058 = vlaneseq
  %v6059 = vshrl.u32 %v6058, 7
  %v6060 = vsub.s32 0, %v6059
  %v6061 = vrot.slane %v6056, %v6060
  %v6063 = vadd.f32 %v6051, %v6061
  %6064 = vst [vmem:[%s17] sm:$0xff] %v6063
  // Predicated region
  $region70: #{rnn_forward.1} parent=0 // pred_check
    _
  $region71: #{rnn_forward.1} parent=0 // pred_check_branch
    %6066 = sbr.rel (0) target = $region73
  $region72: #{rnn_forward.1} parent=0 // pred_region
    _
  $region73: #{rnn_forward.1} parent=0 // pred_fallthru
    _
  // Predicated region
  $region74: #{rnn_forward.1} parent=0 // pred_check
    _
  $region75: #{rnn_forward.1} parent=0 // pred_check_branch
    %6068 = sbr.rel (0) target = $region77
  $region76: #{rnn_forward.1} parent=0 // pred_region
    _
  $region77: #{rnn_forward.1} parent=0 // pred_fallthru
    _

</llo_original>
